<compile_context>
chip_gen: v7x
topology: tpu7x:2x2x1
jax: 0.10.0
libtpu: 0.0.40
codegen_flags: <defaults>
</compile_context>

<pallas_src>
import functools

import jax
import jax.numpy as jnp
from jax.experimental import pallas as pl
from jax.experimental.pallas import tpu as pltpu


_VMEM = pl.BlockSpec(memory_space=pltpu.MemorySpace.VMEM)


def _round_up(x, m):
    return ((x + m - 1) // m) * m


# ----------------------------------------------------------------------------
# Pallas kernels
# ----------------------------------------------------------------------------

def _conv_pool_kernel(p0_ref, p1_ref, p2_ref, p3_ref, w_ref, b_ref, o_ref):
    """Fused: 4x (im2col GEMM + bias + ReLU) -> elementwise max (2x2 pool)."""
    w = w_ref[...]
    b = b_ref[...]

    def branch(p_ref):
        acc = jnp.dot(p_ref[...], w, preferred_element_type=jnp.float32)
        return jnp.maximum(acc + b, 0.0)

    r = jnp.maximum(jnp.maximum(branch(p0_ref), branch(p1_ref)),
                    jnp.maximum(branch(p2_ref), branch(p3_ref)))
    o_ref[...] = r.astype(o_ref.dtype)


def _head_kernel(x_ref, m_ref,
                 cfc_w, cfc_b, f1_w, f1_b, f2_w, f2_b,
                 c1_wx, c1_wy, c1_b, c2_w, c2_b, c3_w, c3_b, o_ref):
    """Fused cnn_fc + fcc branch + (lane-aligned) concat + combined head."""
    f32 = jnp.float32
    # cnn_fc (no ReLU in the reference)
    xo = jnp.dot(x_ref[...].astype(f32), cfc_w[...],
                 preferred_element_type=f32) + cfc_b[...]          # (B, 128)
    # fcc branch: Linear -> ReLU -> Linear
    y = jnp.maximum(jnp.dot(m_ref[...], f1_w[...],
                            preferred_element_type=f32) + f1_b[...], 0.0)
    yo = jnp.dot(y, f2_w[...], preferred_element_type=f32) + f2_b[...]  # (B, 128)
    # concat([x, y]) @ comb1_w  ==  xo @ Wx + yo @ Wy   (Wx/Wy row-padded)
    h = jnp.maximum(jnp.dot(xo, c1_wx[...], preferred_element_type=f32)
                    + jnp.dot(yo, c1_wy[...], preferred_element_type=f32)
                    + c1_b[...], 0.0)
    h = jnp.maximum(jnp.dot(h, c2_w[...], preferred_element_type=f32)
                    + c2_b[...], 0.0)
    o_ref[...] = (jnp.dot(h, c3_w[...], preferred_element_type=f32)
                  + c3_b[...]).astype(o_ref.dtype)


# ----------------------------------------------------------------------------
# Kernel wrappers
# ----------------------------------------------------------------------------

def conv_pool_gemm(p0, p1, p2, p3, w, b, *, tm=256, out_dtype=jnp.bfloat16):
    """Four patch matrices (M, K) x weight (K, N) -> pooled activation (M, N)."""
    M, K = p0.shape
    N = w.shape[1]
    nblk = max(1, pl.cdiv(M, tm))
    if nblk == 1:
        tm_eff, Mp = M, M          # single block: block == full array (no pad copy)
    else:
        tm_eff, Mp = tm, nblk * tm

    def pad_rows(p):
        return p if Mp == M else jnp.pad(p, ((0, Mp - M), (0, 0)))

    ps = [pad_rows(p) for p in (p0, p1, p2, p3)]
    out = pl.pallas_call(
        _conv_pool_kernel,
        out_shape=jax.ShapeDtypeStruct((Mp, N), out_dtype),
        grid=(nblk,),
        in_specs=[pl.BlockSpec((tm_eff, K), lambda i: (i, 0))] * 4
                 + [pl.BlockSpec((K, N), lambda i: (0, 0)),     # weights resident
                    pl.BlockSpec((1, N), lambda i: (0, 0))],
        out_specs=pl.BlockSpec((tm_eff, N), lambda i: (i, 0)),
        compiler_params=pltpu.CompilerParams(
            dimension_semantics=("parallel",)),
    )(*ps, w, b)
    return out if Mp == M else out[:M]


def conv_bn_relu_pool(x, w_mat, b_row):
    """x: (B, H, W, C) NHWC bf16 -> (B, H//2, W//2, C_out) NHWC bf16.
    3x3 conv (pad=1) with BN folded into (w_mat, b_row), ReLU, 2x2 max-pool,
    all fused into a single Pallas kernel."""
    B, H, W, C = x.shape
    Ho, Wo = H // 2, W // 2
    Kp, Co = w_mat.shape
    xp = jnp.pad(x, ((0, 0), (1, 1), (1, 1), (0, 0)))
    taps = [xp[:, kh:kh + H, kw:kw + W, :] for kh in range(3) for kw in range(3)]
    patches = jnp.concatenate(taps, axis=-1)                    # (B,H,W,9*C), (kh,kw,c)
    if Kp > 9 * C:
        patches = jnp.pad(patches, ((0, 0), (0, 0), (0, 0), (0, Kp - 9 * C)))
    # One patch matrix per 2x2 pool-window position, rows ordered (b, ho, wo).
    ps = [patches[:, dy::2, dx::2, :].reshape(B * Ho * Wo, Kp)
          for dy in (0, 1) for dx in (0, 1)]
    out = conv_pool_gemm(ps[0], ps[1], ps[2], ps[3], w_mat, b_row)
    return out.reshape(B, Ho, Wo, Co)


def head_forward(prep, x_flat, mfcc):
    B = x_flat.shape[0]
    Np = prep["comb3_w"].shape[1]
    return pl.pallas_call(
        _head_kernel,
        out_shape=jax.ShapeDtypeStruct((B, Np), jnp.float32),
        in_specs=[_VMEM] * 15,
        out_specs=_VMEM,
    )(x_flat, mfcc.astype(jnp.float32),
      prep["cnn_fc_w"], prep["cnn_fc_b"],
      prep["fcc1_w"], prep["fcc1_b"],
      prep["fcc2_w"], prep["fcc2_b"],
      prep["comb1_wx"], prep["comb1_wy"], prep["comb1_b"],
      prep["comb2_w"], prep["comb2_b"],
      prep["comb3_w"], prep["comb3_b"])


# ----------------------------------------------------------------------------
# Parameter init (deterministic, PyTorch-shaped) and one-time preparation
# ----------------------------------------------------------------------------

def init_params(key, input_shape, classes_, num_numerical_features):
    C_in, H, W = input_shape
    conv_channels = [C_in, 64, 128, 256, 256]
    params = {}
    keys = jax.random.split(key, 32)
    ki = 0

    def nxt():
        nonlocal ki
        k = keys[ki]
        ki += 1
        return k

    for i in range(4):
        cin, cout = conv_channels[i], conv_channels[i + 1]
        params[f"conv{i}_w"] = 0.05 * jax.random.normal(nxt(), (cout, cin, 3, 3), jnp.float32)
        params[f"conv{i}_b"] = 0.05 * jax.random.normal(nxt(), (cout,), jnp.float32)
        params[f"bn{i}_gamma"] = 1.0 + 0.1 * jax.random.normal(nxt(), (cout,), jnp.float32)
        params[f"bn{i}_beta"] = 0.1 * jax.random.normal(nxt(), (cout,), jnp.float32)
        params[f"bn{i}_mean"] = 0.1 * jax.random.normal(nxt(), (cout,), jnp.float32)
        params[f"bn{i}_var"] = 1.0 + 0.1 * jax.random.uniform(nxt(), (cout,), jnp.float32)

    flat_h, flat_w = H // 16, W // 16          # four 2x2 max pools
    flattened = 256 * flat_h * flat_w

    def linear_init(k, fan_in, fan_out):
        k1, k2 = jax.random.split(k)
        w = 0.05 * jax.random.normal(k1, (fan_in, fan_out), jnp.float32)
        b = 0.05 * jax.random.normal(k2, (fan_out,), jnp.float32)
        return w, b

    params["cnn_fc_w"], params["cnn_fc_b"] = linear_init(nxt(), flattened, 100)
    params["fcc1_w"], params["fcc1_b"] = linear_init(nxt(), num_numerical_features, 256)
    params["fcc2_w"], params["fcc2_b"] = linear_init(nxt(), 256, 100)
    params["comb1_w"], params["comb1_b"] = linear_init(nxt(), 200, 256)
    params["comb2_w"], params["comb2_b"] = linear_init(nxt(), 256, 128)
    params["comb3_w"], params["comb3_b"] = linear_init(nxt(), 128, classes_)
    return params


def prepare_params(params, input_shape, eps=1e-5):
    """One-time: fold BN into conv weights, reorder for NHWC im2col, pad all
    non-128-multiple lane dims, cast conv weights to bf16."""
    C_img, H, W = input_shape
    conv_channels = [C_img, 64, 128, 256, 256]
    prep = {}
    cin_pad = C_img                      # channels carried by the activation
    for i in range(4):
        cin, cout = conv_channels[i], conv_channels[i + 1]
        cout_pad = _round_up(cout, 128)
        scale = params[f"bn{i}_gamma"] / jnp.sqrt(params[f"bn{i}_var"] + eps)
        w_fold = params[f"conv{i}_w"] * scale[:, None, None, None]   # (co,ci,3,3)
        b_fold = (params[f"conv{i}_b"] - params[f"bn{i}_mean"]) * scale \
            + params[f"bn{i}_beta"]
        w = jnp.transpose(w_fold, (2, 3, 1, 0))                      # (3,3,ci,co)
        w = jnp.pad(w, ((0, 0), (0, 0),
                        (0, cin_pad - cin), (0, cout_pad - cout)))
        K = 9 * cin_pad
        Kpad = _round_up(K, 128)
        w = jnp.pad(w.reshape(K, cout_pad), ((0, Kpad - K), (0, 0)))
        prep[f"conv{i}_w"] = w.astype(jnp.bfloat16)
        prep[f"conv{i}_b"] = jnp.pad(b_fold, (0, cout_pad - cout)) \
            .reshape(1, cout_pad).astype(jnp.float32)
        cin_pad = cout_pad

    # cnn_fc: permute rows from PyTorch's NCHW-flatten order (c,h,w) to our
    # NHWC-flatten order (h,w,c), pad channel axis & output lanes.
    Hf, Wf = H // 16, W // 16
    c_last = conv_channels[-1]
    wfc = params["cnn_fc_w"].reshape(c_last, Hf, Wf, -1)
    n_fc = wfc.shape[-1]                                             # 100
    wfc = jnp.pad(wfc, ((0, cin_pad - c_last), (0, 0), (0, 0), (0, 0)))
    wfc = jnp.transpose(wfc, (1, 2, 0, 3)).reshape(Hf * Wf * cin_pad, n_fc)
    n_fc_pad = _round_up(n_fc, 128)
    prep["cnn_fc_w"] = jnp.pad(wfc, ((0, 0), (0, n_fc_pad - n_fc)))
    prep["cnn_fc_b"] = jnp.pad(params["cnn_fc_b"], (0, n_fc_pad - n_fc)) \
        .reshape(1, n_fc_pad)

    prep["fcc1_w"] = params["fcc1_w"]
    prep["fcc1_b"] = params["fcc1_b"].reshape(1, -1)
    n2 = params["fcc2_w"].shape[1]                                   # 100
    n2_pad = _round_up(n2, 128)
    prep["fcc2_w"] = jnp.pad(params["fcc2_w"], ((0, 0), (0, n2_pad - n2)))
    prep["fcc2_b"] = jnp.pad(params["fcc2_b"], (0, n2_pad - n2)).reshape(1, n2_pad)

    # comb1 consumes concat([x(100), y(100)]); split into two lane-aligned
    # 128-row halves matching the zero-padded xo / yo slabs.
    w1 = params["comb1_w"]                                           # (200, 256)
    prep["comb1_wx"] = jnp.pad(w1[:n_fc], ((0, n_fc_pad - n_fc), (0, 0)))
    prep["comb1_wy"] = jnp.pad(w1[n_fc:], ((0, n2_pad - n2), (0, 0)))
    prep["comb1_b"] = params["comb1_b"].reshape(1, -1)
    prep["comb2_w"] = params["comb2_w"]
    prep["comb2_b"] = params["comb2_b"].reshape(1, -1)
    n3 = params["comb3_w"].shape[1]                                  # classes_
    n3_pad = _round_up(n3, 128)
    prep["comb3_w"] = jnp.pad(params["comb3_w"], ((0, 0), (0, n3_pad - n3)))
    prep["comb3_b"] = jnp.pad(params["comb3_b"], (0, n3_pad - n3)).reshape(1, n3_pad)
    return prep


# ----------------------------------------------------------------------------
# Forward pass (matches MultiModel.forward, eval mode)
# ----------------------------------------------------------------------------

def multi_model_forward(prep, spectrogram, mfcc, *, classes_):
    # NCHW -> NHWC once at entry; CNN branch stays channels-last (lane-dense).
    x = jnp.transpose(spectrogram, (0, 2, 3, 1)).astype(jnp.bfloat16)
    for i in range(4):
        x = conv_bn_relu_pool(x, prep[f"conv{i}_w"], prep[f"conv{i}_b"])
    # TODO(synk): Dropout(0.5) is identity in eval mode; not implemented as a kernel.
    B = x.shape[0]
    x_flat = x.reshape(B, -1)            # NHWC flatten; cnn_fc rows permuted to match
    out = head_forward(prep, x_flat, mfcc)   # fused cnn_fc + fcc + combined head
    return out[:, :classes_]


if __name__ == "__main__":
    input_shape = (4, 16, 16)      # (C, H, W)
    classes_ = 5
    num_numerical_features = 8
    batch = 2

    key = jax.random.PRNGKey(0)
    kp, ks, km = jax.random.split(key, 3)
    params = init_params(kp, input_shape, classes_, num_numerical_features)
    prep = prepare_params(params, input_shape)        # one-time weight prep
    spectrogram = jax.random.normal(ks, (batch, *input_shape), jnp.float32)
    mfcc = jax.random.normal(km, (batch, num_numerical_features), jnp.float32)

    fwd = jax.jit(functools.partial(multi_model_forward, classes_=classes_))
    out = fwd(prep, spectrogram, mfcc)
    out = jax.block_until_ready(out)
    assert out.shape == (batch, classes_), out.shape
    assert jnp.all(jnp.isfinite(out))
    print("KERNEL_OK")
</pallas_src>

<mosaic_0001>
module attributes {stable_mosaic.version = 11 : i64} {
  func.func @_conv_pool_kernel(%arg0: i32, %arg1: memref<128x128xbf16, #tpu.memory_space<vmem>>, %arg2: memref<128x128xbf16, #tpu.memory_space<vmem>>, %arg3: memref<128x128xbf16, #tpu.memory_space<vmem>>, %arg4: memref<128x128xbf16, #tpu.memory_space<vmem>>, %arg5: memref<128x128xbf16, #tpu.memory_space<vmem>>, %arg6: memref<1x128xf32, #tpu.memory_space<vmem>>, %arg7: memref<128x128xbf16, #tpu.memory_space<vmem>>) attributes {dimension_semantics = [#tpu.dimension_semantics<parallel>], iteration_bounds = array<i64: 1>, scalar_prefetch = 0 : i64, scratch_operands = 0 : i64, tpu.core_type = #tpu.core_type<tc>, window_params = [{transform_indices = @transform_0, window_bounds = array<i64: 128, 128>}, {transform_indices = @transform_1, window_bounds = array<i64: 128, 128>}, {transform_indices = @transform_2, window_bounds = array<i64: 128, 128>}, {transform_indices = @transform_3, window_bounds = array<i64: 128, 128>}, {pipeline_mode = #tpu.pipeline_mode<synchronous>, transform_indices = @transform_4, window_bounds = array<i64: 128, 128>}, {pipeline_mode = #tpu.pipeline_mode<synchronous>, transform_indices = @transform_5, window_bounds = array<i64: 1, 128>}, {transform_indices = @transform_6, window_bounds = array<i64: 128, 128>}]} {
    %c0 = arith.constant 0 : index
    %c0_0 = arith.constant 0 : index
    %0 = vector.load %arg5[%c0, %c0_0] : memref<128x128xbf16, #tpu.memory_space<vmem>>, vector<128x128xbf16>
    %c0_1 = arith.constant 0 : index
    %c0_2 = arith.constant 0 : index
    %1 = vector.load %arg6[%c0_1, %c0_2] : memref<1x128xf32, #tpu.memory_space<vmem>>, vector<1x128xf32>
    %c0_3 = arith.constant 0 : index
    %c0_4 = arith.constant 0 : index
    %2 = vector.load %arg1[%c0_3, %c0_4] : memref<128x128xbf16, #tpu.memory_space<vmem>>, vector<128x128xbf16>
    %cst = arith.constant dense<0.000000e+00> : vector<128x128xf32>
    %3 = tpu.matmul %2, %0, %cst {dimension_numbers = #tpu.dot_dimension_numbers<[1], [0], [0], [1], [0, 0, 1, 1], [], []>} : vector<128x128xbf16>, vector<128x128xbf16>, vector<128x128xf32> -> vector<128x128xf32>
    %4 = vector.broadcast %1 : vector<1x128xf32> to vector<128x128xf32>
    %5 = arith.addf %3, %4 : vector<128x128xf32>
    %cst_5 = arith.constant 0.000000e+00 : f32
    %6 = vector.broadcast %cst_5 : f32 to vector<128x128xf32>
    %7 = arith.maximumf %5, %6 : vector<128x128xf32>
    %c0_6 = arith.constant 0 : index
    %c0_7 = arith.constant 0 : index
    %8 = vector.load %arg2[%c0_6, %c0_7] : memref<128x128xbf16, #tpu.memory_space<vmem>>, vector<128x128xbf16>
    %cst_8 = arith.constant dense<0.000000e+00> : vector<128x128xf32>
    %9 = tpu.matmul %8, %0, %cst_8 {dimension_numbers = #tpu.dot_dimension_numbers<[1], [0], [0], [1], [0, 0, 1, 1], [], []>} : vector<128x128xbf16>, vector<128x128xbf16>, vector<128x128xf32> -> vector<128x128xf32>
    %10 = vector.broadcast %1 : vector<1x128xf32> to vector<128x128xf32>
    %11 = arith.addf %9, %10 : vector<128x128xf32>
    %cst_9 = arith.constant 0.000000e+00 : f32
    %12 = vector.broadcast %cst_9 : f32 to vector<128x128xf32>
    %13 = arith.maximumf %11, %12 : vector<128x128xf32>
    %14 = arith.maximumf %7, %13 : vector<128x128xf32>
    %c0_10 = arith.constant 0 : index
    %c0_11 = arith.constant 0 : index
    %15 = vector.load %arg3[%c0_10, %c0_11] : memref<128x128xbf16, #tpu.memory_space<vmem>>, vector<128x128xbf16>
    %cst_12 = arith.constant dense<0.000000e+00> : vector<128x128xf32>
    %16 = tpu.matmul %15, %0, %cst_12 {dimension_numbers = #tpu.dot_dimension_numbers<[1], [0], [0], [1], [0, 0, 1, 1], [], []>} : vector<128x128xbf16>, vector<128x128xbf16>, vector<128x128xf32> -> vector<128x128xf32>
    %17 = vector.broadcast %1 : vector<1x128xf32> to vector<128x128xf32>
    %18 = arith.addf %16, %17 : vector<128x128xf32>
    %cst_13 = arith.constant 0.000000e+00 : f32
    %19 = vector.broadcast %cst_13 : f32 to vector<128x128xf32>
    %20 = arith.maximumf %18, %19 : vector<128x128xf32>
    %c0_14 = arith.constant 0 : index
    %c0_15 = arith.constant 0 : index
    %21 = vector.load %arg4[%c0_14, %c0_15] : memref<128x128xbf16, #tpu.memory_space<vmem>>, vector<128x128xbf16>
    %cst_16 = arith.constant dense<0.000000e+00> : vector<128x128xf32>
    %22 = tpu.matmul %21, %0, %cst_16 {dimension_numbers = #tpu.dot_dimension_numbers<[1], [0], [0], [1], [0, 0, 1, 1], [], []>} : vector<128x128xbf16>, vector<128x128xbf16>, vector<128x128xf32> -> vector<128x128xf32>
    %23 = vector.broadcast %1 : vector<1x128xf32> to vector<128x128xf32>
    %24 = arith.addf %22, %23 : vector<128x128xf32>
    %cst_17 = arith.constant 0.000000e+00 : f32
    %25 = vector.broadcast %cst_17 : f32 to vector<128x128xf32>
    %26 = arith.maximumf %24, %25 : vector<128x128xf32>
    %27 = arith.maximumf %20, %26 : vector<128x128xf32>
    %28 = arith.maximumf %14, %27 : vector<128x128xf32>
    %29 = arith.truncf %28 : vector<128x128xf32> to vector<128x128xbf16>
    %c0_18 = arith.constant 0 : index
    %c0_19 = arith.constant 0 : index
    %30 = vector.load %arg7[%c0_18, %c0_19] : memref<128x128xbf16, #tpu.memory_space<vmem>>, vector<128x128xbf16>
    tpu.vector_store %arg7[%c0_18, %c0_19], %29 {strides = array<i32>} : memref<128x128xbf16, #tpu.memory_space<vmem>>, vector<128x128xbf16>,
    return
  }
  func.func @transform_0(%arg0: i32) -> (i32, i32) {
    %c0_i32 = arith.constant 0 : i32
    %c0_i32_0 = arith.constant 0 : i32
    return %arg0, %c0_i32 : i32, i32
  }
  func.func @transform_1(%arg0: i32) -> (i32, i32) {
    %c0_i32 = arith.constant 0 : i32
    %c0_i32_0 = arith.constant 0 : i32
    return %arg0, %c0_i32 : i32, i32
  }
  func.func @transform_2(%arg0: i32) -> (i32, i32) {
    %c0_i32 = arith.constant 0 : i32
    %c0_i32_0 = arith.constant 0 : i32
    return %arg0, %c0_i32 : i32, i32
  }
  func.func @transform_3(%arg0: i32) -> (i32, i32) {
    %c0_i32 = arith.constant 0 : i32
    %c0_i32_0 = arith.constant 0 : i32
    return %arg0, %c0_i32 : i32, i32
  }
  func.func @transform_4(%arg0: i32) -> (i32, i32) {
    %c0_i32 = arith.constant 0 : i32
    %c0_i32_0 = arith.constant 0 : i32
    %c0_i32_1 = arith.constant 0 : i32
    return %c0_i32, %c0_i32_0 : i32, i32
  }
  func.func @transform_5(%arg0: i32) -> (i32, i32) {
    %c0_i32 = arith.constant 0 : i32
    %c0_i32_0 = arith.constant 0 : i32
    %c0_i32_1 = arith.constant 0 : i32
    return %c0_i32, %c0_i32_0 : i32, i32
  }
  func.func @transform_6(%arg0: i32) -> (i32, i32) {
    %c0_i32 = arith.constant 0 : i32
    %c0_i32_0 = arith.constant 0 : i32
    return %arg0, %c0_i32 : i32, i32
  }
}

module attributes {stable_mosaic.version = 11 : i64} {
  func.func @_conv_pool_kernel(%arg0: i32, %arg1: memref<32x1152xbf16, #tpu.memory_space<vmem>>, %arg2: memref<32x1152xbf16, #tpu.memory_space<vmem>>, %arg3: memref<32x1152xbf16, #tpu.memory_space<vmem>>, %arg4: memref<32x1152xbf16, #tpu.memory_space<vmem>>, %arg5: memref<1152x128xbf16, #tpu.memory_space<vmem>>, %arg6: memref<1x128xf32, #tpu.memory_space<vmem>>, %arg7: memref<32x128xbf16, #tpu.memory_space<vmem>>) attributes {dimension_semantics = [#tpu.dimension_semantics<parallel>], iteration_bounds = array<i64: 1>, scalar_prefetch = 0 : i64, scratch_operands = 0 : i64, tpu.core_type = #tpu.core_type<tc>, window_params = [{transform_indices = @transform_0, window_bounds = array<i64: 32, 1152>}, {transform_indices = @transform_1, window_bounds = array<i64: 32, 1152>}, {transform_indices = @transform_2, window_bounds = array<i64: 32, 1152>}, {transform_indices = @transform_3, window_bounds = array<i64: 32, 1152>}, {pipeline_mode = #tpu.pipeline_mode<synchronous>, transform_indices = @transform_4, window_bounds = array<i64: 1152, 128>}, {pipeline_mode = #tpu.pipeline_mode<synchronous>, transform_indices = @transform_5, window_bounds = array<i64: 1, 128>}, {transform_indices = @transform_6, window_bounds = array<i64: 32, 128>}]} {
    %c0 = arith.constant 0 : index
    %c0_0 = arith.constant 0 : index
    %0 = vector.load %arg5[%c0, %c0_0] : memref<1152x128xbf16, #tpu.memory_space<vmem>>, vector<1152x128xbf16>
    %c0_1 = arith.constant 0 : index
    %c0_2 = arith.constant 0 : index
    %1 = vector.load %arg6[%c0_1, %c0_2] : memref<1x128xf32, #tpu.memory_space<vmem>>, vector<1x128xf32>
    %c0_3 = arith.constant 0 : index
    %c0_4 = arith.constant 0 : index
    %2 = vector.load %arg1[%c0_3, %c0_4] : memref<32x1152xbf16, #tpu.memory_space<vmem>>, vector<32x1152xbf16>
    %cst = arith.constant dense<0.000000e+00> : vector<32x128xf32>
    %3 = tpu.matmul %2, %0, %cst {dimension_numbers = #tpu.dot_dimension_numbers<[1], [0], [0], [1], [0, 0, 1, 1], [], []>} : vector<32x1152xbf16>, vector<1152x128xbf16>, vector<32x128xf32> -> vector<32x128xf32>
    %4 = vector.broadcast %1 : vector<1x128xf32> to vector<32x128xf32>
    %5 = arith.addf %3, %4 : vector<32x128xf32>
    %cst_5 = arith.constant 0.000000e+00 : f32
    %6 = vector.broadcast %cst_5 : f32 to vector<32x128xf32>
    %7 = arith.maximumf %5, %6 : vector<32x128xf32>
    %c0_6 = arith.constant 0 : index
    %c0_7 = arith.constant 0 : index
    %8 = vector.load %arg2[%c0_6, %c0_7] : memref<32x1152xbf16, #tpu.memory_space<vmem>>, vector<32x1152xbf16>
    %cst_8 = arith.constant dense<0.000000e+00> : vector<32x128xf32>
    %9 = tpu.matmul %8, %0, %cst_8 {dimension_numbers = #tpu.dot_dimension_numbers<[1], [0], [0], [1], [0, 0, 1, 1], [], []>} : vector<32x1152xbf16>, vector<1152x128xbf16>, vector<32x128xf32> -> vector<32x128xf32>
    %10 = vector.broadcast %1 : vector<1x128xf32> to vector<32x128xf32>
    %11 = arith.addf %9, %10 : vector<32x128xf32>
    %cst_9 = arith.constant 0.000000e+00 : f32
    %12 = vector.broadcast %cst_9 : f32 to vector<32x128xf32>
    %13 = arith.maximumf %11, %12 : vector<32x128xf32>
    %14 = arith.maximumf %7, %13 : vector<32x128xf32>
    %c0_10 = arith.constant 0 : index
    %c0_11 = arith.constant 0 : index
    %15 = vector.load %arg3[%c0_10, %c0_11] : memref<32x1152xbf16, #tpu.memory_space<vmem>>, vector<32x1152xbf16>
    %cst_12 = arith.constant dense<0.000000e+00> : vector<32x128xf32>
    %16 = tpu.matmul %15, %0, %cst_12 {dimension_numbers = #tpu.dot_dimension_numbers<[1], [0], [0], [1], [0, 0, 1, 1], [], []>} : vector<32x1152xbf16>, vector<1152x128xbf16>, vector<32x128xf32> -> vector<32x128xf32>
    %17 = vector.broadcast %1 : vector<1x128xf32> to vector<32x128xf32>
    %18 = arith.addf %16, %17 : vector<32x128xf32>
    %cst_13 = arith.constant 0.000000e+00 : f32
    %19 = vector.broadcast %cst_13 : f32 to vector<32x128xf32>
    %20 = arith.maximumf %18, %19 : vector<32x128xf32>
    %c0_14 = arith.constant 0 : index
    %c0_15 = arith.constant 0 : index
    %21 = vector.load %arg4[%c0_14, %c0_15] : memref<32x1152xbf16, #tpu.memory_space<vmem>>, vector<32x1152xbf16>
    %cst_16 = arith.constant dense<0.000000e+00> : vector<32x128xf32>
    %22 = tpu.matmul %21, %0, %cst_16 {dimension_numbers = #tpu.dot_dimension_numbers<[1], [0], [0], [1], [0, 0, 1, 1], [], []>} : vector<32x1152xbf16>, vector<1152x128xbf16>, vector<32x128xf32> -> vector<32x128xf32>
    %23 = vector.broadcast %1 : vector<1x128xf32> to vector<32x128xf32>
    %24 = arith.addf %22, %23 : vector<32x128xf32>
    %cst_17 = arith.constant 0.000000e+00 : f32
    %25 = vector.broadcast %cst_17 : f32 to vector<32x128xf32>
    %26 = arith.maximumf %24, %25 : vector<32x128xf32>
    %27 = arith.maximumf %20, %26 : vector<32x128xf32>
    %28 = arith.maximumf %14, %27 : vector<32x128xf32>
    %29 = arith.truncf %28 : vector<32x128xf32> to vector<32x128xbf16>
    %c0_18 = arith.constant 0 : index
    %c0_19 = arith.constant 0 : index
    %30 = vector.load %arg7[%c0_18, %c0_19] : memref<32x128xbf16, #tpu.memory_space<vmem>>, vector<32x128xbf16>
    tpu.vector_store %arg7[%c0_18, %c0_19], %29 {strides = array<i32>} : memref<32x128xbf16, #tpu.memory_space<vmem>>, vector<32x128xbf16>,
    return
  }
  func.func @transform_0(%arg0: i32) -> (i32, i32) {
    %c0_i32 = arith.constant 0 : i32
    %c0_i32_0 = arith.constant 0 : i32
    return %arg0, %c0_i32 : i32, i32
  }
  func.func @transform_1(%arg0: i32) -> (i32, i32) {
    %c0_i32 = arith.constant 0 : i32
    %c0_i32_0 = arith.constant 0 : i32
    return %arg0, %c0_i32 : i32, i32
  }
  func.func @transform_2(%arg0: i32) -> (i32, i32) {
    %c0_i32 = arith.constant 0 : i32
    %c0_i32_0 = arith.constant 0 : i32
    return %arg0, %c0_i32 : i32, i32
  }
  func.func @transform_3(%arg0: i32) -> (i32, i32) {
    %c0_i32 = arith.constant 0 : i32
    %c0_i32_0 = arith.constant 0 : i32
    return %arg0, %c0_i32 : i32, i32
  }
  func.func @transform_4(%arg0: i32) -> (i32, i32) {
    %c0_i32 = arith.constant 0 : i32
    %c0_i32_0 = arith.constant 0 : i32
    %c0_i32_1 = arith.constant 0 : i32
    return %c0_i32, %c0_i32_0 : i32, i32
  }
  func.func @transform_5(%arg0: i32) -> (i32, i32) {
    %c0_i32 = arith.constant 0 : i32
    %c0_i32_0 = arith.constant 0 : i32
    %c0_i32_1 = arith.constant 0 : i32
    return %c0_i32, %c0_i32_0 : i32, i32
  }
  func.func @transform_6(%arg0: i32) -> (i32, i32) {
    %c0_i32 = arith.constant 0 : i32
    %c0_i32_0 = arith.constant 0 : i32
    return %arg0, %c0_i32 : i32, i32
  }
}

module attributes {stable_mosaic.version = 11 : i64} {
  func.func @_conv_pool_kernel(%arg0: i32, %arg1: memref<8x1152xbf16, #tpu.memory_space<vmem>>, %arg2: memref<8x1152xbf16, #tpu.memory_space<vmem>>, %arg3: memref<8x1152xbf16, #tpu.memory_space<vmem>>, %arg4: memref<8x1152xbf16, #tpu.memory_space<vmem>>, %arg5: memref<1152x256xbf16, #tpu.memory_space<vmem>>, %arg6: memref<1x256xf32, #tpu.memory_space<vmem>>, %arg7: memref<8x256xbf16, #tpu.memory_space<vmem>>) attributes {dimension_semantics = [#tpu.dimension_semantics<parallel>], iteration_bounds = array<i64: 1>, scalar_prefetch = 0 : i64, scratch_operands = 0 : i64, tpu.core_type = #tpu.core_type<tc>, window_params = [{transform_indices = @transform_0, window_bounds = array<i64: 8, 1152>}, {transform_indices = @transform_1, window_bounds = array<i64: 8, 1152>}, {transform_indices = @transform_2, window_bounds = array<i64: 8, 1152>}, {transform_indices = @transform_3, window_bounds = array<i64: 8, 1152>}, {pipeline_mode = #tpu.pipeline_mode<synchronous>, transform_indices = @transform_4, window_bounds = array<i64: 1152, 256>}, {pipeline_mode = #tpu.pipeline_mode<synchronous>, transform_indices = @transform_5, window_bounds = array<i64: 1, 256>}, {transform_indices = @transform_6, window_bounds = array<i64: 8, 256>}]} {
    %c0 = arith.constant 0 : index
    %c0_0 = arith.constant 0 : index
    %0 = vector.load %arg5[%c0, %c0_0] : memref<1152x256xbf16, #tpu.memory_space<vmem>>, vector<1152x256xbf16>
    %c0_1 = arith.constant 0 : index
    %c0_2 = arith.constant 0 : index
    %1 = vector.load %arg6[%c0_1, %c0_2] : memref<1x256xf32, #tpu.memory_space<vmem>>, vector<1x256xf32>
    %c0_3 = arith.constant 0 : index
    %c0_4 = arith.constant 0 : index
    %2 = vector.load %arg1[%c0_3, %c0_4] : memref<8x1152xbf16, #tpu.memory_space<vmem>>, vector<8x1152xbf16>
    %cst = arith.constant dense<0.000000e+00> : vector<8x256xf32>
    %3 = tpu.matmul %2, %0, %cst {dimension_numbers = #tpu.dot_dimension_numbers<[1], [0], [0], [1], [0, 0, 1, 1], [], []>} : vector<8x1152xbf16>, vector<1152x256xbf16>, vector<8x256xf32> -> vector<8x256xf32>
    %4 = vector.broadcast %1 : vector<1x256xf32> to vector<8x256xf32>
    %5 = arith.addf %3, %4 : vector<8x256xf32>
    %cst_5 = arith.constant 0.000000e+00 : f32
    %6 = vector.broadcast %cst_5 : f32 to vector<8x256xf32>
    %7 = arith.maximumf %5, %6 : vector<8x256xf32>
    %c0_6 = arith.constant 0 : index
    %c0_7 = arith.constant 0 : index
    %8 = vector.load %arg2[%c0_6, %c0_7] : memref<8x1152xbf16, #tpu.memory_space<vmem>>, vector<8x1152xbf16>
    %cst_8 = arith.constant dense<0.000000e+00> : vector<8x256xf32>
    %9 = tpu.matmul %8, %0, %cst_8 {dimension_numbers = #tpu.dot_dimension_numbers<[1], [0], [0], [1], [0, 0, 1, 1], [], []>} : vector<8x1152xbf16>, vector<1152x256xbf16>, vector<8x256xf32> -> vector<8x256xf32>
    %10 = vector.broadcast %1 : vector<1x256xf32> to vector<8x256xf32>
    %11 = arith.addf %9, %10 : vector<8x256xf32>
    %cst_9 = arith.constant 0.000000e+00 : f32
    %12 = vector.broadcast %cst_9 : f32 to vector<8x256xf32>
    %13 = arith.maximumf %11, %12 : vector<8x256xf32>
    %14 = arith.maximumf %7, %13 : vector<8x256xf32>
    %c0_10 = arith.constant 0 : index
    %c0_11 = arith.constant 0 : index
    %15 = vector.load %arg3[%c0_10, %c0_11] : memref<8x1152xbf16, #tpu.memory_space<vmem>>, vector<8x1152xbf16>
    %cst_12 = arith.constant dense<0.000000e+00> : vector<8x256xf32>
    %16 = tpu.matmul %15, %0, %cst_12 {dimension_numbers = #tpu.dot_dimension_numbers<[1], [0], [0], [1], [0, 0, 1, 1], [], []>} : vector<8x1152xbf16>, vector<1152x256xbf16>, vector<8x256xf32> -> vector<8x256xf32>
    %17 = vector.broadcast %1 : vector<1x256xf32> to vector<8x256xf32>
    %18 = arith.addf %16, %17 : vector<8x256xf32>
    %cst_13 = arith.constant 0.000000e+00 : f32
    %19 = vector.broadcast %cst_13 : f32 to vector<8x256xf32>
    %20 = arith.maximumf %18, %19 : vector<8x256xf32>
    %c0_14 = arith.constant 0 : index
    %c0_15 = arith.constant 0 : index
    %21 = vector.load %arg4[%c0_14, %c0_15] : memref<8x1152xbf16, #tpu.memory_space<vmem>>, vector<8x1152xbf16>
    %cst_16 = arith.constant dense<0.000000e+00> : vector<8x256xf32>
    %22 = tpu.matmul %21, %0, %cst_16 {dimension_numbers = #tpu.dot_dimension_numbers<[1], [0], [0], [1], [0, 0, 1, 1], [], []>} : vector<8x1152xbf16>, vector<1152x256xbf16>, vector<8x256xf32> -> vector<8x256xf32>
    %23 = vector.broadcast %1 : vector<1x256xf32> to vector<8x256xf32>
    %24 = arith.addf %22, %23 : vector<8x256xf32>
    %cst_17 = arith.constant 0.000000e+00 : f32
    %25 = vector.broadcast %cst_17 : f32 to vector<8x256xf32>
    %26 = arith.maximumf %24, %25 : vector<8x256xf32>
    %27 = arith.maximumf %20, %26 : vector<8x256xf32>
    %28 = arith.maximumf %14, %27 : vector<8x256xf32>
    %29 = arith.truncf %28 : vector<8x256xf32> to vector<8x256xbf16>
    %c0_18 = arith.constant 0 : index
    %c0_19 = arith.constant 0 : index
    %30 = vector.load %arg7[%c0_18, %c0_19] : memref<8x256xbf16, #tpu.memory_space<vmem>>, vector<8x256xbf16>
    tpu.vector_store %arg7[%c0_18, %c0_19], %29 {strides = array<i32>} : memref<8x256xbf16, #tpu.memory_space<vmem>>, vector<8x256xbf16>,
    return
  }
  func.func @transform_0(%arg0: i32) -> (i32, i32) {
    %c0_i32 = arith.constant 0 : i32
    %c0_i32_0 = arith.constant 0 : i32
    return %arg0, %c0_i32 : i32, i32
  }
  func.func @transform_1(%arg0: i32) -> (i32, i32) {
    %c0_i32 = arith.constant 0 : i32
    %c0_i32_0 = arith.constant 0 : i32
    return %arg0, %c0_i32 : i32, i32
  }
  func.func @transform_2(%arg0: i32) -> (i32, i32) {
    %c0_i32 = arith.constant 0 : i32
    %c0_i32_0 = arith.constant 0 : i32
    return %arg0, %c0_i32 : i32, i32
  }
  func.func @transform_3(%arg0: i32) -> (i32, i32) {
    %c0_i32 = arith.constant 0 : i32
    %c0_i32_0 = arith.constant 0 : i32
    return %arg0, %c0_i32 : i32, i32
  }
  func.func @transform_4(%arg0: i32) -> (i32, i32) {
    %c0_i32 = arith.constant 0 : i32
    %c0_i32_0 = arith.constant 0 : i32
    %c0_i32_1 = arith.constant 0 : i32
    return %c0_i32, %c0_i32_0 : i32, i32
  }
  func.func @transform_5(%arg0: i32) -> (i32, i32) {
    %c0_i32 = arith.constant 0 : i32
    %c0_i32_0 = arith.constant 0 : i32
    %c0_i32_1 = arith.constant 0 : i32
    return %c0_i32, %c0_i32_0 : i32, i32
  }
  func.func @transform_6(%arg0: i32) -> (i32, i32) {
    %c0_i32 = arith.constant 0 : i32
    %c0_i32_0 = arith.constant 0 : i32
    return %arg0, %c0_i32 : i32, i32
  }
}

module attributes {stable_mosaic.version = 11 : i64} {
  func.func @_conv_pool_kernel(%arg0: i32, %arg1: memref<2x2304xbf16, #tpu.memory_space<vmem>>, %arg2: memref<2x2304xbf16, #tpu.memory_space<vmem>>, %arg3: memref<2x2304xbf16, #tpu.memory_space<vmem>>, %arg4: memref<2x2304xbf16, #tpu.memory_space<vmem>>, %arg5: memref<2304x256xbf16, #tpu.memory_space<vmem>>, %arg6: memref<1x256xf32, #tpu.memory_space<vmem>>, %arg7: memref<2x256xbf16, #tpu.memory_space<vmem>>) attributes {dimension_semantics = [#tpu.dimension_semantics<parallel>], iteration_bounds = array<i64: 1>, scalar_prefetch = 0 : i64, scratch_operands = 0 : i64, tpu.core_type = #tpu.core_type<tc>, window_params = [{transform_indices = @transform_0, window_bounds = array<i64: 2, 2304>}, {transform_indices = @transform_1, window_bounds = array<i64: 2, 2304>}, {transform_indices = @transform_2, window_bounds = array<i64: 2, 2304>}, {transform_indices = @transform_3, window_bounds = array<i64: 2, 2304>}, {pipeline_mode = #tpu.pipeline_mode<synchronous>, transform_indices = @transform_4, window_bounds = array<i64: 2304, 256>}, {pipeline_mode = #tpu.pipeline_mode<synchronous>, transform_indices = @transform_5, window_bounds = array<i64: 1, 256>}, {transform_indices = @transform_6, window_bounds = array<i64: 2, 256>}]} {
    %c0 = arith.constant 0 : index
    %c0_0 = arith.constant 0 : index
    %0 = vector.load %arg5[%c0, %c0_0] : memref<2304x256xbf16, #tpu.memory_space<vmem>>, vector<2304x256xbf16>
    %c0_1 = arith.constant 0 : index
    %c0_2 = arith.constant 0 : index
    %1 = vector.load %arg6[%c0_1, %c0_2] : memref<1x256xf32, #tpu.memory_space<vmem>>, vector<1x256xf32>
    %c0_3 = arith.constant 0 : index
    %c0_4 = arith.constant 0 : index
    %2 = vector.load %arg1[%c0_3, %c0_4] : memref<2x2304xbf16, #tpu.memory_space<vmem>>, vector<2x2304xbf16>
    %cst = arith.constant dense<0.000000e+00> : vector<2x256xf32>
    %3 = tpu.matmul %2, %0, %cst {dimension_numbers = #tpu.dot_dimension_numbers<[1], [0], [0], [1], [0, 0, 1, 1], [], []>} : vector<2x2304xbf16>, vector<2304x256xbf16>, vector<2x256xf32> -> vector<2x256xf32>
    %4 = vector.broadcast %1 : vector<1x256xf32> to vector<2x256xf32>
    %5 = arith.addf %3, %4 : vector<2x256xf32>
    %cst_5 = arith.constant 0.000000e+00 : f32
    %6 = vector.broadcast %cst_5 : f32 to vector<2x256xf32>
    %7 = arith.maximumf %5, %6 : vector<2x256xf32>
    %c0_6 = arith.constant 0 : index
    %c0_7 = arith.constant 0 : index
    %8 = vector.load %arg2[%c0_6, %c0_7] : memref<2x2304xbf16, #tpu.memory_space<vmem>>, vector<2x2304xbf16>
    %cst_8 = arith.constant dense<0.000000e+00> : vector<2x256xf32>
    %9 = tpu.matmul %8, %0, %cst_8 {dimension_numbers = #tpu.dot_dimension_numbers<[1], [0], [0], [1], [0, 0, 1, 1], [], []>} : vector<2x2304xbf16>, vector<2304x256xbf16>, vector<2x256xf32> -> vector<2x256xf32>
    %10 = vector.broadcast %1 : vector<1x256xf32> to vector<2x256xf32>
    %11 = arith.addf %9, %10 : vector<2x256xf32>
    %cst_9 = arith.constant 0.000000e+00 : f32
    %12 = vector.broadcast %cst_9 : f32 to vector<2x256xf32>
    %13 = arith.maximumf %11, %12 : vector<2x256xf32>
    %14 = arith.maximumf %7, %13 : vector<2x256xf32>
    %c0_10 = arith.constant 0 : index
    %c0_11 = arith.constant 0 : index
    %15 = vector.load %arg3[%c0_10, %c0_11] : memref<2x2304xbf16, #tpu.memory_space<vmem>>, vector<2x2304xbf16>
    %cst_12 = arith.constant dense<0.000000e+00> : vector<2x256xf32>
    %16 = tpu.matmul %15, %0, %cst_12 {dimension_numbers = #tpu.dot_dimension_numbers<[1], [0], [0], [1], [0, 0, 1, 1], [], []>} : vector<2x2304xbf16>, vector<2304x256xbf16>, vector<2x256xf32> -> vector<2x256xf32>
    %17 = vector.broadcast %1 : vector<1x256xf32> to vector<2x256xf32>
    %18 = arith.addf %16, %17 : vector<2x256xf32>
    %cst_13 = arith.constant 0.000000e+00 : f32
    %19 = vector.broadcast %cst_13 : f32 to vector<2x256xf32>
    %20 = arith.maximumf %18, %19 : vector<2x256xf32>
    %c0_14 = arith.constant 0 : index
    %c0_15 = arith.constant 0 : index
    %21 = vector.load %arg4[%c0_14, %c0_15] : memref<2x2304xbf16, #tpu.memory_space<vmem>>, vector<2x2304xbf16>
    %cst_16 = arith.constant dense<0.000000e+00> : vector<2x256xf32>
    %22 = tpu.matmul %21, %0, %cst_16 {dimension_numbers = #tpu.dot_dimension_numbers<[1], [0], [0], [1], [0, 0, 1, 1], [], []>} : vector<2x2304xbf16>, vector<2304x256xbf16>, vector<2x256xf32> -> vector<2x256xf32>
    %23 = vector.broadcast %1 : vector<1x256xf32> to vector<2x256xf32>
    %24 = arith.addf %22, %23 : vector<2x256xf32>
    %cst_17 = arith.constant 0.000000e+00 : f32
    %25 = vector.broadcast %cst_17 : f32 to vector<2x256xf32>
    %26 = arith.maximumf %24, %25 : vector<2x256xf32>
    %27 = arith.maximumf %20, %26 : vector<2x256xf32>
    %28 = arith.maximumf %14, %27 : vector<2x256xf32>
    %29 = arith.truncf %28 : vector<2x256xf32> to vector<2x256xbf16>
    %c0_18 = arith.constant 0 : index
    %c0_19 = arith.constant 0 : index
    %30 = vector.load %arg7[%c0_18, %c0_19] : memref<2x256xbf16, #tpu.memory_space<vmem>>, vector<2x256xbf16>
    tpu.vector_store %arg7[%c0_18, %c0_19], %29 {strides = array<i32>} : memref<2x256xbf16, #tpu.memory_space<vmem>>, vector<2x256xbf16>,
    return
  }
  func.func @transform_0(%arg0: i32) -> (i32, i32) {
    %c0_i32 = arith.constant 0 : i32
    %c0_i32_0 = arith.constant 0 : i32
    return %arg0, %c0_i32 : i32, i32
  }
  func.func @transform_1(%arg0: i32) -> (i32, i32) {
    %c0_i32 = arith.constant 0 : i32
    %c0_i32_0 = arith.constant 0 : i32
    return %arg0, %c0_i32 : i32, i32
  }
  func.func @transform_2(%arg0: i32) -> (i32, i32) {
    %c0_i32 = arith.constant 0 : i32
    %c0_i32_0 = arith.constant 0 : i32
    return %arg0, %c0_i32 : i32, i32
  }
  func.func @transform_3(%arg0: i32) -> (i32, i32) {
    %c0_i32 = arith.constant 0 : i32
    %c0_i32_0 = arith.constant 0 : i32
    return %arg0, %c0_i32 : i32, i32
  }
  func.func @transform_4(%arg0: i32) -> (i32, i32) {
    %c0_i32 = arith.constant 0 : i32
    %c0_i32_0 = arith.constant 0 : i32
    %c0_i32_1 = arith.constant 0 : i32
    return %c0_i32, %c0_i32_0 : i32, i32
  }
  func.func @transform_5(%arg0: i32) -> (i32, i32) {
    %c0_i32 = arith.constant 0 : i32
    %c0_i32_0 = arith.constant 0 : i32
    %c0_i32_1 = arith.constant 0 : i32
    return %c0_i32, %c0_i32_0 : i32, i32
  }
  func.func @transform_6(%arg0: i32) -> (i32, i32) {
    %c0_i32 = arith.constant 0 : i32
    %c0_i32_0 = arith.constant 0 : i32
    return %arg0, %c0_i32 : i32, i32
  }
}

module attributes {stable_mosaic.version = 11 : i64} {
  func.func @_head_kernel(%arg0: memref<2x256xbf16, #tpu.memory_space<vmem>>, %arg1: memref<2x8xf32, #tpu.memory_space<vmem>>, %arg2: memref<256x128xf32, #tpu.memory_space<vmem>>, %arg3: memref<1x128xf32, #tpu.memory_space<vmem>>, %arg4: memref<8x256xf32, #tpu.memory_space<vmem>>, %arg5: memref<1x256xf32, #tpu.memory_space<vmem>>, %arg6: memref<256x128xf32, #tpu.memory_space<vmem>>, %arg7: memref<1x128xf32, #tpu.memory_space<vmem>>, %arg8: memref<128x256xf32, #tpu.memory_space<vmem>>, %arg9: memref<128x256xf32, #tpu.memory_space<vmem>>, %arg10: memref<1x256xf32, #tpu.memory_space<vmem>>, %arg11: memref<256x128xf32, #tpu.memory_space<vmem>>, %arg12: memref<1x128xf32, #tpu.memory_space<vmem>>, %arg13: memref<128x128xf32, #tpu.memory_space<vmem>>, %arg14: memref<1x128xf32, #tpu.memory_space<vmem>>, %arg15: memref<2x128xf32, #tpu.memory_space<vmem>>) attributes {dimension_semantics = [], scalar_prefetch = 0 : i64, scratch_operands = 0 : i64, tpu.core_type = #tpu.core_type<tc>} {
    %c0 = arith.constant 0 : index
    %c0_0 = arith.constant 0 : index
    %0 = vector.load %arg0[%c0, %c0_0] : memref<2x256xbf16, #tpu.memory_space<vmem>>, vector<2x256xbf16>
    %1 = arith.extf %0 : vector<2x256xbf16> to vector<2x256xf32>
    %c0_1 = arith.constant 0 : index
    %c0_2 = arith.constant 0 : index
    %2 = vector.load %arg2[%c0_1, %c0_2] : memref<256x128xf32, #tpu.memory_space<vmem>>, vector<256x128xf32>
    %cst = arith.constant dense<0.000000e+00> : vector<2x128xf32>
    %3 = tpu.matmul %1, %2, %cst {dimension_numbers = #tpu.dot_dimension_numbers<[1], [0], [0], [1], [0, 0, 1, 1], [], []>} : vector<2x256xf32>, vector<256x128xf32>, vector<2x128xf32> -> vector<2x128xf32>
    %c0_3 = arith.constant 0 : index
    %c0_4 = arith.constant 0 : index
    %4 = vector.load %arg3[%c0_3, %c0_4] : memref<1x128xf32, #tpu.memory_space<vmem>>, vector<1x128xf32>
    %5 = vector.broadcast %4 : vector<1x128xf32> to vector<2x128xf32>
    %6 = arith.addf %3, %5 : vector<2x128xf32>
    %c0_5 = arith.constant 0 : index
    %c0_6 = arith.constant 0 : index
    %7 = vector.load %arg1[%c0_5, %c0_6] : memref<2x8xf32, #tpu.memory_space<vmem>>, vector<2x8xf32>
    %c0_7 = arith.constant 0 : index
    %c0_8 = arith.constant 0 : index
    %8 = vector.load %arg4[%c0_7, %c0_8] : memref<8x256xf32, #tpu.memory_space<vmem>>, vector<8x256xf32>
    %cst_9 = arith.constant dense<0.000000e+00> : vector<2x256xf32>
    %9 = tpu.matmul %7, %8, %cst_9 {dimension_numbers = #tpu.dot_dimension_numbers<[1], [0], [0], [1], [0, 0, 1, 1], [], []>} : vector<2x8xf32>, vector<8x256xf32>, vector<2x256xf32> -> vector<2x256xf32>
    %c0_10 = arith.constant 0 : index
    %c0_11 = arith.constant 0 : index
    %10 = vector.load %arg5[%c0_10, %c0_11] : memref<1x256xf32, #tpu.memory_space<vmem>>, vector<1x256xf32>
    %11 = vector.broadcast %10 : vector<1x256xf32> to vector<2x256xf32>
    %12 = arith.addf %9, %11 : vector<2x256xf32>
    %cst_12 = arith.constant 0.000000e+00 : f32
    %13 = vector.broadcast %cst_12 : f32 to vector<2x256xf32>
    %14 = arith.maximumf %12, %13 : vector<2x256xf32>
    %c0_13 = arith.constant 0 : index
    %c0_14 = arith.constant 0 : index
    %15 = vector.load %arg6[%c0_13, %c0_14] : memref<256x128xf32, #tpu.memory_space<vmem>>, vector<256x128xf32>
    %cst_15 = arith.constant dense<0.000000e+00> : vector<2x128xf32>
    %16 = tpu.matmul %14, %15, %cst_15 {dimension_numbers = #tpu.dot_dimension_numbers<[1], [0], [0], [1], [0, 0, 1, 1], [], []>} : vector<2x256xf32>, vector<256x128xf32>, vector<2x128xf32> -> vector<2x128xf32>
    %c0_16 = arith.constant 0 : index
    %c0_17 = arith.constant 0 : index
    %17 = vector.load %arg7[%c0_16, %c0_17] : memref<1x128xf32, #tpu.memory_space<vmem>>, vector<1x128xf32>
    %18 = vector.broadcast %17 : vector<1x128xf32> to vector<2x128xf32>
    %19 = arith.addf %16, %18 : vector<2x128xf32>
    %c0_18 = arith.constant 0 : index
    %c0_19 = arith.constant 0 : index
    %20 = vector.load %arg8[%c0_18, %c0_19] : memref<128x256xf32, #tpu.memory_space<vmem>>, vector<128x256xf32>
    %cst_20 = arith.constant dense<0.000000e+00> : vector<2x256xf32>
    %21 = tpu.matmul %6, %20, %cst_20 {dimension_numbers = #tpu.dot_dimension_numbers<[1], [0], [0], [1], [0, 0, 1, 1], [], []>} : vector<2x128xf32>, vector<128x256xf32>, vector<2x256xf32> -> vector<2x256xf32>
    %c0_21 = arith.constant 0 : index
    %c0_22 = arith.constant 0 : index
    %22 = vector.load %arg9[%c0_21, %c0_22] : memref<128x256xf32, #tpu.memory_space<vmem>>, vector<128x256xf32>
    %cst_23 = arith.constant dense<0.000000e+00> : vector<2x256xf32>
    %23 = tpu.matmul %19, %22, %cst_23 {dimension_numbers = #tpu.dot_dimension_numbers<[1], [0], [0], [1], [0, 0, 1, 1], [], []>} : vector<2x128xf32>, vector<128x256xf32>, vector<2x256xf32> -> vector<2x256xf32>
    %24 = arith.addf %21, %23 : vector<2x256xf32>
    %c0_24 = arith.constant 0 : index
    %c0_25 = arith.constant 0 : index
    %25 = vector.load %arg10[%c0_24, %c0_25] : memref<1x256xf32, #tpu.memory_space<vmem>>, vector<1x256xf32>
    %26 = vector.broadcast %25 : vector<1x256xf32> to vector<2x256xf32>
    %27 = arith.addf %24, %26 : vector<2x256xf32>
    %cst_26 = arith.constant 0.000000e+00 : f32
    %28 = vector.broadcast %cst_26 : f32 to vector<2x256xf32>
    %29 = arith.maximumf %27, %28 : vector<2x256xf32>
    %c0_27 = arith.constant 0 : index
    %c0_28 = arith.constant 0 : index
    %30 = vector.load %arg11[%c0_27, %c0_28] : memref<256x128xf32, #tpu.memory_space<vmem>>, vector<256x128xf32>
    %cst_29 = arith.constant dense<0.000000e+00> : vector<2x128xf32>
    %31 = tpu.matmul %29, %30, %cst_29 {dimension_numbers = #tpu.dot_dimension_numbers<[1], [0], [0], [1], [0, 0, 1, 1], [], []>} : vector<2x256xf32>, vector<256x128xf32>, vector<2x128xf32> -> vector<2x128xf32>
    %c0_30 = arith.constant 0 : index
    %c0_31 = arith.constant 0 : index
    %32 = vector.load %arg12[%c0_30, %c0_31] : memref<1x128xf32, #tpu.memory_space<vmem>>, vector<1x128xf32>
    %33 = vector.broadcast %32 : vector<1x128xf32> to vector<2x128xf32>
    %34 = arith.addf %31, %33 : vector<2x128xf32>
    %cst_32 = arith.constant 0.000000e+00 : f32
    %35 = vector.broadcast %cst_32 : f32 to vector<2x128xf32>
    %36 = arith.maximumf %34, %35 : vector<2x128xf32>
    %c0_33 = arith.constant 0 : index
    %c0_34 = arith.constant 0 : index
    %37 = vector.load %arg13[%c0_33, %c0_34] : memref<128x128xf32, #tpu.memory_space<vmem>>, vector<128x128xf32>
    %cst_35 = arith.constant dense<0.000000e+00> : vector<2x128xf32>
    %38 = tpu.matmul %36, %37, %cst_35 {dimension_numbers = #tpu.dot_dimension_numbers<[1], [0], [0], [1], [0, 0, 1, 1], [], []>} : vector<2x128xf32>, vector<128x128xf32>, vector<2x128xf32> -> vector<2x128xf32>
    %c0_36 = arith.constant 0 : index
    %c0_37 = arith.constant 0 : index
    %39 = vector.load %arg14[%c0_36, %c0_37] : memref<1x128xf32, #tpu.memory_space<vmem>>, vector<1x128xf32>
    %40 = vector.broadcast %39 : vector<1x128xf32> to vector<2x128xf32>
    %41 = arith.addf %38, %40 : vector<2x128xf32>
    %c0_38 = arith.constant 0 : index
    %c0_39 = arith.constant 0 : index
    %42 = vector.load %arg15[%c0_38, %c0_39] : memref<2x128xf32, #tpu.memory_space<vmem>>, vector<2x128xf32>
    tpu.vector_store %arg15[%c0_38, %c0_39], %41 {strides = array<i32>} : memref<2x128xf32, #tpu.memory_space<vmem>>, vector<2x128xf32>,
    return
  }
}

</mosaic_0001>

<llo_original>
// kernel: multi_model_forward.5
$region0: #{multi_model_forward.5}
  #allocation0 [shape = 'u32[]', space=smem, size = 0x4, offset = 0x4, fixed_abs, tag = 'smem constant byte address 0x4 - core index']
  #allocation1 [shape = 'u32[144,128]{1,0:T(1,128)}', space=vmem, size = 0x12000, scoped, tag = 'internal scratch']
  %s0 = inlined_call_operand.vmem [shape: bf16[128,128], index: 0, kind: input, shape index: {}]
  %s1 = inlined_call_operand.vmem [shape: bf16[128,128], index: 1, kind: input, shape index: {}]
  %s2 = inlined_call_operand.vmem [shape: bf16[128,128], index: 2, kind: input, shape index: {}]
  %s3 = inlined_call_operand.vmem [shape: bf16[128,128], index: 3, kind: input, shape index: {}]
  %s4 = inlined_call_operand.vmem [shape: bf16[128,128], index: 4, kind: input, shape index: {}]
  %s5 = inlined_call_operand.vmem [shape: f32[1,128], index: 5, kind: input, shape index: {}]
  %s6 = inlined_call_operand.vmem [shape: bf16[128,128], index: 6, kind: output, shape index: {}]
  %s7 = sld [smem:[#allocation0]]
  $region34: #{multi_model_forward.5} parent=0
    _
  %s9 = ssub.s32 1, %s7
  %s10 = scalar_select 0, %s9, %s7
  // Predicated region
  $region2: #{multi_model_forward.5} parent=0 // pred_check
    _
  $region3: #{multi_model_forward.5} parent=0 // pred_check_branch
    %12 = sbr.rel (0) target = $region5
  $region4: #{multi_model_forward.5} parent=0 // pred_region
    _
  $region5: #{multi_model_forward.5} parent=0 // pred_fallthru
    _
  // Predicated region
  $region6: #{multi_model_forward.5} parent=0 // pred_check
    _
  $region7: #{multi_model_forward.5} parent=0 // pred_check_branch
    %14 = sbr.rel (0) target = $region9
  $region8: #{multi_model_forward.5} parent=0 // pred_region
    _
  $region9: #{multi_model_forward.5} parent=0 // pred_fallthru
    _
  // Predicated region
  $region10: #{multi_model_forward.5} parent=0 // pred_check
    _
  $region11: #{multi_model_forward.5} parent=0 // pred_check_branch
    %16 = sbr.rel (0) target = $region13
  $region12: #{multi_model_forward.5} parent=0 // pred_region
    _
  $region13: #{multi_model_forward.5} parent=0 // pred_fallthru
    _
  // Predicated region
  $region14: #{multi_model_forward.5} parent=0 // pred_check
    _
  $region15: #{multi_model_forward.5} parent=0 // pred_check_branch
    %18 = sbr.rel (0) target = $region17
  $region16: #{multi_model_forward.5} parent=0 // pred_region
    _
  $region17: #{multi_model_forward.5} parent=0 // pred_fallthru
    _
  // Predicated region
  $region18: #{multi_model_forward.5} parent=0 // pred_check
    _
  $region19: #{multi_model_forward.5} parent=0 // pred_check_branch
    %20 = sbr.rel (0) target = $region21
  $region20: #{multi_model_forward.5} parent=0 // pred_region
    _
  $region21: #{multi_model_forward.5} parent=0 // pred_fallthru
    _
  // Predicated region
  $region22: #{multi_model_forward.5} parent=0 // pred_check
    _
  $region23: #{multi_model_forward.5} parent=0 // pred_check_branch
    %22 = sbr.rel (0) target = $region25
  $region24: #{multi_model_forward.5} parent=0 // pred_region
    _
  $region25: #{multi_model_forward.5} parent=0 // pred_fallthru
    _
  %v24 = vld [vmem:[%s4] sm:$0xf]
  %v25 = vld [vmem:[%s4 + $0x4] sm:$0xf]
  %v26 = vld [vmem:[%s4 + $0x8] sm:$0xf]
  %v27 = vld [vmem:[%s4 + $0xc] sm:$0xf]
  %v28 = vld [vmem:[%s4 + $0x10] sm:$0xf]
  %v29 = vld [vmem:[%s4 + $0x14] sm:$0xf]
  %v30 = vld [vmem:[%s4 + $0x18] sm:$0xf]
  %v31 = vld [vmem:[%s4 + $0x1c] sm:$0xf]
  %v32 = vld [vmem:[%s4 + $0x20] sm:$0xf]
  %v33 = vld [vmem:[%s4 + $0x24] sm:$0xf]
  %v34 = vld [vmem:[%s4 + $0x28] sm:$0xf]
  %v35 = vld [vmem:[%s4 + $0x2c] sm:$0xf]
  %v36 = vld [vmem:[%s4 + $0x30] sm:$0xf]
  %v37 = vld [vmem:[%s4 + $0x34] sm:$0xf]
  %v38 = vld [vmem:[%s4 + $0x38] sm:$0xf]
  %v39 = vld [vmem:[%s4 + $0x3c] sm:$0xf]
  %v40 = vld [vmem:[%s5] sm:$0x1]
  %v41 = vld [vmem:[%s0] sm:$0xf]
  %v42 = vld [vmem:[%s0 + $0x4] sm:$0xf]
  %v43 = vld [vmem:[%s0 + $0x8] sm:$0xf]
  %v44 = vld [vmem:[%s0 + $0xc] sm:$0xf]
  %v45 = vld [vmem:[%s0 + $0x10] sm:$0xf]
  %v46 = vld [vmem:[%s0 + $0x14] sm:$0xf]
  %v47 = vld [vmem:[%s0 + $0x18] sm:$0xf]
  %v48 = vld [vmem:[%s0 + $0x1c] sm:$0xf]
  %v49 = vld [vmem:[%s0 + $0x20] sm:$0xf]
  %v50 = vld [vmem:[%s0 + $0x24] sm:$0xf]
  %v51 = vld [vmem:[%s0 + $0x28] sm:$0xf]
  %v52 = vld [vmem:[%s0 + $0x2c] sm:$0xf]
  %v53 = vld [vmem:[%s0 + $0x30] sm:$0xf]
  %v54 = vld [vmem:[%s0 + $0x34] sm:$0xf]
  %v55 = vld [vmem:[%s0 + $0x38] sm:$0xf]
  %v56 = vld [vmem:[%s0 + $0x3c] sm:$0xf]
  %v58 = vlaneseq
  %v59 = vshrl.u32 %v58, 7
  %v60 = vsub.s32 0, %v59
  %v61 = vrot.slane %v40, %v60
  %v79 = vunpack.c.l.b16 %v41
  %v80 = vunpack.c.l.b16 %v42
  %v81 = vunpack.c.l.b16 %v43
  %v82 = vunpack.c.l.b16 %v44
  %v83 = vunpack.c.l.b16 %v45
  %v84 = vunpack.c.l.b16 %v46
  %v85 = vunpack.c.l.b16 %v47
  %v86 = vunpack.c.l.b16 %v48
  %v87 = vunpack.c.l.b16 %v49
  %v88 = vunpack.c.l.b16 %v50
  %v89 = vunpack.c.l.b16 %v51
  %v90 = vunpack.c.l.b16 %v52
  %v91 = vunpack.c.l.b16 %v53
  %v92 = vunpack.c.l.b16 %v54
  %v93 = vunpack.c.l.b16 %v55
  %v94 = vunpack.c.l.b16 %v56
  %v95 = vpack.c.b16 %v80, %v79
  %v96 = vpack.c.b16 %v82, %v81
  %v97 = vpack.c.b16 %v84, %v83
  %v98 = vpack.c.b16 %v86, %v85
  %v99 = vpack.c.b16 %v88, %v87
  %v100 = vpack.c.b16 %v90, %v89
  %v101 = vpack.c.b16 %v92, %v91
  %v102 = vpack.c.b16 %v94, %v93
  %v127 = vunpack.c.l.b16 %v24
  %v128 = vunpack.c.l.b16 %v25
  %v129 = vunpack.c.l.b16 %v26
  %v130 = vunpack.c.l.b16 %v27
  %v131 = vunpack.c.l.b16 %v28
  %v132 = vunpack.c.l.b16 %v29
  %v133 = vunpack.c.l.b16 %v30
  %v134 = vunpack.c.l.b16 %v31
  %v135 = vunpack.c.l.b16 %v32
  %v136 = vunpack.c.l.b16 %v33
  %v137 = vunpack.c.l.b16 %v34
  %v138 = vunpack.c.l.b16 %v35
  %v139 = vunpack.c.l.b16 %v36
  %v140 = vunpack.c.l.b16 %v37
  %v141 = vunpack.c.l.b16 %v38
  %v142 = vunpack.c.l.b16 %v39
  %v143 = vpack.c.b16 %v128, %v127
  %v144 = vpack.c.b16 %v130, %v129
  %v145 = vpack.c.b16 %v132, %v131
  %v146 = vpack.c.b16 %v134, %v133
  %v147 = vpack.c.b16 %v136, %v135
  %v148 = vpack.c.b16 %v138, %v137
  %v149 = vpack.c.b16 %v140, %v139
  %v150 = vpack.c.b16 %v142, %v141
  %159 = vmatprep.subr.bf16.mxu0 0
  %160 = vmatpush1.bf16.msra.mxu0 %v143
  %161 = vmatprep.subr.bf16.mxu0 0
  %162 = vmatpush1.bf16.msra.mxu0 %v144
  %163 = vmatprep.subr.bf16.mxu0 0
  %164 = vmatpush1.bf16.msra.mxu0 %v145
  %165 = vmatprep.subr.bf16.mxu0 0
  %166 = vmatpush1.bf16.msra.mxu0 %v146
  %167 = vmatprep.subr.bf16.mxu0 0
  %168 = vmatpush1.bf16.msra.mxu0 %v147
  %169 = vmatprep.subr.bf16.mxu0 0
  %170 = vmatpush1.bf16.msra.mxu0 %v148
  %171 = vmatprep.subr.bf16.mxu0 0
  %172 = vmatpush1.bf16.msra.mxu0 %v149
  %173 = vmatprep.subr.bf16.mxu0 0
  %174 = vmatpush1.bf16.msra.mxu0 %v150
  %175 = vmatprep.subr.bf16.mxu0 0
  %176 = vmatpush1.bf16.msra.mxu0 0
  %177 = vmatprep.subr.bf16.mxu0 0
  %178 = vmatpush1.bf16.msra.mxu0 0
  %179 = vmatprep.subr.bf16.mxu0 0
  %180 = vmatpush1.bf16.msra.mxu0 0
  %181 = vmatprep.subr.bf16.mxu0 0
  %182 = vmatpush1.bf16.msra.mxu0 0
  %183 = vmatprep.subr.bf16.mxu0 0
  %184 = vmatpush1.bf16.msra.mxu0 0
  %185 = vmatprep.subr.bf16.mxu0 0
  %186 = vmatpush1.bf16.msra.mxu0 0
  %187 = vmatprep.subr.bf16.mxu0 0
  %188 = vmatpush1.bf16.msra.mxu0 0
  %189 = vmatprep.subr.bf16.mxu0 0
  %190 = vmatpush1.bf16.msra.mxu0 0
  %191 = vmatprep.mubr.bf16.mxu0 0
  %192 = vmatmul.mubr.bf16.gmra.mrb[0].mxu0 %v95
  %v193 = vpop.f32.mrb[0].mxu0
  %v194 = vadd.f32 %v61, %v193
  %v195 = vpop.f32.mrb[0].mxu0
  %v196 = vpop.f32.mrb[0].mxu0
  %v197 = vadd.f32 %v61, %v196
  %v198 = vpop.f32.mrb[0].mxu0
  %199 = vmatprep.mubr.bf16.mxu0 0
  %200 = vmatmul.mubr.bf16.gmra.mrb[0].mxu0 %v96
  %v201 = vpop.f32.mrb[0].mxu0
  %v202 = vadd.f32 %v61, %v201
  %v203 = vpop.f32.mrb[0].mxu0
  %v204 = vpop.f32.mrb[0].mxu0
  %v205 = vadd.f32 %v61, %v204
  %v206 = vpop.f32.mrb[0].mxu0
  %207 = vmatprep.mubr.bf16.mxu0 0
  %208 = vmatmul.mubr.bf16.gmra.mrb[0].mxu0 %v97
  %v209 = vpop.f32.mrb[0].mxu0
  %v210 = vadd.f32 %v61, %v209
  %v211 = vpop.f32.mrb[0].mxu0
  %v212 = vpop.f32.mrb[0].mxu0
  %v213 = vadd.f32 %v61, %v212
  %v214 = vpop.f32.mrb[0].mxu0
  %215 = vmatprep.mubr.bf16.mxu0 0
  %216 = vmatmul.mubr.bf16.gmra.mrb[0].mxu0 %v98
  %v217 = vpop.f32.mrb[0].mxu0
  %v218 = vadd.f32 %v61, %v217
  %v219 = vpop.f32.mrb[0].mxu0
  %v220 = vpop.f32.mrb[0].mxu0
  %v221 = vadd.f32 %v61, %v220
  %v222 = vpop.f32.mrb[0].mxu0
  %223 = vmatprep.mubr.bf16.mxu0 0
  %224 = vmatmul.mubr.bf16.gmra.mrb[0].mxu0 %v99
  %v225 = vpop.f32.mrb[0].mxu0
  %v226 = vadd.f32 %v61, %v225
  %v227 = vpop.f32.mrb[0].mxu0
  %v228 = vpop.f32.mrb[0].mxu0
  %v229 = vadd.f32 %v61, %v228
  %v230 = vpop.f32.mrb[0].mxu0
  %231 = vmatprep.mubr.bf16.mxu0 0
  %232 = vmatmul.mubr.bf16.gmra.mrb[0].mxu0 %v100
  %v233 = vpop.f32.mrb[0].mxu0
  %v234 = vadd.f32 %v61, %v233
  %v235 = vpop.f32.mrb[0].mxu0
  %v236 = vpop.f32.mrb[0].mxu0
  %v237 = vadd.f32 %v61, %v236
  %v238 = vpop.f32.mrb[0].mxu0
  %239 = vmatprep.mubr.bf16.mxu0 0
  %240 = vmatmul.mubr.bf16.gmra.mrb[0].mxu0 %v101
  %v241 = vpop.f32.mrb[0].mxu0
  %v242 = vadd.f32 %v61, %v241
  %v243 = vpop.f32.mrb[0].mxu0
  %v244 = vpop.f32.mrb[0].mxu0
  %v245 = vadd.f32 %v61, %v244
  %v246 = vpop.f32.mrb[0].mxu0
  %247 = vmatprep.mubr.bf16.mxu0 0
  %248 = vmatmul.mubr.bf16.gmra.mrb[0].mxu0 %v102
  %v249 = vpop.f32.mrb[0].mxu0
  %v250 = vadd.f32 %v61, %v249
  %v251 = vpop.f32.mrb[0].mxu0
  %v252 = vpop.f32.mrb[0].mxu0
  %v253 = vadd.f32 %v61, %v252
  %v254 = vpop.f32.mrb[0].mxu0
  %255 = vdwg.mxu0
  %v256 = vmax.f32 %v194, 0.0
  %v257 = vmax.f32 %v197, 0.0
  %v258 = vmax.f32 %v202, 0.0
  %v259 = vmax.f32 %v205, 0.0
  %v260 = vmax.f32 %v210, 0.0
  %v261 = vmax.f32 %v213, 0.0
  %v262 = vmax.f32 %v218, 0.0
  %v263 = vmax.f32 %v221, 0.0
  %v264 = vmax.f32 %v226, 0.0
  %v265 = vmax.f32 %v229, 0.0
  %v266 = vmax.f32 %v234, 0.0
  %v267 = vmax.f32 %v237, 0.0
  %v268 = vmax.f32 %v242, 0.0
  %v269 = vmax.f32 %v245, 0.0
  %v270 = vmax.f32 %v250, 0.0
  %v271 = vmax.f32 %v253, 0.0
  %v272 = vld [vmem:[%s1] sm:$0xf]
  %v273 = vld [vmem:[%s1 + $0x4] sm:$0xf]
  %v274 = vld [vmem:[%s1 + $0x8] sm:$0xf]
  %v275 = vld [vmem:[%s1 + $0xc] sm:$0xf]
  %v276 = vld [vmem:[%s1 + $0x10] sm:$0xf]
  %v277 = vld [vmem:[%s1 + $0x14] sm:$0xf]
  %v278 = vld [vmem:[%s1 + $0x18] sm:$0xf]
  %v279 = vld [vmem:[%s1 + $0x1c] sm:$0xf]
  %v280 = vld [vmem:[%s1 + $0x20] sm:$0xf]
  %v281 = vld [vmem:[%s1 + $0x24] sm:$0xf]
  %v282 = vld [vmem:[%s1 + $0x28] sm:$0xf]
  %v283 = vld [vmem:[%s1 + $0x2c] sm:$0xf]
  %v284 = vld [vmem:[%s1 + $0x30] sm:$0xf]
  %v285 = vld [vmem:[%s1 + $0x34] sm:$0xf]
  %v286 = vld [vmem:[%s1 + $0x38] sm:$0xf]
  %v287 = vld [vmem:[%s1 + $0x3c] sm:$0xf]
  %v304 = vunpack.c.l.b16 %v272
  %v305 = vunpack.c.l.b16 %v273
  %v306 = vunpack.c.l.b16 %v274
  %v307 = vunpack.c.l.b16 %v275
  %v308 = vunpack.c.l.b16 %v276
  %v309 = vunpack.c.l.b16 %v277
  %v310 = vunpack.c.l.b16 %v278
  %v311 = vunpack.c.l.b16 %v279
  %v312 = vunpack.c.l.b16 %v280
  %v313 = vunpack.c.l.b16 %v281
  %v314 = vunpack.c.l.b16 %v282
  %v315 = vunpack.c.l.b16 %v283
  %v316 = vunpack.c.l.b16 %v284
  %v317 = vunpack.c.l.b16 %v285
  %v318 = vunpack.c.l.b16 %v286
  %v319 = vunpack.c.l.b16 %v287
  %v320 = vpack.c.b16 %v305, %v304
  %v321 = vpack.c.b16 %v307, %v306
  %v322 = vpack.c.b16 %v309, %v308
  %v323 = vpack.c.b16 %v311, %v310
  %v324 = vpack.c.b16 %v313, %v312
  %v325 = vpack.c.b16 %v315, %v314
  %v326 = vpack.c.b16 %v317, %v316
  %v327 = vpack.c.b16 %v319, %v318
  %336 = vmatprep.subr.bf16.mxu0 0
  %337 = vmatpush1.bf16.msra.mxu0 %v143
  %338 = vmatprep.subr.bf16.mxu0 0
  %339 = vmatpush1.bf16.msra.mxu0 %v144
  %340 = vmatprep.subr.bf16.mxu0 0
  %341 = vmatpush1.bf16.msra.mxu0 %v145
  %342 = vmatprep.subr.bf16.mxu0 0
  %343 = vmatpush1.bf16.msra.mxu0 %v146
  %344 = vmatprep.subr.bf16.mxu0 0
  %345 = vmatpush1.bf16.msra.mxu0 %v147
  %346 = vmatprep.subr.bf16.mxu0 0
  %347 = vmatpush1.bf16.msra.mxu0 %v148
  %348 = vmatprep.subr.bf16.mxu0 0
  %349 = vmatpush1.bf16.msra.mxu0 %v149
  %350 = vmatprep.subr.bf16.mxu0 0
  %351 = vmatpush1.bf16.msra.mxu0 %v150
  %352 = vmatprep.subr.bf16.mxu0 0
  %353 = vmatpush1.bf16.msra.mxu0 0
  %354 = vmatprep.subr.bf16.mxu0 0
  %355 = vmatpush1.bf16.msra.mxu0 0
  %356 = vmatprep.subr.bf16.mxu0 0
  %357 = vmatpush1.bf16.msra.mxu0 0
  %358 = vmatprep.subr.bf16.mxu0 0
  %359 = vmatpush1.bf16.msra.mxu0 0
  %360 = vmatprep.subr.bf16.mxu0 0
  %361 = vmatpush1.bf16.msra.mxu0 0
  %362 = vmatprep.subr.bf16.mxu0 0
  %363 = vmatpush1.bf16.msra.mxu0 0
  %364 = vmatprep.subr.bf16.mxu0 0
  %365 = vmatpush1.bf16.msra.mxu0 0
  %366 = vmatprep.subr.bf16.mxu0 0
  %367 = vmatpush1.bf16.msra.mxu0 0
  %368 = vmatprep.mubr.bf16.mxu0 0
  %369 = vmatmul.mubr.bf16.gmra.mrb[0].mxu0 %v320
  %v370 = vpop.f32.mrb[0].mxu0
  %v371 = vadd.f32 %v61, %v370
  %v372 = vpop.f32.mrb[0].mxu0
  %v373 = vpop.f32.mrb[0].mxu0
  %v374 = vadd.f32 %v61, %v373
  %v375 = vpop.f32.mrb[0].mxu0
  %376 = vmatprep.mubr.bf16.mxu0 0
  %377 = vmatmul.mubr.bf16.gmra.mrb[0].mxu0 %v321
  %v378 = vpop.f32.mrb[0].mxu0
  %v379 = vadd.f32 %v61, %v378
  %v380 = vpop.f32.mrb[0].mxu0
  %v381 = vpop.f32.mrb[0].mxu0
  %v382 = vadd.f32 %v61, %v381
  %v383 = vpop.f32.mrb[0].mxu0
  %384 = vmatprep.mubr.bf16.mxu0 0
  %385 = vmatmul.mubr.bf16.gmra.mrb[0].mxu0 %v322
  %v386 = vpop.f32.mrb[0].mxu0
  %v387 = vadd.f32 %v61, %v386
  %v388 = vpop.f32.mrb[0].mxu0
  %v389 = vpop.f32.mrb[0].mxu0
  %v390 = vadd.f32 %v61, %v389
  %v391 = vpop.f32.mrb[0].mxu0
  %392 = vmatprep.mubr.bf16.mxu0 0
  %393 = vmatmul.mubr.bf16.gmra.mrb[0].mxu0 %v323
  %v394 = vpop.f32.mrb[0].mxu0
  %v395 = vadd.f32 %v61, %v394
  %v396 = vpop.f32.mrb[0].mxu0
  %v397 = vpop.f32.mrb[0].mxu0
  %v398 = vadd.f32 %v61, %v397
  %v399 = vpop.f32.mrb[0].mxu0
  %400 = vmatprep.mubr.bf16.mxu0 0
  %401 = vmatmul.mubr.bf16.gmra.mrb[0].mxu0 %v324
  %v402 = vpop.f32.mrb[0].mxu0
  %v403 = vadd.f32 %v61, %v402
  %v404 = vpop.f32.mrb[0].mxu0
  %v405 = vpop.f32.mrb[0].mxu0
  %v406 = vadd.f32 %v61, %v405
  %v407 = vpop.f32.mrb[0].mxu0
  %408 = vmatprep.mubr.bf16.mxu0 0
  %409 = vmatmul.mubr.bf16.gmra.mrb[0].mxu0 %v325
  %v410 = vpop.f32.mrb[0].mxu0
  %v411 = vadd.f32 %v61, %v410
  %v412 = vpop.f32.mrb[0].mxu0
  %v413 = vpop.f32.mrb[0].mxu0
  %v414 = vadd.f32 %v61, %v413
  %v415 = vpop.f32.mrb[0].mxu0
  %416 = vmatprep.mubr.bf16.mxu0 0
  %417 = vmatmul.mubr.bf16.gmra.mrb[0].mxu0 %v326
  %v418 = vpop.f32.mrb[0].mxu0
  %v419 = vadd.f32 %v61, %v418
  %v420 = vpop.f32.mrb[0].mxu0
  %v421 = vpop.f32.mrb[0].mxu0
  %v422 = vadd.f32 %v61, %v421
  %v423 = vpop.f32.mrb[0].mxu0
  %424 = vmatprep.mubr.bf16.mxu0 0
  %425 = vmatmul.mubr.bf16.gmra.mrb[0].mxu0 %v327
  %v426 = vpop.f32.mrb[0].mxu0
  %v427 = vadd.f32 %v61, %v426
  %v428 = vpop.f32.mrb[0].mxu0
  %v429 = vpop.f32.mrb[0].mxu0
  %v430 = vadd.f32 %v61, %v429
  %v431 = vpop.f32.mrb[0].mxu0
  %432 = vdwg.mxu0
  %v433 = vmax.f32 %v371, 0.0
  %v434 = vmax.f32 %v374, 0.0
  %v435 = vmax.f32 %v379, 0.0
  %v436 = vmax.f32 %v382, 0.0
  %v437 = vmax.f32 %v387, 0.0
  %v438 = vmax.f32 %v390, 0.0
  %v439 = vmax.f32 %v395, 0.0
  %v440 = vmax.f32 %v398, 0.0
  %v441 = vmax.f32 %v403, 0.0
  %v442 = vmax.f32 %v406, 0.0
  %v443 = vmax.f32 %v411, 0.0
  %v444 = vmax.f32 %v414, 0.0
  %v445 = vmax.f32 %v419, 0.0
  %v446 = vmax.f32 %v422, 0.0
  %v447 = vmax.f32 %v427, 0.0
  %v448 = vmax.f32 %v430, 0.0
  %v449 = vmax.f32 %v256, %v433
  %v450 = vmax.f32 %v257, %v434
  %v451 = vmax.f32 %v258, %v435
  %v452 = vmax.f32 %v259, %v436
  %v453 = vmax.f32 %v260, %v437
  %v454 = vmax.f32 %v261, %v438
  %v455 = vmax.f32 %v262, %v439
  %v456 = vmax.f32 %v263, %v440
  %v457 = vmax.f32 %v264, %v441
  %v458 = vmax.f32 %v265, %v442
  %v459 = vmax.f32 %v266, %v443
  %v460 = vmax.f32 %v267, %v444
  %v461 = vmax.f32 %v268, %v445
  %v462 = vmax.f32 %v269, %v446
  %v463 = vmax.f32 %v270, %v447
  %v464 = vmax.f32 %v271, %v448
  %v465 = vld [vmem:[%s2] sm:$0xf]
  %v466 = vld [vmem:[%s2 + $0x4] sm:$0xf]
  %v467 = vld [vmem:[%s2 + $0x8] sm:$0xf]
  %v468 = vld [vmem:[%s2 + $0xc] sm:$0xf]
  %v469 = vld [vmem:[%s2 + $0x10] sm:$0xf]
  %v470 = vld [vmem:[%s2 + $0x14] sm:$0xf]
  %v471 = vld [vmem:[%s2 + $0x18] sm:$0xf]
  %v472 = vld [vmem:[%s2 + $0x1c] sm:$0xf]
  %v473 = vld [vmem:[%s2 + $0x20] sm:$0xf]
  %v474 = vld [vmem:[%s2 + $0x24] sm:$0xf]
  %v475 = vld [vmem:[%s2 + $0x28] sm:$0xf]
  %v476 = vld [vmem:[%s2 + $0x2c] sm:$0xf]
  %v477 = vld [vmem:[%s2 + $0x30] sm:$0xf]
  %v478 = vld [vmem:[%s2 + $0x34] sm:$0xf]
  %v479 = vld [vmem:[%s2 + $0x38] sm:$0xf]
  %v480 = vld [vmem:[%s2 + $0x3c] sm:$0xf]
  %v497 = vunpack.c.l.b16 %v465
  %v498 = vunpack.c.l.b16 %v466
  %v499 = vunpack.c.l.b16 %v467
  %v500 = vunpack.c.l.b16 %v468
  %v501 = vunpack.c.l.b16 %v469
  %v502 = vunpack.c.l.b16 %v470
  %v503 = vunpack.c.l.b16 %v471
  %v504 = vunpack.c.l.b16 %v472
  %v505 = vunpack.c.l.b16 %v473
  %v506 = vunpack.c.l.b16 %v474
  %v507 = vunpack.c.l.b16 %v475
  %v508 = vunpack.c.l.b16 %v476
  %v509 = vunpack.c.l.b16 %v477
  %v510 = vunpack.c.l.b16 %v478
  %v511 = vunpack.c.l.b16 %v479
  %v512 = vunpack.c.l.b16 %v480
  %v513 = vpack.c.b16 %v498, %v497
  %v514 = vpack.c.b16 %v500, %v499
  %v515 = vpack.c.b16 %v502, %v501
  %v516 = vpack.c.b16 %v504, %v503
  %v517 = vpack.c.b16 %v506, %v505
  %v518 = vpack.c.b16 %v508, %v507
  %v519 = vpack.c.b16 %v510, %v509
  %v520 = vpack.c.b16 %v512, %v511
  %529 = vmatprep.subr.bf16.mxu0 0
  %530 = vmatpush1.bf16.msra.mxu0 %v143
  %531 = vmatprep.subr.bf16.mxu0 0
  %532 = vmatpush1.bf16.msra.mxu0 %v144
  %533 = vmatprep.subr.bf16.mxu0 0
  %534 = vmatpush1.bf16.msra.mxu0 %v145
  %535 = vmatprep.subr.bf16.mxu0 0
  %536 = vmatpush1.bf16.msra.mxu0 %v146
  %537 = vmatprep.subr.bf16.mxu0 0
  %538 = vmatpush1.bf16.msra.mxu0 %v147
  %539 = vmatprep.subr.bf16.mxu0 0
  %540 = vmatpush1.bf16.msra.mxu0 %v148
  %541 = vmatprep.subr.bf16.mxu0 0
  %542 = vmatpush1.bf16.msra.mxu0 %v149
  %543 = vmatprep.subr.bf16.mxu0 0
  %544 = vmatpush1.bf16.msra.mxu0 %v150
  %545 = vmatprep.subr.bf16.mxu0 0
  %546 = vmatpush1.bf16.msra.mxu0 0
  %547 = vmatprep.subr.bf16.mxu0 0
  %548 = vmatpush1.bf16.msra.mxu0 0
  %549 = vmatprep.subr.bf16.mxu0 0
  %550 = vmatpush1.bf16.msra.mxu0 0
  %551 = vmatprep.subr.bf16.mxu0 0
  %552 = vmatpush1.bf16.msra.mxu0 0
  %553 = vmatprep.subr.bf16.mxu0 0
  %554 = vmatpush1.bf16.msra.mxu0 0
  %555 = vmatprep.subr.bf16.mxu0 0
  %556 = vmatpush1.bf16.msra.mxu0 0
  %557 = vmatprep.subr.bf16.mxu0 0
  %558 = vmatpush1.bf16.msra.mxu0 0
  %559 = vmatprep.subr.bf16.mxu0 0
  %560 = vmatpush1.bf16.msra.mxu0 0
  %561 = vmatprep.mubr.bf16.mxu0 0
  %562 = vmatmul.mubr.bf16.gmra.mrb[0].mxu0 %v513
  %v563 = vpop.f32.mrb[0].mxu0
  %v564 = vadd.f32 %v61, %v563
  %v565 = vpop.f32.mrb[0].mxu0
  %v566 = vpop.f32.mrb[0].mxu0
  %v567 = vadd.f32 %v61, %v566
  %v568 = vpop.f32.mrb[0].mxu0
  %569 = vmatprep.mubr.bf16.mxu0 0
  %570 = vmatmul.mubr.bf16.gmra.mrb[0].mxu0 %v514
  %v571 = vpop.f32.mrb[0].mxu0
  %v572 = vadd.f32 %v61, %v571
  %v573 = vpop.f32.mrb[0].mxu0
  %v574 = vpop.f32.mrb[0].mxu0
  %v575 = vadd.f32 %v61, %v574
  %v576 = vpop.f32.mrb[0].mxu0
  %577 = vmatprep.mubr.bf16.mxu0 0
  %578 = vmatmul.mubr.bf16.gmra.mrb[0].mxu0 %v515
  %v579 = vpop.f32.mrb[0].mxu0
  %v580 = vadd.f32 %v61, %v579
  %v581 = vpop.f32.mrb[0].mxu0
  %v582 = vpop.f32.mrb[0].mxu0
  %v583 = vadd.f32 %v61, %v582
  %v584 = vpop.f32.mrb[0].mxu0
  %585 = vmatprep.mubr.bf16.mxu0 0
  %586 = vmatmul.mubr.bf16.gmra.mrb[0].mxu0 %v516
  %v587 = vpop.f32.mrb[0].mxu0
  %v588 = vadd.f32 %v61, %v587
  %v589 = vpop.f32.mrb[0].mxu0
  %v590 = vpop.f32.mrb[0].mxu0
  %v591 = vadd.f32 %v61, %v590
  %v592 = vpop.f32.mrb[0].mxu0
  %593 = vmatprep.mubr.bf16.mxu0 0
  %594 = vmatmul.mubr.bf16.gmra.mrb[0].mxu0 %v517
  %v595 = vpop.f32.mrb[0].mxu0
  %v596 = vadd.f32 %v61, %v595
  %v597 = vpop.f32.mrb[0].mxu0
  %v598 = vpop.f32.mrb[0].mxu0
  %v599 = vadd.f32 %v61, %v598
  %v600 = vpop.f32.mrb[0].mxu0
  %601 = vmatprep.mubr.bf16.mxu0 0
  %602 = vmatmul.mubr.bf16.gmra.mrb[0].mxu0 %v518
  %v603 = vpop.f32.mrb[0].mxu0
  %v604 = vadd.f32 %v61, %v603
  %v605 = vpop.f32.mrb[0].mxu0
  %v606 = vpop.f32.mrb[0].mxu0
  %v607 = vadd.f32 %v61, %v606
  %v608 = vpop.f32.mrb[0].mxu0
  %609 = vmatprep.mubr.bf16.mxu0 0
  %610 = vmatmul.mubr.bf16.gmra.mrb[0].mxu0 %v519
  %v611 = vpop.f32.mrb[0].mxu0
  %v612 = vadd.f32 %v61, %v611
  %v613 = vpop.f32.mrb[0].mxu0
  %v614 = vpop.f32.mrb[0].mxu0
  %v615 = vadd.f32 %v61, %v614
  %v616 = vpop.f32.mrb[0].mxu0
  %617 = vmatprep.mubr.bf16.mxu0 0
  %618 = vmatmul.mubr.bf16.gmra.mrb[0].mxu0 %v520
  %v619 = vpop.f32.mrb[0].mxu0
  %v620 = vadd.f32 %v61, %v619
  %v621 = vpop.f32.mrb[0].mxu0
  %v622 = vpop.f32.mrb[0].mxu0
  %v623 = vadd.f32 %v61, %v622
  %v624 = vpop.f32.mrb[0].mxu0
  %625 = vdwg.mxu0
  %v626 = vmax.f32 %v564, 0.0
  %v627 = vmax.f32 %v567, 0.0
  %v628 = vmax.f32 %v572, 0.0
  %v629 = vmax.f32 %v575, 0.0
  %v630 = vmax.f32 %v580, 0.0
  %v631 = vmax.f32 %v583, 0.0
  %v632 = vmax.f32 %v588, 0.0
  %v633 = vmax.f32 %v591, 0.0
  %v634 = vmax.f32 %v596, 0.0
  %v635 = vmax.f32 %v599, 0.0
  %v636 = vmax.f32 %v604, 0.0
  %v637 = vmax.f32 %v607, 0.0
  %v638 = vmax.f32 %v612, 0.0
  %v639 = vmax.f32 %v615, 0.0
  %v640 = vmax.f32 %v620, 0.0
  %v641 = vmax.f32 %v623, 0.0
  %v642 = vld [vmem:[%s3] sm:$0xf]
  %v643 = vld [vmem:[%s3 + $0x4] sm:$0xf]
  %v644 = vld [vmem:[%s3 + $0x8] sm:$0xf]
  %v645 = vld [vmem:[%s3 + $0xc] sm:$0xf]
  %v646 = vld [vmem:[%s3 + $0x10] sm:$0xf]
  %v647 = vld [vmem:[%s3 + $0x14] sm:$0xf]
  %v648 = vld [vmem:[%s3 + $0x18] sm:$0xf]
  %v649 = vld [vmem:[%s3 + $0x1c] sm:$0xf]
  %v650 = vld [vmem:[%s3 + $0x20] sm:$0xf]
  %v651 = vld [vmem:[%s3 + $0x24] sm:$0xf]
  %v652 = vld [vmem:[%s3 + $0x28] sm:$0xf]
  %v653 = vld [vmem:[%s3 + $0x2c] sm:$0xf]
  %v654 = vld [vmem:[%s3 + $0x30] sm:$0xf]
  %v655 = vld [vmem:[%s3 + $0x34] sm:$0xf]
  %v656 = vld [vmem:[%s3 + $0x38] sm:$0xf]
  %v657 = vld [vmem:[%s3 + $0x3c] sm:$0xf]
  %v674 = vunpack.c.l.b16 %v642
  %v675 = vunpack.c.l.b16 %v643
  %v676 = vunpack.c.l.b16 %v644
  %v677 = vunpack.c.l.b16 %v645
  %v678 = vunpack.c.l.b16 %v646
  %v679 = vunpack.c.l.b16 %v647
  %v680 = vunpack.c.l.b16 %v648
  %v681 = vunpack.c.l.b16 %v649
  %v682 = vunpack.c.l.b16 %v650
  %v683 = vunpack.c.l.b16 %v651
  %v684 = vunpack.c.l.b16 %v652
  %v685 = vunpack.c.l.b16 %v653
  %v686 = vunpack.c.l.b16 %v654
  %v687 = vunpack.c.l.b16 %v655
  %v688 = vunpack.c.l.b16 %v656
  %v689 = vunpack.c.l.b16 %v657
  %v690 = vpack.c.b16 %v675, %v674
  %v691 = vpack.c.b16 %v677, %v676
  %v692 = vpack.c.b16 %v679, %v678
  %v693 = vpack.c.b16 %v681, %v680
  %v694 = vpack.c.b16 %v683, %v682
  %v695 = vpack.c.b16 %v685, %v684
  %v696 = vpack.c.b16 %v687, %v686
  %v697 = vpack.c.b16 %v689, %v688
  %706 = vmatprep.subr.bf16.mxu0 0
  %707 = vmatpush1.bf16.msra.mxu0 %v143
  %708 = vmatprep.subr.bf16.mxu0 0
  %709 = vmatpush1.bf16.msra.mxu0 %v144
  %710 = vmatprep.subr.bf16.mxu0 0
  %711 = vmatpush1.bf16.msra.mxu0 %v145
  %712 = vmatprep.subr.bf16.mxu0 0
  %713 = vmatpush1.bf16.msra.mxu0 %v146
  %714 = vmatprep.subr.bf16.mxu0 0
  %715 = vmatpush1.bf16.msra.mxu0 %v147
  %716 = vmatprep.subr.bf16.mxu0 0
  %717 = vmatpush1.bf16.msra.mxu0 %v148
  %718 = vmatprep.subr.bf16.mxu0 0
  %719 = vmatpush1.bf16.msra.mxu0 %v149
  %720 = vmatprep.subr.bf16.mxu0 0
  %721 = vmatpush1.bf16.msra.mxu0 %v150
  %722 = vmatprep.subr.bf16.mxu0 0
  %723 = vmatpush1.bf16.msra.mxu0 0
  %724 = vmatprep.subr.bf16.mxu0 0
  %725 = vmatpush1.bf16.msra.mxu0 0
  %726 = vmatprep.subr.bf16.mxu0 0
  %727 = vmatpush1.bf16.msra.mxu0 0
  %728 = vmatprep.subr.bf16.mxu0 0
  %729 = vmatpush1.bf16.msra.mxu0 0
  %730 = vmatprep.subr.bf16.mxu0 0
  %731 = vmatpush1.bf16.msra.mxu0 0
  %732 = vmatprep.subr.bf16.mxu0 0
  %733 = vmatpush1.bf16.msra.mxu0 0
  %734 = vmatprep.subr.bf16.mxu0 0
  %735 = vmatpush1.bf16.msra.mxu0 0
  %736 = vmatprep.subr.bf16.mxu0 0
  %737 = vmatpush1.bf16.msra.mxu0 0
  %738 = vmatprep.mubr.bf16.mxu0 0
  %739 = vmatmul.mubr.bf16.gmra.mrb[0].mxu0 %v690
  %v740 = vpop.f32.mrb[0].mxu0
  %v741 = vadd.f32 %v61, %v740
  %v742 = vpop.f32.mrb[0].mxu0
  %v743 = vpop.f32.mrb[0].mxu0
  %v744 = vadd.f32 %v61, %v743
  %v745 = vpop.f32.mrb[0].mxu0
  %746 = vmatprep.mubr.bf16.mxu0 0
  %747 = vmatmul.mubr.bf16.gmra.mrb[0].mxu0 %v691
  %v748 = vpop.f32.mrb[0].mxu0
  %v749 = vadd.f32 %v61, %v748
  %v750 = vpop.f32.mrb[0].mxu0
  %v751 = vpop.f32.mrb[0].mxu0
  %v752 = vadd.f32 %v61, %v751
  %v753 = vpop.f32.mrb[0].mxu0
  %754 = vmatprep.mubr.bf16.mxu0 0
  %755 = vmatmul.mubr.bf16.gmra.mrb[0].mxu0 %v692
  %v756 = vpop.f32.mrb[0].mxu0
  %v757 = vadd.f32 %v61, %v756
  %v758 = vpop.f32.mrb[0].mxu0
  %v759 = vpop.f32.mrb[0].mxu0
  %v760 = vadd.f32 %v61, %v759
  %v761 = vpop.f32.mrb[0].mxu0
  %762 = vmatprep.mubr.bf16.mxu0 0
  %763 = vmatmul.mubr.bf16.gmra.mrb[0].mxu0 %v693
  %v764 = vpop.f32.mrb[0].mxu0
  %v765 = vadd.f32 %v61, %v764
  %v766 = vpop.f32.mrb[0].mxu0
  %v767 = vpop.f32.mrb[0].mxu0
  %v768 = vadd.f32 %v61, %v767
  %v769 = vpop.f32.mrb[0].mxu0
  %770 = vmatprep.mubr.bf16.mxu0 0
  %771 = vmatmul.mubr.bf16.gmra.mrb[0].mxu0 %v694
  %v772 = vpop.f32.mrb[0].mxu0
  %v773 = vadd.f32 %v61, %v772
  %v774 = vpop.f32.mrb[0].mxu0
  %v775 = vpop.f32.mrb[0].mxu0
  %v776 = vadd.f32 %v61, %v775
  %v777 = vpop.f32.mrb[0].mxu0
  %778 = vmatprep.mubr.bf16.mxu0 0
  %779 = vmatmul.mubr.bf16.gmra.mrb[0].mxu0 %v695
  %v780 = vpop.f32.mrb[0].mxu0
  %v781 = vadd.f32 %v61, %v780
  %v782 = vpop.f32.mrb[0].mxu0
  %v783 = vpop.f32.mrb[0].mxu0
  %v784 = vadd.f32 %v61, %v783
  %v785 = vpop.f32.mrb[0].mxu0
  %786 = vmatprep.mubr.bf16.mxu0 0
  %787 = vmatmul.mubr.bf16.gmra.mrb[0].mxu0 %v696
  %v788 = vpop.f32.mrb[0].mxu0
  %v789 = vadd.f32 %v61, %v788
  %v790 = vpop.f32.mrb[0].mxu0
  %v791 = vpop.f32.mrb[0].mxu0
  %v792 = vadd.f32 %v61, %v791
  %v793 = vpop.f32.mrb[0].mxu0
  %794 = vmatprep.mubr.bf16.mxu0 0
  %795 = vmatmul.mubr.bf16.gmra.mrb[0].mxu0 %v697
  %v796 = vpop.f32.mrb[0].mxu0
  %v797 = vadd.f32 %v61, %v796
  %v798 = vpop.f32.mrb[0].mxu0
  %v799 = vpop.f32.mrb[0].mxu0
  %v800 = vadd.f32 %v61, %v799
  %v801 = vpop.f32.mrb[0].mxu0
  %802 = vdwg.mxu0
  %v803 = vmax.f32 %v741, 0.0
  %v804 = vmax.f32 %v744, 0.0
  %v805 = vmax.f32 %v749, 0.0
  %v806 = vmax.f32 %v752, 0.0
  %v807 = vmax.f32 %v757, 0.0
  %v808 = vmax.f32 %v760, 0.0
  %v809 = vmax.f32 %v765, 0.0
  %v810 = vmax.f32 %v768, 0.0
  %v811 = vmax.f32 %v773, 0.0
  %v812 = vmax.f32 %v776, 0.0
  %v813 = vmax.f32 %v781, 0.0
  %v814 = vmax.f32 %v784, 0.0
  %v815 = vmax.f32 %v789, 0.0
  %v816 = vmax.f32 %v792, 0.0
  %v817 = vmax.f32 %v797, 0.0
  %v818 = vmax.f32 %v800, 0.0
  %v819 = vmax.f32 %v626, %v803
  %v820 = vmax.f32 %v627, %v804
  %v821 = vmax.f32 %v628, %v805
  %v822 = vmax.f32 %v629, %v806
  %v823 = vmax.f32 %v630, %v807
  %v824 = vmax.f32 %v631, %v808
  %v825 = vmax.f32 %v632, %v809
  %v826 = vmax.f32 %v633, %v810
  %v827 = vmax.f32 %v634, %v811
  %v828 = vmax.f32 %v635, %v812
  %v829 = vmax.f32 %v636, %v813
  %v830 = vmax.f32 %v637, %v814
  %v831 = vmax.f32 %v638, %v815
  %v832 = vmax.f32 %v639, %v816
  %v833 = vmax.f32 %v640, %v817
  %v834 = vmax.f32 %v641, %v818
  %v835 = vmax.f32 %v449, %v819
  %v836 = vmax.f32 %v450, %v820
  %v837 = vmax.f32 %v451, %v821
  %v838 = vmax.f32 %v452, %v822
  %v839 = vmax.f32 %v453, %v823
  %v840 = vmax.f32 %v454, %v824
  %v841 = vmax.f32 %v455, %v825
  %v842 = vmax.f32 %v456, %v826
  %v843 = vmax.f32 %v457, %v827
  %v844 = vmax.f32 %v458, %v828
  %v845 = vmax.f32 %v459, %v829
  %v846 = vmax.f32 %v460, %v830
  %v847 = vmax.f32 %v461, %v831
  %v848 = vmax.f32 %v462, %v832
  %v849 = vmax.f32 %v463, %v833
  %v850 = vmax.f32 %v464, %v834
  %v851 = vpack.c.bf16 %v836, %v835
  %v852 = vpack.c.bf16 %v838, %v837
  %v853 = vpack.c.bf16 %v840, %v839
  %v854 = vpack.c.bf16 %v842, %v841
  %v855 = vpack.c.bf16 %v844, %v843
  %v856 = vpack.c.bf16 %v846, %v845
  %v857 = vpack.c.bf16 %v848, %v847
  %v858 = vpack.c.bf16 %v850, %v849
  %v867 = vunpack.c.l.b16 %v851
  %v868 = vunpack.c.h.b16 %v851
  %v869 = vunpack.c.l.b16 %v852
  %v870 = vunpack.c.h.b16 %v852
  %v871 = vunpack.c.l.b16 %v853
  %v872 = vunpack.c.h.b16 %v853
  %v873 = vunpack.c.l.b16 %v854
  %v874 = vunpack.c.h.b16 %v854
  %v875 = vunpack.c.l.b16 %v855
  %v876 = vunpack.c.h.b16 %v855
  %v877 = vunpack.c.l.b16 %v856
  %v878 = vunpack.c.h.b16 %v856
  %v879 = vunpack.c.l.b16 %v857
  %v880 = vunpack.c.h.b16 %v857
  %v881 = vunpack.c.l.b16 %v858
  %v882 = vunpack.c.h.b16 %v858
  %v883 = vpack.c.b16 %v867, %v867
  %v884 = vpack.c.b16 %v868, %v868
  %v885 = vpack.c.b16 %v869, %v869
  %v886 = vpack.c.b16 %v870, %v870
  %v887 = vpack.c.b16 %v871, %v871
  %v888 = vpack.c.b16 %v872, %v872
  %v889 = vpack.c.b16 %v873, %v873
  %v890 = vpack.c.b16 %v874, %v874
  %v891 = vpack.c.b16 %v875, %v875
  %v892 = vpack.c.b16 %v876, %v876
  %v893 = vpack.c.b16 %v877, %v877
  %v894 = vpack.c.b16 %v878, %v878
  %v895 = vpack.c.b16 %v879, %v879
  %v896 = vpack.c.b16 %v880, %v880
  %v897 = vpack.c.b16 %v881, %v881
  %v898 = vpack.c.b16 %v882, %v882
  %915 = vst [vmem:[%s6] sm:$0xf] %v883
  %916 = vst [vmem:[%s6 + $0x4] sm:$0xf] %v884
  %917 = vst [vmem:[%s6 + $0x8] sm:$0xf] %v885
  %918 = vst [vmem:[%s6 + $0xc] sm:$0xf] %v886
  %919 = vst [vmem:[%s6 + $0x10] sm:$0xf] %v887
  %920 = vst [vmem:[%s6 + $0x14] sm:$0xf] %v888
  %921 = vst [vmem:[%s6 + $0x18] sm:$0xf] %v889
  %922 = vst [vmem:[%s6 + $0x1c] sm:$0xf] %v890
  %923 = vst [vmem:[%s6 + $0x20] sm:$0xf] %v891
  %924 = vst [vmem:[%s6 + $0x24] sm:$0xf] %v892
  %925 = vst [vmem:[%s6 + $0x28] sm:$0xf] %v893
  %926 = vst [vmem:[%s6 + $0x2c] sm:$0xf] %v894
  %927 = vst [vmem:[%s6 + $0x30] sm:$0xf] %v895
  %928 = vst [vmem:[%s6 + $0x34] sm:$0xf] %v896
  %929 = vst [vmem:[%s6 + $0x38] sm:$0xf] %v897
  %930 = vst [vmem:[%s6 + $0x3c] sm:$0xf] %v898
  // Predicated region
  $region26: #{multi_model_forward.5} parent=0 // pred_check
    _
  $region27: #{multi_model_forward.5} parent=0 // pred_check_branch
    %932 = sbr.rel (0) target = $region29
  $region28: #{multi_model_forward.5} parent=0 // pred_region
    _
  $region29: #{multi_model_forward.5} parent=0 // pred_fallthru
    _
  // Predicated region
  $region30: #{multi_model_forward.5} parent=0 // pred_check
    _
  $region31: #{multi_model_forward.5} parent=0 // pred_check_branch
    %934 = sbr.rel (0) target = $region33
  $region32: #{multi_model_forward.5} parent=0 // pred_region
    _
  $region33: #{multi_model_forward.5} parent=0 // pred_fallthru
    _

// kernel: multi_model_forward.6
$region0: #{multi_model_forward.6}
  #allocation0 [shape = 'u32[]', space=smem, size = 0x4, offset = 0x4, fixed_abs, tag = 'smem constant byte address 0x4 - core index']
  #allocation1 [shape = 'u32[144,128]{1,0:T(1,128)}', space=vmem, size = 0x12000, scoped, tag = 'internal scratch']
  %s0 = inlined_call_operand.vmem [shape: bf16[32,1152], index: 0, kind: input, shape index: {}]
  %s1 = inlined_call_operand.vmem [shape: bf16[32,1152], index: 1, kind: input, shape index: {}]
  %s2 = inlined_call_operand.vmem [shape: bf16[32,1152], index: 2, kind: input, shape index: {}]
  %s3 = inlined_call_operand.vmem [shape: bf16[32,1152], index: 3, kind: input, shape index: {}]
  %s4 = inlined_call_operand.vmem [shape: bf16[1152,128], index: 4, kind: input, shape index: {}]
  %s5 = inlined_call_operand.vmem [shape: f32[1,128], index: 5, kind: input, shape index: {}]
  %s6 = inlined_call_operand.vmem [shape: bf16[32,128], index: 6, kind: output, shape index: {}]
  %s7 = sld [smem:[#allocation0]]
  $region34: #{multi_model_forward.6} parent=0
    _
  %s9 = ssub.s32 1, %s7
  %s10 = scalar_select 0, %s9, %s7
  // Predicated region
  $region2: #{multi_model_forward.6} parent=0 // pred_check
    _
  $region3: #{multi_model_forward.6} parent=0 // pred_check_branch
    %12 = sbr.rel (0) target = $region5
  $region4: #{multi_model_forward.6} parent=0 // pred_region
    _
  $region5: #{multi_model_forward.6} parent=0 // pred_fallthru
    _
  // Predicated region
  $region6: #{multi_model_forward.6} parent=0 // pred_check
    _
  $region7: #{multi_model_forward.6} parent=0 // pred_check_branch
    %14 = sbr.rel (0) target = $region9
  $region8: #{multi_model_forward.6} parent=0 // pred_region
    _
  $region9: #{multi_model_forward.6} parent=0 // pred_fallthru
    _
  // Predicated region
  $region10: #{multi_model_forward.6} parent=0 // pred_check
    _
  $region11: #{multi_model_forward.6} parent=0 // pred_check_branch
    %16 = sbr.rel (0) target = $region13
  $region12: #{multi_model_forward.6} parent=0 // pred_region
    _
  $region13: #{multi_model_forward.6} parent=0 // pred_fallthru
    _
  // Predicated region
  $region14: #{multi_model_forward.6} parent=0 // pred_check
    _
  $region15: #{multi_model_forward.6} parent=0 // pred_check_branch
    %18 = sbr.rel (0) target = $region17
  $region16: #{multi_model_forward.6} parent=0 // pred_region
    _
  $region17: #{multi_model_forward.6} parent=0 // pred_fallthru
    _
  // Predicated region
  $region18: #{multi_model_forward.6} parent=0 // pred_check
    _
  $region19: #{multi_model_forward.6} parent=0 // pred_check_branch
    %20 = sbr.rel (0) target = $region21
  $region20: #{multi_model_forward.6} parent=0 // pred_region
    _
  $region21: #{multi_model_forward.6} parent=0 // pred_fallthru
    _
  // Predicated region
  $region22: #{multi_model_forward.6} parent=0 // pred_check
    _
  $region23: #{multi_model_forward.6} parent=0 // pred_check_branch
    %22 = sbr.rel (0) target = $region25
  $region24: #{multi_model_forward.6} parent=0 // pred_region
    _
  $region25: #{multi_model_forward.6} parent=0 // pred_fallthru
    _
  %v24 = vld [vmem:[%s4] sm:$0xf]
  %v25 = vld [vmem:[%s4 + $0x4] sm:$0xf]
  %v26 = vld [vmem:[%s4 + $0x8] sm:$0xf]
  %v27 = vld [vmem:[%s4 + $0xc] sm:$0xf]
  %v28 = vld [vmem:[%s4 + $0x10] sm:$0xf]
  %v29 = vld [vmem:[%s4 + $0x14] sm:$0xf]
  %v30 = vld [vmem:[%s4 + $0x18] sm:$0xf]
  %v31 = vld [vmem:[%s4 + $0x1c] sm:$0xf]
  %v32 = vld [vmem:[%s4 + $0x20] sm:$0xf]
  %v33 = vld [vmem:[%s4 + $0x24] sm:$0xf]
  %v34 = vld [vmem:[%s4 + $0x28] sm:$0xf]
  %v35 = vld [vmem:[%s4 + $0x2c] sm:$0xf]
  %v36 = vld [vmem:[%s4 + $0x30] sm:$0xf]
  %v37 = vld [vmem:[%s4 + $0x34] sm:$0xf]
  %v38 = vld [vmem:[%s4 + $0x38] sm:$0xf]
  %v39 = vld [vmem:[%s4 + $0x3c] sm:$0xf]
  %v40 = vld [vmem:[%s4 + $0x40] sm:$0xf]
  %v41 = vld [vmem:[%s4 + $0x44] sm:$0xf]
  %v42 = vld [vmem:[%s4 + $0x48] sm:$0xf]
  %v43 = vld [vmem:[%s4 + $0x4c] sm:$0xf]
  %v44 = vld [vmem:[%s4 + $0x50] sm:$0xf]
  %v45 = vld [vmem:[%s4 + $0x54] sm:$0xf]
  %v46 = vld [vmem:[%s4 + $0x58] sm:$0xf]
  %v47 = vld [vmem:[%s4 + $0x5c] sm:$0xf]
  %v48 = vld [vmem:[%s4 + $0x60] sm:$0xf]
  %v49 = vld [vmem:[%s4 + $0x64] sm:$0xf]
  %v50 = vld [vmem:[%s4 + $0x68] sm:$0xf]
  %v51 = vld [vmem:[%s4 + $0x6c] sm:$0xf]
  %v52 = vld [vmem:[%s4 + $0x70] sm:$0xf]
  %v53 = vld [vmem:[%s4 + $0x74] sm:$0xf]
  %v54 = vld [vmem:[%s4 + $0x78] sm:$0xf]
  %v55 = vld [vmem:[%s4 + $0x7c] sm:$0xf]
  %v56 = vld [vmem:[%s4 + $0x80] sm:$0xf]
  %v57 = vld [vmem:[%s4 + $0x84] sm:$0xf]
  %v58 = vld [vmem:[%s4 + $0x88] sm:$0xf]
  %v59 = vld [vmem:[%s4 + $0x8c] sm:$0xf]
  %v60 = vld [vmem:[%s4 + $0x90] sm:$0xf]
  %v61 = vld [vmem:[%s4 + $0x94] sm:$0xf]
  %v62 = vld [vmem:[%s4 + $0x98] sm:$0xf]
  %v63 = vld [vmem:[%s4 + $0x9c] sm:$0xf]
  %v64 = vld [vmem:[%s4 + $0xa0] sm:$0xf]
  %v65 = vld [vmem:[%s4 + $0xa4] sm:$0xf]
  %v66 = vld [vmem:[%s4 + $0xa8] sm:$0xf]
  %v67 = vld [vmem:[%s4 + $0xac] sm:$0xf]
  %v68 = vld [vmem:[%s4 + $0xb0] sm:$0xf]
  %v69 = vld [vmem:[%s4 + $0xb4] sm:$0xf]
  %v70 = vld [vmem:[%s4 + $0xb8] sm:$0xf]
  %v71 = vld [vmem:[%s4 + $0xbc] sm:$0xf]
  %v72 = vld [vmem:[%s4 + $0xc0] sm:$0xf]
  %v73 = vld [vmem:[%s4 + $0xc4] sm:$0xf]
  %v74 = vld [vmem:[%s4 + $0xc8] sm:$0xf]
  %v75 = vld [vmem:[%s4 + $0xcc] sm:$0xf]
  %v76 = vld [vmem:[%s4 + $0xd0] sm:$0xf]
  %v77 = vld [vmem:[%s4 + $0xd4] sm:$0xf]
  %v78 = vld [vmem:[%s4 + $0xd8] sm:$0xf]
  %v79 = vld [vmem:[%s4 + $0xdc] sm:$0xf]
  %v80 = vld [vmem:[%s4 + $0xe0] sm:$0xf]
  %v81 = vld [vmem:[%s4 + $0xe4] sm:$0xf]
  %v82 = vld [vmem:[%s4 + $0xe8] sm:$0xf]
  %v83 = vld [vmem:[%s4 + $0xec] sm:$0xf]
  %v84 = vld [vmem:[%s4 + $0xf0] sm:$0xf]
  %v85 = vld [vmem:[%s4 + $0xf4] sm:$0xf]
  %v86 = vld [vmem:[%s4 + $0xf8] sm:$0xf]
  %v87 = vld [vmem:[%s4 + $0xfc] sm:$0xf]
  %v88 = vld [vmem:[%s4 + $0x100] sm:$0xf]
  %v89 = vld [vmem:[%s4 + $0x104] sm:$0xf]
  %v90 = vld [vmem:[%s4 + $0x108] sm:$0xf]
  %v91 = vld [vmem:[%s4 + $0x10c] sm:$0xf]
  %v92 = vld [vmem:[%s4 + $0x110] sm:$0xf]
  %v93 = vld [vmem:[%s4 + $0x114] sm:$0xf]
  %v94 = vld [vmem:[%s4 + $0x118] sm:$0xf]
  %v95 = vld [vmem:[%s4 + $0x11c] sm:$0xf]
  %v96 = vld [vmem:[%s4 + $0x120] sm:$0xf]
  %v97 = vld [vmem:[%s4 + $0x124] sm:$0xf]
  %v98 = vld [vmem:[%s4 + $0x128] sm:$0xf]
  %v99 = vld [vmem:[%s4 + $0x12c] sm:$0xf]
  %v100 = vld [vmem:[%s4 + $0x130] sm:$0xf]
  %v101 = vld [vmem:[%s4 + $0x134] sm:$0xf]
  %v102 = vld [vmem:[%s4 + $0x138] sm:$0xf]
  %v103 = vld [vmem:[%s4 + $0x13c] sm:$0xf]
  %v104 = vld [vmem:[%s4 + $0x140] sm:$0xf]
  %v105 = vld [vmem:[%s4 + $0x144] sm:$0xf]
  %v106 = vld [vmem:[%s4 + $0x148] sm:$0xf]
  %v107 = vld [vmem:[%s4 + $0x14c] sm:$0xf]
  %v108 = vld [vmem:[%s4 + $0x150] sm:$0xf]
  %v109 = vld [vmem:[%s4 + $0x154] sm:$0xf]
  %v110 = vld [vmem:[%s4 + $0x158] sm:$0xf]
  %v111 = vld [vmem:[%s4 + $0x15c] sm:$0xf]
  %v112 = vld [vmem:[%s4 + $0x160] sm:$0xf]
  %v113 = vld [vmem:[%s4 + $0x164] sm:$0xf]
  %v114 = vld [vmem:[%s4 + $0x168] sm:$0xf]
  %v115 = vld [vmem:[%s4 + $0x16c] sm:$0xf]
  %v116 = vld [vmem:[%s4 + $0x170] sm:$0xf]
  %v117 = vld [vmem:[%s4 + $0x174] sm:$0xf]
  %v118 = vld [vmem:[%s4 + $0x178] sm:$0xf]
  %v119 = vld [vmem:[%s4 + $0x17c] sm:$0xf]
  %v120 = vld [vmem:[%s4 + $0x180] sm:$0xf]
  %v121 = vld [vmem:[%s4 + $0x184] sm:$0xf]
  %v122 = vld [vmem:[%s4 + $0x188] sm:$0xf]
  %v123 = vld [vmem:[%s4 + $0x18c] sm:$0xf]
  %v124 = vld [vmem:[%s4 + $0x190] sm:$0xf]
  %v125 = vld [vmem:[%s4 + $0x194] sm:$0xf]
  %v126 = vld [vmem:[%s4 + $0x198] sm:$0xf]
  %v127 = vld [vmem:[%s4 + $0x19c] sm:$0xf]
  %v128 = vld [vmem:[%s4 + $0x1a0] sm:$0xf]
  %v129 = vld [vmem:[%s4 + $0x1a4] sm:$0xf]
  %v130 = vld [vmem:[%s4 + $0x1a8] sm:$0xf]
  %v131 = vld [vmem:[%s4 + $0x1ac] sm:$0xf]
  %v132 = vld [vmem:[%s4 + $0x1b0] sm:$0xf]
  %v133 = vld [vmem:[%s4 + $0x1b4] sm:$0xf]
  %v134 = vld [vmem:[%s4 + $0x1b8] sm:$0xf]
  %v135 = vld [vmem:[%s4 + $0x1bc] sm:$0xf]
  %v136 = vld [vmem:[%s4 + $0x1c0] sm:$0xf]
  %v137 = vld [vmem:[%s4 + $0x1c4] sm:$0xf]
  %v138 = vld [vmem:[%s4 + $0x1c8] sm:$0xf]
  %v139 = vld [vmem:[%s4 + $0x1cc] sm:$0xf]
  %v140 = vld [vmem:[%s4 + $0x1d0] sm:$0xf]
  %v141 = vld [vmem:[%s4 + $0x1d4] sm:$0xf]
  %v142 = vld [vmem:[%s4 + $0x1d8] sm:$0xf]
  %v143 = vld [vmem:[%s4 + $0x1dc] sm:$0xf]
  %v144 = vld [vmem:[%s4 + $0x1e0] sm:$0xf]
  %v145 = vld [vmem:[%s4 + $0x1e4] sm:$0xf]
  %v146 = vld [vmem:[%s4 + $0x1e8] sm:$0xf]
  %v147 = vld [vmem:[%s4 + $0x1ec] sm:$0xf]
  %v148 = vld [vmem:[%s4 + $0x1f0] sm:$0xf]
  %v149 = vld [vmem:[%s4 + $0x1f4] sm:$0xf]
  %v150 = vld [vmem:[%s4 + $0x1f8] sm:$0xf]
  %v151 = vld [vmem:[%s4 + $0x1fc] sm:$0xf]
  %v152 = vld [vmem:[%s4 + $0x200] sm:$0xf]
  %v153 = vld [vmem:[%s4 + $0x204] sm:$0xf]
  %v154 = vld [vmem:[%s4 + $0x208] sm:$0xf]
  %v155 = vld [vmem:[%s4 + $0x20c] sm:$0xf]
  %v156 = vld [vmem:[%s4 + $0x210] sm:$0xf]
  %v157 = vld [vmem:[%s4 + $0x214] sm:$0xf]
  %v158 = vld [vmem:[%s4 + $0x218] sm:$0xf]
  %v159 = vld [vmem:[%s4 + $0x21c] sm:$0xf]
  %v160 = vld [vmem:[%s4 + $0x220] sm:$0xf]
  %v161 = vld [vmem:[%s4 + $0x224] sm:$0xf]
  %v162 = vld [vmem:[%s4 + $0x228] sm:$0xf]
  %v163 = vld [vmem:[%s4 + $0x22c] sm:$0xf]
  %v164 = vld [vmem:[%s4 + $0x230] sm:$0xf]
  %v165 = vld [vmem:[%s4 + $0x234] sm:$0xf]
  %v166 = vld [vmem:[%s4 + $0x238] sm:$0xf]
  %v167 = vld [vmem:[%s4 + $0x23c] sm:$0xf]
  %v168 = vld [vmem:[%s5] sm:$0x1]
  %v169 = vld [vmem:[%s0] sm:$0xff]
  %v170 = vld [vmem:[%s0 + $0x8] sm:$0xff]
  %v171 = vld [vmem:[%s0 + $0x10] sm:$0xff]
  %v172 = vld [vmem:[%s0 + $0x18] sm:$0xff]
  %v173 = vld [vmem:[%s0 + $0x20] sm:$0xf]
  %v174 = vld [vmem:[%s0 + $0x24] sm:$0xff]
  %v175 = vld [vmem:[%s0 + $0x2c] sm:$0xff]
  %v176 = vld [vmem:[%s0 + $0x34] sm:$0xff]
  %v177 = vld [vmem:[%s0 + $0x3c] sm:$0xff]
  %v178 = vld [vmem:[%s0 + $0x44] sm:$0xf]
  %v179 = vld [vmem:[%s0 + $0x48] sm:$0xff]
  %v180 = vld [vmem:[%s0 + $0x50] sm:$0xff]
  %v181 = vld [vmem:[%s0 + $0x58] sm:$0xff]
  %v182 = vld [vmem:[%s0 + $0x60] sm:$0xff]
  %v183 = vld [vmem:[%s0 + $0x68] sm:$0xf]
  %v184 = vld [vmem:[%s0 + $0x6c] sm:$0xff]
  %v185 = vld [vmem:[%s0 + $0x74] sm:$0xff]
  %v186 = vld [vmem:[%s0 + $0x7c] sm:$0xff]
  %v187 = vld [vmem:[%s0 + $0x84] sm:$0xff]
  %v188 = vld [vmem:[%s0 + $0x8c] sm:$0xf]
  %v190 = vlaneseq
  %v191 = vshrl.u32 %v190, 7
  %v192 = vsub.s32 0, %v191
  %v193 = vrot.slane %v168, %v192
  %v215 = vunpack.c.l.b16 %v169
  %v216 = vunpack.c.h.b16 %v169
  %v217 = vunpack.c.l.b16 %v170
  %v218 = vunpack.c.h.b16 %v170
  %v219 = vunpack.c.l.b16 %v171
  %v220 = vunpack.c.h.b16 %v171
  %v221 = vunpack.c.l.b16 %v172
  %v222 = vunpack.c.h.b16 %v172
  %v223 = vunpack.c.l.b16 %v173
  %v224 = vunpack.c.l.b16 %v174
  %v225 = vunpack.c.h.b16 %v174
  %v226 = vunpack.c.l.b16 %v175
  %v227 = vunpack.c.h.b16 %v175
  %v228 = vunpack.c.l.b16 %v176
  %v229 = vunpack.c.h.b16 %v176
  %v230 = vunpack.c.l.b16 %v177
  %v231 = vunpack.c.h.b16 %v177
  %v232 = vunpack.c.l.b16 %v178
  %v233 = vunpack.c.l.b16 %v179
  %v234 = vunpack.c.h.b16 %v179
  %v235 = vunpack.c.l.b16 %v180
  %v236 = vunpack.c.h.b16 %v180
  %v237 = vunpack.c.l.b16 %v181
  %v238 = vunpack.c.h.b16 %v181
  %v239 = vunpack.c.l.b16 %v182
  %v240 = vunpack.c.h.b16 %v182
  %v241 = vunpack.c.l.b16 %v183
  %v242 = vunpack.c.l.b16 %v184
  %v243 = vunpack.c.h.b16 %v184
  %v244 = vunpack.c.l.b16 %v185
  %v245 = vunpack.c.h.b16 %v185
  %v246 = vunpack.c.l.b16 %v186
  %v247 = vunpack.c.h.b16 %v186
  %v248 = vunpack.c.l.b16 %v187
  %v249 = vunpack.c.h.b16 %v187
  %v250 = vunpack.c.l.b16 %v188
  %v251 = vpack.c.b16 %v224, %v215
  %v252 = vpack.c.b16 %v225, %v216
  %v253 = vpack.c.b16 %v226, %v217
  %v254 = vpack.c.b16 %v227, %v218
  %v255 = vpack.c.b16 %v228, %v219
  %v256 = vpack.c.b16 %v229, %v220
  %v257 = vpack.c.b16 %v230, %v221
  %v258 = vpack.c.b16 %v231, %v222
  %v259 = vpack.c.b16 %v232, %v223
  %v260 = vpack.c.b16 %v242, %v233
  %v261 = vpack.c.b16 %v243, %v234
  %v262 = vpack.c.b16 %v244, %v235
  %v263 = vpack.c.b16 %v245, %v236
  %v264 = vpack.c.b16 %v246, %v237
  %v265 = vpack.c.b16 %v247, %v238
  %v266 = vpack.c.b16 %v248, %v239
  %v267 = vpack.c.b16 %v249, %v240
  %v268 = vpack.c.b16 %v250, %v241
  %v431 = vunpack.c.l.b16 %v24
  %v432 = vunpack.c.l.b16 %v25
  %v433 = vunpack.c.l.b16 %v26
  %v434 = vunpack.c.l.b16 %v27
  %v435 = vunpack.c.l.b16 %v28
  %v436 = vunpack.c.l.b16 %v29
  %v437 = vunpack.c.l.b16 %v30
  %v438 = vunpack.c.l.b16 %v31
  %v439 = vunpack.c.l.b16 %v32
  %v440 = vunpack.c.l.b16 %v33
  %v441 = vunpack.c.l.b16 %v34
  %v442 = vunpack.c.l.b16 %v35
  %v443 = vunpack.c.l.b16 %v36
  %v444 = vunpack.c.l.b16 %v37
  %v445 = vunpack.c.l.b16 %v38
  %v446 = vunpack.c.l.b16 %v39
  %v447 = vunpack.c.l.b16 %v40
  %v448 = vunpack.c.l.b16 %v41
  %v449 = vunpack.c.l.b16 %v42
  %v450 = vunpack.c.l.b16 %v43
  %v451 = vunpack.c.l.b16 %v44
  %v452 = vunpack.c.l.b16 %v45
  %v453 = vunpack.c.l.b16 %v46
  %v454 = vunpack.c.l.b16 %v47
  %v455 = vunpack.c.l.b16 %v48
  %v456 = vunpack.c.l.b16 %v49
  %v457 = vunpack.c.l.b16 %v50
  %v458 = vunpack.c.l.b16 %v51
  %v459 = vunpack.c.l.b16 %v52
  %v460 = vunpack.c.l.b16 %v53
  %v461 = vunpack.c.l.b16 %v54
  %v462 = vunpack.c.l.b16 %v55
  %v463 = vunpack.c.l.b16 %v56
  %v464 = vunpack.c.l.b16 %v57
  %v465 = vunpack.c.l.b16 %v58
  %v466 = vunpack.c.l.b16 %v59
  %v467 = vunpack.c.l.b16 %v60
  %v468 = vunpack.c.l.b16 %v61
  %v469 = vunpack.c.l.b16 %v62
  %v470 = vunpack.c.l.b16 %v63
  %v471 = vunpack.c.l.b16 %v64
  %v472 = vunpack.c.l.b16 %v65
  %v473 = vunpack.c.l.b16 %v66
  %v474 = vunpack.c.l.b16 %v67
  %v475 = vunpack.c.l.b16 %v68
  %v476 = vunpack.c.l.b16 %v69
  %v477 = vunpack.c.l.b16 %v70
  %v478 = vunpack.c.l.b16 %v71
  %v479 = vunpack.c.l.b16 %v72
  %v480 = vunpack.c.l.b16 %v73
  %v481 = vunpack.c.l.b16 %v74
  %v482 = vunpack.c.l.b16 %v75
  %v483 = vunpack.c.l.b16 %v76
  %v484 = vunpack.c.l.b16 %v77
  %v485 = vunpack.c.l.b16 %v78
  %v486 = vunpack.c.l.b16 %v79
  %v487 = vunpack.c.l.b16 %v80
  %v488 = vunpack.c.l.b16 %v81
  %v489 = vunpack.c.l.b16 %v82
  %v490 = vunpack.c.l.b16 %v83
  %v491 = vunpack.c.l.b16 %v84
  %v492 = vunpack.c.l.b16 %v85
  %v493 = vunpack.c.l.b16 %v86
  %v494 = vunpack.c.l.b16 %v87
  %v495 = vunpack.c.l.b16 %v88
  %v496 = vunpack.c.l.b16 %v89
  %v497 = vunpack.c.l.b16 %v90
  %v498 = vunpack.c.l.b16 %v91
  %v499 = vunpack.c.l.b16 %v92
  %v500 = vunpack.c.l.b16 %v93
  %v501 = vunpack.c.l.b16 %v94
  %v502 = vunpack.c.l.b16 %v95
  %v503 = vunpack.c.l.b16 %v96
  %v504 = vunpack.c.l.b16 %v97
  %v505 = vunpack.c.l.b16 %v98
  %v506 = vunpack.c.l.b16 %v99
  %v507 = vunpack.c.l.b16 %v100
  %v508 = vunpack.c.l.b16 %v101
  %v509 = vunpack.c.l.b16 %v102
  %v510 = vunpack.c.l.b16 %v103
  %v511 = vunpack.c.l.b16 %v104
  %v512 = vunpack.c.l.b16 %v105
  %v513 = vunpack.c.l.b16 %v106
  %v514 = vunpack.c.l.b16 %v107
  %v515 = vunpack.c.l.b16 %v108
  %v516 = vunpack.c.l.b16 %v109
  %v517 = vunpack.c.l.b16 %v110
  %v518 = vunpack.c.l.b16 %v111
  %v519 = vunpack.c.l.b16 %v112
  %v520 = vunpack.c.l.b16 %v113
  %v521 = vunpack.c.l.b16 %v114
  %v522 = vunpack.c.l.b16 %v115
  %v523 = vunpack.c.l.b16 %v116
  %v524 = vunpack.c.l.b16 %v117
  %v525 = vunpack.c.l.b16 %v118
  %v526 = vunpack.c.l.b16 %v119
  %v527 = vunpack.c.l.b16 %v120
  %v528 = vunpack.c.l.b16 %v121
  %v529 = vunpack.c.l.b16 %v122
  %v530 = vunpack.c.l.b16 %v123
  %v531 = vunpack.c.l.b16 %v124
  %v532 = vunpack.c.l.b16 %v125
  %v533 = vunpack.c.l.b16 %v126
  %v534 = vunpack.c.l.b16 %v127
  %v535 = vunpack.c.l.b16 %v128
  %v536 = vunpack.c.l.b16 %v129
  %v537 = vunpack.c.l.b16 %v130
  %v538 = vunpack.c.l.b16 %v131
  %v539 = vunpack.c.l.b16 %v132
  %v540 = vunpack.c.l.b16 %v133
  %v541 = vunpack.c.l.b16 %v134
  %v542 = vunpack.c.l.b16 %v135
  %v543 = vunpack.c.l.b16 %v136
  %v544 = vunpack.c.l.b16 %v137
  %v545 = vunpack.c.l.b16 %v138
  %v546 = vunpack.c.l.b16 %v139
  %v547 = vunpack.c.l.b16 %v140
  %v548 = vunpack.c.l.b16 %v141
  %v549 = vunpack.c.l.b16 %v142
  %v550 = vunpack.c.l.b16 %v143
  %v551 = vunpack.c.l.b16 %v144
  %v552 = vunpack.c.l.b16 %v145
  %v553 = vunpack.c.l.b16 %v146
  %v554 = vunpack.c.l.b16 %v147
  %v555 = vunpack.c.l.b16 %v148
  %v556 = vunpack.c.l.b16 %v149
  %v557 = vunpack.c.l.b16 %v150
  %v558 = vunpack.c.l.b16 %v151
  %v559 = vunpack.c.l.b16 %v152
  %v560 = vunpack.c.l.b16 %v153
  %v561 = vunpack.c.l.b16 %v154
  %v562 = vunpack.c.l.b16 %v155
  %v563 = vunpack.c.l.b16 %v156
  %v564 = vunpack.c.l.b16 %v157
  %v565 = vunpack.c.l.b16 %v158
  %v566 = vunpack.c.l.b16 %v159
  %v567 = vunpack.c.l.b16 %v160
  %v568 = vunpack.c.l.b16 %v161
  %v569 = vunpack.c.l.b16 %v162
  %v570 = vunpack.c.l.b16 %v163
  %v571 = vunpack.c.l.b16 %v164
  %v572 = vunpack.c.l.b16 %v165
  %v573 = vunpack.c.l.b16 %v166
  %v574 = vunpack.c.l.b16 %v167
  %v575 = vpack.c.b16 %v432, %v431
  %v576 = vpack.c.b16 %v434, %v433
  %v577 = vpack.c.b16 %v436, %v435
  %v578 = vpack.c.b16 %v438, %v437
  %v579 = vpack.c.b16 %v440, %v439
  %v580 = vpack.c.b16 %v442, %v441
  %v581 = vpack.c.b16 %v444, %v443
  %v582 = vpack.c.b16 %v446, %v445
  %v583 = vpack.c.b16 %v448, %v447
  %v584 = vpack.c.b16 %v450, %v449
  %v585 = vpack.c.b16 %v452, %v451
  %v586 = vpack.c.b16 %v454, %v453
  %v587 = vpack.c.b16 %v456, %v455
  %v588 = vpack.c.b16 %v458, %v457
  %v589 = vpack.c.b16 %v460, %v459
  %v590 = vpack.c.b16 %v462, %v461
  %v591 = vpack.c.b16 %v464, %v463
  %v592 = vpack.c.b16 %v466, %v465
  %v593 = vpack.c.b16 %v468, %v467
  %v594 = vpack.c.b16 %v470, %v469
  %v595 = vpack.c.b16 %v472, %v471
  %v596 = vpack.c.b16 %v474, %v473
  %v597 = vpack.c.b16 %v476, %v475
  %v598 = vpack.c.b16 %v478, %v477
  %v599 = vpack.c.b16 %v480, %v479
  %v600 = vpack.c.b16 %v482, %v481
  %v601 = vpack.c.b16 %v484, %v483
  %v602 = vpack.c.b16 %v486, %v485
  %v603 = vpack.c.b16 %v488, %v487
  %v604 = vpack.c.b16 %v490, %v489
  %v605 = vpack.c.b16 %v492, %v491
  %v606 = vpack.c.b16 %v494, %v493
  %v607 = vpack.c.b16 %v496, %v495
  %v608 = vpack.c.b16 %v498, %v497
  %v609 = vpack.c.b16 %v500, %v499
  %v610 = vpack.c.b16 %v502, %v501
  %v611 = vpack.c.b16 %v504, %v503
  %v612 = vpack.c.b16 %v506, %v505
  %v613 = vpack.c.b16 %v508, %v507
  %v614 = vpack.c.b16 %v510, %v509
  %v615 = vpack.c.b16 %v512, %v511
  %v616 = vpack.c.b16 %v514, %v513
  %v617 = vpack.c.b16 %v516, %v515
  %v618 = vpack.c.b16 %v518, %v517
  %v619 = vpack.c.b16 %v520, %v519
  %v620 = vpack.c.b16 %v522, %v521
  %v621 = vpack.c.b16 %v524, %v523
  %v622 = vpack.c.b16 %v526, %v525
  %v623 = vpack.c.b16 %v528, %v527
  %v624 = vpack.c.b16 %v530, %v529
  %v625 = vpack.c.b16 %v532, %v531
  %v626 = vpack.c.b16 %v534, %v533
  %v627 = vpack.c.b16 %v536, %v535
  %v628 = vpack.c.b16 %v538, %v537
  %v629 = vpack.c.b16 %v540, %v539
  %v630 = vpack.c.b16 %v542, %v541
  %v631 = vpack.c.b16 %v544, %v543
  %v632 = vpack.c.b16 %v546, %v545
  %v633 = vpack.c.b16 %v548, %v547
  %v634 = vpack.c.b16 %v550, %v549
  %v635 = vpack.c.b16 %v552, %v551
  %v636 = vpack.c.b16 %v554, %v553
  %v637 = vpack.c.b16 %v556, %v555
  %v638 = vpack.c.b16 %v558, %v557
  %v639 = vpack.c.b16 %v560, %v559
  %v640 = vpack.c.b16 %v562, %v561
  %v641 = vpack.c.b16 %v564, %v563
  %v642 = vpack.c.b16 %v566, %v565
  %v643 = vpack.c.b16 %v568, %v567
  %v644 = vpack.c.b16 %v570, %v569
  %v645 = vpack.c.b16 %v572, %v571
  %v646 = vpack.c.b16 %v574, %v573
  %719 = vmatprep.subr.bf16.mxu0 0
  %720 = vmatpush1.bf16.msra.mxu0 %v575
  %721 = vmatprep.subr.bf16.mxu0 0
  %722 = vmatpush1.bf16.msra.mxu0 %v576
  %723 = vmatprep.subr.bf16.mxu0 0
  %724 = vmatpush1.bf16.msra.mxu0 %v577
  %725 = vmatprep.subr.bf16.mxu0 0
  %726 = vmatpush1.bf16.msra.mxu0 %v578
  %727 = vmatprep.subr.bf16.mxu0 0
  %728 = vmatpush1.bf16.msra.mxu0 %v579
  %729 = vmatprep.subr.bf16.mxu0 0
  %730 = vmatpush1.bf16.msra.mxu0 %v580
  %731 = vmatprep.subr.bf16.mxu0 0
  %732 = vmatpush1.bf16.msra.mxu0 %v581
  %733 = vmatprep.subr.bf16.mxu0 0
  %734 = vmatpush1.bf16.msra.mxu0 %v582
  %735 = vmatprep.subr.bf16.mxu0 0
  %736 = vmatpush1.bf16.msra.mxu0 %v583
  %737 = vmatprep.subr.bf16.mxu0 0
  %738 = vmatpush1.bf16.msra.mxu0 %v584
  %739 = vmatprep.subr.bf16.mxu0 0
  %740 = vmatpush1.bf16.msra.mxu0 %v585
  %741 = vmatprep.subr.bf16.mxu0 0
  %742 = vmatpush1.bf16.msra.mxu0 %v586
  %743 = vmatprep.subr.bf16.mxu0 0
  %744 = vmatpush1.bf16.msra.mxu0 %v587
  %745 = vmatprep.subr.bf16.mxu0 0
  %746 = vmatpush1.bf16.msra.mxu0 %v588
  %747 = vmatprep.subr.bf16.mxu0 0
  %748 = vmatpush1.bf16.msra.mxu0 %v589
  %749 = vmatprep.subr.bf16.mxu0 0
  %750 = vmatpush1.bf16.msra.mxu0 %v590
  %751 = vmatprep.mubr.bf16.mxu0 %v252
  %752 = vmatmul.mubr.bf16.gmra.mrb[0].mxu0 %v251
  %v753 = vpop.f32.mrb[0].mxu0
  %v754 = vadd.f32 %v193, %v753
  %v755 = vpop.f32.mrb[0].mxu0
  %v756 = vpop.f32.mrb[0].mxu0
  %v757 = vadd.f32 %v193, %v756
  %v758 = vpop.f32.mrb[0].mxu0
  %759 = vmatprep.mubr.bf16.mxu0 %v261
  %760 = vmatmul.mubr.bf16.gmra.mrb[0].mxu0 %v260
  %v761 = vpop.f32.mrb[0].mxu0
  %v762 = vadd.f32 %v193, %v761
  %v763 = vpop.f32.mrb[0].mxu0
  %v764 = vpop.f32.mrb[0].mxu0
  %v765 = vadd.f32 %v193, %v764
  %v766 = vpop.f32.mrb[0].mxu0
  %767 = vdwg.mxu0
  %768 = vmatprep.subr.bf16.mxu0 0
  %769 = vmatpush1.bf16.msra.mxu0 %v591
  %770 = vmatprep.subr.bf16.mxu0 0
  %771 = vmatpush1.bf16.msra.mxu0 %v592
  %772 = vmatprep.subr.bf16.mxu0 0
  %773 = vmatpush1.bf16.msra.mxu0 %v593
  %774 = vmatprep.subr.bf16.mxu0 0
  %775 = vmatpush1.bf16.msra.mxu0 %v594
  %776 = vmatprep.subr.bf16.mxu0 0
  %777 = vmatpush1.bf16.msra.mxu0 %v595
  %778 = vmatprep.subr.bf16.mxu0 0
  %779 = vmatpush1.bf16.msra.mxu0 %v596
  %780 = vmatprep.subr.bf16.mxu0 0
  %781 = vmatpush1.bf16.msra.mxu0 %v597
  %782 = vmatprep.subr.bf16.mxu0 0
  %783 = vmatpush1.bf16.msra.mxu0 %v598
  %784 = vmatprep.subr.bf16.mxu0 0
  %785 = vmatpush1.bf16.msra.mxu0 %v599
  %786 = vmatprep.subr.bf16.mxu0 0
  %787 = vmatpush1.bf16.msra.mxu0 %v600
  %788 = vmatprep.subr.bf16.mxu0 0
  %789 = vmatpush1.bf16.msra.mxu0 %v601
  %790 = vmatprep.subr.bf16.mxu0 0
  %791 = vmatpush1.bf16.msra.mxu0 %v602
  %792 = vmatprep.subr.bf16.mxu0 0
  %793 = vmatpush1.bf16.msra.mxu0 %v603
  %794 = vmatprep.subr.bf16.mxu0 0
  %795 = vmatpush1.bf16.msra.mxu0 %v604
  %796 = vmatprep.subr.bf16.mxu0 0
  %797 = vmatpush1.bf16.msra.mxu0 %v605
  %798 = vmatprep.subr.bf16.mxu0 0
  %799 = vmatpush1.bf16.msra.mxu0 %v606
  %800 = vmatprep.mubr.bf16.mxu0 %v254
  %801 = vmatmul.mubr.bf16.gmra.mrb[0].mxu0 %v253
  %v802 = vpop.f32.mrb[0].mxu0
  %v803 = vadd.f32 %v754, %v802
  %v804 = vpop.f32.mrb[0].mxu0
  %v805 = vpop.f32.mrb[0].mxu0
  %v806 = vadd.f32 %v757, %v805
  %v807 = vpop.f32.mrb[0].mxu0
  %808 = vmatprep.mubr.bf16.mxu0 %v263
  %809 = vmatmul.mubr.bf16.gmra.mrb[0].mxu0 %v262
  %v810 = vpop.f32.mrb[0].mxu0
  %v811 = vadd.f32 %v762, %v810
  %v812 = vpop.f32.mrb[0].mxu0
  %v813 = vpop.f32.mrb[0].mxu0
  %v814 = vadd.f32 %v765, %v813
  %v815 = vpop.f32.mrb[0].mxu0
  %816 = vdwg.mxu0
  %817 = vmatprep.subr.bf16.mxu0 0
  %818 = vmatpush1.bf16.msra.mxu0 %v607
  %819 = vmatprep.subr.bf16.mxu0 0
  %820 = vmatpush1.bf16.msra.mxu0 %v608
  %821 = vmatprep.subr.bf16.mxu0 0
  %822 = vmatpush1.bf16.msra.mxu0 %v609
  %823 = vmatprep.subr.bf16.mxu0 0
  %824 = vmatpush1.bf16.msra.mxu0 %v610
  %825 = vmatprep.subr.bf16.mxu0 0
  %826 = vmatpush1.bf16.msra.mxu0 %v611
  %827 = vmatprep.subr.bf16.mxu0 0
  %828 = vmatpush1.bf16.msra.mxu0 %v612
  %829 = vmatprep.subr.bf16.mxu0 0
  %830 = vmatpush1.bf16.msra.mxu0 %v613
  %831 = vmatprep.subr.bf16.mxu0 0
  %832 = vmatpush1.bf16.msra.mxu0 %v614
  %833 = vmatprep.subr.bf16.mxu0 0
  %834 = vmatpush1.bf16.msra.mxu0 %v615
  %835 = vmatprep.subr.bf16.mxu0 0
  %836 = vmatpush1.bf16.msra.mxu0 %v616
  %837 = vmatprep.subr.bf16.mxu0 0
  %838 = vmatpush1.bf16.msra.mxu0 %v617
  %839 = vmatprep.subr.bf16.mxu0 0
  %840 = vmatpush1.bf16.msra.mxu0 %v618
  %841 = vmatprep.subr.bf16.mxu0 0
  %842 = vmatpush1.bf16.msra.mxu0 %v619
  %843 = vmatprep.subr.bf16.mxu0 0
  %844 = vmatpush1.bf16.msra.mxu0 %v620
  %845 = vmatprep.subr.bf16.mxu0 0
  %846 = vmatpush1.bf16.msra.mxu0 %v621
  %847 = vmatprep.subr.bf16.mxu0 0
  %848 = vmatpush1.bf16.msra.mxu0 %v622
  %849 = vmatprep.mubr.bf16.mxu0 %v256
  %850 = vmatmul.mubr.bf16.gmra.mrb[0].mxu0 %v255
  %v851 = vpop.f32.mrb[0].mxu0
  %v852 = vadd.f32 %v803, %v851
  %v853 = vpop.f32.mrb[0].mxu0
  %v854 = vpop.f32.mrb[0].mxu0
  %v855 = vadd.f32 %v806, %v854
  %v856 = vpop.f32.mrb[0].mxu0
  %857 = vmatprep.mubr.bf16.mxu0 %v265
  %858 = vmatmul.mubr.bf16.gmra.mrb[0].mxu0 %v264
  %v859 = vpop.f32.mrb[0].mxu0
  %v860 = vadd.f32 %v811, %v859
  %v861 = vpop.f32.mrb[0].mxu0
  %v862 = vpop.f32.mrb[0].mxu0
  %v863 = vadd.f32 %v814, %v862
  %v864 = vpop.f32.mrb[0].mxu0
  %865 = vdwg.mxu0
  %866 = vmatprep.subr.bf16.mxu0 0
  %867 = vmatpush1.bf16.msra.mxu0 %v623
  %868 = vmatprep.subr.bf16.mxu0 0
  %869 = vmatpush1.bf16.msra.mxu0 %v624
  %870 = vmatprep.subr.bf16.mxu0 0
  %871 = vmatpush1.bf16.msra.mxu0 %v625
  %872 = vmatprep.subr.bf16.mxu0 0
  %873 = vmatpush1.bf16.msra.mxu0 %v626
  %874 = vmatprep.subr.bf16.mxu0 0
  %875 = vmatpush1.bf16.msra.mxu0 %v627
  %876 = vmatprep.subr.bf16.mxu0 0
  %877 = vmatpush1.bf16.msra.mxu0 %v628
  %878 = vmatprep.subr.bf16.mxu0 0
  %879 = vmatpush1.bf16.msra.mxu0 %v629
  %880 = vmatprep.subr.bf16.mxu0 0
  %881 = vmatpush1.bf16.msra.mxu0 %v630
  %882 = vmatprep.subr.bf16.mxu0 0
  %883 = vmatpush1.bf16.msra.mxu0 %v631
  %884 = vmatprep.subr.bf16.mxu0 0
  %885 = vmatpush1.bf16.msra.mxu0 %v632
  %886 = vmatprep.subr.bf16.mxu0 0
  %887 = vmatpush1.bf16.msra.mxu0 %v633
  %888 = vmatprep.subr.bf16.mxu0 0
  %889 = vmatpush1.bf16.msra.mxu0 %v634
  %890 = vmatprep.subr.bf16.mxu0 0
  %891 = vmatpush1.bf16.msra.mxu0 %v635
  %892 = vmatprep.subr.bf16.mxu0 0
  %893 = vmatpush1.bf16.msra.mxu0 %v636
  %894 = vmatprep.subr.bf16.mxu0 0
  %895 = vmatpush1.bf16.msra.mxu0 %v637
  %896 = vmatprep.subr.bf16.mxu0 0
  %897 = vmatpush1.bf16.msra.mxu0 %v638
  %898 = vmatprep.mubr.bf16.mxu0 %v258
  %899 = vmatmul.mubr.bf16.gmra.mrb[0].mxu0 %v257
  %v900 = vpop.f32.mrb[0].mxu0
  %v901 = vadd.f32 %v852, %v900
  %v902 = vpop.f32.mrb[0].mxu0
  %v903 = vpop.f32.mrb[0].mxu0
  %v904 = vadd.f32 %v855, %v903
  %v905 = vpop.f32.mrb[0].mxu0
  %906 = vmatprep.mubr.bf16.mxu0 %v267
  %907 = vmatmul.mubr.bf16.gmra.mrb[0].mxu0 %v266
  %v908 = vpop.f32.mrb[0].mxu0
  %v909 = vadd.f32 %v860, %v908
  %v910 = vpop.f32.mrb[0].mxu0
  %v911 = vpop.f32.mrb[0].mxu0
  %v912 = vadd.f32 %v863, %v911
  %v913 = vpop.f32.mrb[0].mxu0
  %914 = vdwg.mxu0
  %915 = vmatprep.subr.bf16.mxu0 0
  %916 = vmatpush1.bf16.msra.mxu0 %v639
  %917 = vmatprep.subr.bf16.mxu0 0
  %918 = vmatpush1.bf16.msra.mxu0 %v640
  %919 = vmatprep.subr.bf16.mxu0 0
  %920 = vmatpush1.bf16.msra.mxu0 %v641
  %921 = vmatprep.subr.bf16.mxu0 0
  %922 = vmatpush1.bf16.msra.mxu0 %v642
  %923 = vmatprep.subr.bf16.mxu0 0
  %924 = vmatpush1.bf16.msra.mxu0 %v643
  %925 = vmatprep.subr.bf16.mxu0 0
  %926 = vmatpush1.bf16.msra.mxu0 %v644
  %927 = vmatprep.subr.bf16.mxu0 0
  %928 = vmatpush1.bf16.msra.mxu0 %v645
  %929 = vmatprep.subr.bf16.mxu0 0
  %930 = vmatpush1.bf16.msra.mxu0 %v646
  %931 = vmatprep.subr.bf16.mxu0 0
  %932 = vmatpush1.bf16.msra.mxu0 0
  %933 = vmatprep.subr.bf16.mxu0 0
  %934 = vmatpush1.bf16.msra.mxu0 0
  %935 = vmatprep.subr.bf16.mxu0 0
  %936 = vmatpush1.bf16.msra.mxu0 0
  %937 = vmatprep.subr.bf16.mxu0 0
  %938 = vmatpush1.bf16.msra.mxu0 0
  %939 = vmatprep.subr.bf16.mxu0 0
  %940 = vmatpush1.bf16.msra.mxu0 0
  %941 = vmatprep.subr.bf16.mxu0 0
  %942 = vmatpush1.bf16.msra.mxu0 0
  %943 = vmatprep.subr.bf16.mxu0 0
  %944 = vmatpush1.bf16.msra.mxu0 0
  %945 = vmatprep.subr.bf16.mxu0 0
  %946 = vmatpush1.bf16.msra.mxu0 0
  %947 = vmatprep.mubr.bf16.mxu0 0
  %948 = vmatmul.mubr.bf16.gmra.mrb[0].mxu0 %v259
  %v949 = vpop.f32.mrb[0].mxu0
  %v950 = vadd.f32 %v901, %v949
  %v951 = vpop.f32.mrb[0].mxu0
  %v952 = vpop.f32.mrb[0].mxu0
  %v953 = vadd.f32 %v904, %v952
  %v954 = vpop.f32.mrb[0].mxu0
  %955 = vmatprep.mubr.bf16.mxu0 0
  %956 = vmatmul.mubr.bf16.gmra.mrb[0].mxu0 %v268
  %v957 = vpop.f32.mrb[0].mxu0
  %v958 = vadd.f32 %v909, %v957
  %v959 = vpop.f32.mrb[0].mxu0
  %v960 = vpop.f32.mrb[0].mxu0
  %v961 = vadd.f32 %v912, %v960
  %v962 = vpop.f32.mrb[0].mxu0
  %963 = vdwg.mxu0
  %v964 = vmax.f32 %v950, 0.0
  %v965 = vmax.f32 %v953, 0.0
  %v966 = vmax.f32 %v958, 0.0
  %v967 = vmax.f32 %v961, 0.0
  %v968 = vld [vmem:[%s1] sm:$0xff]
  %v969 = vld [vmem:[%s1 + $0x8] sm:$0xff]
  %v970 = vld [vmem:[%s1 + $0x10] sm:$0xff]
  %v971 = vld [vmem:[%s1 + $0x18] sm:$0xff]
  %v972 = vld [vmem:[%s1 + $0x20] sm:$0xf]
  %v973 = vld [vmem:[%s1 + $0x24] sm:$0xff]
  %v974 = vld [vmem:[%s1 + $0x2c] sm:$0xff]
  %v975 = vld [vmem:[%s1 + $0x34] sm:$0xff]
  %v976 = vld [vmem:[%s1 + $0x3c] sm:$0xff]
  %v977 = vld [vmem:[%s1 + $0x44] sm:$0xf]
  %v978 = vld [vmem:[%s1 + $0x48] sm:$0xff]
  %v979 = vld [vmem:[%s1 + $0x50] sm:$0xff]
  %v980 = vld [vmem:[%s1 + $0x58] sm:$0xff]
  %v981 = vld [vmem:[%s1 + $0x60] sm:$0xff]
  %v982 = vld [vmem:[%s1 + $0x68] sm:$0xf]
  %v983 = vld [vmem:[%s1 + $0x6c] sm:$0xff]
  %v984 = vld [vmem:[%s1 + $0x74] sm:$0xff]
  %v985 = vld [vmem:[%s1 + $0x7c] sm:$0xff]
  %v986 = vld [vmem:[%s1 + $0x84] sm:$0xff]
  %v987 = vld [vmem:[%s1 + $0x8c] sm:$0xf]
  %v1008 = vunpack.c.l.b16 %v968
  %v1009 = vunpack.c.h.b16 %v968
  %v1010 = vunpack.c.l.b16 %v969
  %v1011 = vunpack.c.h.b16 %v969
  %v1012 = vunpack.c.l.b16 %v970
  %v1013 = vunpack.c.h.b16 %v970
  %v1014 = vunpack.c.l.b16 %v971
  %v1015 = vunpack.c.h.b16 %v971
  %v1016 = vunpack.c.l.b16 %v972
  %v1017 = vunpack.c.l.b16 %v973
  %v1018 = vunpack.c.h.b16 %v973
  %v1019 = vunpack.c.l.b16 %v974
  %v1020 = vunpack.c.h.b16 %v974
  %v1021 = vunpack.c.l.b16 %v975
  %v1022 = vunpack.c.h.b16 %v975
  %v1023 = vunpack.c.l.b16 %v976
  %v1024 = vunpack.c.h.b16 %v976
  %v1025 = vunpack.c.l.b16 %v977
  %v1026 = vunpack.c.l.b16 %v978
  %v1027 = vunpack.c.h.b16 %v978
  %v1028 = vunpack.c.l.b16 %v979
  %v1029 = vunpack.c.h.b16 %v979
  %v1030 = vunpack.c.l.b16 %v980
  %v1031 = vunpack.c.h.b16 %v980
  %v1032 = vunpack.c.l.b16 %v981
  %v1033 = vunpack.c.h.b16 %v981
  %v1034 = vunpack.c.l.b16 %v982
  %v1035 = vunpack.c.l.b16 %v983
  %v1036 = vunpack.c.h.b16 %v983
  %v1037 = vunpack.c.l.b16 %v984
  %v1038 = vunpack.c.h.b16 %v984
  %v1039 = vunpack.c.l.b16 %v985
  %v1040 = vunpack.c.h.b16 %v985
  %v1041 = vunpack.c.l.b16 %v986
  %v1042 = vunpack.c.h.b16 %v986
  %v1043 = vunpack.c.l.b16 %v987
  %v1044 = vpack.c.b16 %v1017, %v1008
  %v1045 = vpack.c.b16 %v1018, %v1009
  %v1046 = vpack.c.b16 %v1019, %v1010
  %v1047 = vpack.c.b16 %v1020, %v1011
  %v1048 = vpack.c.b16 %v1021, %v1012
  %v1049 = vpack.c.b16 %v1022, %v1013
  %v1050 = vpack.c.b16 %v1023, %v1014
  %v1051 = vpack.c.b16 %v1024, %v1015
  %v1052 = vpack.c.b16 %v1025, %v1016
  %v1053 = vpack.c.b16 %v1035, %v1026
  %v1054 = vpack.c.b16 %v1036, %v1027
  %v1055 = vpack.c.b16 %v1037, %v1028
  %v1056 = vpack.c.b16 %v1038, %v1029
  %v1057 = vpack.c.b16 %v1039, %v1030
  %v1058 = vpack.c.b16 %v1040, %v1031
  %v1059 = vpack.c.b16 %v1041, %v1032
  %v1060 = vpack.c.b16 %v1042, %v1033
  %v1061 = vpack.c.b16 %v1043, %v1034
  %1080 = vmatprep.subr.bf16.mxu0 0
  %1081 = vmatpush1.bf16.msra.mxu0 %v575
  %1082 = vmatprep.subr.bf16.mxu0 0
  %1083 = vmatpush1.bf16.msra.mxu0 %v576
  %1084 = vmatprep.subr.bf16.mxu0 0
  %1085 = vmatpush1.bf16.msra.mxu0 %v577
  %1086 = vmatprep.subr.bf16.mxu0 0
  %1087 = vmatpush1.bf16.msra.mxu0 %v578
  %1088 = vmatprep.subr.bf16.mxu0 0
  %1089 = vmatpush1.bf16.msra.mxu0 %v579
  %1090 = vmatprep.subr.bf16.mxu0 0
  %1091 = vmatpush1.bf16.msra.mxu0 %v580
  %1092 = vmatprep.subr.bf16.mxu0 0
  %1093 = vmatpush1.bf16.msra.mxu0 %v581
  %1094 = vmatprep.subr.bf16.mxu0 0
  %1095 = vmatpush1.bf16.msra.mxu0 %v582
  %1096 = vmatprep.subr.bf16.mxu0 0
  %1097 = vmatpush1.bf16.msra.mxu0 %v583
  %1098 = vmatprep.subr.bf16.mxu0 0
  %1099 = vmatpush1.bf16.msra.mxu0 %v584
  %1100 = vmatprep.subr.bf16.mxu0 0
  %1101 = vmatpush1.bf16.msra.mxu0 %v585
  %1102 = vmatprep.subr.bf16.mxu0 0
  %1103 = vmatpush1.bf16.msra.mxu0 %v586
  %1104 = vmatprep.subr.bf16.mxu0 0
  %1105 = vmatpush1.bf16.msra.mxu0 %v587
  %1106 = vmatprep.subr.bf16.mxu0 0
  %1107 = vmatpush1.bf16.msra.mxu0 %v588
  %1108 = vmatprep.subr.bf16.mxu0 0
  %1109 = vmatpush1.bf16.msra.mxu0 %v589
  %1110 = vmatprep.subr.bf16.mxu0 0
  %1111 = vmatpush1.bf16.msra.mxu0 %v590
  %1112 = vmatprep.mubr.bf16.mxu0 %v1045
  %1113 = vmatmul.mubr.bf16.gmra.mrb[0].mxu0 %v1044
  %v1114 = vpop.f32.mrb[0].mxu0
  %v1115 = vadd.f32 %v193, %v1114
  %v1116 = vpop.f32.mrb[0].mxu0
  %v1117 = vpop.f32.mrb[0].mxu0
  %v1118 = vadd.f32 %v193, %v1117
  %v1119 = vpop.f32.mrb[0].mxu0
  %1120 = vmatprep.mubr.bf16.mxu0 %v1054
  %1121 = vmatmul.mubr.bf16.gmra.mrb[0].mxu0 %v1053
  %v1122 = vpop.f32.mrb[0].mxu0
  %v1123 = vadd.f32 %v193, %v1122
  %v1124 = vpop.f32.mrb[0].mxu0
  %v1125 = vpop.f32.mrb[0].mxu0
  %v1126 = vadd.f32 %v193, %v1125
  %v1127 = vpop.f32.mrb[0].mxu0
  %1128 = vdwg.mxu0
  %1129 = vmatprep.subr.bf16.mxu0 0
  %1130 = vmatpush1.bf16.msra.mxu0 %v591
  %1131 = vmatprep.subr.bf16.mxu0 0
  %1132 = vmatpush1.bf16.msra.mxu0 %v592
  %1133 = vmatprep.subr.bf16.mxu0 0
  %1134 = vmatpush1.bf16.msra.mxu0 %v593
  %1135 = vmatprep.subr.bf16.mxu0 0
  %1136 = vmatpush1.bf16.msra.mxu0 %v594
  %1137 = vmatprep.subr.bf16.mxu0 0
  %1138 = vmatpush1.bf16.msra.mxu0 %v595
  %1139 = vmatprep.subr.bf16.mxu0 0
  %1140 = vmatpush1.bf16.msra.mxu0 %v596
  %1141 = vmatprep.subr.bf16.mxu0 0
  %1142 = vmatpush1.bf16.msra.mxu0 %v597
  %1143 = vmatprep.subr.bf16.mxu0 0
  %1144 = vmatpush1.bf16.msra.mxu0 %v598
  %1145 = vmatprep.subr.bf16.mxu0 0
  %1146 = vmatpush1.bf16.msra.mxu0 %v599
  %1147 = vmatprep.subr.bf16.mxu0 0
  %1148 = vmatpush1.bf16.msra.mxu0 %v600
  %1149 = vmatprep.subr.bf16.mxu0 0
  %1150 = vmatpush1.bf16.msra.mxu0 %v601
  %1151 = vmatprep.subr.bf16.mxu0 0
  %1152 = vmatpush1.bf16.msra.mxu0 %v602
  %1153 = vmatprep.subr.bf16.mxu0 0
  %1154 = vmatpush1.bf16.msra.mxu0 %v603
  %1155 = vmatprep.subr.bf16.mxu0 0
  %1156 = vmatpush1.bf16.msra.mxu0 %v604
  %1157 = vmatprep.subr.bf16.mxu0 0
  %1158 = vmatpush1.bf16.msra.mxu0 %v605
  %1159 = vmatprep.subr.bf16.mxu0 0
  %1160 = vmatpush1.bf16.msra.mxu0 %v606
  %1161 = vmatprep.mubr.bf16.mxu0 %v1047
  %1162 = vmatmul.mubr.bf16.gmra.mrb[0].mxu0 %v1046
  %v1163 = vpop.f32.mrb[0].mxu0
  %v1164 = vadd.f32 %v1115, %v1163
  %v1165 = vpop.f32.mrb[0].mxu0
  %v1166 = vpop.f32.mrb[0].mxu0
  %v1167 = vadd.f32 %v1118, %v1166
  %v1168 = vpop.f32.mrb[0].mxu0
  %1169 = vmatprep.mubr.bf16.mxu0 %v1056
  %1170 = vmatmul.mubr.bf16.gmra.mrb[0].mxu0 %v1055
  %v1171 = vpop.f32.mrb[0].mxu0
  %v1172 = vadd.f32 %v1123, %v1171
  %v1173 = vpop.f32.mrb[0].mxu0
  %v1174 = vpop.f32.mrb[0].mxu0
  %v1175 = vadd.f32 %v1126, %v1174
  %v1176 = vpop.f32.mrb[0].mxu0
  %1177 = vdwg.mxu0
  %1178 = vmatprep.subr.bf16.mxu0 0
  %1179 = vmatpush1.bf16.msra.mxu0 %v607
  %1180 = vmatprep.subr.bf16.mxu0 0
  %1181 = vmatpush1.bf16.msra.mxu0 %v608
  %1182 = vmatprep.subr.bf16.mxu0 0
  %1183 = vmatpush1.bf16.msra.mxu0 %v609
  %1184 = vmatprep.subr.bf16.mxu0 0
  %1185 = vmatpush1.bf16.msra.mxu0 %v610
  %1186 = vmatprep.subr.bf16.mxu0 0
  %1187 = vmatpush1.bf16.msra.mxu0 %v611
  %1188 = vmatprep.subr.bf16.mxu0 0
  %1189 = vmatpush1.bf16.msra.mxu0 %v612
  %1190 = vmatprep.subr.bf16.mxu0 0
  %1191 = vmatpush1.bf16.msra.mxu0 %v613
  %1192 = vmatprep.subr.bf16.mxu0 0
  %1193 = vmatpush1.bf16.msra.mxu0 %v614
  %1194 = vmatprep.subr.bf16.mxu0 0
  %1195 = vmatpush1.bf16.msra.mxu0 %v615
  %1196 = vmatprep.subr.bf16.mxu0 0
  %1197 = vmatpush1.bf16.msra.mxu0 %v616
  %1198 = vmatprep.subr.bf16.mxu0 0
  %1199 = vmatpush1.bf16.msra.mxu0 %v617
  %1200 = vmatprep.subr.bf16.mxu0 0
  %1201 = vmatpush1.bf16.msra.mxu0 %v618
  %1202 = vmatprep.subr.bf16.mxu0 0
  %1203 = vmatpush1.bf16.msra.mxu0 %v619
  %1204 = vmatprep.subr.bf16.mxu0 0
  %1205 = vmatpush1.bf16.msra.mxu0 %v620
  %1206 = vmatprep.subr.bf16.mxu0 0
  %1207 = vmatpush1.bf16.msra.mxu0 %v621
  %1208 = vmatprep.subr.bf16.mxu0 0
  %1209 = vmatpush1.bf16.msra.mxu0 %v622
  %1210 = vmatprep.mubr.bf16.mxu0 %v1049
  %1211 = vmatmul.mubr.bf16.gmra.mrb[0].mxu0 %v1048
  %v1212 = vpop.f32.mrb[0].mxu0
  %v1213 = vadd.f32 %v1164, %v1212
  %v1214 = vpop.f32.mrb[0].mxu0
  %v1215 = vpop.f32.mrb[0].mxu0
  %v1216 = vadd.f32 %v1167, %v1215
  %v1217 = vpop.f32.mrb[0].mxu0
  %1218 = vmatprep.mubr.bf16.mxu0 %v1058
  %1219 = vmatmul.mubr.bf16.gmra.mrb[0].mxu0 %v1057
  %v1220 = vpop.f32.mrb[0].mxu0
  %v1221 = vadd.f32 %v1172, %v1220
  %v1222 = vpop.f32.mrb[0].mxu0
  %v1223 = vpop.f32.mrb[0].mxu0
  %v1224 = vadd.f32 %v1175, %v1223
  %v1225 = vpop.f32.mrb[0].mxu0
  %1226 = vdwg.mxu0
  %1227 = vmatprep.subr.bf16.mxu0 0
  %1228 = vmatpush1.bf16.msra.mxu0 %v623
  %1229 = vmatprep.subr.bf16.mxu0 0
  %1230 = vmatpush1.bf16.msra.mxu0 %v624
  %1231 = vmatprep.subr.bf16.mxu0 0
  %1232 = vmatpush1.bf16.msra.mxu0 %v625
  %1233 = vmatprep.subr.bf16.mxu0 0
  %1234 = vmatpush1.bf16.msra.mxu0 %v626
  %1235 = vmatprep.subr.bf16.mxu0 0
  %1236 = vmatpush1.bf16.msra.mxu0 %v627
  %1237 = vmatprep.subr.bf16.mxu0 0
  %1238 = vmatpush1.bf16.msra.mxu0 %v628
  %1239 = vmatprep.subr.bf16.mxu0 0
  %1240 = vmatpush1.bf16.msra.mxu0 %v629
  %1241 = vmatprep.subr.bf16.mxu0 0
  %1242 = vmatpush1.bf16.msra.mxu0 %v630
  %1243 = vmatprep.subr.bf16.mxu0 0
  %1244 = vmatpush1.bf16.msra.mxu0 %v631
  %1245 = vmatprep.subr.bf16.mxu0 0
  %1246 = vmatpush1.bf16.msra.mxu0 %v632
  %1247 = vmatprep.subr.bf16.mxu0 0
  %1248 = vmatpush1.bf16.msra.mxu0 %v633
  %1249 = vmatprep.subr.bf16.mxu0 0
  %1250 = vmatpush1.bf16.msra.mxu0 %v634
  %1251 = vmatprep.subr.bf16.mxu0 0
  %1252 = vmatpush1.bf16.msra.mxu0 %v635
  %1253 = vmatprep.subr.bf16.mxu0 0
  %1254 = vmatpush1.bf16.msra.mxu0 %v636
  %1255 = vmatprep.subr.bf16.mxu0 0
  %1256 = vmatpush1.bf16.msra.mxu0 %v637
  %1257 = vmatprep.subr.bf16.mxu0 0
  %1258 = vmatpush1.bf16.msra.mxu0 %v638
  %1259 = vmatprep.mubr.bf16.mxu0 %v1051
  %1260 = vmatmul.mubr.bf16.gmra.mrb[0].mxu0 %v1050
  %v1261 = vpop.f32.mrb[0].mxu0
  %v1262 = vadd.f32 %v1213, %v1261
  %v1263 = vpop.f32.mrb[0].mxu0
  %v1264 = vpop.f32.mrb[0].mxu0
  %v1265 = vadd.f32 %v1216, %v1264
  %v1266 = vpop.f32.mrb[0].mxu0
  %1267 = vmatprep.mubr.bf16.mxu0 %v1060
  %1268 = vmatmul.mubr.bf16.gmra.mrb[0].mxu0 %v1059
  %v1269 = vpop.f32.mrb[0].mxu0
  %v1270 = vadd.f32 %v1221, %v1269
  %v1271 = vpop.f32.mrb[0].mxu0
  %v1272 = vpop.f32.mrb[0].mxu0
  %v1273 = vadd.f32 %v1224, %v1272
  %v1274 = vpop.f32.mrb[0].mxu0
  %1275 = vdwg.mxu0
  %1276 = vmatprep.subr.bf16.mxu0 0
  %1277 = vmatpush1.bf16.msra.mxu0 %v639
  %1278 = vmatprep.subr.bf16.mxu0 0
  %1279 = vmatpush1.bf16.msra.mxu0 %v640
  %1280 = vmatprep.subr.bf16.mxu0 0
  %1281 = vmatpush1.bf16.msra.mxu0 %v641
  %1282 = vmatprep.subr.bf16.mxu0 0
  %1283 = vmatpush1.bf16.msra.mxu0 %v642
  %1284 = vmatprep.subr.bf16.mxu0 0
  %1285 = vmatpush1.bf16.msra.mxu0 %v643
  %1286 = vmatprep.subr.bf16.mxu0 0
  %1287 = vmatpush1.bf16.msra.mxu0 %v644
  %1288 = vmatprep.subr.bf16.mxu0 0
  %1289 = vmatpush1.bf16.msra.mxu0 %v645
  %1290 = vmatprep.subr.bf16.mxu0 0
  %1291 = vmatpush1.bf16.msra.mxu0 %v646
  %1292 = vmatprep.subr.bf16.mxu0 0
  %1293 = vmatpush1.bf16.msra.mxu0 0
  %1294 = vmatprep.subr.bf16.mxu0 0
  %1295 = vmatpush1.bf16.msra.mxu0 0
  %1296 = vmatprep.subr.bf16.mxu0 0
  %1297 = vmatpush1.bf16.msra.mxu0 0
  %1298 = vmatprep.subr.bf16.mxu0 0
  %1299 = vmatpush1.bf16.msra.mxu0 0
  %1300 = vmatprep.subr.bf16.mxu0 0
  %1301 = vmatpush1.bf16.msra.mxu0 0
  %1302 = vmatprep.subr.bf16.mxu0 0
  %1303 = vmatpush1.bf16.msra.mxu0 0
  %1304 = vmatprep.subr.bf16.mxu0 0
  %1305 = vmatpush1.bf16.msra.mxu0 0
  %1306 = vmatprep.subr.bf16.mxu0 0
  %1307 = vmatpush1.bf16.msra.mxu0 0
  %1308 = vmatprep.mubr.bf16.mxu0 0
  %1309 = vmatmul.mubr.bf16.gmra.mrb[0].mxu0 %v1052
  %v1310 = vpop.f32.mrb[0].mxu0
  %v1311 = vadd.f32 %v1262, %v1310
  %v1312 = vpop.f32.mrb[0].mxu0
  %v1313 = vpop.f32.mrb[0].mxu0
  %v1314 = vadd.f32 %v1265, %v1313
  %v1315 = vpop.f32.mrb[0].mxu0
  %1316 = vmatprep.mubr.bf16.mxu0 0
  %1317 = vmatmul.mubr.bf16.gmra.mrb[0].mxu0 %v1061
  %v1318 = vpop.f32.mrb[0].mxu0
  %v1319 = vadd.f32 %v1270, %v1318
  %v1320 = vpop.f32.mrb[0].mxu0
  %v1321 = vpop.f32.mrb[0].mxu0
  %v1322 = vadd.f32 %v1273, %v1321
  %v1323 = vpop.f32.mrb[0].mxu0
  %1324 = vdwg.mxu0
  %v1325 = vmax.f32 %v1311, 0.0
  %v1326 = vmax.f32 %v1314, 0.0
  %v1327 = vmax.f32 %v1319, 0.0
  %v1328 = vmax.f32 %v1322, 0.0
  %v1329 = vmax.f32 %v964, %v1325
  %v1330 = vmax.f32 %v965, %v1326
  %v1331 = vmax.f32 %v966, %v1327
  %v1332 = vmax.f32 %v967, %v1328
  %v1333 = vld [vmem:[%s2] sm:$0xff]
  %v1334 = vld [vmem:[%s2 + $0x8] sm:$0xff]
  %v1335 = vld [vmem:[%s2 + $0x10] sm:$0xff]
  %v1336 = vld [vmem:[%s2 + $0x18] sm:$0xff]
  %v1337 = vld [vmem:[%s2 + $0x20] sm:$0xf]
  %v1338 = vld [vmem:[%s2 + $0x24] sm:$0xff]
  %v1339 = vld [vmem:[%s2 + $0x2c] sm:$0xff]
  %v1340 = vld [vmem:[%s2 + $0x34] sm:$0xff]
  %v1341 = vld [vmem:[%s2 + $0x3c] sm:$0xff]
  %v1342 = vld [vmem:[%s2 + $0x44] sm:$0xf]
  %v1343 = vld [vmem:[%s2 + $0x48] sm:$0xff]
  %v1344 = vld [vmem:[%s2 + $0x50] sm:$0xff]
  %v1345 = vld [vmem:[%s2 + $0x58] sm:$0xff]
  %v1346 = vld [vmem:[%s2 + $0x60] sm:$0xff]
  %v1347 = vld [vmem:[%s2 + $0x68] sm:$0xf]
  %v1348 = vld [vmem:[%s2 + $0x6c] sm:$0xff]
  %v1349 = vld [vmem:[%s2 + $0x74] sm:$0xff]
  %v1350 = vld [vmem:[%s2 + $0x7c] sm:$0xff]
  %v1351 = vld [vmem:[%s2 + $0x84] sm:$0xff]
  %v1352 = vld [vmem:[%s2 + $0x8c] sm:$0xf]
  %v1373 = vunpack.c.l.b16 %v1333
  %v1374 = vunpack.c.h.b16 %v1333
  %v1375 = vunpack.c.l.b16 %v1334
  %v1376 = vunpack.c.h.b16 %v1334
  %v1377 = vunpack.c.l.b16 %v1335
  %v1378 = vunpack.c.h.b16 %v1335
  %v1379 = vunpack.c.l.b16 %v1336
  %v1380 = vunpack.c.h.b16 %v1336
  %v1381 = vunpack.c.l.b16 %v1337
  %v1382 = vunpack.c.l.b16 %v1338
  %v1383 = vunpack.c.h.b16 %v1338
  %v1384 = vunpack.c.l.b16 %v1339
  %v1385 = vunpack.c.h.b16 %v1339
  %v1386 = vunpack.c.l.b16 %v1340
  %v1387 = vunpack.c.h.b16 %v1340
  %v1388 = vunpack.c.l.b16 %v1341
  %v1389 = vunpack.c.h.b16 %v1341
  %v1390 = vunpack.c.l.b16 %v1342
  %v1391 = vunpack.c.l.b16 %v1343
  %v1392 = vunpack.c.h.b16 %v1343
  %v1393 = vunpack.c.l.b16 %v1344
  %v1394 = vunpack.c.h.b16 %v1344
  %v1395 = vunpack.c.l.b16 %v1345
  %v1396 = vunpack.c.h.b16 %v1345
  %v1397 = vunpack.c.l.b16 %v1346
  %v1398 = vunpack.c.h.b16 %v1346
  %v1399 = vunpack.c.l.b16 %v1347
  %v1400 = vunpack.c.l.b16 %v1348
  %v1401 = vunpack.c.h.b16 %v1348
  %v1402 = vunpack.c.l.b16 %v1349
  %v1403 = vunpack.c.h.b16 %v1349
  %v1404 = vunpack.c.l.b16 %v1350
  %v1405 = vunpack.c.h.b16 %v1350
  %v1406 = vunpack.c.l.b16 %v1351
  %v1407 = vunpack.c.h.b16 %v1351
  %v1408 = vunpack.c.l.b16 %v1352
  %v1409 = vpack.c.b16 %v1382, %v1373
  %v1410 = vpack.c.b16 %v1383, %v1374
  %v1411 = vpack.c.b16 %v1384, %v1375
  %v1412 = vpack.c.b16 %v1385, %v1376
  %v1413 = vpack.c.b16 %v1386, %v1377
  %v1414 = vpack.c.b16 %v1387, %v1378
  %v1415 = vpack.c.b16 %v1388, %v1379
  %v1416 = vpack.c.b16 %v1389, %v1380
  %v1417 = vpack.c.b16 %v1390, %v1381
  %v1418 = vpack.c.b16 %v1400, %v1391
  %v1419 = vpack.c.b16 %v1401, %v1392
  %v1420 = vpack.c.b16 %v1402, %v1393
  %v1421 = vpack.c.b16 %v1403, %v1394
  %v1422 = vpack.c.b16 %v1404, %v1395
  %v1423 = vpack.c.b16 %v1405, %v1396
  %v1424 = vpack.c.b16 %v1406, %v1397
  %v1425 = vpack.c.b16 %v1407, %v1398
  %v1426 = vpack.c.b16 %v1408, %v1399
  %1445 = vmatprep.subr.bf16.mxu0 0
  %1446 = vmatpush1.bf16.msra.mxu0 %v575
  %1447 = vmatprep.subr.bf16.mxu0 0
  %1448 = vmatpush1.bf16.msra.mxu0 %v576
  %1449 = vmatprep.subr.bf16.mxu0 0
  %1450 = vmatpush1.bf16.msra.mxu0 %v577
  %1451 = vmatprep.subr.bf16.mxu0 0
  %1452 = vmatpush1.bf16.msra.mxu0 %v578
  %1453 = vmatprep.subr.bf16.mxu0 0
  %1454 = vmatpush1.bf16.msra.mxu0 %v579
  %1455 = vmatprep.subr.bf16.mxu0 0
  %1456 = vmatpush1.bf16.msra.mxu0 %v580
  %1457 = vmatprep.subr.bf16.mxu0 0
  %1458 = vmatpush1.bf16.msra.mxu0 %v581
  %1459 = vmatprep.subr.bf16.mxu0 0
  %1460 = vmatpush1.bf16.msra.mxu0 %v582
  %1461 = vmatprep.subr.bf16.mxu0 0
  %1462 = vmatpush1.bf16.msra.mxu0 %v583
  %1463 = vmatprep.subr.bf16.mxu0 0
  %1464 = vmatpush1.bf16.msra.mxu0 %v584
  %1465 = vmatprep.subr.bf16.mxu0 0
  %1466 = vmatpush1.bf16.msra.mxu0 %v585
  %1467 = vmatprep.subr.bf16.mxu0 0
  %1468 = vmatpush1.bf16.msra.mxu0 %v586
  %1469 = vmatprep.subr.bf16.mxu0 0
  %1470 = vmatpush1.bf16.msra.mxu0 %v587
  %1471 = vmatprep.subr.bf16.mxu0 0
  %1472 = vmatpush1.bf16.msra.mxu0 %v588
  %1473 = vmatprep.subr.bf16.mxu0 0
  %1474 = vmatpush1.bf16.msra.mxu0 %v589
  %1475 = vmatprep.subr.bf16.mxu0 0
  %1476 = vmatpush1.bf16.msra.mxu0 %v590
  %1477 = vmatprep.mubr.bf16.mxu0 %v1410
  %1478 = vmatmul.mubr.bf16.gmra.mrb[0].mxu0 %v1409
  %v1479 = vpop.f32.mrb[0].mxu0
  %v1480 = vadd.f32 %v193, %v1479
  %v1481 = vpop.f32.mrb[0].mxu0
  %v1482 = vpop.f32.mrb[0].mxu0
  %v1483 = vadd.f32 %v193, %v1482
  %v1484 = vpop.f32.mrb[0].mxu0
  %1485 = vmatprep.mubr.bf16.mxu0 %v1419
  %1486 = vmatmul.mubr.bf16.gmra.mrb[0].mxu0 %v1418
  %v1487 = vpop.f32.mrb[0].mxu0
  %v1488 = vadd.f32 %v193, %v1487
  %v1489 = vpop.f32.mrb[0].mxu0
  %v1490 = vpop.f32.mrb[0].mxu0
  %v1491 = vadd.f32 %v193, %v1490
  %v1492 = vpop.f32.mrb[0].mxu0
  %1493 = vdwg.mxu0
  %1494 = vmatprep.subr.bf16.mxu0 0
  %1495 = vmatpush1.bf16.msra.mxu0 %v591
  %1496 = vmatprep.subr.bf16.mxu0 0
  %1497 = vmatpush1.bf16.msra.mxu0 %v592
  %1498 = vmatprep.subr.bf16.mxu0 0
  %1499 = vmatpush1.bf16.msra.mxu0 %v593
  %1500 = vmatprep.subr.bf16.mxu0 0
  %1501 = vmatpush1.bf16.msra.mxu0 %v594
  %1502 = vmatprep.subr.bf16.mxu0 0
  %1503 = vmatpush1.bf16.msra.mxu0 %v595
  %1504 = vmatprep.subr.bf16.mxu0 0
  %1505 = vmatpush1.bf16.msra.mxu0 %v596
  %1506 = vmatprep.subr.bf16.mxu0 0
  %1507 = vmatpush1.bf16.msra.mxu0 %v597
  %1508 = vmatprep.subr.bf16.mxu0 0
  %1509 = vmatpush1.bf16.msra.mxu0 %v598
  %1510 = vmatprep.subr.bf16.mxu0 0
  %1511 = vmatpush1.bf16.msra.mxu0 %v599
  %1512 = vmatprep.subr.bf16.mxu0 0
  %1513 = vmatpush1.bf16.msra.mxu0 %v600
  %1514 = vmatprep.subr.bf16.mxu0 0
  %1515 = vmatpush1.bf16.msra.mxu0 %v601
  %1516 = vmatprep.subr.bf16.mxu0 0
  %1517 = vmatpush1.bf16.msra.mxu0 %v602
  %1518 = vmatprep.subr.bf16.mxu0 0
  %1519 = vmatpush1.bf16.msra.mxu0 %v603
  %1520 = vmatprep.subr.bf16.mxu0 0
  %1521 = vmatpush1.bf16.msra.mxu0 %v604
  %1522 = vmatprep.subr.bf16.mxu0 0
  %1523 = vmatpush1.bf16.msra.mxu0 %v605
  %1524 = vmatprep.subr.bf16.mxu0 0
  %1525 = vmatpush1.bf16.msra.mxu0 %v606
  %1526 = vmatprep.mubr.bf16.mxu0 %v1412
  %1527 = vmatmul.mubr.bf16.gmra.mrb[0].mxu0 %v1411
  %v1528 = vpop.f32.mrb[0].mxu0
  %v1529 = vadd.f32 %v1480, %v1528
  %v1530 = vpop.f32.mrb[0].mxu0
  %v1531 = vpop.f32.mrb[0].mxu0
  %v1532 = vadd.f32 %v1483, %v1531
  %v1533 = vpop.f32.mrb[0].mxu0
  %1534 = vmatprep.mubr.bf16.mxu0 %v1421
  %1535 = vmatmul.mubr.bf16.gmra.mrb[0].mxu0 %v1420
  %v1536 = vpop.f32.mrb[0].mxu0
  %v1537 = vadd.f32 %v1488, %v1536
  %v1538 = vpop.f32.mrb[0].mxu0
  %v1539 = vpop.f32.mrb[0].mxu0
  %v1540 = vadd.f32 %v1491, %v1539
  %v1541 = vpop.f32.mrb[0].mxu0
  %1542 = vdwg.mxu0
  %1543 = vmatprep.subr.bf16.mxu0 0
  %1544 = vmatpush1.bf16.msra.mxu0 %v607
  %1545 = vmatprep.subr.bf16.mxu0 0
  %1546 = vmatpush1.bf16.msra.mxu0 %v608
  %1547 = vmatprep.subr.bf16.mxu0 0
  %1548 = vmatpush1.bf16.msra.mxu0 %v609
  %1549 = vmatprep.subr.bf16.mxu0 0
  %1550 = vmatpush1.bf16.msra.mxu0 %v610
  %1551 = vmatprep.subr.bf16.mxu0 0
  %1552 = vmatpush1.bf16.msra.mxu0 %v611
  %1553 = vmatprep.subr.bf16.mxu0 0
  %1554 = vmatpush1.bf16.msra.mxu0 %v612
  %1555 = vmatprep.subr.bf16.mxu0 0
  %1556 = vmatpush1.bf16.msra.mxu0 %v613
  %1557 = vmatprep.subr.bf16.mxu0 0
  %1558 = vmatpush1.bf16.msra.mxu0 %v614
  %1559 = vmatprep.subr.bf16.mxu0 0
  %1560 = vmatpush1.bf16.msra.mxu0 %v615
  %1561 = vmatprep.subr.bf16.mxu0 0
  %1562 = vmatpush1.bf16.msra.mxu0 %v616
  %1563 = vmatprep.subr.bf16.mxu0 0
  %1564 = vmatpush1.bf16.msra.mxu0 %v617
  %1565 = vmatprep.subr.bf16.mxu0 0
  %1566 = vmatpush1.bf16.msra.mxu0 %v618
  %1567 = vmatprep.subr.bf16.mxu0 0
  %1568 = vmatpush1.bf16.msra.mxu0 %v619
  %1569 = vmatprep.subr.bf16.mxu0 0
  %1570 = vmatpush1.bf16.msra.mxu0 %v620
  %1571 = vmatprep.subr.bf16.mxu0 0
  %1572 = vmatpush1.bf16.msra.mxu0 %v621
  %1573 = vmatprep.subr.bf16.mxu0 0
  %1574 = vmatpush1.bf16.msra.mxu0 %v622
  %1575 = vmatprep.mubr.bf16.mxu0 %v1414
  %1576 = vmatmul.mubr.bf16.gmra.mrb[0].mxu0 %v1413
  %v1577 = vpop.f32.mrb[0].mxu0
  %v1578 = vadd.f32 %v1529, %v1577
  %v1579 = vpop.f32.mrb[0].mxu0
  %v1580 = vpop.f32.mrb[0].mxu0
  %v1581 = vadd.f32 %v1532, %v1580
  %v1582 = vpop.f32.mrb[0].mxu0
  %1583 = vmatprep.mubr.bf16.mxu0 %v1423
  %1584 = vmatmul.mubr.bf16.gmra.mrb[0].mxu0 %v1422
  %v1585 = vpop.f32.mrb[0].mxu0
  %v1586 = vadd.f32 %v1537, %v1585
  %v1587 = vpop.f32.mrb[0].mxu0
  %v1588 = vpop.f32.mrb[0].mxu0
  %v1589 = vadd.f32 %v1540, %v1588
  %v1590 = vpop.f32.mrb[0].mxu0
  %1591 = vdwg.mxu0
  %1592 = vmatprep.subr.bf16.mxu0 0
  %1593 = vmatpush1.bf16.msra.mxu0 %v623
  %1594 = vmatprep.subr.bf16.mxu0 0
  %1595 = vmatpush1.bf16.msra.mxu0 %v624
  %1596 = vmatprep.subr.bf16.mxu0 0
  %1597 = vmatpush1.bf16.msra.mxu0 %v625
  %1598 = vmatprep.subr.bf16.mxu0 0
  %1599 = vmatpush1.bf16.msra.mxu0 %v626
  %1600 = vmatprep.subr.bf16.mxu0 0
  %1601 = vmatpush1.bf16.msra.mxu0 %v627
  %1602 = vmatprep.subr.bf16.mxu0 0
  %1603 = vmatpush1.bf16.msra.mxu0 %v628
  %1604 = vmatprep.subr.bf16.mxu0 0
  %1605 = vmatpush1.bf16.msra.mxu0 %v629
  %1606 = vmatprep.subr.bf16.mxu0 0
  %1607 = vmatpush1.bf16.msra.mxu0 %v630
  %1608 = vmatprep.subr.bf16.mxu0 0
  %1609 = vmatpush1.bf16.msra.mxu0 %v631
  %1610 = vmatprep.subr.bf16.mxu0 0
  %1611 = vmatpush1.bf16.msra.mxu0 %v632
  %1612 = vmatprep.subr.bf16.mxu0 0
  %1613 = vmatpush1.bf16.msra.mxu0 %v633
  %1614 = vmatprep.subr.bf16.mxu0 0
  %1615 = vmatpush1.bf16.msra.mxu0 %v634
  %1616 = vmatprep.subr.bf16.mxu0 0
  %1617 = vmatpush1.bf16.msra.mxu0 %v635
  %1618 = vmatprep.subr.bf16.mxu0 0
  %1619 = vmatpush1.bf16.msra.mxu0 %v636
  %1620 = vmatprep.subr.bf16.mxu0 0
  %1621 = vmatpush1.bf16.msra.mxu0 %v637
  %1622 = vmatprep.subr.bf16.mxu0 0
  %1623 = vmatpush1.bf16.msra.mxu0 %v638
  %1624 = vmatprep.mubr.bf16.mxu0 %v1416
  %1625 = vmatmul.mubr.bf16.gmra.mrb[0].mxu0 %v1415
  %v1626 = vpop.f32.mrb[0].mxu0
  %v1627 = vadd.f32 %v1578, %v1626
  %v1628 = vpop.f32.mrb[0].mxu0
  %v1629 = vpop.f32.mrb[0].mxu0
  %v1630 = vadd.f32 %v1581, %v1629
  %v1631 = vpop.f32.mrb[0].mxu0
  %1632 = vmatprep.mubr.bf16.mxu0 %v1425
  %1633 = vmatmul.mubr.bf16.gmra.mrb[0].mxu0 %v1424
  %v1634 = vpop.f32.mrb[0].mxu0
  %v1635 = vadd.f32 %v1586, %v1634
  %v1636 = vpop.f32.mrb[0].mxu0
  %v1637 = vpop.f32.mrb[0].mxu0
  %v1638 = vadd.f32 %v1589, %v1637
  %v1639 = vpop.f32.mrb[0].mxu0
  %1640 = vdwg.mxu0
  %1641 = vmatprep.subr.bf16.mxu0 0
  %1642 = vmatpush1.bf16.msra.mxu0 %v639
  %1643 = vmatprep.subr.bf16.mxu0 0
  %1644 = vmatpush1.bf16.msra.mxu0 %v640
  %1645 = vmatprep.subr.bf16.mxu0 0
  %1646 = vmatpush1.bf16.msra.mxu0 %v641
  %1647 = vmatprep.subr.bf16.mxu0 0
  %1648 = vmatpush1.bf16.msra.mxu0 %v642
  %1649 = vmatprep.subr.bf16.mxu0 0
  %1650 = vmatpush1.bf16.msra.mxu0 %v643
  %1651 = vmatprep.subr.bf16.mxu0 0
  %1652 = vmatpush1.bf16.msra.mxu0 %v644
  %1653 = vmatprep.subr.bf16.mxu0 0
  %1654 = vmatpush1.bf16.msra.mxu0 %v645
  %1655 = vmatprep.subr.bf16.mxu0 0
  %1656 = vmatpush1.bf16.msra.mxu0 %v646
  %1657 = vmatprep.subr.bf16.mxu0 0
  %1658 = vmatpush1.bf16.msra.mxu0 0
  %1659 = vmatprep.subr.bf16.mxu0 0
  %1660 = vmatpush1.bf16.msra.mxu0 0
  %1661 = vmatprep.subr.bf16.mxu0 0
  %1662 = vmatpush1.bf16.msra.mxu0 0
  %1663 = vmatprep.subr.bf16.mxu0 0
  %1664 = vmatpush1.bf16.msra.mxu0 0
  %1665 = vmatprep.subr.bf16.mxu0 0
  %1666 = vmatpush1.bf16.msra.mxu0 0
  %1667 = vmatprep.subr.bf16.mxu0 0
  %1668 = vmatpush1.bf16.msra.mxu0 0
  %1669 = vmatprep.subr.bf16.mxu0 0
  %1670 = vmatpush1.bf16.msra.mxu0 0
  %1671 = vmatprep.subr.bf16.mxu0 0
  %1672 = vmatpush1.bf16.msra.mxu0 0
  %1673 = vmatprep.mubr.bf16.mxu0 0
  %1674 = vmatmul.mubr.bf16.gmra.mrb[0].mxu0 %v1417
  %v1675 = vpop.f32.mrb[0].mxu0
  %v1676 = vadd.f32 %v1627, %v1675
  %v1677 = vpop.f32.mrb[0].mxu0
  %v1678 = vpop.f32.mrb[0].mxu0
  %v1679 = vadd.f32 %v1630, %v1678
  %v1680 = vpop.f32.mrb[0].mxu0
  %1681 = vmatprep.mubr.bf16.mxu0 0
  %1682 = vmatmul.mubr.bf16.gmra.mrb[0].mxu0 %v1426
  %v1683 = vpop.f32.mrb[0].mxu0
  %v1684 = vadd.f32 %v1635, %v1683
  %v1685 = vpop.f32.mrb[0].mxu0
  %v1686 = vpop.f32.mrb[0].mxu0
  %v1687 = vadd.f32 %v1638, %v1686
  %v1688 = vpop.f32.mrb[0].mxu0
  %1689 = vdwg.mxu0
  %v1690 = vmax.f32 %v1676, 0.0
  %v1691 = vmax.f32 %v1679, 0.0
  %v1692 = vmax.f32 %v1684, 0.0
  %v1693 = vmax.f32 %v1687, 0.0
  %v1694 = vld [vmem:[%s3] sm:$0xff]
  %v1695 = vld [vmem:[%s3 + $0x8] sm:$0xff]
  %v1696 = vld [vmem:[%s3 + $0x10] sm:$0xff]
  %v1697 = vld [vmem:[%s3 + $0x18] sm:$0xff]
  %v1698 = vld [vmem:[%s3 + $0x20] sm:$0xf]
  %v1699 = vld [vmem:[%s3 + $0x24] sm:$0xff]
  %v1700 = vld [vmem:[%s3 + $0x2c] sm:$0xff]
  %v1701 = vld [vmem:[%s3 + $0x34] sm:$0xff]
  %v1702 = vld [vmem:[%s3 + $0x3c] sm:$0xff]
  %v1703 = vld [vmem:[%s3 + $0x44] sm:$0xf]
  %v1704 = vld [vmem:[%s3 + $0x48] sm:$0xff]
  %v1705 = vld [vmem:[%s3 + $0x50] sm:$0xff]
  %v1706 = vld [vmem:[%s3 + $0x58] sm:$0xff]
  %v1707 = vld [vmem:[%s3 + $0x60] sm:$0xff]
  %v1708 = vld [vmem:[%s3 + $0x68] sm:$0xf]
  %v1709 = vld [vmem:[%s3 + $0x6c] sm:$0xff]
  %v1710 = vld [vmem:[%s3 + $0x74] sm:$0xff]
  %v1711 = vld [vmem:[%s3 + $0x7c] sm:$0xff]
  %v1712 = vld [vmem:[%s3 + $0x84] sm:$0xff]
  %v1713 = vld [vmem:[%s3 + $0x8c] sm:$0xf]
  %v1734 = vunpack.c.l.b16 %v1694
  %v1735 = vunpack.c.h.b16 %v1694
  %v1736 = vunpack.c.l.b16 %v1695
  %v1737 = vunpack.c.h.b16 %v1695
  %v1738 = vunpack.c.l.b16 %v1696
  %v1739 = vunpack.c.h.b16 %v1696
  %v1740 = vunpack.c.l.b16 %v1697
  %v1741 = vunpack.c.h.b16 %v1697
  %v1742 = vunpack.c.l.b16 %v1698
  %v1743 = vunpack.c.l.b16 %v1699
  %v1744 = vunpack.c.h.b16 %v1699
  %v1745 = vunpack.c.l.b16 %v1700
  %v1746 = vunpack.c.h.b16 %v1700
  %v1747 = vunpack.c.l.b16 %v1701
  %v1748 = vunpack.c.h.b16 %v1701
  %v1749 = vunpack.c.l.b16 %v1702
  %v1750 = vunpack.c.h.b16 %v1702
  %v1751 = vunpack.c.l.b16 %v1703
  %v1752 = vunpack.c.l.b16 %v1704
  %v1753 = vunpack.c.h.b16 %v1704
  %v1754 = vunpack.c.l.b16 %v1705
  %v1755 = vunpack.c.h.b16 %v1705
  %v1756 = vunpack.c.l.b16 %v1706
  %v1757 = vunpack.c.h.b16 %v1706
  %v1758 = vunpack.c.l.b16 %v1707
  %v1759 = vunpack.c.h.b16 %v1707
  %v1760 = vunpack.c.l.b16 %v1708
  %v1761 = vunpack.c.l.b16 %v1709
  %v1762 = vunpack.c.h.b16 %v1709
  %v1763 = vunpack.c.l.b16 %v1710
  %v1764 = vunpack.c.h.b16 %v1710
  %v1765 = vunpack.c.l.b16 %v1711
  %v1766 = vunpack.c.h.b16 %v1711
  %v1767 = vunpack.c.l.b16 %v1712
  %v1768 = vunpack.c.h.b16 %v1712
  %v1769 = vunpack.c.l.b16 %v1713
  %v1770 = vpack.c.b16 %v1743, %v1734
  %v1771 = vpack.c.b16 %v1744, %v1735
  %v1772 = vpack.c.b16 %v1745, %v1736
  %v1773 = vpack.c.b16 %v1746, %v1737
  %v1774 = vpack.c.b16 %v1747, %v1738
  %v1775 = vpack.c.b16 %v1748, %v1739
  %v1776 = vpack.c.b16 %v1749, %v1740
  %v1777 = vpack.c.b16 %v1750, %v1741
  %v1778 = vpack.c.b16 %v1751, %v1742
  %v1779 = vpack.c.b16 %v1761, %v1752
  %v1780 = vpack.c.b16 %v1762, %v1753
  %v1781 = vpack.c.b16 %v1763, %v1754
  %v1782 = vpack.c.b16 %v1764, %v1755
  %v1783 = vpack.c.b16 %v1765, %v1756
  %v1784 = vpack.c.b16 %v1766, %v1757
  %v1785 = vpack.c.b16 %v1767, %v1758
  %v1786 = vpack.c.b16 %v1768, %v1759
  %v1787 = vpack.c.b16 %v1769, %v1760
  %1806 = vmatprep.subr.bf16.mxu0 0
  %1807 = vmatpush1.bf16.msra.mxu0 %v575
  %1808 = vmatprep.subr.bf16.mxu0 0
  %1809 = vmatpush1.bf16.msra.mxu0 %v576
  %1810 = vmatprep.subr.bf16.mxu0 0
  %1811 = vmatpush1.bf16.msra.mxu0 %v577
  %1812 = vmatprep.subr.bf16.mxu0 0
  %1813 = vmatpush1.bf16.msra.mxu0 %v578
  %1814 = vmatprep.subr.bf16.mxu0 0
  %1815 = vmatpush1.bf16.msra.mxu0 %v579
  %1816 = vmatprep.subr.bf16.mxu0 0
  %1817 = vmatpush1.bf16.msra.mxu0 %v580
  %1818 = vmatprep.subr.bf16.mxu0 0
  %1819 = vmatpush1.bf16.msra.mxu0 %v581
  %1820 = vmatprep.subr.bf16.mxu0 0
  %1821 = vmatpush1.bf16.msra.mxu0 %v582
  %1822 = vmatprep.subr.bf16.mxu0 0
  %1823 = vmatpush1.bf16.msra.mxu0 %v583
  %1824 = vmatprep.subr.bf16.mxu0 0
  %1825 = vmatpush1.bf16.msra.mxu0 %v584
  %1826 = vmatprep.subr.bf16.mxu0 0
  %1827 = vmatpush1.bf16.msra.mxu0 %v585
  %1828 = vmatprep.subr.bf16.mxu0 0
  %1829 = vmatpush1.bf16.msra.mxu0 %v586
  %1830 = vmatprep.subr.bf16.mxu0 0
  %1831 = vmatpush1.bf16.msra.mxu0 %v587
  %1832 = vmatprep.subr.bf16.mxu0 0
  %1833 = vmatpush1.bf16.msra.mxu0 %v588
  %1834 = vmatprep.subr.bf16.mxu0 0
  %1835 = vmatpush1.bf16.msra.mxu0 %v589
  %1836 = vmatprep.subr.bf16.mxu0 0
  %1837 = vmatpush1.bf16.msra.mxu0 %v590
  %1838 = vmatprep.mubr.bf16.mxu0 %v1771
  %1839 = vmatmul.mubr.bf16.gmra.mrb[0].mxu0 %v1770
  %v1840 = vpop.f32.mrb[0].mxu0
  %v1841 = vadd.f32 %v193, %v1840
  %v1842 = vpop.f32.mrb[0].mxu0
  %v1843 = vpop.f32.mrb[0].mxu0
  %v1844 = vadd.f32 %v193, %v1843
  %v1845 = vpop.f32.mrb[0].mxu0
  %1846 = vmatprep.mubr.bf16.mxu0 %v1780
  %1847 = vmatmul.mubr.bf16.gmra.mrb[0].mxu0 %v1779
  %v1848 = vpop.f32.mrb[0].mxu0
  %v1849 = vadd.f32 %v193, %v1848
  %v1850 = vpop.f32.mrb[0].mxu0
  %v1851 = vpop.f32.mrb[0].mxu0
  %v1852 = vadd.f32 %v193, %v1851
  %v1853 = vpop.f32.mrb[0].mxu0
  %1854 = vdwg.mxu0
  %1855 = vmatprep.subr.bf16.mxu0 0
  %1856 = vmatpush1.bf16.msra.mxu0 %v591
  %1857 = vmatprep.subr.bf16.mxu0 0
  %1858 = vmatpush1.bf16.msra.mxu0 %v592
  %1859 = vmatprep.subr.bf16.mxu0 0
  %1860 = vmatpush1.bf16.msra.mxu0 %v593
  %1861 = vmatprep.subr.bf16.mxu0 0
  %1862 = vmatpush1.bf16.msra.mxu0 %v594
  %1863 = vmatprep.subr.bf16.mxu0 0
  %1864 = vmatpush1.bf16.msra.mxu0 %v595
  %1865 = vmatprep.subr.bf16.mxu0 0
  %1866 = vmatpush1.bf16.msra.mxu0 %v596
  %1867 = vmatprep.subr.bf16.mxu0 0
  %1868 = vmatpush1.bf16.msra.mxu0 %v597
  %1869 = vmatprep.subr.bf16.mxu0 0
  %1870 = vmatpush1.bf16.msra.mxu0 %v598
  %1871 = vmatprep.subr.bf16.mxu0 0
  %1872 = vmatpush1.bf16.msra.mxu0 %v599
  %1873 = vmatprep.subr.bf16.mxu0 0
  %1874 = vmatpush1.bf16.msra.mxu0 %v600
  %1875 = vmatprep.subr.bf16.mxu0 0
  %1876 = vmatpush1.bf16.msra.mxu0 %v601
  %1877 = vmatprep.subr.bf16.mxu0 0
  %1878 = vmatpush1.bf16.msra.mxu0 %v602
  %1879 = vmatprep.subr.bf16.mxu0 0
  %1880 = vmatpush1.bf16.msra.mxu0 %v603
  %1881 = vmatprep.subr.bf16.mxu0 0
  %1882 = vmatpush1.bf16.msra.mxu0 %v604
  %1883 = vmatprep.subr.bf16.mxu0 0
  %1884 = vmatpush1.bf16.msra.mxu0 %v605
  %1885 = vmatprep.subr.bf16.mxu0 0
  %1886 = vmatpush1.bf16.msra.mxu0 %v606
  %1887 = vmatprep.mubr.bf16.mxu0 %v1773
  %1888 = vmatmul.mubr.bf16.gmra.mrb[0].mxu0 %v1772
  %v1889 = vpop.f32.mrb[0].mxu0
  %v1890 = vadd.f32 %v1841, %v1889
  %v1891 = vpop.f32.mrb[0].mxu0
  %v1892 = vpop.f32.mrb[0].mxu0
  %v1893 = vadd.f32 %v1844, %v1892
  %v1894 = vpop.f32.mrb[0].mxu0
  %1895 = vmatprep.mubr.bf16.mxu0 %v1782
  %1896 = vmatmul.mubr.bf16.gmra.mrb[0].mxu0 %v1781
  %v1897 = vpop.f32.mrb[0].mxu0
  %v1898 = vadd.f32 %v1849, %v1897
  %v1899 = vpop.f32.mrb[0].mxu0
  %v1900 = vpop.f32.mrb[0].mxu0
  %v1901 = vadd.f32 %v1852, %v1900
  %v1902 = vpop.f32.mrb[0].mxu0
  %1903 = vdwg.mxu0
  %1904 = vmatprep.subr.bf16.mxu0 0
  %1905 = vmatpush1.bf16.msra.mxu0 %v607
  %1906 = vmatprep.subr.bf16.mxu0 0
  %1907 = vmatpush1.bf16.msra.mxu0 %v608
  %1908 = vmatprep.subr.bf16.mxu0 0
  %1909 = vmatpush1.bf16.msra.mxu0 %v609
  %1910 = vmatprep.subr.bf16.mxu0 0
  %1911 = vmatpush1.bf16.msra.mxu0 %v610
  %1912 = vmatprep.subr.bf16.mxu0 0
  %1913 = vmatpush1.bf16.msra.mxu0 %v611
  %1914 = vmatprep.subr.bf16.mxu0 0
  %1915 = vmatpush1.bf16.msra.mxu0 %v612
  %1916 = vmatprep.subr.bf16.mxu0 0
  %1917 = vmatpush1.bf16.msra.mxu0 %v613
  %1918 = vmatprep.subr.bf16.mxu0 0
  %1919 = vmatpush1.bf16.msra.mxu0 %v614
  %1920 = vmatprep.subr.bf16.mxu0 0
  %1921 = vmatpush1.bf16.msra.mxu0 %v615
  %1922 = vmatprep.subr.bf16.mxu0 0
  %1923 = vmatpush1.bf16.msra.mxu0 %v616
  %1924 = vmatprep.subr.bf16.mxu0 0
  %1925 = vmatpush1.bf16.msra.mxu0 %v617
  %1926 = vmatprep.subr.bf16.mxu0 0
  %1927 = vmatpush1.bf16.msra.mxu0 %v618
  %1928 = vmatprep.subr.bf16.mxu0 0
  %1929 = vmatpush1.bf16.msra.mxu0 %v619
  %1930 = vmatprep.subr.bf16.mxu0 0
  %1931 = vmatpush1.bf16.msra.mxu0 %v620
  %1932 = vmatprep.subr.bf16.mxu0 0
  %1933 = vmatpush1.bf16.msra.mxu0 %v621
  %1934 = vmatprep.subr.bf16.mxu0 0
  %1935 = vmatpush1.bf16.msra.mxu0 %v622
  %1936 = vmatprep.mubr.bf16.mxu0 %v1775
  %1937 = vmatmul.mubr.bf16.gmra.mrb[0].mxu0 %v1774
  %v1938 = vpop.f32.mrb[0].mxu0
  %v1939 = vadd.f32 %v1890, %v1938
  %v1940 = vpop.f32.mrb[0].mxu0
  %v1941 = vpop.f32.mrb[0].mxu0
  %v1942 = vadd.f32 %v1893, %v1941
  %v1943 = vpop.f32.mrb[0].mxu0
  %1944 = vmatprep.mubr.bf16.mxu0 %v1784
  %1945 = vmatmul.mubr.bf16.gmra.mrb[0].mxu0 %v1783
  %v1946 = vpop.f32.mrb[0].mxu0
  %v1947 = vadd.f32 %v1898, %v1946
  %v1948 = vpop.f32.mrb[0].mxu0
  %v1949 = vpop.f32.mrb[0].mxu0
  %v1950 = vadd.f32 %v1901, %v1949
  %v1951 = vpop.f32.mrb[0].mxu0
  %1952 = vdwg.mxu0
  %1953 = vmatprep.subr.bf16.mxu0 0
  %1954 = vmatpush1.bf16.msra.mxu0 %v623
  %1955 = vmatprep.subr.bf16.mxu0 0
  %1956 = vmatpush1.bf16.msra.mxu0 %v624
  %1957 = vmatprep.subr.bf16.mxu0 0
  %1958 = vmatpush1.bf16.msra.mxu0 %v625
  %1959 = vmatprep.subr.bf16.mxu0 0
  %1960 = vmatpush1.bf16.msra.mxu0 %v626
  %1961 = vmatprep.subr.bf16.mxu0 0
  %1962 = vmatpush1.bf16.msra.mxu0 %v627
  %1963 = vmatprep.subr.bf16.mxu0 0
  %1964 = vmatpush1.bf16.msra.mxu0 %v628
  %1965 = vmatprep.subr.bf16.mxu0 0
  %1966 = vmatpush1.bf16.msra.mxu0 %v629
  %1967 = vmatprep.subr.bf16.mxu0 0
  %1968 = vmatpush1.bf16.msra.mxu0 %v630
  %1969 = vmatprep.subr.bf16.mxu0 0
  %1970 = vmatpush1.bf16.msra.mxu0 %v631
  %1971 = vmatprep.subr.bf16.mxu0 0
  %1972 = vmatpush1.bf16.msra.mxu0 %v632
  %1973 = vmatprep.subr.bf16.mxu0 0
  %1974 = vmatpush1.bf16.msra.mxu0 %v633
  %1975 = vmatprep.subr.bf16.mxu0 0
  %1976 = vmatpush1.bf16.msra.mxu0 %v634
  %1977 = vmatprep.subr.bf16.mxu0 0
  %1978 = vmatpush1.bf16.msra.mxu0 %v635
  %1979 = vmatprep.subr.bf16.mxu0 0
  %1980 = vmatpush1.bf16.msra.mxu0 %v636
  %1981 = vmatprep.subr.bf16.mxu0 0
  %1982 = vmatpush1.bf16.msra.mxu0 %v637
  %1983 = vmatprep.subr.bf16.mxu0 0
  %1984 = vmatpush1.bf16.msra.mxu0 %v638
  %1985 = vmatprep.mubr.bf16.mxu0 %v1777
  %1986 = vmatmul.mubr.bf16.gmra.mrb[0].mxu0 %v1776
  %v1987 = vpop.f32.mrb[0].mxu0
  %v1988 = vadd.f32 %v1939, %v1987
  %v1989 = vpop.f32.mrb[0].mxu0
  %v1990 = vpop.f32.mrb[0].mxu0
  %v1991 = vadd.f32 %v1942, %v1990
  %v1992 = vpop.f32.mrb[0].mxu0
  %1993 = vmatprep.mubr.bf16.mxu0 %v1786
  %1994 = vmatmul.mubr.bf16.gmra.mrb[0].mxu0 %v1785
  %v1995 = vpop.f32.mrb[0].mxu0
  %v1996 = vadd.f32 %v1947, %v1995
  %v1997 = vpop.f32.mrb[0].mxu0
  %v1998 = vpop.f32.mrb[0].mxu0
  %v1999 = vadd.f32 %v1950, %v1998
  %v2000 = vpop.f32.mrb[0].mxu0
  %2001 = vdwg.mxu0
  %2002 = vmatprep.subr.bf16.mxu0 0
  %2003 = vmatpush1.bf16.msra.mxu0 %v639
  %2004 = vmatprep.subr.bf16.mxu0 0
  %2005 = vmatpush1.bf16.msra.mxu0 %v640
  %2006 = vmatprep.subr.bf16.mxu0 0
  %2007 = vmatpush1.bf16.msra.mxu0 %v641
  %2008 = vmatprep.subr.bf16.mxu0 0
  %2009 = vmatpush1.bf16.msra.mxu0 %v642
  %2010 = vmatprep.subr.bf16.mxu0 0
  %2011 = vmatpush1.bf16.msra.mxu0 %v643
  %2012 = vmatprep.subr.bf16.mxu0 0
  %2013 = vmatpush1.bf16.msra.mxu0 %v644
  %2014 = vmatprep.subr.bf16.mxu0 0
  %2015 = vmatpush1.bf16.msra.mxu0 %v645
  %2016 = vmatprep.subr.bf16.mxu0 0
  %2017 = vmatpush1.bf16.msra.mxu0 %v646
  %2018 = vmatprep.subr.bf16.mxu0 0
  %2019 = vmatpush1.bf16.msra.mxu0 0
  %2020 = vmatprep.subr.bf16.mxu0 0
  %2021 = vmatpush1.bf16.msra.mxu0 0
  %2022 = vmatprep.subr.bf16.mxu0 0
  %2023 = vmatpush1.bf16.msra.mxu0 0
  %2024 = vmatprep.subr.bf16.mxu0 0
  %2025 = vmatpush1.bf16.msra.mxu0 0
  %2026 = vmatprep.subr.bf16.mxu0 0
  %2027 = vmatpush1.bf16.msra.mxu0 0
  %2028 = vmatprep.subr.bf16.mxu0 0
  %2029 = vmatpush1.bf16.msra.mxu0 0
  %2030 = vmatprep.subr.bf16.mxu0 0
  %2031 = vmatpush1.bf16.msra.mxu0 0
  %2032 = vmatprep.subr.bf16.mxu0 0
  %2033 = vmatpush1.bf16.msra.mxu0 0
  %2034 = vmatprep.mubr.bf16.mxu0 0
  %2035 = vmatmul.mubr.bf16.gmra.mrb[0].mxu0 %v1778
  %v2036 = vpop.f32.mrb[0].mxu0
  %v2037 = vadd.f32 %v1988, %v2036
  %v2038 = vpop.f32.mrb[0].mxu0
  %v2039 = vpop.f32.mrb[0].mxu0
  %v2040 = vadd.f32 %v1991, %v2039
  %v2041 = vpop.f32.mrb[0].mxu0
  %2042 = vmatprep.mubr.bf16.mxu0 0
  %2043 = vmatmul.mubr.bf16.gmra.mrb[0].mxu0 %v1787
  %v2044 = vpop.f32.mrb[0].mxu0
  %v2045 = vadd.f32 %v1996, %v2044
  %v2046 = vpop.f32.mrb[0].mxu0
  %v2047 = vpop.f32.mrb[0].mxu0
  %v2048 = vadd.f32 %v1999, %v2047
  %v2049 = vpop.f32.mrb[0].mxu0
  %2050 = vdwg.mxu0
  %v2051 = vmax.f32 %v2037, 0.0
  %v2052 = vmax.f32 %v2040, 0.0
  %v2053 = vmax.f32 %v2045, 0.0
  %v2054 = vmax.f32 %v2048, 0.0
  %v2055 = vmax.f32 %v1690, %v2051
  %v2056 = vmax.f32 %v1691, %v2052
  %v2057 = vmax.f32 %v1692, %v2053
  %v2058 = vmax.f32 %v1693, %v2054
  %v2059 = vmax.f32 %v1329, %v2055
  %v2060 = vmax.f32 %v1330, %v2056
  %v2061 = vmax.f32 %v1331, %v2057
  %v2062 = vmax.f32 %v1332, %v2058
  %v2063 = vpack.c.bf16 %v2060, %v2059
  %v2064 = vpack.c.bf16 %v2062, %v2061
  %v2067 = vunpack.c.l.b16 %v2063
  %v2068 = vunpack.c.h.b16 %v2063
  %v2069 = vunpack.c.l.b16 %v2064
  %v2070 = vunpack.c.h.b16 %v2064
  %v2071 = vpack.c.b16 %v2067, %v2067
  %v2072 = vpack.c.b16 %v2068, %v2068
  %v2073 = vpack.c.b16 %v2069, %v2069
  %v2074 = vpack.c.b16 %v2070, %v2070
  %2079 = vst [vmem:[%s6] sm:$0xf] %v2071
  %2080 = vst [vmem:[%s6 + $0x4] sm:$0xf] %v2072
  %2081 = vst [vmem:[%s6 + $0x8] sm:$0xf] %v2073
  %2082 = vst [vmem:[%s6 + $0xc] sm:$0xf] %v2074
  // Predicated region
  $region26: #{multi_model_forward.6} parent=0 // pred_check
    _
  $region27: #{multi_model_forward.6} parent=0 // pred_check_branch
    %2084 = sbr.rel (0) target = $region29
  $region28: #{multi_model_forward.6} parent=0 // pred_region
    _
  $region29: #{multi_model_forward.6} parent=0 // pred_fallthru
    _
  // Predicated region
  $region30: #{multi_model_forward.6} parent=0 // pred_check
    _
  $region31: #{multi_model_forward.6} parent=0 // pred_check_branch
    %2086 = sbr.rel (0) target = $region33
  $region32: #{multi_model_forward.6} parent=0 // pred_region
    _
  $region33: #{multi_model_forward.6} parent=0 // pred_fallthru
    _

// kernel: multi_model_forward.7
$region0: #{multi_model_forward.7}
  #allocation0 [shape = 'u32[]', space=smem, size = 0x4, offset = 0x4, fixed_abs, tag = 'smem constant byte address 0x4 - core index']
  #allocation1 [shape = 'u32[144,128]{1,0:T(1,128)}', space=vmem, size = 0x12000, scoped, tag = 'internal scratch']
  %s0 = inlined_call_operand.vmem [shape: bf16[8,1152], index: 0, kind: input, shape index: {}]
  %s1 = inlined_call_operand.vmem [shape: bf16[8,1152], index: 1, kind: input, shape index: {}]
  %s2 = inlined_call_operand.vmem [shape: bf16[8,1152], index: 2, kind: input, shape index: {}]
  %s3 = inlined_call_operand.vmem [shape: bf16[8,1152], index: 3, kind: input, shape index: {}]
  %s4 = inlined_call_operand.vmem [shape: bf16[1152,256], index: 4, kind: input, shape index: {}]
  %s5 = inlined_call_operand.vmem [shape: f32[1,256], index: 5, kind: input, shape index: {}]
  %s6 = inlined_call_operand.vmem [shape: bf16[8,256], index: 6, kind: output, shape index: {}]
  %s7 = sld [smem:[#allocation0]]
  $region34: #{multi_model_forward.7} parent=0
    _
  %s9 = ssub.s32 1, %s7
  %s10 = scalar_select 0, %s9, %s7
  // Predicated region
  $region2: #{multi_model_forward.7} parent=0 // pred_check
    _
  $region3: #{multi_model_forward.7} parent=0 // pred_check_branch
    %12 = sbr.rel (0) target = $region5
  $region4: #{multi_model_forward.7} parent=0 // pred_region
    _
  $region5: #{multi_model_forward.7} parent=0 // pred_fallthru
    _
  // Predicated region
  $region6: #{multi_model_forward.7} parent=0 // pred_check
    _
  $region7: #{multi_model_forward.7} parent=0 // pred_check_branch
    %14 = sbr.rel (0) target = $region9
  $region8: #{multi_model_forward.7} parent=0 // pred_region
    _
  $region9: #{multi_model_forward.7} parent=0 // pred_fallthru
    _
  // Predicated region
  $region10: #{multi_model_forward.7} parent=0 // pred_check
    _
  $region11: #{multi_model_forward.7} parent=0 // pred_check_branch
    %16 = sbr.rel (0) target = $region13
  $region12: #{multi_model_forward.7} parent=0 // pred_region
    _
  $region13: #{multi_model_forward.7} parent=0 // pred_fallthru
    _
  // Predicated region
  $region14: #{multi_model_forward.7} parent=0 // pred_check
    _
  $region15: #{multi_model_forward.7} parent=0 // pred_check_branch
    %18 = sbr.rel (0) target = $region17
  $region16: #{multi_model_forward.7} parent=0 // pred_region
    _
  $region17: #{multi_model_forward.7} parent=0 // pred_fallthru
    _
  // Predicated region
  $region18: #{multi_model_forward.7} parent=0 // pred_check
    _
  $region19: #{multi_model_forward.7} parent=0 // pred_check_branch
    %20 = sbr.rel (0) target = $region21
  $region20: #{multi_model_forward.7} parent=0 // pred_region
    _
  $region21: #{multi_model_forward.7} parent=0 // pred_fallthru
    _
  // Predicated region
  $region22: #{multi_model_forward.7} parent=0 // pred_check
    _
  $region23: #{multi_model_forward.7} parent=0 // pred_check_branch
    %22 = sbr.rel (0) target = $region25
  $region24: #{multi_model_forward.7} parent=0 // pred_region
    _
  $region25: #{multi_model_forward.7} parent=0 // pred_fallthru
    _
  %v24 = vld [vmem:[%s4] sm:$0xff]
  %v25 = vld [vmem:[%s4 + $0x8] sm:$0xff]
  %v26 = vld [vmem:[%s4 + $0x10] sm:$0xff]
  %v27 = vld [vmem:[%s4 + $0x18] sm:$0xff]
  %v28 = vld [vmem:[%s4 + $0x20] sm:$0xff]
  %v29 = vld [vmem:[%s4 + $0x28] sm:$0xff]
  %v30 = vld [vmem:[%s4 + $0x30] sm:$0xff]
  %v31 = vld [vmem:[%s4 + $0x38] sm:$0xff]
  %v32 = vld [vmem:[%s4 + $0x40] sm:$0xff]
  %v33 = vld [vmem:[%s4 + $0x48] sm:$0xff]
  %v34 = vld [vmem:[%s4 + $0x50] sm:$0xff]
  %v35 = vld [vmem:[%s4 + $0x58] sm:$0xff]
  %v36 = vld [vmem:[%s4 + $0x60] sm:$0xff]
  %v37 = vld [vmem:[%s4 + $0x68] sm:$0xff]
  %v38 = vld [vmem:[%s4 + $0x70] sm:$0xff]
  %v39 = vld [vmem:[%s4 + $0x78] sm:$0xff]
  %v40 = vld [vmem:[%s4 + $0x80] sm:$0xff]
  %v41 = vld [vmem:[%s4 + $0x88] sm:$0xff]
  %v42 = vld [vmem:[%s4 + $0x90] sm:$0xff]
  %v43 = vld [vmem:[%s4 + $0x98] sm:$0xff]
  %v44 = vld [vmem:[%s4 + $0xa0] sm:$0xff]
  %v45 = vld [vmem:[%s4 + $0xa8] sm:$0xff]
  %v46 = vld [vmem:[%s4 + $0xb0] sm:$0xff]
  %v47 = vld [vmem:[%s4 + $0xb8] sm:$0xff]
  %v48 = vld [vmem:[%s4 + $0xc0] sm:$0xff]
  %v49 = vld [vmem:[%s4 + $0xc8] sm:$0xff]
  %v50 = vld [vmem:[%s4 + $0xd0] sm:$0xff]
  %v51 = vld [vmem:[%s4 + $0xd8] sm:$0xff]
  %v52 = vld [vmem:[%s4 + $0xe0] sm:$0xff]
  %v53 = vld [vmem:[%s4 + $0xe8] sm:$0xff]
  %v54 = vld [vmem:[%s4 + $0xf0] sm:$0xff]
  %v55 = vld [vmem:[%s4 + $0xf8] sm:$0xff]
  %v56 = vld [vmem:[%s4 + $0x100] sm:$0xff]
  %v57 = vld [vmem:[%s4 + $0x108] sm:$0xff]
  %v58 = vld [vmem:[%s4 + $0x110] sm:$0xff]
  %v59 = vld [vmem:[%s4 + $0x118] sm:$0xff]
  %v60 = vld [vmem:[%s4 + $0x120] sm:$0xff]
  %v61 = vld [vmem:[%s4 + $0x128] sm:$0xff]
  %v62 = vld [vmem:[%s4 + $0x130] sm:$0xff]
  %v63 = vld [vmem:[%s4 + $0x138] sm:$0xff]
  %v64 = vld [vmem:[%s4 + $0x140] sm:$0xff]
  %v65 = vld [vmem:[%s4 + $0x148] sm:$0xff]
  %v66 = vld [vmem:[%s4 + $0x150] sm:$0xff]
  %v67 = vld [vmem:[%s4 + $0x158] sm:$0xff]
  %v68 = vld [vmem:[%s4 + $0x160] sm:$0xff]
  %v69 = vld [vmem:[%s4 + $0x168] sm:$0xff]
  %v70 = vld [vmem:[%s4 + $0x170] sm:$0xff]
  %v71 = vld [vmem:[%s4 + $0x178] sm:$0xff]
  %v72 = vld [vmem:[%s4 + $0x180] sm:$0xff]
  %v73 = vld [vmem:[%s4 + $0x188] sm:$0xff]
  %v74 = vld [vmem:[%s4 + $0x190] sm:$0xff]
  %v75 = vld [vmem:[%s4 + $0x198] sm:$0xff]
  %v76 = vld [vmem:[%s4 + $0x1a0] sm:$0xff]
  %v77 = vld [vmem:[%s4 + $0x1a8] sm:$0xff]
  %v78 = vld [vmem:[%s4 + $0x1b0] sm:$0xff]
  %v79 = vld [vmem:[%s4 + $0x1b8] sm:$0xff]
  %v80 = vld [vmem:[%s4 + $0x1c0] sm:$0xff]
  %v81 = vld [vmem:[%s4 + $0x1c8] sm:$0xff]
  %v82 = vld [vmem:[%s4 + $0x1d0] sm:$0xff]
  %v83 = vld [vmem:[%s4 + $0x1d8] sm:$0xff]
  %v84 = vld [vmem:[%s4 + $0x1e0] sm:$0xff]
  %v85 = vld [vmem:[%s4 + $0x1e8] sm:$0xff]
  %v86 = vld [vmem:[%s4 + $0x1f0] sm:$0xff]
  %v87 = vld [vmem:[%s4 + $0x1f8] sm:$0xff]
  %v88 = vld [vmem:[%s4 + $0x200] sm:$0xff]
  %v89 = vld [vmem:[%s4 + $0x208] sm:$0xff]
  %v90 = vld [vmem:[%s4 + $0x210] sm:$0xff]
  %v91 = vld [vmem:[%s4 + $0x218] sm:$0xff]
  %v92 = vld [vmem:[%s4 + $0x220] sm:$0xff]
  %v93 = vld [vmem:[%s4 + $0x228] sm:$0xff]
  %v94 = vld [vmem:[%s4 + $0x230] sm:$0xff]
  %v95 = vld [vmem:[%s4 + $0x238] sm:$0xff]
  %v96 = vld [vmem:[%s4 + $0x240] sm:$0xff]
  %v97 = vld [vmem:[%s4 + $0x248] sm:$0xff]
  %v98 = vld [vmem:[%s4 + $0x250] sm:$0xff]
  %v99 = vld [vmem:[%s4 + $0x258] sm:$0xff]
  %v100 = vld [vmem:[%s4 + $0x260] sm:$0xff]
  %v101 = vld [vmem:[%s4 + $0x268] sm:$0xff]
  %v102 = vld [vmem:[%s4 + $0x270] sm:$0xff]
  %v103 = vld [vmem:[%s4 + $0x278] sm:$0xff]
  %v104 = vld [vmem:[%s4 + $0x280] sm:$0xff]
  %v105 = vld [vmem:[%s4 + $0x288] sm:$0xff]
  %v106 = vld [vmem:[%s4 + $0x290] sm:$0xff]
  %v107 = vld [vmem:[%s4 + $0x298] sm:$0xff]
  %v108 = vld [vmem:[%s4 + $0x2a0] sm:$0xff]
  %v109 = vld [vmem:[%s4 + $0x2a8] sm:$0xff]
  %v110 = vld [vmem:[%s4 + $0x2b0] sm:$0xff]
  %v111 = vld [vmem:[%s4 + $0x2b8] sm:$0xff]
  %v112 = vld [vmem:[%s4 + $0x2c0] sm:$0xff]
  %v113 = vld [vmem:[%s4 + $0x2c8] sm:$0xff]
  %v114 = vld [vmem:[%s4 + $0x2d0] sm:$0xff]
  %v115 = vld [vmem:[%s4 + $0x2d8] sm:$0xff]
  %v116 = vld [vmem:[%s4 + $0x2e0] sm:$0xff]
  %v117 = vld [vmem:[%s4 + $0x2e8] sm:$0xff]
  %v118 = vld [vmem:[%s4 + $0x2f0] sm:$0xff]
  %v119 = vld [vmem:[%s4 + $0x2f8] sm:$0xff]
  %v120 = vld [vmem:[%s4 + $0x300] sm:$0xff]
  %v121 = vld [vmem:[%s4 + $0x308] sm:$0xff]
  %v122 = vld [vmem:[%s4 + $0x310] sm:$0xff]
  %v123 = vld [vmem:[%s4 + $0x318] sm:$0xff]
  %v124 = vld [vmem:[%s4 + $0x320] sm:$0xff]
  %v125 = vld [vmem:[%s4 + $0x328] sm:$0xff]
  %v126 = vld [vmem:[%s4 + $0x330] sm:$0xff]
  %v127 = vld [vmem:[%s4 + $0x338] sm:$0xff]
  %v128 = vld [vmem:[%s4 + $0x340] sm:$0xff]
  %v129 = vld [vmem:[%s4 + $0x348] sm:$0xff]
  %v130 = vld [vmem:[%s4 + $0x350] sm:$0xff]
  %v131 = vld [vmem:[%s4 + $0x358] sm:$0xff]
  %v132 = vld [vmem:[%s4 + $0x360] sm:$0xff]
  %v133 = vld [vmem:[%s4 + $0x368] sm:$0xff]
  %v134 = vld [vmem:[%s4 + $0x370] sm:$0xff]
  %v135 = vld [vmem:[%s4 + $0x378] sm:$0xff]
  %v136 = vld [vmem:[%s4 + $0x380] sm:$0xff]
  %v137 = vld [vmem:[%s4 + $0x388] sm:$0xff]
  %v138 = vld [vmem:[%s4 + $0x390] sm:$0xff]
  %v139 = vld [vmem:[%s4 + $0x398] sm:$0xff]
  %v140 = vld [vmem:[%s4 + $0x3a0] sm:$0xff]
  %v141 = vld [vmem:[%s4 + $0x3a8] sm:$0xff]
  %v142 = vld [vmem:[%s4 + $0x3b0] sm:$0xff]
  %v143 = vld [vmem:[%s4 + $0x3b8] sm:$0xff]
  %v144 = vld [vmem:[%s4 + $0x3c0] sm:$0xff]
  %v145 = vld [vmem:[%s4 + $0x3c8] sm:$0xff]
  %v146 = vld [vmem:[%s4 + $0x3d0] sm:$0xff]
  %v147 = vld [vmem:[%s4 + $0x3d8] sm:$0xff]
  %v148 = vld [vmem:[%s4 + $0x3e0] sm:$0xff]
  %v149 = vld [vmem:[%s4 + $0x3e8] sm:$0xff]
  %v150 = vld [vmem:[%s4 + $0x3f0] sm:$0xff]
  %v151 = vld [vmem:[%s4 + $0x3f8] sm:$0xff]
  %v152 = vld [vmem:[%s4 + $0x400] sm:$0xff]
  %v153 = vld [vmem:[%s4 + $0x408] sm:$0xff]
  %v154 = vld [vmem:[%s4 + $0x410] sm:$0xff]
  %v155 = vld [vmem:[%s4 + $0x418] sm:$0xff]
  %v156 = vld [vmem:[%s4 + $0x420] sm:$0xff]
  %v157 = vld [vmem:[%s4 + $0x428] sm:$0xff]
  %v158 = vld [vmem:[%s4 + $0x430] sm:$0xff]
  %v159 = vld [vmem:[%s4 + $0x438] sm:$0xff]
  %v160 = vld [vmem:[%s4 + $0x440] sm:$0xff]
  %v161 = vld [vmem:[%s4 + $0x448] sm:$0xff]
  %v162 = vld [vmem:[%s4 + $0x450] sm:$0xff]
  %v163 = vld [vmem:[%s4 + $0x458] sm:$0xff]
  %v164 = vld [vmem:[%s4 + $0x460] sm:$0xff]
  %v165 = vld [vmem:[%s4 + $0x468] sm:$0xff]
  %v166 = vld [vmem:[%s4 + $0x470] sm:$0xff]
  %v167 = vld [vmem:[%s4 + $0x478] sm:$0xff]
  %v168 = vld [vmem:[%s5] sm:$0x3]
  %v169 = vld [vmem:[%s0] sm:$0xff]
  %v170 = vld [vmem:[%s0 + $0x8] sm:$0xff]
  %v171 = vld [vmem:[%s0 + $0x10] sm:$0xff]
  %v172 = vld [vmem:[%s0 + $0x18] sm:$0xff]
  %v173 = vld [vmem:[%s0 + $0x20] sm:$0xf]
  %v175 = vlaneseq
  %v176 = vshrl.u32 %v175, 7
  %v177 = vsub.s32 0, %v176
  %v178 = vrot.slane %v168, %v177
  %v179 = vlaneseq
  %v180 = vshrl.u32 %v179, 7
  %v181 = vsub.s32 1, %v180
  %v182 = vrot.slane %v168, %v181
  %v190 = vunpack.c.l.b16 %v169
  %v191 = vunpack.c.h.b16 %v169
  %v192 = vunpack.c.l.b16 %v170
  %v193 = vunpack.c.h.b16 %v170
  %v194 = vunpack.c.l.b16 %v171
  %v195 = vunpack.c.h.b16 %v171
  %v196 = vunpack.c.l.b16 %v172
  %v197 = vunpack.c.h.b16 %v172
  %v198 = vunpack.c.l.b16 %v173
  %v199 = vpack.c.b16 %v190, %v190
  %v200 = vpack.c.b16 %v191, %v191
  %v201 = vpack.c.b16 %v192, %v192
  %v202 = vpack.c.b16 %v193, %v193
  %v203 = vpack.c.b16 %v194, %v194
  %v204 = vpack.c.b16 %v195, %v195
  %v205 = vpack.c.b16 %v196, %v196
  %v206 = vpack.c.b16 %v197, %v197
  %v207 = vpack.c.b16 %v198, %v198
  %v361 = vunpack.c.l.b16 %v24
  %v362 = vunpack.c.h.b16 %v24
  %v363 = vunpack.c.l.b16 %v25
  %v364 = vunpack.c.h.b16 %v25
  %v365 = vunpack.c.l.b16 %v26
  %v366 = vunpack.c.h.b16 %v26
  %v367 = vunpack.c.l.b16 %v27
  %v368 = vunpack.c.h.b16 %v27
  %v369 = vunpack.c.l.b16 %v28
  %v370 = vunpack.c.h.b16 %v28
  %v371 = vunpack.c.l.b16 %v29
  %v372 = vunpack.c.h.b16 %v29
  %v373 = vunpack.c.l.b16 %v30
  %v374 = vunpack.c.h.b16 %v30
  %v375 = vunpack.c.l.b16 %v31
  %v376 = vunpack.c.h.b16 %v31
  %v377 = vunpack.c.l.b16 %v32
  %v378 = vunpack.c.h.b16 %v32
  %v379 = vunpack.c.l.b16 %v33
  %v380 = vunpack.c.h.b16 %v33
  %v381 = vunpack.c.l.b16 %v34
  %v382 = vunpack.c.h.b16 %v34
  %v383 = vunpack.c.l.b16 %v35
  %v384 = vunpack.c.h.b16 %v35
  %v385 = vunpack.c.l.b16 %v36
  %v386 = vunpack.c.h.b16 %v36
  %v387 = vunpack.c.l.b16 %v37
  %v388 = vunpack.c.h.b16 %v37
  %v389 = vunpack.c.l.b16 %v38
  %v390 = vunpack.c.h.b16 %v38
  %v391 = vunpack.c.l.b16 %v39
  %v392 = vunpack.c.h.b16 %v39
  %v393 = vunpack.c.l.b16 %v40
  %v394 = vunpack.c.h.b16 %v40
  %v395 = vunpack.c.l.b16 %v41
  %v396 = vunpack.c.h.b16 %v41
  %v397 = vunpack.c.l.b16 %v42
  %v398 = vunpack.c.h.b16 %v42
  %v399 = vunpack.c.l.b16 %v43
  %v400 = vunpack.c.h.b16 %v43
  %v401 = vunpack.c.l.b16 %v44
  %v402 = vunpack.c.h.b16 %v44
  %v403 = vunpack.c.l.b16 %v45
  %v404 = vunpack.c.h.b16 %v45
  %v405 = vunpack.c.l.b16 %v46
  %v406 = vunpack.c.h.b16 %v46
  %v407 = vunpack.c.l.b16 %v47
  %v408 = vunpack.c.h.b16 %v47
  %v409 = vunpack.c.l.b16 %v48
  %v410 = vunpack.c.h.b16 %v48
  %v411 = vunpack.c.l.b16 %v49
  %v412 = vunpack.c.h.b16 %v49
  %v413 = vunpack.c.l.b16 %v50
  %v414 = vunpack.c.h.b16 %v50
  %v415 = vunpack.c.l.b16 %v51
  %v416 = vunpack.c.h.b16 %v51
  %v417 = vunpack.c.l.b16 %v52
  %v418 = vunpack.c.h.b16 %v52
  %v419 = vunpack.c.l.b16 %v53
  %v420 = vunpack.c.h.b16 %v53
  %v421 = vunpack.c.l.b16 %v54
  %v422 = vunpack.c.h.b16 %v54
  %v423 = vunpack.c.l.b16 %v55
  %v424 = vunpack.c.h.b16 %v55
  %v425 = vunpack.c.l.b16 %v56
  %v426 = vunpack.c.h.b16 %v56
  %v427 = vunpack.c.l.b16 %v57
  %v428 = vunpack.c.h.b16 %v57
  %v429 = vunpack.c.l.b16 %v58
  %v430 = vunpack.c.h.b16 %v58
  %v431 = vunpack.c.l.b16 %v59
  %v432 = vunpack.c.h.b16 %v59
  %v433 = vunpack.c.l.b16 %v60
  %v434 = vunpack.c.h.b16 %v60
  %v435 = vunpack.c.l.b16 %v61
  %v436 = vunpack.c.h.b16 %v61
  %v437 = vunpack.c.l.b16 %v62
  %v438 = vunpack.c.h.b16 %v62
  %v439 = vunpack.c.l.b16 %v63
  %v440 = vunpack.c.h.b16 %v63
  %v441 = vunpack.c.l.b16 %v64
  %v442 = vunpack.c.h.b16 %v64
  %v443 = vunpack.c.l.b16 %v65
  %v444 = vunpack.c.h.b16 %v65
  %v445 = vunpack.c.l.b16 %v66
  %v446 = vunpack.c.h.b16 %v66
  %v447 = vunpack.c.l.b16 %v67
  %v448 = vunpack.c.h.b16 %v67
  %v449 = vunpack.c.l.b16 %v68
  %v450 = vunpack.c.h.b16 %v68
  %v451 = vunpack.c.l.b16 %v69
  %v452 = vunpack.c.h.b16 %v69
  %v453 = vunpack.c.l.b16 %v70
  %v454 = vunpack.c.h.b16 %v70
  %v455 = vunpack.c.l.b16 %v71
  %v456 = vunpack.c.h.b16 %v71
  %v457 = vunpack.c.l.b16 %v72
  %v458 = vunpack.c.h.b16 %v72
  %v459 = vunpack.c.l.b16 %v73
  %v460 = vunpack.c.h.b16 %v73
  %v461 = vunpack.c.l.b16 %v74
  %v462 = vunpack.c.h.b16 %v74
  %v463 = vunpack.c.l.b16 %v75
  %v464 = vunpack.c.h.b16 %v75
  %v465 = vunpack.c.l.b16 %v76
  %v466 = vunpack.c.h.b16 %v76
  %v467 = vunpack.c.l.b16 %v77
  %v468 = vunpack.c.h.b16 %v77
  %v469 = vunpack.c.l.b16 %v78
  %v470 = vunpack.c.h.b16 %v78
  %v471 = vunpack.c.l.b16 %v79
  %v472 = vunpack.c.h.b16 %v79
  %v473 = vunpack.c.l.b16 %v80
  %v474 = vunpack.c.h.b16 %v80
  %v475 = vunpack.c.l.b16 %v81
  %v476 = vunpack.c.h.b16 %v81
  %v477 = vunpack.c.l.b16 %v82
  %v478 = vunpack.c.h.b16 %v82
  %v479 = vunpack.c.l.b16 %v83
  %v480 = vunpack.c.h.b16 %v83
  %v481 = vunpack.c.l.b16 %v84
  %v482 = vunpack.c.h.b16 %v84
  %v483 = vunpack.c.l.b16 %v85
  %v484 = vunpack.c.h.b16 %v85
  %v485 = vunpack.c.l.b16 %v86
  %v486 = vunpack.c.h.b16 %v86
  %v487 = vunpack.c.l.b16 %v87
  %v488 = vunpack.c.h.b16 %v87
  %v489 = vunpack.c.l.b16 %v88
  %v490 = vunpack.c.h.b16 %v88
  %v491 = vunpack.c.l.b16 %v89
  %v492 = vunpack.c.h.b16 %v89
  %v493 = vunpack.c.l.b16 %v90
  %v494 = vunpack.c.h.b16 %v90
  %v495 = vunpack.c.l.b16 %v91
  %v496 = vunpack.c.h.b16 %v91
  %v497 = vunpack.c.l.b16 %v92
  %v498 = vunpack.c.h.b16 %v92
  %v499 = vunpack.c.l.b16 %v93
  %v500 = vunpack.c.h.b16 %v93
  %v501 = vunpack.c.l.b16 %v94
  %v502 = vunpack.c.h.b16 %v94
  %v503 = vunpack.c.l.b16 %v95
  %v504 = vunpack.c.h.b16 %v95
  %v505 = vunpack.c.l.b16 %v96
  %v506 = vunpack.c.h.b16 %v96
  %v507 = vunpack.c.l.b16 %v97
  %v508 = vunpack.c.h.b16 %v97
  %v509 = vunpack.c.l.b16 %v98
  %v510 = vunpack.c.h.b16 %v98
  %v511 = vunpack.c.l.b16 %v99
  %v512 = vunpack.c.h.b16 %v99
  %v513 = vunpack.c.l.b16 %v100
  %v514 = vunpack.c.h.b16 %v100
  %v515 = vunpack.c.l.b16 %v101
  %v516 = vunpack.c.h.b16 %v101
  %v517 = vunpack.c.l.b16 %v102
  %v518 = vunpack.c.h.b16 %v102
  %v519 = vunpack.c.l.b16 %v103
  %v520 = vunpack.c.h.b16 %v103
  %v521 = vunpack.c.l.b16 %v104
  %v522 = vunpack.c.h.b16 %v104
  %v523 = vunpack.c.l.b16 %v105
  %v524 = vunpack.c.h.b16 %v105
  %v525 = vunpack.c.l.b16 %v106
  %v526 = vunpack.c.h.b16 %v106
  %v527 = vunpack.c.l.b16 %v107
  %v528 = vunpack.c.h.b16 %v107
  %v529 = vunpack.c.l.b16 %v108
  %v530 = vunpack.c.h.b16 %v108
  %v531 = vunpack.c.l.b16 %v109
  %v532 = vunpack.c.h.b16 %v109
  %v533 = vunpack.c.l.b16 %v110
  %v534 = vunpack.c.h.b16 %v110
  %v535 = vunpack.c.l.b16 %v111
  %v536 = vunpack.c.h.b16 %v111
  %v537 = vunpack.c.l.b16 %v112
  %v538 = vunpack.c.h.b16 %v112
  %v539 = vunpack.c.l.b16 %v113
  %v540 = vunpack.c.h.b16 %v113
  %v541 = vunpack.c.l.b16 %v114
  %v542 = vunpack.c.h.b16 %v114
  %v543 = vunpack.c.l.b16 %v115
  %v544 = vunpack.c.h.b16 %v115
  %v545 = vunpack.c.l.b16 %v116
  %v546 = vunpack.c.h.b16 %v116
  %v547 = vunpack.c.l.b16 %v117
  %v548 = vunpack.c.h.b16 %v117
  %v549 = vunpack.c.l.b16 %v118
  %v550 = vunpack.c.h.b16 %v118
  %v551 = vunpack.c.l.b16 %v119
  %v552 = vunpack.c.h.b16 %v119
  %v553 = vunpack.c.l.b16 %v120
  %v554 = vunpack.c.h.b16 %v120
  %v555 = vunpack.c.l.b16 %v121
  %v556 = vunpack.c.h.b16 %v121
  %v557 = vunpack.c.l.b16 %v122
  %v558 = vunpack.c.h.b16 %v122
  %v559 = vunpack.c.l.b16 %v123
  %v560 = vunpack.c.h.b16 %v123
  %v561 = vunpack.c.l.b16 %v124
  %v562 = vunpack.c.h.b16 %v124
  %v563 = vunpack.c.l.b16 %v125
  %v564 = vunpack.c.h.b16 %v125
  %v565 = vunpack.c.l.b16 %v126
  %v566 = vunpack.c.h.b16 %v126
  %v567 = vunpack.c.l.b16 %v127
  %v568 = vunpack.c.h.b16 %v127
  %v569 = vunpack.c.l.b16 %v128
  %v570 = vunpack.c.h.b16 %v128
  %v571 = vunpack.c.l.b16 %v129
  %v572 = vunpack.c.h.b16 %v129
  %v573 = vunpack.c.l.b16 %v130
  %v574 = vunpack.c.h.b16 %v130
  %v575 = vunpack.c.l.b16 %v131
  %v576 = vunpack.c.h.b16 %v131
  %v577 = vunpack.c.l.b16 %v132
  %v578 = vunpack.c.h.b16 %v132
  %v579 = vunpack.c.l.b16 %v133
  %v580 = vunpack.c.h.b16 %v133
  %v581 = vunpack.c.l.b16 %v134
  %v582 = vunpack.c.h.b16 %v134
  %v583 = vunpack.c.l.b16 %v135
  %v584 = vunpack.c.h.b16 %v135
  %v585 = vunpack.c.l.b16 %v136
  %v586 = vunpack.c.h.b16 %v136
  %v587 = vunpack.c.l.b16 %v137
  %v588 = vunpack.c.h.b16 %v137
  %v589 = vunpack.c.l.b16 %v138
  %v590 = vunpack.c.h.b16 %v138
  %v591 = vunpack.c.l.b16 %v139
  %v592 = vunpack.c.h.b16 %v139
  %v593 = vunpack.c.l.b16 %v140
  %v594 = vunpack.c.h.b16 %v140
  %v595 = vunpack.c.l.b16 %v141
  %v596 = vunpack.c.h.b16 %v141
  %v597 = vunpack.c.l.b16 %v142
  %v598 = vunpack.c.h.b16 %v142
  %v599 = vunpack.c.l.b16 %v143
  %v600 = vunpack.c.h.b16 %v143
  %v601 = vunpack.c.l.b16 %v144
  %v602 = vunpack.c.h.b16 %v144
  %v603 = vunpack.c.l.b16 %v145
  %v604 = vunpack.c.h.b16 %v145
  %v605 = vunpack.c.l.b16 %v146
  %v606 = vunpack.c.h.b16 %v146
  %v607 = vunpack.c.l.b16 %v147
  %v608 = vunpack.c.h.b16 %v147
  %v609 = vunpack.c.l.b16 %v148
  %v610 = vunpack.c.h.b16 %v148
  %v611 = vunpack.c.l.b16 %v149
  %v612 = vunpack.c.h.b16 %v149
  %v613 = vunpack.c.l.b16 %v150
  %v614 = vunpack.c.h.b16 %v150
  %v615 = vunpack.c.l.b16 %v151
  %v616 = vunpack.c.h.b16 %v151
  %v617 = vunpack.c.l.b16 %v152
  %v618 = vunpack.c.h.b16 %v152
  %v619 = vunpack.c.l.b16 %v153
  %v620 = vunpack.c.h.b16 %v153
  %v621 = vunpack.c.l.b16 %v154
  %v622 = vunpack.c.h.b16 %v154
  %v623 = vunpack.c.l.b16 %v155
  %v624 = vunpack.c.h.b16 %v155
  %v625 = vunpack.c.l.b16 %v156
  %v626 = vunpack.c.h.b16 %v156
  %v627 = vunpack.c.l.b16 %v157
  %v628 = vunpack.c.h.b16 %v157
  %v629 = vunpack.c.l.b16 %v158
  %v630 = vunpack.c.h.b16 %v158
  %v631 = vunpack.c.l.b16 %v159
  %v632 = vunpack.c.h.b16 %v159
  %v633 = vunpack.c.l.b16 %v160
  %v634 = vunpack.c.h.b16 %v160
  %v635 = vunpack.c.l.b16 %v161
  %v636 = vunpack.c.h.b16 %v161
  %v637 = vunpack.c.l.b16 %v162
  %v638 = vunpack.c.h.b16 %v162
  %v639 = vunpack.c.l.b16 %v163
  %v640 = vunpack.c.h.b16 %v163
  %v641 = vunpack.c.l.b16 %v164
  %v642 = vunpack.c.h.b16 %v164
  %v643 = vunpack.c.l.b16 %v165
  %v644 = vunpack.c.h.b16 %v165
  %v645 = vunpack.c.l.b16 %v166
  %v646 = vunpack.c.h.b16 %v166
  %v647 = vunpack.c.l.b16 %v167
  %v648 = vunpack.c.h.b16 %v167
  %v649 = vpack.c.b16 %v363, %v361
  %v650 = vpack.c.b16 %v364, %v362
  %v651 = vpack.c.b16 %v367, %v365
  %v652 = vpack.c.b16 %v368, %v366
  %v653 = vpack.c.b16 %v371, %v369
  %v654 = vpack.c.b16 %v372, %v370
  %v655 = vpack.c.b16 %v375, %v373
  %v656 = vpack.c.b16 %v376, %v374
  %v657 = vpack.c.b16 %v379, %v377
  %v658 = vpack.c.b16 %v380, %v378
  %v659 = vpack.c.b16 %v383, %v381
  %v660 = vpack.c.b16 %v384, %v382
  %v661 = vpack.c.b16 %v387, %v385
  %v662 = vpack.c.b16 %v388, %v386
  %v663 = vpack.c.b16 %v391, %v389
  %v664 = vpack.c.b16 %v392, %v390
  %v665 = vpack.c.b16 %v395, %v393
  %v666 = vpack.c.b16 %v396, %v394
  %v667 = vpack.c.b16 %v399, %v397
  %v668 = vpack.c.b16 %v400, %v398
  %v669 = vpack.c.b16 %v403, %v401
  %v670 = vpack.c.b16 %v404, %v402
  %v671 = vpack.c.b16 %v407, %v405
  %v672 = vpack.c.b16 %v408, %v406
  %v673 = vpack.c.b16 %v411, %v409
  %v674 = vpack.c.b16 %v412, %v410
  %v675 = vpack.c.b16 %v415, %v413
  %v676 = vpack.c.b16 %v416, %v414
  %v677 = vpack.c.b16 %v419, %v417
  %v678 = vpack.c.b16 %v420, %v418
  %v679 = vpack.c.b16 %v423, %v421
  %v680 = vpack.c.b16 %v424, %v422
  %v681 = vpack.c.b16 %v427, %v425
  %v682 = vpack.c.b16 %v428, %v426
  %v683 = vpack.c.b16 %v431, %v429
  %v684 = vpack.c.b16 %v432, %v430
  %v685 = vpack.c.b16 %v435, %v433
  %v686 = vpack.c.b16 %v436, %v434
  %v687 = vpack.c.b16 %v439, %v437
  %v688 = vpack.c.b16 %v440, %v438
  %v689 = vpack.c.b16 %v443, %v441
  %v690 = vpack.c.b16 %v444, %v442
  %v691 = vpack.c.b16 %v447, %v445
  %v692 = vpack.c.b16 %v448, %v446
  %v693 = vpack.c.b16 %v451, %v449
  %v694 = vpack.c.b16 %v452, %v450
  %v695 = vpack.c.b16 %v455, %v453
  %v696 = vpack.c.b16 %v456, %v454
  %v697 = vpack.c.b16 %v459, %v457
  %v698 = vpack.c.b16 %v460, %v458
  %v699 = vpack.c.b16 %v463, %v461
  %v700 = vpack.c.b16 %v464, %v462
  %v701 = vpack.c.b16 %v467, %v465
  %v702 = vpack.c.b16 %v468, %v466
  %v703 = vpack.c.b16 %v471, %v469
  %v704 = vpack.c.b16 %v472, %v470
  %v705 = vpack.c.b16 %v475, %v473
  %v706 = vpack.c.b16 %v476, %v474
  %v707 = vpack.c.b16 %v479, %v477
  %v708 = vpack.c.b16 %v480, %v478
  %v709 = vpack.c.b16 %v483, %v481
  %v710 = vpack.c.b16 %v484, %v482
  %v711 = vpack.c.b16 %v487, %v485
  %v712 = vpack.c.b16 %v488, %v486
  %v713 = vpack.c.b16 %v491, %v489
  %v714 = vpack.c.b16 %v492, %v490
  %v715 = vpack.c.b16 %v495, %v493
  %v716 = vpack.c.b16 %v496, %v494
  %v717 = vpack.c.b16 %v499, %v497
  %v718 = vpack.c.b16 %v500, %v498
  %v719 = vpack.c.b16 %v503, %v501
  %v720 = vpack.c.b16 %v504, %v502
  %v721 = vpack.c.b16 %v507, %v505
  %v722 = vpack.c.b16 %v508, %v506
  %v723 = vpack.c.b16 %v511, %v509
  %v724 = vpack.c.b16 %v512, %v510
  %v725 = vpack.c.b16 %v515, %v513
  %v726 = vpack.c.b16 %v516, %v514
  %v727 = vpack.c.b16 %v519, %v517
  %v728 = vpack.c.b16 %v520, %v518
  %v729 = vpack.c.b16 %v523, %v521
  %v730 = vpack.c.b16 %v524, %v522
  %v731 = vpack.c.b16 %v527, %v525
  %v732 = vpack.c.b16 %v528, %v526
  %v733 = vpack.c.b16 %v531, %v529
  %v734 = vpack.c.b16 %v532, %v530
  %v735 = vpack.c.b16 %v535, %v533
  %v736 = vpack.c.b16 %v536, %v534
  %v737 = vpack.c.b16 %v539, %v537
  %v738 = vpack.c.b16 %v540, %v538
  %v739 = vpack.c.b16 %v543, %v541
  %v740 = vpack.c.b16 %v544, %v542
  %v741 = vpack.c.b16 %v547, %v545
  %v742 = vpack.c.b16 %v548, %v546
  %v743 = vpack.c.b16 %v551, %v549
  %v744 = vpack.c.b16 %v552, %v550
  %v745 = vpack.c.b16 %v555, %v553
  %v746 = vpack.c.b16 %v556, %v554
  %v747 = vpack.c.b16 %v559, %v557
  %v748 = vpack.c.b16 %v560, %v558
  %v749 = vpack.c.b16 %v563, %v561
  %v750 = vpack.c.b16 %v564, %v562
  %v751 = vpack.c.b16 %v567, %v565
  %v752 = vpack.c.b16 %v568, %v566
  %v753 = vpack.c.b16 %v571, %v569
  %v754 = vpack.c.b16 %v572, %v570
  %v755 = vpack.c.b16 %v575, %v573
  %v756 = vpack.c.b16 %v576, %v574
  %v757 = vpack.c.b16 %v579, %v577
  %v758 = vpack.c.b16 %v580, %v578
  %v759 = vpack.c.b16 %v583, %v581
  %v760 = vpack.c.b16 %v584, %v582
  %v761 = vpack.c.b16 %v587, %v585
  %v762 = vpack.c.b16 %v588, %v586
  %v763 = vpack.c.b16 %v591, %v589
  %v764 = vpack.c.b16 %v592, %v590
  %v765 = vpack.c.b16 %v595, %v593
  %v766 = vpack.c.b16 %v596, %v594
  %v767 = vpack.c.b16 %v599, %v597
  %v768 = vpack.c.b16 %v600, %v598
  %v769 = vpack.c.b16 %v603, %v601
  %v770 = vpack.c.b16 %v604, %v602
  %v771 = vpack.c.b16 %v607, %v605
  %v772 = vpack.c.b16 %v608, %v606
  %v773 = vpack.c.b16 %v611, %v609
  %v774 = vpack.c.b16 %v612, %v610
  %v775 = vpack.c.b16 %v615, %v613
  %v776 = vpack.c.b16 %v616, %v614
  %v777 = vpack.c.b16 %v619, %v617
  %v778 = vpack.c.b16 %v620, %v618
  %v779 = vpack.c.b16 %v623, %v621
  %v780 = vpack.c.b16 %v624, %v622
  %v781 = vpack.c.b16 %v627, %v625
  %v782 = vpack.c.b16 %v628, %v626
  %v783 = vpack.c.b16 %v631, %v629
  %v784 = vpack.c.b16 %v632, %v630
  %v785 = vpack.c.b16 %v635, %v633
  %v786 = vpack.c.b16 %v636, %v634
  %v787 = vpack.c.b16 %v639, %v637
  %v788 = vpack.c.b16 %v640, %v638
  %v789 = vpack.c.b16 %v643, %v641
  %v790 = vpack.c.b16 %v644, %v642
  %v791 = vpack.c.b16 %v647, %v645
  %v792 = vpack.c.b16 %v648, %v646
  %937 = vmatprep.subr.bf16.mxu0 %v650
  %938 = vmatpush1.bf16.msra.mxu0 %v649
  %939 = vmatprep.subr.bf16.mxu0 %v652
  %940 = vmatpush1.bf16.msra.mxu0 %v651
  %941 = vmatprep.subr.bf16.mxu0 %v654
  %942 = vmatpush1.bf16.msra.mxu0 %v653
  %943 = vmatprep.subr.bf16.mxu0 %v656
  %944 = vmatpush1.bf16.msra.mxu0 %v655
  %945 = vmatprep.subr.bf16.mxu0 %v658
  %946 = vmatpush1.bf16.msra.mxu0 %v657
  %947 = vmatprep.subr.bf16.mxu0 %v660
  %948 = vmatpush1.bf16.msra.mxu0 %v659
  %949 = vmatprep.subr.bf16.mxu0 %v662
  %950 = vmatpush1.bf16.msra.mxu0 %v661
  %951 = vmatprep.subr.bf16.mxu0 %v664
  %952 = vmatpush1.bf16.msra.mxu0 %v663
  %953 = vmatprep.subr.bf16.mxu0 %v666
  %954 = vmatpush1.bf16.msra.mxu0 %v665
  %955 = vmatprep.subr.bf16.mxu0 %v668
  %956 = vmatpush1.bf16.msra.mxu0 %v667
  %957 = vmatprep.subr.bf16.mxu0 %v670
  %958 = vmatpush1.bf16.msra.mxu0 %v669
  %959 = vmatprep.subr.bf16.mxu0 %v672
  %960 = vmatpush1.bf16.msra.mxu0 %v671
  %961 = vmatprep.subr.bf16.mxu0 %v674
  %962 = vmatpush1.bf16.msra.mxu0 %v673
  %963 = vmatprep.subr.bf16.mxu0 %v676
  %964 = vmatpush1.bf16.msra.mxu0 %v675
  %965 = vmatprep.subr.bf16.mxu0 %v678
  %966 = vmatpush1.bf16.msra.mxu0 %v677
  %967 = vmatprep.subr.bf16.mxu0 %v680
  %968 = vmatpush1.bf16.msra.mxu0 %v679
  %969 = vmatprep.mubr.bf16.mxu0 %v200
  %970 = vmatmul.mubr.bf16.gmra.mrb[0].mxu0 %v199
  %v971 = vpop.f32.mrb[0].mxu0
  %v972 = vadd.f32 %v178, %v971
  %v973 = vpop.f32.mrb[0].mxu0
  %v974 = vadd.f32 %v182, %v973
  %v975 = vpop.f32.mrb[0].mxu0
  %v976 = vpop.f32.mrb[0].mxu0
  %977 = vdwg.mxu0
  %978 = vmatprep.subr.bf16.mxu0 %v682
  %979 = vmatpush1.bf16.msra.mxu0 %v681
  %980 = vmatprep.subr.bf16.mxu0 %v684
  %981 = vmatpush1.bf16.msra.mxu0 %v683
  %982 = vmatprep.subr.bf16.mxu0 %v686
  %983 = vmatpush1.bf16.msra.mxu0 %v685
  %984 = vmatprep.subr.bf16.mxu0 %v688
  %985 = vmatpush1.bf16.msra.mxu0 %v687
  %986 = vmatprep.subr.bf16.mxu0 %v690
  %987 = vmatpush1.bf16.msra.mxu0 %v689
  %988 = vmatprep.subr.bf16.mxu0 %v692
  %989 = vmatpush1.bf16.msra.mxu0 %v691
  %990 = vmatprep.subr.bf16.mxu0 %v694
  %991 = vmatpush1.bf16.msra.mxu0 %v693
  %992 = vmatprep.subr.bf16.mxu0 %v696
  %993 = vmatpush1.bf16.msra.mxu0 %v695
  %994 = vmatprep.subr.bf16.mxu0 %v698
  %995 = vmatpush1.bf16.msra.mxu0 %v697
  %996 = vmatprep.subr.bf16.mxu0 %v700
  %997 = vmatpush1.bf16.msra.mxu0 %v699
  %998 = vmatprep.subr.bf16.mxu0 %v702
  %999 = vmatpush1.bf16.msra.mxu0 %v701
  %1000 = vmatprep.subr.bf16.mxu0 %v704
  %1001 = vmatpush1.bf16.msra.mxu0 %v703
  %1002 = vmatprep.subr.bf16.mxu0 %v706
  %1003 = vmatpush1.bf16.msra.mxu0 %v705
  %1004 = vmatprep.subr.bf16.mxu0 %v708
  %1005 = vmatpush1.bf16.msra.mxu0 %v707
  %1006 = vmatprep.subr.bf16.mxu0 %v710
  %1007 = vmatpush1.bf16.msra.mxu0 %v709
  %1008 = vmatprep.subr.bf16.mxu0 %v712
  %1009 = vmatpush1.bf16.msra.mxu0 %v711
  %1010 = vmatprep.mubr.bf16.mxu0 %v202
  %1011 = vmatmul.mubr.bf16.gmra.mrb[0].mxu0 %v201
  %v1012 = vpop.f32.mrb[0].mxu0
  %v1013 = vadd.f32 %v972, %v1012
  %v1014 = vpop.f32.mrb[0].mxu0
  %v1015 = vadd.f32 %v974, %v1014
  %v1016 = vpop.f32.mrb[0].mxu0
  %v1017 = vpop.f32.mrb[0].mxu0
  %1018 = vdwg.mxu0
  %1019 = vmatprep.subr.bf16.mxu0 %v714
  %1020 = vmatpush1.bf16.msra.mxu0 %v713
  %1021 = vmatprep.subr.bf16.mxu0 %v716
  %1022 = vmatpush1.bf16.msra.mxu0 %v715
  %1023 = vmatprep.subr.bf16.mxu0 %v718
  %1024 = vmatpush1.bf16.msra.mxu0 %v717
  %1025 = vmatprep.subr.bf16.mxu0 %v720
  %1026 = vmatpush1.bf16.msra.mxu0 %v719
  %1027 = vmatprep.subr.bf16.mxu0 %v722
  %1028 = vmatpush1.bf16.msra.mxu0 %v721
  %1029 = vmatprep.subr.bf16.mxu0 %v724
  %1030 = vmatpush1.bf16.msra.mxu0 %v723
  %1031 = vmatprep.subr.bf16.mxu0 %v726
  %1032 = vmatpush1.bf16.msra.mxu0 %v725
  %1033 = vmatprep.subr.bf16.mxu0 %v728
  %1034 = vmatpush1.bf16.msra.mxu0 %v727
  %1035 = vmatprep.subr.bf16.mxu0 %v730
  %1036 = vmatpush1.bf16.msra.mxu0 %v729
  %1037 = vmatprep.subr.bf16.mxu0 %v732
  %1038 = vmatpush1.bf16.msra.mxu0 %v731
  %1039 = vmatprep.subr.bf16.mxu0 %v734
  %1040 = vmatpush1.bf16.msra.mxu0 %v733
  %1041 = vmatprep.subr.bf16.mxu0 %v736
  %1042 = vmatpush1.bf16.msra.mxu0 %v735
  %1043 = vmatprep.subr.bf16.mxu0 %v738
  %1044 = vmatpush1.bf16.msra.mxu0 %v737
  %1045 = vmatprep.subr.bf16.mxu0 %v740
  %1046 = vmatpush1.bf16.msra.mxu0 %v739
  %1047 = vmatprep.subr.bf16.mxu0 %v742
  %1048 = vmatpush1.bf16.msra.mxu0 %v741
  %1049 = vmatprep.subr.bf16.mxu0 %v744
  %1050 = vmatpush1.bf16.msra.mxu0 %v743
  %1051 = vmatprep.mubr.bf16.mxu0 %v204
  %1052 = vmatmul.mubr.bf16.gmra.mrb[0].mxu0 %v203
  %v1053 = vpop.f32.mrb[0].mxu0
  %v1054 = vadd.f32 %v1013, %v1053
  %v1055 = vpop.f32.mrb[0].mxu0
  %v1056 = vadd.f32 %v1015, %v1055
  %v1057 = vpop.f32.mrb[0].mxu0
  %v1058 = vpop.f32.mrb[0].mxu0
  %1059 = vdwg.mxu0
  %1060 = vmatprep.subr.bf16.mxu0 %v746
  %1061 = vmatpush1.bf16.msra.mxu0 %v745
  %1062 = vmatprep.subr.bf16.mxu0 %v748
  %1063 = vmatpush1.bf16.msra.mxu0 %v747
  %1064 = vmatprep.subr.bf16.mxu0 %v750
  %1065 = vmatpush1.bf16.msra.mxu0 %v749
  %1066 = vmatprep.subr.bf16.mxu0 %v752
  %1067 = vmatpush1.bf16.msra.mxu0 %v751
  %1068 = vmatprep.subr.bf16.mxu0 %v754
  %1069 = vmatpush1.bf16.msra.mxu0 %v753
  %1070 = vmatprep.subr.bf16.mxu0 %v756
  %1071 = vmatpush1.bf16.msra.mxu0 %v755
  %1072 = vmatprep.subr.bf16.mxu0 %v758
  %1073 = vmatpush1.bf16.msra.mxu0 %v757
  %1074 = vmatprep.subr.bf16.mxu0 %v760
  %1075 = vmatpush1.bf16.msra.mxu0 %v759
  %1076 = vmatprep.subr.bf16.mxu0 %v762
  %1077 = vmatpush1.bf16.msra.mxu0 %v761
  %1078 = vmatprep.subr.bf16.mxu0 %v764
  %1079 = vmatpush1.bf16.msra.mxu0 %v763
  %1080 = vmatprep.subr.bf16.mxu0 %v766
  %1081 = vmatpush1.bf16.msra.mxu0 %v765
  %1082 = vmatprep.subr.bf16.mxu0 %v768
  %1083 = vmatpush1.bf16.msra.mxu0 %v767
  %1084 = vmatprep.subr.bf16.mxu0 %v770
  %1085 = vmatpush1.bf16.msra.mxu0 %v769
  %1086 = vmatprep.subr.bf16.mxu0 %v772
  %1087 = vmatpush1.bf16.msra.mxu0 %v771
  %1088 = vmatprep.subr.bf16.mxu0 %v774
  %1089 = vmatpush1.bf16.msra.mxu0 %v773
  %1090 = vmatprep.subr.bf16.mxu0 %v776
  %1091 = vmatpush1.bf16.msra.mxu0 %v775
  %1092 = vmatprep.mubr.bf16.mxu0 %v206
  %1093 = vmatmul.mubr.bf16.gmra.mrb[0].mxu0 %v205
  %v1094 = vpop.f32.mrb[0].mxu0
  %v1095 = vadd.f32 %v1054, %v1094
  %v1096 = vpop.f32.mrb[0].mxu0
  %v1097 = vadd.f32 %v1056, %v1096
  %v1098 = vpop.f32.mrb[0].mxu0
  %v1099 = vpop.f32.mrb[0].mxu0
  %1100 = vdwg.mxu0
  %1101 = vmatprep.subr.bf16.mxu0 %v778
  %1102 = vmatpush1.bf16.msra.mxu0 %v777
  %1103 = vmatprep.subr.bf16.mxu0 %v780
  %1104 = vmatpush1.bf16.msra.mxu0 %v779
  %1105 = vmatprep.subr.bf16.mxu0 %v782
  %1106 = vmatpush1.bf16.msra.mxu0 %v781
  %1107 = vmatprep.subr.bf16.mxu0 %v784
  %1108 = vmatpush1.bf16.msra.mxu0 %v783
  %1109 = vmatprep.subr.bf16.mxu0 %v786
  %1110 = vmatpush1.bf16.msra.mxu0 %v785
  %1111 = vmatprep.subr.bf16.mxu0 %v788
  %1112 = vmatpush1.bf16.msra.mxu0 %v787
  %1113 = vmatprep.subr.bf16.mxu0 %v790
  %1114 = vmatpush1.bf16.msra.mxu0 %v789
  %1115 = vmatprep.subr.bf16.mxu0 %v792
  %1116 = vmatpush1.bf16.msra.mxu0 %v791
  %1117 = vmatprep.subr.bf16.mxu0 0
  %1118 = vmatpush1.bf16.msra.mxu0 0
  %1119 = vmatprep.subr.bf16.mxu0 0
  %1120 = vmatpush1.bf16.msra.mxu0 0
  %1121 = vmatprep.subr.bf16.mxu0 0
  %1122 = vmatpush1.bf16.msra.mxu0 0
  %1123 = vmatprep.subr.bf16.mxu0 0
  %1124 = vmatpush1.bf16.msra.mxu0 0
  %1125 = vmatprep.subr.bf16.mxu0 0
  %1126 = vmatpush1.bf16.msra.mxu0 0
  %1127 = vmatprep.subr.bf16.mxu0 0
  %1128 = vmatpush1.bf16.msra.mxu0 0
  %1129 = vmatprep.subr.bf16.mxu0 0
  %1130 = vmatpush1.bf16.msra.mxu0 0
  %1131 = vmatprep.subr.bf16.mxu0 0
  %1132 = vmatpush1.bf16.msra.mxu0 0
  %1133 = vmatprep.mubr.bf16.mxu0 0
  %1134 = vmatmul.mubr.bf16.gmra.mrb[0].mxu0 %v207
  %v1135 = vpop.f32.mrb[0].mxu0
  %v1136 = vadd.f32 %v1095, %v1135
  %v1137 = vpop.f32.mrb[0].mxu0
  %v1138 = vadd.f32 %v1097, %v1137
  %v1139 = vpop.f32.mrb[0].mxu0
  %v1140 = vpop.f32.mrb[0].mxu0
  %1141 = vdwg.mxu0
  %v1142 = vmax.f32 %v1136, 0.0
  %v1143 = vmax.f32 %v1138, 0.0
  %v1144 = vld [vmem:[%s1] sm:$0xff]
  %v1145 = vld [vmem:[%s1 + $0x8] sm:$0xff]
  %v1146 = vld [vmem:[%s1 + $0x10] sm:$0xff]
  %v1147 = vld [vmem:[%s1 + $0x18] sm:$0xff]
  %v1148 = vld [vmem:[%s1 + $0x20] sm:$0xf]
  %v1154 = vunpack.c.l.b16 %v1144
  %v1155 = vunpack.c.h.b16 %v1144
  %v1156 = vunpack.c.l.b16 %v1145
  %v1157 = vunpack.c.h.b16 %v1145
  %v1158 = vunpack.c.l.b16 %v1146
  %v1159 = vunpack.c.h.b16 %v1146
  %v1160 = vunpack.c.l.b16 %v1147
  %v1161 = vunpack.c.h.b16 %v1147
  %v1162 = vunpack.c.l.b16 %v1148
  %v1163 = vpack.c.b16 %v1154, %v1154
  %v1164 = vpack.c.b16 %v1155, %v1155
  %v1165 = vpack.c.b16 %v1156, %v1156
  %v1166 = vpack.c.b16 %v1157, %v1157
  %v1167 = vpack.c.b16 %v1158, %v1158
  %v1168 = vpack.c.b16 %v1159, %v1159
  %v1169 = vpack.c.b16 %v1160, %v1160
  %v1170 = vpack.c.b16 %v1161, %v1161
  %v1171 = vpack.c.b16 %v1162, %v1162
  %1181 = vmatprep.subr.bf16.mxu0 %v650
  %1182 = vmatpush1.bf16.msra.mxu0 %v649
  %1183 = vmatprep.subr.bf16.mxu0 %v652
  %1184 = vmatpush1.bf16.msra.mxu0 %v651
  %1185 = vmatprep.subr.bf16.mxu0 %v654
  %1186 = vmatpush1.bf16.msra.mxu0 %v653
  %1187 = vmatprep.subr.bf16.mxu0 %v656
  %1188 = vmatpush1.bf16.msra.mxu0 %v655
  %1189 = vmatprep.subr.bf16.mxu0 %v658
  %1190 = vmatpush1.bf16.msra.mxu0 %v657
  %1191 = vmatprep.subr.bf16.mxu0 %v660
  %1192 = vmatpush1.bf16.msra.mxu0 %v659
  %1193 = vmatprep.subr.bf16.mxu0 %v662
  %1194 = vmatpush1.bf16.msra.mxu0 %v661
  %1195 = vmatprep.subr.bf16.mxu0 %v664
  %1196 = vmatpush1.bf16.msra.mxu0 %v663
  %1197 = vmatprep.subr.bf16.mxu0 %v666
  %1198 = vmatpush1.bf16.msra.mxu0 %v665
  %1199 = vmatprep.subr.bf16.mxu0 %v668
  %1200 = vmatpush1.bf16.msra.mxu0 %v667
  %1201 = vmatprep.subr.bf16.mxu0 %v670
  %1202 = vmatpush1.bf16.msra.mxu0 %v669
  %1203 = vmatprep.subr.bf16.mxu0 %v672
  %1204 = vmatpush1.bf16.msra.mxu0 %v671
  %1205 = vmatprep.subr.bf16.mxu0 %v674
  %1206 = vmatpush1.bf16.msra.mxu0 %v673
  %1207 = vmatprep.subr.bf16.mxu0 %v676
  %1208 = vmatpush1.bf16.msra.mxu0 %v675
  %1209 = vmatprep.subr.bf16.mxu0 %v678
  %1210 = vmatpush1.bf16.msra.mxu0 %v677
  %1211 = vmatprep.subr.bf16.mxu0 %v680
  %1212 = vmatpush1.bf16.msra.mxu0 %v679
  %1213 = vmatprep.mubr.bf16.mxu0 %v1164
  %1214 = vmatmul.mubr.bf16.gmra.mrb[0].mxu0 %v1163
  %v1215 = vpop.f32.mrb[0].mxu0
  %v1216 = vadd.f32 %v178, %v1215
  %v1217 = vpop.f32.mrb[0].mxu0
  %v1218 = vadd.f32 %v182, %v1217
  %v1219 = vpop.f32.mrb[0].mxu0
  %v1220 = vpop.f32.mrb[0].mxu0
  %1221 = vdwg.mxu0
  %1222 = vmatprep.subr.bf16.mxu0 %v682
  %1223 = vmatpush1.bf16.msra.mxu0 %v681
  %1224 = vmatprep.subr.bf16.mxu0 %v684
  %1225 = vmatpush1.bf16.msra.mxu0 %v683
  %1226 = vmatprep.subr.bf16.mxu0 %v686
  %1227 = vmatpush1.bf16.msra.mxu0 %v685
  %1228 = vmatprep.subr.bf16.mxu0 %v688
  %1229 = vmatpush1.bf16.msra.mxu0 %v687
  %1230 = vmatprep.subr.bf16.mxu0 %v690
  %1231 = vmatpush1.bf16.msra.mxu0 %v689
  %1232 = vmatprep.subr.bf16.mxu0 %v692
  %1233 = vmatpush1.bf16.msra.mxu0 %v691
  %1234 = vmatprep.subr.bf16.mxu0 %v694
  %1235 = vmatpush1.bf16.msra.mxu0 %v693
  %1236 = vmatprep.subr.bf16.mxu0 %v696
  %1237 = vmatpush1.bf16.msra.mxu0 %v695
  %1238 = vmatprep.subr.bf16.mxu0 %v698
  %1239 = vmatpush1.bf16.msra.mxu0 %v697
  %1240 = vmatprep.subr.bf16.mxu0 %v700
  %1241 = vmatpush1.bf16.msra.mxu0 %v699
  %1242 = vmatprep.subr.bf16.mxu0 %v702
  %1243 = vmatpush1.bf16.msra.mxu0 %v701
  %1244 = vmatprep.subr.bf16.mxu0 %v704
  %1245 = vmatpush1.bf16.msra.mxu0 %v703
  %1246 = vmatprep.subr.bf16.mxu0 %v706
  %1247 = vmatpush1.bf16.msra.mxu0 %v705
  %1248 = vmatprep.subr.bf16.mxu0 %v708
  %1249 = vmatpush1.bf16.msra.mxu0 %v707
  %1250 = vmatprep.subr.bf16.mxu0 %v710
  %1251 = vmatpush1.bf16.msra.mxu0 %v709
  %1252 = vmatprep.subr.bf16.mxu0 %v712
  %1253 = vmatpush1.bf16.msra.mxu0 %v711
  %1254 = vmatprep.mubr.bf16.mxu0 %v1166
  %1255 = vmatmul.mubr.bf16.gmra.mrb[0].mxu0 %v1165
  %v1256 = vpop.f32.mrb[0].mxu0
  %v1257 = vadd.f32 %v1216, %v1256
  %v1258 = vpop.f32.mrb[0].mxu0
  %v1259 = vadd.f32 %v1218, %v1258
  %v1260 = vpop.f32.mrb[0].mxu0
  %v1261 = vpop.f32.mrb[0].mxu0
  %1262 = vdwg.mxu0
  %1263 = vmatprep.subr.bf16.mxu0 %v714
  %1264 = vmatpush1.bf16.msra.mxu0 %v713
  %1265 = vmatprep.subr.bf16.mxu0 %v716
  %1266 = vmatpush1.bf16.msra.mxu0 %v715
  %1267 = vmatprep.subr.bf16.mxu0 %v718
  %1268 = vmatpush1.bf16.msra.mxu0 %v717
  %1269 = vmatprep.subr.bf16.mxu0 %v720
  %1270 = vmatpush1.bf16.msra.mxu0 %v719
  %1271 = vmatprep.subr.bf16.mxu0 %v722
  %1272 = vmatpush1.bf16.msra.mxu0 %v721
  %1273 = vmatprep.subr.bf16.mxu0 %v724
  %1274 = vmatpush1.bf16.msra.mxu0 %v723
  %1275 = vmatprep.subr.bf16.mxu0 %v726
  %1276 = vmatpush1.bf16.msra.mxu0 %v725
  %1277 = vmatprep.subr.bf16.mxu0 %v728
  %1278 = vmatpush1.bf16.msra.mxu0 %v727
  %1279 = vmatprep.subr.bf16.mxu0 %v730
  %1280 = vmatpush1.bf16.msra.mxu0 %v729
  %1281 = vmatprep.subr.bf16.mxu0 %v732
  %1282 = vmatpush1.bf16.msra.mxu0 %v731
  %1283 = vmatprep.subr.bf16.mxu0 %v734
  %1284 = vmatpush1.bf16.msra.mxu0 %v733
  %1285 = vmatprep.subr.bf16.mxu0 %v736
  %1286 = vmatpush1.bf16.msra.mxu0 %v735
  %1287 = vmatprep.subr.bf16.mxu0 %v738
  %1288 = vmatpush1.bf16.msra.mxu0 %v737
  %1289 = vmatprep.subr.bf16.mxu0 %v740
  %1290 = vmatpush1.bf16.msra.mxu0 %v739
  %1291 = vmatprep.subr.bf16.mxu0 %v742
  %1292 = vmatpush1.bf16.msra.mxu0 %v741
  %1293 = vmatprep.subr.bf16.mxu0 %v744
  %1294 = vmatpush1.bf16.msra.mxu0 %v743
  %1295 = vmatprep.mubr.bf16.mxu0 %v1168
  %1296 = vmatmul.mubr.bf16.gmra.mrb[0].mxu0 %v1167
  %v1297 = vpop.f32.mrb[0].mxu0
  %v1298 = vadd.f32 %v1257, %v1297
  %v1299 = vpop.f32.mrb[0].mxu0
  %v1300 = vadd.f32 %v1259, %v1299
  %v1301 = vpop.f32.mrb[0].mxu0
  %v1302 = vpop.f32.mrb[0].mxu0
  %1303 = vdwg.mxu0
  %1304 = vmatprep.subr.bf16.mxu0 %v746
  %1305 = vmatpush1.bf16.msra.mxu0 %v745
  %1306 = vmatprep.subr.bf16.mxu0 %v748
  %1307 = vmatpush1.bf16.msra.mxu0 %v747
  %1308 = vmatprep.subr.bf16.mxu0 %v750
  %1309 = vmatpush1.bf16.msra.mxu0 %v749
  %1310 = vmatprep.subr.bf16.mxu0 %v752
  %1311 = vmatpush1.bf16.msra.mxu0 %v751
  %1312 = vmatprep.subr.bf16.mxu0 %v754
  %1313 = vmatpush1.bf16.msra.mxu0 %v753
  %1314 = vmatprep.subr.bf16.mxu0 %v756
  %1315 = vmatpush1.bf16.msra.mxu0 %v755
  %1316 = vmatprep.subr.bf16.mxu0 %v758
  %1317 = vmatpush1.bf16.msra.mxu0 %v757
  %1318 = vmatprep.subr.bf16.mxu0 %v760
  %1319 = vmatpush1.bf16.msra.mxu0 %v759
  %1320 = vmatprep.subr.bf16.mxu0 %v762
  %1321 = vmatpush1.bf16.msra.mxu0 %v761
  %1322 = vmatprep.subr.bf16.mxu0 %v764
  %1323 = vmatpush1.bf16.msra.mxu0 %v763
  %1324 = vmatprep.subr.bf16.mxu0 %v766
  %1325 = vmatpush1.bf16.msra.mxu0 %v765
  %1326 = vmatprep.subr.bf16.mxu0 %v768
  %1327 = vmatpush1.bf16.msra.mxu0 %v767
  %1328 = vmatprep.subr.bf16.mxu0 %v770
  %1329 = vmatpush1.bf16.msra.mxu0 %v769
  %1330 = vmatprep.subr.bf16.mxu0 %v772
  %1331 = vmatpush1.bf16.msra.mxu0 %v771
  %1332 = vmatprep.subr.bf16.mxu0 %v774
  %1333 = vmatpush1.bf16.msra.mxu0 %v773
  %1334 = vmatprep.subr.bf16.mxu0 %v776
  %1335 = vmatpush1.bf16.msra.mxu0 %v775
  %1336 = vmatprep.mubr.bf16.mxu0 %v1170
  %1337 = vmatmul.mubr.bf16.gmra.mrb[0].mxu0 %v1169
  %v1338 = vpop.f32.mrb[0].mxu0
  %v1339 = vadd.f32 %v1298, %v1338
  %v1340 = vpop.f32.mrb[0].mxu0
  %v1341 = vadd.f32 %v1300, %v1340
  %v1342 = vpop.f32.mrb[0].mxu0
  %v1343 = vpop.f32.mrb[0].mxu0
  %1344 = vdwg.mxu0
  %1345 = vmatprep.subr.bf16.mxu0 %v778
  %1346 = vmatpush1.bf16.msra.mxu0 %v777
  %1347 = vmatprep.subr.bf16.mxu0 %v780
  %1348 = vmatpush1.bf16.msra.mxu0 %v779
  %1349 = vmatprep.subr.bf16.mxu0 %v782
  %1350 = vmatpush1.bf16.msra.mxu0 %v781
  %1351 = vmatprep.subr.bf16.mxu0 %v784
  %1352 = vmatpush1.bf16.msra.mxu0 %v783
  %1353 = vmatprep.subr.bf16.mxu0 %v786
  %1354 = vmatpush1.bf16.msra.mxu0 %v785
  %1355 = vmatprep.subr.bf16.mxu0 %v788
  %1356 = vmatpush1.bf16.msra.mxu0 %v787
  %1357 = vmatprep.subr.bf16.mxu0 %v790
  %1358 = vmatpush1.bf16.msra.mxu0 %v789
  %1359 = vmatprep.subr.bf16.mxu0 %v792
  %1360 = vmatpush1.bf16.msra.mxu0 %v791
  %1361 = vmatprep.subr.bf16.mxu0 0
  %1362 = vmatpush1.bf16.msra.mxu0 0
  %1363 = vmatprep.subr.bf16.mxu0 0
  %1364 = vmatpush1.bf16.msra.mxu0 0
  %1365 = vmatprep.subr.bf16.mxu0 0
  %1366 = vmatpush1.bf16.msra.mxu0 0
  %1367 = vmatprep.subr.bf16.mxu0 0
  %1368 = vmatpush1.bf16.msra.mxu0 0
  %1369 = vmatprep.subr.bf16.mxu0 0
  %1370 = vmatpush1.bf16.msra.mxu0 0
  %1371 = vmatprep.subr.bf16.mxu0 0
  %1372 = vmatpush1.bf16.msra.mxu0 0
  %1373 = vmatprep.subr.bf16.mxu0 0
  %1374 = vmatpush1.bf16.msra.mxu0 0
  %1375 = vmatprep.subr.bf16.mxu0 0
  %1376 = vmatpush1.bf16.msra.mxu0 0
  %1377 = vmatprep.mubr.bf16.mxu0 0
  %1378 = vmatmul.mubr.bf16.gmra.mrb[0].mxu0 %v1171
  %v1379 = vpop.f32.mrb[0].mxu0
  %v1380 = vadd.f32 %v1339, %v1379
  %v1381 = vpop.f32.mrb[0].mxu0
  %v1382 = vadd.f32 %v1341, %v1381
  %v1383 = vpop.f32.mrb[0].mxu0
  %v1384 = vpop.f32.mrb[0].mxu0
  %1385 = vdwg.mxu0
  %v1386 = vmax.f32 %v1380, 0.0
  %v1387 = vmax.f32 %v1382, 0.0
  %v1388 = vmax.f32 %v1142, %v1386
  %v1389 = vmax.f32 %v1143, %v1387
  %v1390 = vld [vmem:[%s2] sm:$0xff]
  %v1391 = vld [vmem:[%s2 + $0x8] sm:$0xff]
  %v1392 = vld [vmem:[%s2 + $0x10] sm:$0xff]
  %v1393 = vld [vmem:[%s2 + $0x18] sm:$0xff]
  %v1394 = vld [vmem:[%s2 + $0x20] sm:$0xf]
  %v1400 = vunpack.c.l.b16 %v1390
  %v1401 = vunpack.c.h.b16 %v1390
  %v1402 = vunpack.c.l.b16 %v1391
  %v1403 = vunpack.c.h.b16 %v1391
  %v1404 = vunpack.c.l.b16 %v1392
  %v1405 = vunpack.c.h.b16 %v1392
  %v1406 = vunpack.c.l.b16 %v1393
  %v1407 = vunpack.c.h.b16 %v1393
  %v1408 = vunpack.c.l.b16 %v1394
  %v1409 = vpack.c.b16 %v1400, %v1400
  %v1410 = vpack.c.b16 %v1401, %v1401
  %v1411 = vpack.c.b16 %v1402, %v1402
  %v1412 = vpack.c.b16 %v1403, %v1403
  %v1413 = vpack.c.b16 %v1404, %v1404
  %v1414 = vpack.c.b16 %v1405, %v1405
  %v1415 = vpack.c.b16 %v1406, %v1406
  %v1416 = vpack.c.b16 %v1407, %v1407
  %v1417 = vpack.c.b16 %v1408, %v1408
  %1427 = vmatprep.subr.bf16.mxu0 %v650
  %1428 = vmatpush1.bf16.msra.mxu0 %v649
  %1429 = vmatprep.subr.bf16.mxu0 %v652
  %1430 = vmatpush1.bf16.msra.mxu0 %v651
  %1431 = vmatprep.subr.bf16.mxu0 %v654
  %1432 = vmatpush1.bf16.msra.mxu0 %v653
  %1433 = vmatprep.subr.bf16.mxu0 %v656
  %1434 = vmatpush1.bf16.msra.mxu0 %v655
  %1435 = vmatprep.subr.bf16.mxu0 %v658
  %1436 = vmatpush1.bf16.msra.mxu0 %v657
  %1437 = vmatprep.subr.bf16.mxu0 %v660
  %1438 = vmatpush1.bf16.msra.mxu0 %v659
  %1439 = vmatprep.subr.bf16.mxu0 %v662
  %1440 = vmatpush1.bf16.msra.mxu0 %v661
  %1441 = vmatprep.subr.bf16.mxu0 %v664
  %1442 = vmatpush1.bf16.msra.mxu0 %v663
  %1443 = vmatprep.subr.bf16.mxu0 %v666
  %1444 = vmatpush1.bf16.msra.mxu0 %v665
  %1445 = vmatprep.subr.bf16.mxu0 %v668
  %1446 = vmatpush1.bf16.msra.mxu0 %v667
  %1447 = vmatprep.subr.bf16.mxu0 %v670
  %1448 = vmatpush1.bf16.msra.mxu0 %v669
  %1449 = vmatprep.subr.bf16.mxu0 %v672
  %1450 = vmatpush1.bf16.msra.mxu0 %v671
  %1451 = vmatprep.subr.bf16.mxu0 %v674
  %1452 = vmatpush1.bf16.msra.mxu0 %v673
  %1453 = vmatprep.subr.bf16.mxu0 %v676
  %1454 = vmatpush1.bf16.msra.mxu0 %v675
  %1455 = vmatprep.subr.bf16.mxu0 %v678
  %1456 = vmatpush1.bf16.msra.mxu0 %v677
  %1457 = vmatprep.subr.bf16.mxu0 %v680
  %1458 = vmatpush1.bf16.msra.mxu0 %v679
  %1459 = vmatprep.mubr.bf16.mxu0 %v1410
  %1460 = vmatmul.mubr.bf16.gmra.mrb[0].mxu0 %v1409
  %v1461 = vpop.f32.mrb[0].mxu0
  %v1462 = vadd.f32 %v178, %v1461
  %v1463 = vpop.f32.mrb[0].mxu0
  %v1464 = vadd.f32 %v182, %v1463
  %v1465 = vpop.f32.mrb[0].mxu0
  %v1466 = vpop.f32.mrb[0].mxu0
  %1467 = vdwg.mxu0
  %1468 = vmatprep.subr.bf16.mxu0 %v682
  %1469 = vmatpush1.bf16.msra.mxu0 %v681
  %1470 = vmatprep.subr.bf16.mxu0 %v684
  %1471 = vmatpush1.bf16.msra.mxu0 %v683
  %1472 = vmatprep.subr.bf16.mxu0 %v686
  %1473 = vmatpush1.bf16.msra.mxu0 %v685
  %1474 = vmatprep.subr.bf16.mxu0 %v688
  %1475 = vmatpush1.bf16.msra.mxu0 %v687
  %1476 = vmatprep.subr.bf16.mxu0 %v690
  %1477 = vmatpush1.bf16.msra.mxu0 %v689
  %1478 = vmatprep.subr.bf16.mxu0 %v692
  %1479 = vmatpush1.bf16.msra.mxu0 %v691
  %1480 = vmatprep.subr.bf16.mxu0 %v694
  %1481 = vmatpush1.bf16.msra.mxu0 %v693
  %1482 = vmatprep.subr.bf16.mxu0 %v696
  %1483 = vmatpush1.bf16.msra.mxu0 %v695
  %1484 = vmatprep.subr.bf16.mxu0 %v698
  %1485 = vmatpush1.bf16.msra.mxu0 %v697
  %1486 = vmatprep.subr.bf16.mxu0 %v700
  %1487 = vmatpush1.bf16.msra.mxu0 %v699
  %1488 = vmatprep.subr.bf16.mxu0 %v702
  %1489 = vmatpush1.bf16.msra.mxu0 %v701
  %1490 = vmatprep.subr.bf16.mxu0 %v704
  %1491 = vmatpush1.bf16.msra.mxu0 %v703
  %1492 = vmatprep.subr.bf16.mxu0 %v706
  %1493 = vmatpush1.bf16.msra.mxu0 %v705
  %1494 = vmatprep.subr.bf16.mxu0 %v708
  %1495 = vmatpush1.bf16.msra.mxu0 %v707
  %1496 = vmatprep.subr.bf16.mxu0 %v710
  %1497 = vmatpush1.bf16.msra.mxu0 %v709
  %1498 = vmatprep.subr.bf16.mxu0 %v712
  %1499 = vmatpush1.bf16.msra.mxu0 %v711
  %1500 = vmatprep.mubr.bf16.mxu0 %v1412
  %1501 = vmatmul.mubr.bf16.gmra.mrb[0].mxu0 %v1411
  %v1502 = vpop.f32.mrb[0].mxu0
  %v1503 = vadd.f32 %v1462, %v1502
  %v1504 = vpop.f32.mrb[0].mxu0
  %v1505 = vadd.f32 %v1464, %v1504
  %v1506 = vpop.f32.mrb[0].mxu0
  %v1507 = vpop.f32.mrb[0].mxu0
  %1508 = vdwg.mxu0
  %1509 = vmatprep.subr.bf16.mxu0 %v714
  %1510 = vmatpush1.bf16.msra.mxu0 %v713
  %1511 = vmatprep.subr.bf16.mxu0 %v716
  %1512 = vmatpush1.bf16.msra.mxu0 %v715
  %1513 = vmatprep.subr.bf16.mxu0 %v718
  %1514 = vmatpush1.bf16.msra.mxu0 %v717
  %1515 = vmatprep.subr.bf16.mxu0 %v720
  %1516 = vmatpush1.bf16.msra.mxu0 %v719
  %1517 = vmatprep.subr.bf16.mxu0 %v722
  %1518 = vmatpush1.bf16.msra.mxu0 %v721
  %1519 = vmatprep.subr.bf16.mxu0 %v724
  %1520 = vmatpush1.bf16.msra.mxu0 %v723
  %1521 = vmatprep.subr.bf16.mxu0 %v726
  %1522 = vmatpush1.bf16.msra.mxu0 %v725
  %1523 = vmatprep.subr.bf16.mxu0 %v728
  %1524 = vmatpush1.bf16.msra.mxu0 %v727
  %1525 = vmatprep.subr.bf16.mxu0 %v730
  %1526 = vmatpush1.bf16.msra.mxu0 %v729
  %1527 = vmatprep.subr.bf16.mxu0 %v732
  %1528 = vmatpush1.bf16.msra.mxu0 %v731
  %1529 = vmatprep.subr.bf16.mxu0 %v734
  %1530 = vmatpush1.bf16.msra.mxu0 %v733
  %1531 = vmatprep.subr.bf16.mxu0 %v736
  %1532 = vmatpush1.bf16.msra.mxu0 %v735
  %1533 = vmatprep.subr.bf16.mxu0 %v738
  %1534 = vmatpush1.bf16.msra.mxu0 %v737
  %1535 = vmatprep.subr.bf16.mxu0 %v740
  %1536 = vmatpush1.bf16.msra.mxu0 %v739
  %1537 = vmatprep.subr.bf16.mxu0 %v742
  %1538 = vmatpush1.bf16.msra.mxu0 %v741
  %1539 = vmatprep.subr.bf16.mxu0 %v744
  %1540 = vmatpush1.bf16.msra.mxu0 %v743
  %1541 = vmatprep.mubr.bf16.mxu0 %v1414
  %1542 = vmatmul.mubr.bf16.gmra.mrb[0].mxu0 %v1413
  %v1543 = vpop.f32.mrb[0].mxu0
  %v1544 = vadd.f32 %v1503, %v1543
  %v1545 = vpop.f32.mrb[0].mxu0
  %v1546 = vadd.f32 %v1505, %v1545
  %v1547 = vpop.f32.mrb[0].mxu0
  %v1548 = vpop.f32.mrb[0].mxu0
  %1549 = vdwg.mxu0
  %1550 = vmatprep.subr.bf16.mxu0 %v746
  %1551 = vmatpush1.bf16.msra.mxu0 %v745
  %1552 = vmatprep.subr.bf16.mxu0 %v748
  %1553 = vmatpush1.bf16.msra.mxu0 %v747
  %1554 = vmatprep.subr.bf16.mxu0 %v750
  %1555 = vmatpush1.bf16.msra.mxu0 %v749
  %1556 = vmatprep.subr.bf16.mxu0 %v752
  %1557 = vmatpush1.bf16.msra.mxu0 %v751
  %1558 = vmatprep.subr.bf16.mxu0 %v754
  %1559 = vmatpush1.bf16.msra.mxu0 %v753
  %1560 = vmatprep.subr.bf16.mxu0 %v756
  %1561 = vmatpush1.bf16.msra.mxu0 %v755
  %1562 = vmatprep.subr.bf16.mxu0 %v758
  %1563 = vmatpush1.bf16.msra.mxu0 %v757
  %1564 = vmatprep.subr.bf16.mxu0 %v760
  %1565 = vmatpush1.bf16.msra.mxu0 %v759
  %1566 = vmatprep.subr.bf16.mxu0 %v762
  %1567 = vmatpush1.bf16.msra.mxu0 %v761
  %1568 = vmatprep.subr.bf16.mxu0 %v764
  %1569 = vmatpush1.bf16.msra.mxu0 %v763
  %1570 = vmatprep.subr.bf16.mxu0 %v766
  %1571 = vmatpush1.bf16.msra.mxu0 %v765
  %1572 = vmatprep.subr.bf16.mxu0 %v768
  %1573 = vmatpush1.bf16.msra.mxu0 %v767
  %1574 = vmatprep.subr.bf16.mxu0 %v770
  %1575 = vmatpush1.bf16.msra.mxu0 %v769
  %1576 = vmatprep.subr.bf16.mxu0 %v772
  %1577 = vmatpush1.bf16.msra.mxu0 %v771
  %1578 = vmatprep.subr.bf16.mxu0 %v774
  %1579 = vmatpush1.bf16.msra.mxu0 %v773
  %1580 = vmatprep.subr.bf16.mxu0 %v776
  %1581 = vmatpush1.bf16.msra.mxu0 %v775
  %1582 = vmatprep.mubr.bf16.mxu0 %v1416
  %1583 = vmatmul.mubr.bf16.gmra.mrb[0].mxu0 %v1415
  %v1584 = vpop.f32.mrb[0].mxu0
  %v1585 = vadd.f32 %v1544, %v1584
  %v1586 = vpop.f32.mrb[0].mxu0
  %v1587 = vadd.f32 %v1546, %v1586
  %v1588 = vpop.f32.mrb[0].mxu0
  %v1589 = vpop.f32.mrb[0].mxu0
  %1590 = vdwg.mxu0
  %1591 = vmatprep.subr.bf16.mxu0 %v778
  %1592 = vmatpush1.bf16.msra.mxu0 %v777
  %1593 = vmatprep.subr.bf16.mxu0 %v780
  %1594 = vmatpush1.bf16.msra.mxu0 %v779
  %1595 = vmatprep.subr.bf16.mxu0 %v782
  %1596 = vmatpush1.bf16.msra.mxu0 %v781
  %1597 = vmatprep.subr.bf16.mxu0 %v784
  %1598 = vmatpush1.bf16.msra.mxu0 %v783
  %1599 = vmatprep.subr.bf16.mxu0 %v786
  %1600 = vmatpush1.bf16.msra.mxu0 %v785
  %1601 = vmatprep.subr.bf16.mxu0 %v788
  %1602 = vmatpush1.bf16.msra.mxu0 %v787
  %1603 = vmatprep.subr.bf16.mxu0 %v790
  %1604 = vmatpush1.bf16.msra.mxu0 %v789
  %1605 = vmatprep.subr.bf16.mxu0 %v792
  %1606 = vmatpush1.bf16.msra.mxu0 %v791
  %1607 = vmatprep.subr.bf16.mxu0 0
  %1608 = vmatpush1.bf16.msra.mxu0 0
  %1609 = vmatprep.subr.bf16.mxu0 0
  %1610 = vmatpush1.bf16.msra.mxu0 0
  %1611 = vmatprep.subr.bf16.mxu0 0
  %1612 = vmatpush1.bf16.msra.mxu0 0
  %1613 = vmatprep.subr.bf16.mxu0 0
  %1614 = vmatpush1.bf16.msra.mxu0 0
  %1615 = vmatprep.subr.bf16.mxu0 0
  %1616 = vmatpush1.bf16.msra.mxu0 0
  %1617 = vmatprep.subr.bf16.mxu0 0
  %1618 = vmatpush1.bf16.msra.mxu0 0
  %1619 = vmatprep.subr.bf16.mxu0 0
  %1620 = vmatpush1.bf16.msra.mxu0 0
  %1621 = vmatprep.subr.bf16.mxu0 0
  %1622 = vmatpush1.bf16.msra.mxu0 0
  %1623 = vmatprep.mubr.bf16.mxu0 0
  %1624 = vmatmul.mubr.bf16.gmra.mrb[0].mxu0 %v1417
  %v1625 = vpop.f32.mrb[0].mxu0
  %v1626 = vadd.f32 %v1585, %v1625
  %v1627 = vpop.f32.mrb[0].mxu0
  %v1628 = vadd.f32 %v1587, %v1627
  %v1629 = vpop.f32.mrb[0].mxu0
  %v1630 = vpop.f32.mrb[0].mxu0
  %1631 = vdwg.mxu0
  %v1632 = vmax.f32 %v1626, 0.0
  %v1633 = vmax.f32 %v1628, 0.0
  %v1634 = vld [vmem:[%s3] sm:$0xff]
  %v1635 = vld [vmem:[%s3 + $0x8] sm:$0xff]
  %v1636 = vld [vmem:[%s3 + $0x10] sm:$0xff]
  %v1637 = vld [vmem:[%s3 + $0x18] sm:$0xff]
  %v1638 = vld [vmem:[%s3 + $0x20] sm:$0xf]
  %v1644 = vunpack.c.l.b16 %v1634
  %v1645 = vunpack.c.h.b16 %v1634
  %v1646 = vunpack.c.l.b16 %v1635
  %v1647 = vunpack.c.h.b16 %v1635
  %v1648 = vunpack.c.l.b16 %v1636
  %v1649 = vunpack.c.h.b16 %v1636
  %v1650 = vunpack.c.l.b16 %v1637
  %v1651 = vunpack.c.h.b16 %v1637
  %v1652 = vunpack.c.l.b16 %v1638
  %v1653 = vpack.c.b16 %v1644, %v1644
  %v1654 = vpack.c.b16 %v1645, %v1645
  %v1655 = vpack.c.b16 %v1646, %v1646
  %v1656 = vpack.c.b16 %v1647, %v1647
  %v1657 = vpack.c.b16 %v1648, %v1648
  %v1658 = vpack.c.b16 %v1649, %v1649
  %v1659 = vpack.c.b16 %v1650, %v1650
  %v1660 = vpack.c.b16 %v1651, %v1651
  %v1661 = vpack.c.b16 %v1652, %v1652
  %1671 = vmatprep.subr.bf16.mxu0 %v650
  %1672 = vmatpush1.bf16.msra.mxu0 %v649
  %1673 = vmatprep.subr.bf16.mxu0 %v652
  %1674 = vmatpush1.bf16.msra.mxu0 %v651
  %1675 = vmatprep.subr.bf16.mxu0 %v654
  %1676 = vmatpush1.bf16.msra.mxu0 %v653
  %1677 = vmatprep.subr.bf16.mxu0 %v656
  %1678 = vmatpush1.bf16.msra.mxu0 %v655
  %1679 = vmatprep.subr.bf16.mxu0 %v658
  %1680 = vmatpush1.bf16.msra.mxu0 %v657
  %1681 = vmatprep.subr.bf16.mxu0 %v660
  %1682 = vmatpush1.bf16.msra.mxu0 %v659
  %1683 = vmatprep.subr.bf16.mxu0 %v662
  %1684 = vmatpush1.bf16.msra.mxu0 %v661
  %1685 = vmatprep.subr.bf16.mxu0 %v664
  %1686 = vmatpush1.bf16.msra.mxu0 %v663
  %1687 = vmatprep.subr.bf16.mxu0 %v666
  %1688 = vmatpush1.bf16.msra.mxu0 %v665
  %1689 = vmatprep.subr.bf16.mxu0 %v668
  %1690 = vmatpush1.bf16.msra.mxu0 %v667
  %1691 = vmatprep.subr.bf16.mxu0 %v670
  %1692 = vmatpush1.bf16.msra.mxu0 %v669
  %1693 = vmatprep.subr.bf16.mxu0 %v672
  %1694 = vmatpush1.bf16.msra.mxu0 %v671
  %1695 = vmatprep.subr.bf16.mxu0 %v674
  %1696 = vmatpush1.bf16.msra.mxu0 %v673
  %1697 = vmatprep.subr.bf16.mxu0 %v676
  %1698 = vmatpush1.bf16.msra.mxu0 %v675
  %1699 = vmatprep.subr.bf16.mxu0 %v678
  %1700 = vmatpush1.bf16.msra.mxu0 %v677
  %1701 = vmatprep.subr.bf16.mxu0 %v680
  %1702 = vmatpush1.bf16.msra.mxu0 %v679
  %1703 = vmatprep.mubr.bf16.mxu0 %v1654
  %1704 = vmatmul.mubr.bf16.gmra.mrb[0].mxu0 %v1653
  %v1705 = vpop.f32.mrb[0].mxu0
  %v1706 = vadd.f32 %v178, %v1705
  %v1707 = vpop.f32.mrb[0].mxu0
  %v1708 = vadd.f32 %v182, %v1707
  %v1709 = vpop.f32.mrb[0].mxu0
  %v1710 = vpop.f32.mrb[0].mxu0
  %1711 = vdwg.mxu0
  %1712 = vmatprep.subr.bf16.mxu0 %v682
  %1713 = vmatpush1.bf16.msra.mxu0 %v681
  %1714 = vmatprep.subr.bf16.mxu0 %v684
  %1715 = vmatpush1.bf16.msra.mxu0 %v683
  %1716 = vmatprep.subr.bf16.mxu0 %v686
  %1717 = vmatpush1.bf16.msra.mxu0 %v685
  %1718 = vmatprep.subr.bf16.mxu0 %v688
  %1719 = vmatpush1.bf16.msra.mxu0 %v687
  %1720 = vmatprep.subr.bf16.mxu0 %v690
  %1721 = vmatpush1.bf16.msra.mxu0 %v689
  %1722 = vmatprep.subr.bf16.mxu0 %v692
  %1723 = vmatpush1.bf16.msra.mxu0 %v691
  %1724 = vmatprep.subr.bf16.mxu0 %v694
  %1725 = vmatpush1.bf16.msra.mxu0 %v693
  %1726 = vmatprep.subr.bf16.mxu0 %v696
  %1727 = vmatpush1.bf16.msra.mxu0 %v695
  %1728 = vmatprep.subr.bf16.mxu0 %v698
  %1729 = vmatpush1.bf16.msra.mxu0 %v697
  %1730 = vmatprep.subr.bf16.mxu0 %v700
  %1731 = vmatpush1.bf16.msra.mxu0 %v699
  %1732 = vmatprep.subr.bf16.mxu0 %v702
  %1733 = vmatpush1.bf16.msra.mxu0 %v701
  %1734 = vmatprep.subr.bf16.mxu0 %v704
  %1735 = vmatpush1.bf16.msra.mxu0 %v703
  %1736 = vmatprep.subr.bf16.mxu0 %v706
  %1737 = vmatpush1.bf16.msra.mxu0 %v705
  %1738 = vmatprep.subr.bf16.mxu0 %v708
  %1739 = vmatpush1.bf16.msra.mxu0 %v707
  %1740 = vmatprep.subr.bf16.mxu0 %v710
  %1741 = vmatpush1.bf16.msra.mxu0 %v709
  %1742 = vmatprep.subr.bf16.mxu0 %v712
  %1743 = vmatpush1.bf16.msra.mxu0 %v711
  %1744 = vmatprep.mubr.bf16.mxu0 %v1656
  %1745 = vmatmul.mubr.bf16.gmra.mrb[0].mxu0 %v1655
  %v1746 = vpop.f32.mrb[0].mxu0
  %v1747 = vadd.f32 %v1706, %v1746
  %v1748 = vpop.f32.mrb[0].mxu0
  %v1749 = vadd.f32 %v1708, %v1748
  %v1750 = vpop.f32.mrb[0].mxu0
  %v1751 = vpop.f32.mrb[0].mxu0
  %1752 = vdwg.mxu0
  %1753 = vmatprep.subr.bf16.mxu0 %v714
  %1754 = vmatpush1.bf16.msra.mxu0 %v713
  %1755 = vmatprep.subr.bf16.mxu0 %v716
  %1756 = vmatpush1.bf16.msra.mxu0 %v715
  %1757 = vmatprep.subr.bf16.mxu0 %v718
  %1758 = vmatpush1.bf16.msra.mxu0 %v717
  %1759 = vmatprep.subr.bf16.mxu0 %v720
  %1760 = vmatpush1.bf16.msra.mxu0 %v719
  %1761 = vmatprep.subr.bf16.mxu0 %v722
  %1762 = vmatpush1.bf16.msra.mxu0 %v721
  %1763 = vmatprep.subr.bf16.mxu0 %v724
  %1764 = vmatpush1.bf16.msra.mxu0 %v723
  %1765 = vmatprep.subr.bf16.mxu0 %v726
  %1766 = vmatpush1.bf16.msra.mxu0 %v725
  %1767 = vmatprep.subr.bf16.mxu0 %v728
  %1768 = vmatpush1.bf16.msra.mxu0 %v727
  %1769 = vmatprep.subr.bf16.mxu0 %v730
  %1770 = vmatpush1.bf16.msra.mxu0 %v729
  %1771 = vmatprep.subr.bf16.mxu0 %v732
  %1772 = vmatpush1.bf16.msra.mxu0 %v731
  %1773 = vmatprep.subr.bf16.mxu0 %v734
  %1774 = vmatpush1.bf16.msra.mxu0 %v733
  %1775 = vmatprep.subr.bf16.mxu0 %v736
  %1776 = vmatpush1.bf16.msra.mxu0 %v735
  %1777 = vmatprep.subr.bf16.mxu0 %v738
  %1778 = vmatpush1.bf16.msra.mxu0 %v737
  %1779 = vmatprep.subr.bf16.mxu0 %v740
  %1780 = vmatpush1.bf16.msra.mxu0 %v739
  %1781 = vmatprep.subr.bf16.mxu0 %v742
  %1782 = vmatpush1.bf16.msra.mxu0 %v741
  %1783 = vmatprep.subr.bf16.mxu0 %v744
  %1784 = vmatpush1.bf16.msra.mxu0 %v743
  %1785 = vmatprep.mubr.bf16.mxu0 %v1658
  %1786 = vmatmul.mubr.bf16.gmra.mrb[0].mxu0 %v1657
  %v1787 = vpop.f32.mrb[0].mxu0
  %v1788 = vadd.f32 %v1747, %v1787
  %v1789 = vpop.f32.mrb[0].mxu0
  %v1790 = vadd.f32 %v1749, %v1789
  %v1791 = vpop.f32.mrb[0].mxu0
  %v1792 = vpop.f32.mrb[0].mxu0
  %1793 = vdwg.mxu0
  %1794 = vmatprep.subr.bf16.mxu0 %v746
  %1795 = vmatpush1.bf16.msra.mxu0 %v745
  %1796 = vmatprep.subr.bf16.mxu0 %v748
  %1797 = vmatpush1.bf16.msra.mxu0 %v747
  %1798 = vmatprep.subr.bf16.mxu0 %v750
  %1799 = vmatpush1.bf16.msra.mxu0 %v749
  %1800 = vmatprep.subr.bf16.mxu0 %v752
  %1801 = vmatpush1.bf16.msra.mxu0 %v751
  %1802 = vmatprep.subr.bf16.mxu0 %v754
  %1803 = vmatpush1.bf16.msra.mxu0 %v753
  %1804 = vmatprep.subr.bf16.mxu0 %v756
  %1805 = vmatpush1.bf16.msra.mxu0 %v755
  %1806 = vmatprep.subr.bf16.mxu0 %v758
  %1807 = vmatpush1.bf16.msra.mxu0 %v757
  %1808 = vmatprep.subr.bf16.mxu0 %v760
  %1809 = vmatpush1.bf16.msra.mxu0 %v759
  %1810 = vmatprep.subr.bf16.mxu0 %v762
  %1811 = vmatpush1.bf16.msra.mxu0 %v761
  %1812 = vmatprep.subr.bf16.mxu0 %v764
  %1813 = vmatpush1.bf16.msra.mxu0 %v763
  %1814 = vmatprep.subr.bf16.mxu0 %v766
  %1815 = vmatpush1.bf16.msra.mxu0 %v765
  %1816 = vmatprep.subr.bf16.mxu0 %v768
  %1817 = vmatpush1.bf16.msra.mxu0 %v767
  %1818 = vmatprep.subr.bf16.mxu0 %v770
  %1819 = vmatpush1.bf16.msra.mxu0 %v769
  %1820 = vmatprep.subr.bf16.mxu0 %v772
  %1821 = vmatpush1.bf16.msra.mxu0 %v771
  %1822 = vmatprep.subr.bf16.mxu0 %v774
  %1823 = vmatpush1.bf16.msra.mxu0 %v773
  %1824 = vmatprep.subr.bf16.mxu0 %v776
  %1825 = vmatpush1.bf16.msra.mxu0 %v775
  %1826 = vmatprep.mubr.bf16.mxu0 %v1660
  %1827 = vmatmul.mubr.bf16.gmra.mrb[0].mxu0 %v1659
  %v1828 = vpop.f32.mrb[0].mxu0
  %v1829 = vadd.f32 %v1788, %v1828
  %v1830 = vpop.f32.mrb[0].mxu0
  %v1831 = vadd.f32 %v1790, %v1830
  %v1832 = vpop.f32.mrb[0].mxu0
  %v1833 = vpop.f32.mrb[0].mxu0
  %1834 = vdwg.mxu0
  %1835 = vmatprep.subr.bf16.mxu0 %v778
  %1836 = vmatpush1.bf16.msra.mxu0 %v777
  %1837 = vmatprep.subr.bf16.mxu0 %v780
  %1838 = vmatpush1.bf16.msra.mxu0 %v779
  %1839 = vmatprep.subr.bf16.mxu0 %v782
  %1840 = vmatpush1.bf16.msra.mxu0 %v781
  %1841 = vmatprep.subr.bf16.mxu0 %v784
  %1842 = vmatpush1.bf16.msra.mxu0 %v783
  %1843 = vmatprep.subr.bf16.mxu0 %v786
  %1844 = vmatpush1.bf16.msra.mxu0 %v785
  %1845 = vmatprep.subr.bf16.mxu0 %v788
  %1846 = vmatpush1.bf16.msra.mxu0 %v787
  %1847 = vmatprep.subr.bf16.mxu0 %v790
  %1848 = vmatpush1.bf16.msra.mxu0 %v789
  %1849 = vmatprep.subr.bf16.mxu0 %v792
  %1850 = vmatpush1.bf16.msra.mxu0 %v791
  %1851 = vmatprep.subr.bf16.mxu0 0
  %1852 = vmatpush1.bf16.msra.mxu0 0
  %1853 = vmatprep.subr.bf16.mxu0 0
  %1854 = vmatpush1.bf16.msra.mxu0 0
  %1855 = vmatprep.subr.bf16.mxu0 0
  %1856 = vmatpush1.bf16.msra.mxu0 0
  %1857 = vmatprep.subr.bf16.mxu0 0
  %1858 = vmatpush1.bf16.msra.mxu0 0
  %1859 = vmatprep.subr.bf16.mxu0 0
  %1860 = vmatpush1.bf16.msra.mxu0 0
  %1861 = vmatprep.subr.bf16.mxu0 0
  %1862 = vmatpush1.bf16.msra.mxu0 0
  %1863 = vmatprep.subr.bf16.mxu0 0
  %1864 = vmatpush1.bf16.msra.mxu0 0
  %1865 = vmatprep.subr.bf16.mxu0 0
  %1866 = vmatpush1.bf16.msra.mxu0 0
  %1867 = vmatprep.mubr.bf16.mxu0 0
  %1868 = vmatmul.mubr.bf16.gmra.mrb[0].mxu0 %v1661
  %v1869 = vpop.f32.mrb[0].mxu0
  %v1870 = vadd.f32 %v1829, %v1869
  %v1871 = vpop.f32.mrb[0].mxu0
  %v1872 = vadd.f32 %v1831, %v1871
  %v1873 = vpop.f32.mrb[0].mxu0
  %v1874 = vpop.f32.mrb[0].mxu0
  %1875 = vdwg.mxu0
  %v1876 = vmax.f32 %v1870, 0.0
  %v1877 = vmax.f32 %v1872, 0.0
  %v1878 = vmax.f32 %v1632, %v1876
  %v1879 = vmax.f32 %v1633, %v1877
  %v1880 = vmax.f32 %v1388, %v1878
  %v1881 = vmax.f32 %v1389, %v1879
  %v1882 = vpack.c.bf16 %v1880, %v1880
  %v1883 = vpack.c.bf16 %v1881, %v1881
  %v1886 = vunpack.c.l.b16 %v1882
  %v1887 = vunpack.c.l.b16 %v1883
  %v1888 = vpack.c.b16 %v1887, %v1886
  %1890 = vst [vmem:[%s6] sm:$0xff] %v1888
  // Predicated region
  $region26: #{multi_model_forward.7} parent=0 // pred_check
    _
  $region27: #{multi_model_forward.7} parent=0 // pred_check_branch
    %1892 = sbr.rel (0) target = $region29
  $region28: #{multi_model_forward.7} parent=0 // pred_region
    _
  $region29: #{multi_model_forward.7} parent=0 // pred_fallthru
    _
  // Predicated region
  $region30: #{multi_model_forward.7} parent=0 // pred_check
    _
  $region31: #{multi_model_forward.7} parent=0 // pred_check_branch
    %1894 = sbr.rel (0) target = $region33
  $region32: #{multi_model_forward.7} parent=0 // pred_region
    _
  $region33: #{multi_model_forward.7} parent=0 // pred_fallthru
    _

// kernel: multi_model_forward.9
$region0: #{multi_model_forward.9}
  #allocation0 [shape = 'u32[]', space=smem, size = 0x4, offset = 0x4, fixed_abs, tag = 'smem constant byte address 0x4 - core index']
  #allocation1 [shape = 'u32[144,128]{1,0:T(1,128)}', space=vmem, size = 0x12000, scoped, tag = 'internal scratch']
  %s0 = inlined_call_operand.vmem [shape: bf16[2,256], index: 0, kind: input, shape index: {}]
  %s1 = inlined_call_operand.vmem [shape: f32[2,8], index: 1, kind: input, shape index: {}]
  %s2 = inlined_call_operand.vmem [shape: f32[256,128], index: 2, kind: input, shape index: {}]
  %s3 = inlined_call_operand.vmem [shape: f32[1,128], index: 3, kind: input, shape index: {}]
  %s4 = inlined_call_operand.vmem [shape: f32[8,256], index: 4, kind: input, shape index: {}]
  %s5 = inlined_call_operand.vmem [shape: f32[1,256], index: 5, kind: input, shape index: {}]
  %s6 = inlined_call_operand.vmem [shape: f32[256,128], index: 6, kind: input, shape index: {}]
  %s7 = inlined_call_operand.vmem [shape: f32[1,128], index: 7, kind: input, shape index: {}]
  %s8 = inlined_call_operand.vmem [shape: f32[128,256], index: 8, kind: input, shape index: {}]
  %s9 = inlined_call_operand.vmem [shape: f32[128,256], index: 9, kind: input, shape index: {}]
  %s10 = inlined_call_operand.vmem [shape: f32[1,256], index: 10, kind: input, shape index: {}]
  %s11 = inlined_call_operand.vmem [shape: f32[256,128], index: 11, kind: input, shape index: {}]
  %s12 = inlined_call_operand.vmem [shape: f32[1,128], index: 12, kind: input, shape index: {}]
  %s13 = inlined_call_operand.vmem [shape: f32[128,128], index: 13, kind: input, shape index: {}]
  %s14 = inlined_call_operand.vmem [shape: f32[1,128], index: 14, kind: input, shape index: {}]
  %s15 = inlined_call_operand.hbm [shape: f32[2,128], index: 15, kind: output, shape index: {}]
  %s16 = sld [smem:[#allocation0]]
  $region70: #{multi_model_forward.9} parent=0
    _
  %s18 = ssub.s32 1, %s16
  %s19 = scalar_select 0, %s18, %s16
  $region1: #{multi_model_forward.9} parent=0
    #allocation2 [shape = 'u8[1024]{0}', space=vmem, size = 0x400, scoped, tag = 'output window, operand 0, single buffered']
    #allocation3 [shape = 's32[1]{0}', space=sflag, size = 0x4, scoped, tag = 'scoped memory for multi_model_forward.9']
    %20 = vsyncpa [#allocation3], 0
    // Predicated region
    $region2: #{multi_model_forward.9} parent=1 // pred_check
      _
    $region3: #{multi_model_forward.9} parent=1 // pred_check_branch
      %22 = sbr.rel (0) target = $region5
    $region4: #{multi_model_forward.9} parent=1 // pred_region
      _
    $region5: #{multi_model_forward.9} parent=1 // pred_fallthru
      _
    // Predicated region
    $region6: #{multi_model_forward.9} parent=1 // pred_check
      _
    $region7: #{multi_model_forward.9} parent=1 // pred_check_branch
      %24 = sbr.rel (0) target = $region9
    $region8: #{multi_model_forward.9} parent=1 // pred_region
      _
    $region9: #{multi_model_forward.9} parent=1 // pred_fallthru
      _
    // Predicated region
    $region10: #{multi_model_forward.9} parent=1 // pred_check
      _
    $region11: #{multi_model_forward.9} parent=1 // pred_check_branch
      %26 = sbr.rel (0) target = $region13
    $region12: #{multi_model_forward.9} parent=1 // pred_region
      _
    $region13: #{multi_model_forward.9} parent=1 // pred_fallthru
      _
    // Predicated region
    $region14: #{multi_model_forward.9} parent=1 // pred_check
      _
    $region15: #{multi_model_forward.9} parent=1 // pred_check_branch
      %28 = sbr.rel (0) target = $region17
    $region16: #{multi_model_forward.9} parent=1 // pred_region
      _
    $region17: #{multi_model_forward.9} parent=1 // pred_fallthru
      _
    // Predicated region
    $region18: #{multi_model_forward.9} parent=1 // pred_check
      _
    $region19: #{multi_model_forward.9} parent=1 // pred_check_branch
      %30 = sbr.rel (0) target = $region21
    $region20: #{multi_model_forward.9} parent=1 // pred_region
      _
    $region21: #{multi_model_forward.9} parent=1 // pred_fallthru
      _
    // Predicated region
    $region22: #{multi_model_forward.9} parent=1 // pred_check
      _
    $region23: #{multi_model_forward.9} parent=1 // pred_check_branch
      %32 = sbr.rel (0) target = $region25
    $region24: #{multi_model_forward.9} parent=1 // pred_region
      _
    $region25: #{multi_model_forward.9} parent=1 // pred_fallthru
      _
    // Predicated region
    $region26: #{multi_model_forward.9} parent=1 // pred_check
      _
    $region27: #{multi_model_forward.9} parent=1 // pred_check_branch
      %34 = sbr.rel (0) target = $region29
    $region28: #{multi_model_forward.9} parent=1 // pred_region
      _
    $region29: #{multi_model_forward.9} parent=1 // pred_fallthru
      _
    // Predicated region
    $region30: #{multi_model_forward.9} parent=1 // pred_check
      _
    $region31: #{multi_model_forward.9} parent=1 // pred_check_branch
      %36 = sbr.rel (0) target = $region33
    $region32: #{multi_model_forward.9} parent=1 // pred_region
      _
    $region33: #{multi_model_forward.9} parent=1 // pred_fallthru
      _
    // Predicated region
    $region34: #{multi_model_forward.9} parent=1 // pred_check
      _
    $region35: #{multi_model_forward.9} parent=1 // pred_check_branch
      %38 = sbr.rel (0) target = $region37
    $region36: #{multi_model_forward.9} parent=1 // pred_region
      _
    $region37: #{multi_model_forward.9} parent=1 // pred_fallthru
      _
    // Predicated region
    $region38: #{multi_model_forward.9} parent=1 // pred_check
      _
    $region39: #{multi_model_forward.9} parent=1 // pred_check_branch
      %40 = sbr.rel (0) target = $region41
    $region40: #{multi_model_forward.9} parent=1 // pred_region
      _
    $region41: #{multi_model_forward.9} parent=1 // pred_fallthru
      _
    // Predicated region
    $region42: #{multi_model_forward.9} parent=1 // pred_check
      _
    $region43: #{multi_model_forward.9} parent=1 // pred_check_branch
      %42 = sbr.rel (0) target = $region45
    $region44: #{multi_model_forward.9} parent=1 // pred_region
      _
    $region45: #{multi_model_forward.9} parent=1 // pred_fallthru
      _
    // Predicated region
    $region46: #{multi_model_forward.9} parent=1 // pred_check
      _
    $region47: #{multi_model_forward.9} parent=1 // pred_check_branch
      %44 = sbr.rel (0) target = $region49
    $region48: #{multi_model_forward.9} parent=1 // pred_region
      _
    $region49: #{multi_model_forward.9} parent=1 // pred_fallthru
      _
    // Predicated region
    $region50: #{multi_model_forward.9} parent=1 // pred_check
      _
    $region51: #{multi_model_forward.9} parent=1 // pred_check_branch
      %46 = sbr.rel (0) target = $region53
    $region52: #{multi_model_forward.9} parent=1 // pred_region
      _
    $region53: #{multi_model_forward.9} parent=1 // pred_fallthru
      _
    // Predicated region
    $region54: #{multi_model_forward.9} parent=1 // pred_check
      _
    $region55: #{multi_model_forward.9} parent=1 // pred_check_branch
      %48 = sbr.rel (0) target = $region57
    $region56: #{multi_model_forward.9} parent=1 // pred_region
      _
    $region57: #{multi_model_forward.9} parent=1 // pred_fallthru
      _
    // Predicated region
    $region58: #{multi_model_forward.9} parent=1 // pred_check
      _
    $region59: #{multi_model_forward.9} parent=1 // pred_check_branch
      %50 = sbr.rel (0) target = $region61
    $region60: #{multi_model_forward.9} parent=1 // pred_region
      _
    $region61: #{multi_model_forward.9} parent=1 // pred_fallthru
      _
    %v51 = vld [vmem:[%s0] sm:$0x3]
    %v52 = vunpack.c.l.bf16 %v51
    %v53 = vld [vmem:[%s2] sm:$0xff]
    %v54 = vld [vmem:[%s2 + $0x8] sm:$0xff]
    %v55 = vld [vmem:[%s2 + $0x10] sm:$0xff]
    %v56 = vld [vmem:[%s2 + $0x18] sm:$0xff]
    %v57 = vld [vmem:[%s2 + $0x20] sm:$0xff]
    %v58 = vld [vmem:[%s2 + $0x28] sm:$0xff]
    %v59 = vld [vmem:[%s2 + $0x30] sm:$0xff]
    %v60 = vld [vmem:[%s2 + $0x38] sm:$0xff]
    %v61 = vld [vmem:[%s2 + $0x40] sm:$0xff]
    %v62 = vld [vmem:[%s2 + $0x48] sm:$0xff]
    %v63 = vld [vmem:[%s2 + $0x50] sm:$0xff]
    %v64 = vld [vmem:[%s2 + $0x58] sm:$0xff]
    %v65 = vld [vmem:[%s2 + $0x60] sm:$0xff]
    %v66 = vld [vmem:[%s2 + $0x68] sm:$0xff]
    %v67 = vld [vmem:[%s2 + $0x70] sm:$0xff]
    %v68 = vld [vmem:[%s2 + $0x78] sm:$0xff]
    %v69 = vld [vmem:[%s2 + $0x80] sm:$0xff]
    %v70 = vld [vmem:[%s2 + $0x88] sm:$0xff]
    %v71 = vld [vmem:[%s2 + $0x90] sm:$0xff]
    %v72 = vld [vmem:[%s2 + $0x98] sm:$0xff]
    %v73 = vld [vmem:[%s2 + $0xa0] sm:$0xff]
    %v74 = vld [vmem:[%s2 + $0xa8] sm:$0xff]
    %v75 = vld [vmem:[%s2 + $0xb0] sm:$0xff]
    %v76 = vld [vmem:[%s2 + $0xb8] sm:$0xff]
    %v77 = vld [vmem:[%s2 + $0xc0] sm:$0xff]
    %v78 = vld [vmem:[%s2 + $0xc8] sm:$0xff]
    %v79 = vld [vmem:[%s2 + $0xd0] sm:$0xff]
    %v80 = vld [vmem:[%s2 + $0xd8] sm:$0xff]
    %v81 = vld [vmem:[%s2 + $0xe0] sm:$0xff]
    %v82 = vld [vmem:[%s2 + $0xe8] sm:$0xff]
    %v83 = vld [vmem:[%s2 + $0xf0] sm:$0xff]
    %v84 = vld [vmem:[%s2 + $0xf8] sm:$0xff]
    %v85 = vld [vmem:[%s3] sm:$0x1]
    %v87 = vlaneseq
    %v88 = vshrl.u32 %v87, 7
    %v89 = vsub.s32 0, %v88
    %v90 = vrot.slane %v85, %v89
    %v94 = vunpack.c.l.s4 1983009808
    %v95 = vunpack.c.0.s8 %v94
    %v96 = vlaneseq
    %v97 = vshrl.u32 %v96, 7
    %v98 = vsub.s32 %v95, %v97
    %v99 = vrot.slane %v52, %v98
    %v100 = vcombine.high %v99, %v99
    %103 = vmatprep.subr.mxu0 0.0
    %104 = vmatpush1.msra.mxu0 %v53
    %105 = vmatprep.subr.mxu0 0.0
    %106 = vmatpush1.msra.mxu0 %v54
    %107 = vmatprep.subr.mxu0 0.0
    %108 = vmatpush1.msra.mxu0 %v55
    %109 = vmatprep.subr.mxu0 0.0
    %110 = vmatpush1.msra.mxu0 %v56
    %111 = vmatprep.subr.mxu0 0.0
    %112 = vmatpush1.msra.mxu0 %v57
    %113 = vmatprep.subr.mxu0 0.0
    %114 = vmatpush1.msra.mxu0 %v58
    %115 = vmatprep.subr.mxu0 0.0
    %116 = vmatpush1.msra.mxu0 %v59
    %117 = vmatprep.subr.mxu0 0.0
    %118 = vmatpush1.msra.mxu0 %v60
    %119 = vmatprep.subr.mxu0 0.0
    %120 = vmatpush1.msra.mxu0 %v61
    %121 = vmatprep.subr.mxu0 0.0
    %122 = vmatpush1.msra.mxu0 %v62
    %123 = vmatprep.subr.mxu0 0.0
    %124 = vmatpush1.msra.mxu0 %v63
    %125 = vmatprep.subr.mxu0 0.0
    %126 = vmatpush1.msra.mxu0 %v64
    %127 = vmatprep.subr.mxu0 0.0
    %128 = vmatpush1.msra.mxu0 %v65
    %129 = vmatprep.subr.mxu0 0.0
    %130 = vmatpush1.msra.mxu0 %v66
    %131 = vmatprep.subr.mxu0 0.0
    %132 = vmatpush1.msra.mxu0 %v67
    %133 = vmatprep.subr.mxu0 0.0
    %134 = vmatpush1.msra.mxu0 %v68
    %135 = vmatprep.subr.mxu0 0.0
    %136 = vmatpush1.msra.mxu0 %v69
    %137 = vmatprep.subr.mxu0 0.0
    %138 = vmatpush1.msra.mxu0 %v70
    %139 = vmatprep.subr.mxu0 0.0
    %140 = vmatpush1.msra.mxu0 %v71
    %141 = vmatprep.subr.mxu0 0.0
    %142 = vmatpush1.msra.mxu0 %v72
    %143 = vmatprep.subr.mxu0 0.0
    %144 = vmatpush1.msra.mxu0 %v73
    %145 = vmatprep.subr.mxu0 0.0
    %146 = vmatpush1.msra.mxu0 %v74
    %147 = vmatprep.subr.mxu0 0.0
    %148 = vmatpush1.msra.mxu0 %v75
    %149 = vmatprep.subr.mxu0 0.0
    %150 = vmatpush1.msra.mxu0 %v76
    %151 = vmatprep.subr.mxu0 0.0
    %152 = vmatpush1.msra.mxu0 %v77
    %153 = vmatprep.subr.mxu0 0.0
    %154 = vmatpush1.msra.mxu0 %v78
    %155 = vmatprep.subr.mxu0 0.0
    %156 = vmatpush1.msra.mxu0 %v79
    %157 = vmatprep.subr.mxu0 0.0
    %158 = vmatpush1.msra.mxu0 %v80
    %159 = vmatprep.subr.mxu0 0.0
    %160 = vmatpush1.msra.mxu0 %v81
    %161 = vmatprep.subr.mxu0 0.0
    %162 = vmatpush1.msra.mxu0 %v82
    %163 = vmatprep.subr.mxu0 0.0
    %164 = vmatpush1.msra.mxu0 %v83
    %165 = vmatprep.subr.mxu0 0.0
    %166 = vmatpush1.msra.mxu0 %v84
    %167 = vmatprep.mubr.f32.mxu0 %v100
    %168 = vmatmul.mubr.f32.gmra.mrb[0].mxu0 %v99
    %v169 = vpop.f32.mrb[0].mxu0
    %v170 = vadd.f32 %v90, %v169
    %v171 = vpop.f32.mrb[0].mxu0
    %172 = vdwg.mxu0
    %v173 = vld [vmem:[%s1] sm:$0x3]
    %v174 = vld [vmem:[%s4] sm:$0xff]
    %v175 = vld [vmem:[%s4 + $0x8] sm:$0xff]
    %v176 = vld [vmem:[%s5] sm:$0x3]
    %v178 = vlaneseq
    %v179 = vshrl.u32 %v178, 7
    %v180 = vsub.s32 0, %v179
    %v181 = vrot.slane %v176, %v180
    %v182 = vlaneseq
    %v183 = vshrl.u32 %v182, 7
    %v184 = vsub.s32 1, %v183
    %v185 = vrot.slane %v176, %v184
    %vm188 = vcmask 64512
    %v190 = vsel %vm188, %v173, 0
    %192 = vmatprep.subr.mxu0 %v175
    %193 = vmatpush1.msra.mxu0 %v174
    %194 = vmatprep.subr.mxu0 0.0
    %195 = vmatpush1.msra.mxu0 0.0
    %196 = vmatprep.subr.mxu0 0.0
    %197 = vmatpush1.msra.mxu0 0.0
    %198 = vmatprep.subr.mxu0 0.0
    %199 = vmatpush1.msra.mxu0 0.0
    %200 = vmatprep.subr.mxu0 0.0
    %201 = vmatpush1.msra.mxu0 0.0
    %202 = vmatprep.subr.mxu0 0.0
    %203 = vmatpush1.msra.mxu0 0.0
    %204 = vmatprep.subr.mxu0 0.0
    %205 = vmatpush1.msra.mxu0 0.0
    %206 = vmatprep.subr.mxu0 0.0
    %207 = vmatpush1.msra.mxu0 0.0
    %208 = vmatprep.subr.mxu0 0.0
    %209 = vmatpush1.msra.mxu0 0.0
    %210 = vmatprep.subr.mxu0 0.0
    %211 = vmatpush1.msra.mxu0 0.0
    %212 = vmatprep.subr.mxu0 0.0
    %213 = vmatpush1.msra.mxu0 0.0
    %214 = vmatprep.subr.mxu0 0.0
    %215 = vmatpush1.msra.mxu0 0.0
    %216 = vmatprep.subr.mxu0 0.0
    %217 = vmatpush1.msra.mxu0 0.0
    %218 = vmatprep.subr.mxu0 0.0
    %219 = vmatpush1.msra.mxu0 0.0
    %220 = vmatprep.subr.mxu0 0.0
    %221 = vmatpush1.msra.mxu0 0.0
    %222 = vmatprep.subr.mxu0 0.0
    %223 = vmatpush1.msra.mxu0 0.0
    %224 = vmatprep.subr.mxu0 0.0
    %225 = vmatpush1.msra.mxu0 0.0
    %226 = vmatprep.subr.mxu0 0.0
    %227 = vmatpush1.msra.mxu0 0.0
    %228 = vmatprep.subr.mxu0 0.0
    %229 = vmatpush1.msra.mxu0 0.0
    %230 = vmatprep.subr.mxu0 0.0
    %231 = vmatpush1.msra.mxu0 0.0
    %232 = vmatprep.subr.mxu0 0.0
    %233 = vmatpush1.msra.mxu0 0.0
    %234 = vmatprep.subr.mxu0 0.0
    %235 = vmatpush1.msra.mxu0 0.0
    %236 = vmatprep.subr.mxu0 0.0
    %237 = vmatpush1.msra.mxu0 0.0
    %238 = vmatprep.subr.mxu0 0.0
    %239 = vmatpush1.msra.mxu0 0.0
    %240 = vmatprep.subr.mxu0 0.0
    %241 = vmatpush1.msra.mxu0 0.0
    %242 = vmatprep.subr.mxu0 0.0
    %243 = vmatpush1.msra.mxu0 0.0
    %244 = vmatprep.subr.mxu0 0.0
    %245 = vmatpush1.msra.mxu0 0.0
    %246 = vmatprep.subr.mxu0 0.0
    %247 = vmatpush1.msra.mxu0 0.0
    %248 = vmatprep.subr.mxu0 0.0
    %249 = vmatpush1.msra.mxu0 0.0
    %250 = vmatprep.subr.mxu0 0.0
    %251 = vmatpush1.msra.mxu0 0.0
    %252 = vmatprep.subr.mxu0 0.0
    %253 = vmatpush1.msra.mxu0 0.0
    %254 = vmatprep.subr.mxu0 0.0
    %255 = vmatpush1.msra.mxu0 0.0
    %256 = vmatprep.mubr.f32.mxu0 0.0
    %257 = vmatmul.mubr.f32.gmra.mrb[0].mxu0 %v190
    %v258 = vpop.f32.mrb[0].mxu0
    %v259 = vadd.f32 %v181, %v258
    %v260 = vpop.f32.mrb[0].mxu0
    %v261 = vadd.f32 %v185, %v260
    %262 = vdwg.mxu0
    %v263 = vmax.f32 %v259, 0.0
    %v264 = vmax.f32 %v261, 0.0
    %v265 = vld [vmem:[%s6] sm:$0xff]
    %v266 = vld [vmem:[%s6 + $0x8] sm:$0xff]
    %v267 = vld [vmem:[%s6 + $0x10] sm:$0xff]
    %v268 = vld [vmem:[%s6 + $0x18] sm:$0xff]
    %v269 = vld [vmem:[%s6 + $0x20] sm:$0xff]
    %v270 = vld [vmem:[%s6 + $0x28] sm:$0xff]
    %v271 = vld [vmem:[%s6 + $0x30] sm:$0xff]
    %v272 = vld [vmem:[%s6 + $0x38] sm:$0xff]
    %v273 = vld [vmem:[%s6 + $0x40] sm:$0xff]
    %v274 = vld [vmem:[%s6 + $0x48] sm:$0xff]
    %v275 = vld [vmem:[%s6 + $0x50] sm:$0xff]
    %v276 = vld [vmem:[%s6 + $0x58] sm:$0xff]
    %v277 = vld [vmem:[%s6 + $0x60] sm:$0xff]
    %v278 = vld [vmem:[%s6 + $0x68] sm:$0xff]
    %v279 = vld [vmem:[%s6 + $0x70] sm:$0xff]
    %v280 = vld [vmem:[%s6 + $0x78] sm:$0xff]
    %v281 = vld [vmem:[%s6 + $0x80] sm:$0xff]
    %v282 = vld [vmem:[%s6 + $0x88] sm:$0xff]
    %v283 = vld [vmem:[%s6 + $0x90] sm:$0xff]
    %v284 = vld [vmem:[%s6 + $0x98] sm:$0xff]
    %v285 = vld [vmem:[%s6 + $0xa0] sm:$0xff]
    %v286 = vld [vmem:[%s6 + $0xa8] sm:$0xff]
    %v287 = vld [vmem:[%s6 + $0xb0] sm:$0xff]
    %v288 = vld [vmem:[%s6 + $0xb8] sm:$0xff]
    %v289 = vld [vmem:[%s6 + $0xc0] sm:$0xff]
    %v290 = vld [vmem:[%s6 + $0xc8] sm:$0xff]
    %v291 = vld [vmem:[%s6 + $0xd0] sm:$0xff]
    %v292 = vld [vmem:[%s6 + $0xd8] sm:$0xff]
    %v293 = vld [vmem:[%s6 + $0xe0] sm:$0xff]
    %v294 = vld [vmem:[%s6 + $0xe8] sm:$0xff]
    %v295 = vld [vmem:[%s6 + $0xf0] sm:$0xff]
    %v296 = vld [vmem:[%s6 + $0xf8] sm:$0xff]
    %v297 = vld [vmem:[%s7] sm:$0x1]
    %v299 = vlaneseq
    %v300 = vshrl.u32 %v299, 7
    %v301 = vsub.s32 0, %v300
    %v302 = vrot.slane %v297, %v301
    %304 = vmatprep.subr.mxu0 0.0
    %305 = vmatpush1.msra.mxu0 %v265
    %306 = vmatprep.subr.mxu0 0.0
    %307 = vmatpush1.msra.mxu0 %v266
    %308 = vmatprep.subr.mxu0 0.0
    %309 = vmatpush1.msra.mxu0 %v267
    %310 = vmatprep.subr.mxu0 0.0
    %311 = vmatpush1.msra.mxu0 %v268
    %312 = vmatprep.subr.mxu0 0.0
    %313 = vmatpush1.msra.mxu0 %v269
    %314 = vmatprep.subr.mxu0 0.0
    %315 = vmatpush1.msra.mxu0 %v270
    %316 = vmatprep.subr.mxu0 0.0
    %317 = vmatpush1.msra.mxu0 %v271
    %318 = vmatprep.subr.mxu0 0.0
    %319 = vmatpush1.msra.mxu0 %v272
    %320 = vmatprep.subr.mxu0 0.0
    %321 = vmatpush1.msra.mxu0 %v273
    %322 = vmatprep.subr.mxu0 0.0
    %323 = vmatpush1.msra.mxu0 %v274
    %324 = vmatprep.subr.mxu0 0.0
    %325 = vmatpush1.msra.mxu0 %v275
    %326 = vmatprep.subr.mxu0 0.0
    %327 = vmatpush1.msra.mxu0 %v276
    %328 = vmatprep.subr.mxu0 0.0
    %329 = vmatpush1.msra.mxu0 %v277
    %330 = vmatprep.subr.mxu0 0.0
    %331 = vmatpush1.msra.mxu0 %v278
    %332 = vmatprep.subr.mxu0 0.0
    %333 = vmatpush1.msra.mxu0 %v279
    %334 = vmatprep.subr.mxu0 0.0
    %335 = vmatpush1.msra.mxu0 %v280
    %336 = vmatprep.subr.mxu0 0.0
    %337 = vmatpush1.msra.mxu0 %v281
    %338 = vmatprep.subr.mxu0 0.0
    %339 = vmatpush1.msra.mxu0 %v282
    %340 = vmatprep.subr.mxu0 0.0
    %341 = vmatpush1.msra.mxu0 %v283
    %342 = vmatprep.subr.mxu0 0.0
    %343 = vmatpush1.msra.mxu0 %v284
    %344 = vmatprep.subr.mxu0 0.0
    %345 = vmatpush1.msra.mxu0 %v285
    %346 = vmatprep.subr.mxu0 0.0
    %347 = vmatpush1.msra.mxu0 %v286
    %348 = vmatprep.subr.mxu0 0.0
    %349 = vmatpush1.msra.mxu0 %v287
    %350 = vmatprep.subr.mxu0 0.0
    %351 = vmatpush1.msra.mxu0 %v288
    %352 = vmatprep.subr.mxu0 0.0
    %353 = vmatpush1.msra.mxu0 %v289
    %354 = vmatprep.subr.mxu0 0.0
    %355 = vmatpush1.msra.mxu0 %v290
    %356 = vmatprep.subr.mxu0 0.0
    %357 = vmatpush1.msra.mxu0 %v291
    %358 = vmatprep.subr.mxu0 0.0
    %359 = vmatpush1.msra.mxu0 %v292
    %360 = vmatprep.subr.mxu0 0.0
    %361 = vmatpush1.msra.mxu0 %v293
    %362 = vmatprep.subr.mxu0 0.0
    %363 = vmatpush1.msra.mxu0 %v294
    %364 = vmatprep.subr.mxu0 0.0
    %365 = vmatpush1.msra.mxu0 %v295
    %366 = vmatprep.subr.mxu0 0.0
    %367 = vmatpush1.msra.mxu0 %v296
    %368 = vmatprep.mubr.f32.mxu0 %v264
    %369 = vmatmul.mubr.f32.gmra.mrb[0].mxu0 %v263
    %v370 = vpop.f32.mrb[0].mxu0
    %v371 = vadd.f32 %v302, %v370
    %v372 = vpop.f32.mrb[0].mxu0
    %373 = vdwg.mxu0
    %v374 = vld [vmem:[%s8] sm:$0xff]
    %v375 = vld [vmem:[%s8 + $0x8] sm:$0xff]
    %v376 = vld [vmem:[%s8 + $0x10] sm:$0xff]
    %v377 = vld [vmem:[%s8 + $0x18] sm:$0xff]
    %v378 = vld [vmem:[%s8 + $0x20] sm:$0xff]
    %v379 = vld [vmem:[%s8 + $0x28] sm:$0xff]
    %v380 = vld [vmem:[%s8 + $0x30] sm:$0xff]
    %v381 = vld [vmem:[%s8 + $0x38] sm:$0xff]
    %v382 = vld [vmem:[%s8 + $0x40] sm:$0xff]
    %v383 = vld [vmem:[%s8 + $0x48] sm:$0xff]
    %v384 = vld [vmem:[%s8 + $0x50] sm:$0xff]
    %v385 = vld [vmem:[%s8 + $0x58] sm:$0xff]
    %v386 = vld [vmem:[%s8 + $0x60] sm:$0xff]
    %v387 = vld [vmem:[%s8 + $0x68] sm:$0xff]
    %v388 = vld [vmem:[%s8 + $0x70] sm:$0xff]
    %v389 = vld [vmem:[%s8 + $0x78] sm:$0xff]
    %v390 = vld [vmem:[%s8 + $0x80] sm:$0xff]
    %v391 = vld [vmem:[%s8 + $0x88] sm:$0xff]
    %v392 = vld [vmem:[%s8 + $0x90] sm:$0xff]
    %v393 = vld [vmem:[%s8 + $0x98] sm:$0xff]
    %v394 = vld [vmem:[%s8 + $0xa0] sm:$0xff]
    %v395 = vld [vmem:[%s8 + $0xa8] sm:$0xff]
    %v396 = vld [vmem:[%s8 + $0xb0] sm:$0xff]
    %v397 = vld [vmem:[%s8 + $0xb8] sm:$0xff]
    %v398 = vld [vmem:[%s8 + $0xc0] sm:$0xff]
    %v399 = vld [vmem:[%s8 + $0xc8] sm:$0xff]
    %v400 = vld [vmem:[%s8 + $0xd0] sm:$0xff]
    %v401 = vld [vmem:[%s8 + $0xd8] sm:$0xff]
    %v402 = vld [vmem:[%s8 + $0xe0] sm:$0xff]
    %v403 = vld [vmem:[%s8 + $0xe8] sm:$0xff]
    %v404 = vld [vmem:[%s8 + $0xf0] sm:$0xff]
    %v405 = vld [vmem:[%s8 + $0xf8] sm:$0xff]
    %v406 = vld [vmem:[%s9] sm:$0xff]
    %v407 = vld [vmem:[%s9 + $0x8] sm:$0xff]
    %v408 = vld [vmem:[%s9 + $0x10] sm:$0xff]
    %v409 = vld [vmem:[%s9 + $0x18] sm:$0xff]
    %v410 = vld [vmem:[%s9 + $0x20] sm:$0xff]
    %v411 = vld [vmem:[%s9 + $0x28] sm:$0xff]
    %v412 = vld [vmem:[%s9 + $0x30] sm:$0xff]
    %v413 = vld [vmem:[%s9 + $0x38] sm:$0xff]
    %v414 = vld [vmem:[%s9 + $0x40] sm:$0xff]
    %v415 = vld [vmem:[%s9 + $0x48] sm:$0xff]
    %v416 = vld [vmem:[%s9 + $0x50] sm:$0xff]
    %v417 = vld [vmem:[%s9 + $0x58] sm:$0xff]
    %v418 = vld [vmem:[%s9 + $0x60] sm:$0xff]
    %v419 = vld [vmem:[%s9 + $0x68] sm:$0xff]
    %v420 = vld [vmem:[%s9 + $0x70] sm:$0xff]
    %v421 = vld [vmem:[%s9 + $0x78] sm:$0xff]
    %v422 = vld [vmem:[%s9 + $0x80] sm:$0xff]
    %v423 = vld [vmem:[%s9 + $0x88] sm:$0xff]
    %v424 = vld [vmem:[%s9 + $0x90] sm:$0xff]
    %v425 = vld [vmem:[%s9 + $0x98] sm:$0xff]
    %v426 = vld [vmem:[%s9 + $0xa0] sm:$0xff]
    %v427 = vld [vmem:[%s9 + $0xa8] sm:$0xff]
    %v428 = vld [vmem:[%s9 + $0xb0] sm:$0xff]
    %v429 = vld [vmem:[%s9 + $0xb8] sm:$0xff]
    %v430 = vld [vmem:[%s9 + $0xc0] sm:$0xff]
    %v431 = vld [vmem:[%s9 + $0xc8] sm:$0xff]
    %v432 = vld [vmem:[%s9 + $0xd0] sm:$0xff]
    %v433 = vld [vmem:[%s9 + $0xd8] sm:$0xff]
    %v434 = vld [vmem:[%s9 + $0xe0] sm:$0xff]
    %v435 = vld [vmem:[%s9 + $0xe8] sm:$0xff]
    %v436 = vld [vmem:[%s9 + $0xf0] sm:$0xff]
    %v437 = vld [vmem:[%s9 + $0xf8] sm:$0xff]
    %438 = vmatprep.subr.mxu0 %v407
    %439 = vmatpush1.msra.mxu0 %v406
    %440 = vmatprep.subr.mxu0 %v409
    %441 = vmatpush1.msra.mxu0 %v408
    %442 = vmatprep.subr.mxu0 %v411
    %443 = vmatpush1.msra.mxu0 %v410
    %444 = vmatprep.subr.mxu0 %v413
    %445 = vmatpush1.msra.mxu0 %v412
    %446 = vmatprep.subr.mxu0 %v415
    %447 = vmatpush1.msra.mxu0 %v414
    %448 = vmatprep.subr.mxu0 %v417
    %449 = vmatpush1.msra.mxu0 %v416
    %450 = vmatprep.subr.mxu0 %v419
    %451 = vmatpush1.msra.mxu0 %v418
    %452 = vmatprep.subr.mxu0 %v421
    %453 = vmatpush1.msra.mxu0 %v420
    %454 = vmatprep.subr.mxu0 %v423
    %455 = vmatpush1.msra.mxu0 %v422
    %456 = vmatprep.subr.mxu0 %v425
    %457 = vmatpush1.msra.mxu0 %v424
    %458 = vmatprep.subr.mxu0 %v427
    %459 = vmatpush1.msra.mxu0 %v426
    %460 = vmatprep.subr.mxu0 %v429
    %461 = vmatpush1.msra.mxu0 %v428
    %462 = vmatprep.subr.mxu0 %v431
    %463 = vmatpush1.msra.mxu0 %v430
    %464 = vmatprep.subr.mxu0 %v433
    %465 = vmatpush1.msra.mxu0 %v432
    %466 = vmatprep.subr.mxu0 %v435
    %467 = vmatpush1.msra.mxu0 %v434
    %468 = vmatprep.subr.mxu0 %v437
    %469 = vmatpush1.msra.mxu0 %v436
    %470 = vmatprep.subr.mxu0 0.0
    %471 = vmatpush1.msra.mxu0 0.0
    %472 = vmatprep.subr.mxu0 0.0
    %473 = vmatpush1.msra.mxu0 0.0
    %474 = vmatprep.subr.mxu0 0.0
    %475 = vmatpush1.msra.mxu0 0.0
    %476 = vmatprep.subr.mxu0 0.0
    %477 = vmatpush1.msra.mxu0 0.0
    %478 = vmatprep.subr.mxu0 0.0
    %479 = vmatpush1.msra.mxu0 0.0
    %480 = vmatprep.subr.mxu0 0.0
    %481 = vmatpush1.msra.mxu0 0.0
    %482 = vmatprep.subr.mxu0 0.0
    %483 = vmatpush1.msra.mxu0 0.0
    %484 = vmatprep.subr.mxu0 0.0
    %485 = vmatpush1.msra.mxu0 0.0
    %486 = vmatprep.subr.mxu0 0.0
    %487 = vmatpush1.msra.mxu0 0.0
    %488 = vmatprep.subr.mxu0 0.0
    %489 = vmatpush1.msra.mxu0 0.0
    %490 = vmatprep.subr.mxu0 0.0
    %491 = vmatpush1.msra.mxu0 0.0
    %492 = vmatprep.subr.mxu0 0.0
    %493 = vmatpush1.msra.mxu0 0.0
    %494 = vmatprep.subr.mxu0 0.0
    %495 = vmatpush1.msra.mxu0 0.0
    %496 = vmatprep.subr.mxu0 0.0
    %497 = vmatpush1.msra.mxu0 0.0
    %498 = vmatprep.subr.mxu0 0.0
    %499 = vmatpush1.msra.mxu0 0.0
    %500 = vmatprep.subr.mxu0 0.0
    %501 = vmatpush1.msra.mxu0 0.0
    %502 = vmatprep.mubr.f32.mxu0 0.0
    %503 = vmatmul.mubr.f32.gmra.mrb[0].mxu0 %v371
    %v504 = vpop.f32.mrb[0].mxu0
    %v505 = vadd.f32 0.0, %v504
    %v506 = vpop.f32.mrb[0].mxu0
    %v507 = vadd.f32 0.0, %v506
    %508 = vdwg.mxu0
    %509 = vmatprep.subr.mxu0 %v375
    %510 = vmatpush1.msra.mxu0 %v374
    %511 = vmatprep.subr.mxu0 %v377
    %512 = vmatpush1.msra.mxu0 %v376
    %513 = vmatprep.subr.mxu0 %v379
    %514 = vmatpush1.msra.mxu0 %v378
    %515 = vmatprep.subr.mxu0 %v381
    %516 = vmatpush1.msra.mxu0 %v380
    %517 = vmatprep.subr.mxu0 %v383
    %518 = vmatpush1.msra.mxu0 %v382
    %519 = vmatprep.subr.mxu0 %v385
    %520 = vmatpush1.msra.mxu0 %v384
    %521 = vmatprep.subr.mxu0 %v387
    %522 = vmatpush1.msra.mxu0 %v386
    %523 = vmatprep.subr.mxu0 %v389
    %524 = vmatpush1.msra.mxu0 %v388
    %525 = vmatprep.subr.mxu0 %v391
    %526 = vmatpush1.msra.mxu0 %v390
    %527 = vmatprep.subr.mxu0 %v393
    %528 = vmatpush1.msra.mxu0 %v392
    %529 = vmatprep.subr.mxu0 %v395
    %530 = vmatpush1.msra.mxu0 %v394
    %531 = vmatprep.subr.mxu0 %v397
    %532 = vmatpush1.msra.mxu0 %v396
    %533 = vmatprep.subr.mxu0 %v399
    %534 = vmatpush1.msra.mxu0 %v398
    %535 = vmatprep.subr.mxu0 %v401
    %536 = vmatpush1.msra.mxu0 %v400
    %537 = vmatprep.subr.mxu0 %v403
    %538 = vmatpush1.msra.mxu0 %v402
    %539 = vmatprep.subr.mxu0 %v405
    %540 = vmatpush1.msra.mxu0 %v404
    %541 = vmatprep.subr.mxu0 0.0
    %542 = vmatpush1.msra.mxu0 0.0
    %543 = vmatprep.subr.mxu0 0.0
    %544 = vmatpush1.msra.mxu0 0.0
    %545 = vmatprep.subr.mxu0 0.0
    %546 = vmatpush1.msra.mxu0 0.0
    %547 = vmatprep.subr.mxu0 0.0
    %548 = vmatpush1.msra.mxu0 0.0
    %549 = vmatprep.subr.mxu0 0.0
    %550 = vmatpush1.msra.mxu0 0.0
    %551 = vmatprep.subr.mxu0 0.0
    %552 = vmatpush1.msra.mxu0 0.0
    %553 = vmatprep.subr.mxu0 0.0
    %554 = vmatpush1.msra.mxu0 0.0
    %555 = vmatprep.subr.mxu0 0.0
    %556 = vmatpush1.msra.mxu0 0.0
    %557 = vmatprep.subr.mxu0 0.0
    %558 = vmatpush1.msra.mxu0 0.0
    %559 = vmatprep.subr.mxu0 0.0
    %560 = vmatpush1.msra.mxu0 0.0
    %561 = vmatprep.subr.mxu0 0.0
    %562 = vmatpush1.msra.mxu0 0.0
    %563 = vmatprep.subr.mxu0 0.0
    %564 = vmatpush1.msra.mxu0 0.0
    %565 = vmatprep.subr.mxu0 0.0
    %566 = vmatpush1.msra.mxu0 0.0
    %567 = vmatprep.subr.mxu0 0.0
    %568 = vmatpush1.msra.mxu0 0.0
    %569 = vmatprep.subr.mxu0 0.0
    %570 = vmatpush1.msra.mxu0 0.0
    %571 = vmatprep.subr.mxu0 0.0
    %572 = vmatpush1.msra.mxu0 0.0
    %573 = vmatprep.mubr.f32.mxu0 0.0
    %574 = vmatmul.mubr.f32.gmra.mrb[0].mxu0 %v170
    %v575 = vpop.f32.mrb[0].mxu0
    %v576 = vadd.f32 %v505, %v575
    %v577 = vpop.f32.mrb[0].mxu0
    %v578 = vadd.f32 %v507, %v577
    %579 = vdwg.mxu0
    %v580 = vld [vmem:[%s10] sm:$0x3]
    %v582 = vlaneseq
    %v583 = vshrl.u32 %v582, 7
    %v584 = vsub.s32 0, %v583
    %v585 = vrot.slane %v580, %v584
    %v586 = vlaneseq
    %v587 = vshrl.u32 %v586, 7
    %v588 = vsub.s32 1, %v587
    %v589 = vrot.slane %v580, %v588
    %v592 = vadd.f32 %v576, %v585
    %v593 = vadd.f32 %v578, %v589
    %v594 = vmax.f32 %v592, 0.0
    %v595 = vmax.f32 %v593, 0.0
    %v596 = vld [vmem:[%s11] sm:$0xff]
    %v597 = vld [vmem:[%s11 + $0x8] sm:$0xff]
    %v598 = vld [vmem:[%s11 + $0x10] sm:$0xff]
    %v599 = vld [vmem:[%s11 + $0x18] sm:$0xff]
    %v600 = vld [vmem:[%s11 + $0x20] sm:$0xff]
    %v601 = vld [vmem:[%s11 + $0x28] sm:$0xff]
    %v602 = vld [vmem:[%s11 + $0x30] sm:$0xff]
    %v603 = vld [vmem:[%s11 + $0x38] sm:$0xff]
    %v604 = vld [vmem:[%s11 + $0x40] sm:$0xff]
    %v605 = vld [vmem:[%s11 + $0x48] sm:$0xff]
    %v606 = vld [vmem:[%s11 + $0x50] sm:$0xff]
    %v607 = vld [vmem:[%s11 + $0x58] sm:$0xff]
    %v608 = vld [vmem:[%s11 + $0x60] sm:$0xff]
    %v609 = vld [vmem:[%s11 + $0x68] sm:$0xff]
    %v610 = vld [vmem:[%s11 + $0x70] sm:$0xff]
    %v611 = vld [vmem:[%s11 + $0x78] sm:$0xff]
    %v612 = vld [vmem:[%s11 + $0x80] sm:$0xff]
    %v613 = vld [vmem:[%s11 + $0x88] sm:$0xff]
    %v614 = vld [vmem:[%s11 + $0x90] sm:$0xff]
    %v615 = vld [vmem:[%s11 + $0x98] sm:$0xff]
    %v616 = vld [vmem:[%s11 + $0xa0] sm:$0xff]
    %v617 = vld [vmem:[%s11 + $0xa8] sm:$0xff]
    %v618 = vld [vmem:[%s11 + $0xb0] sm:$0xff]
    %v619 = vld [vmem:[%s11 + $0xb8] sm:$0xff]
    %v620 = vld [vmem:[%s11 + $0xc0] sm:$0xff]
    %v621 = vld [vmem:[%s11 + $0xc8] sm:$0xff]
    %v622 = vld [vmem:[%s11 + $0xd0] sm:$0xff]
    %v623 = vld [vmem:[%s11 + $0xd8] sm:$0xff]
    %v624 = vld [vmem:[%s11 + $0xe0] sm:$0xff]
    %v625 = vld [vmem:[%s11 + $0xe8] sm:$0xff]
    %v626 = vld [vmem:[%s11 + $0xf0] sm:$0xff]
    %v627 = vld [vmem:[%s11 + $0xf8] sm:$0xff]
    %v628 = vld [vmem:[%s12] sm:$0x1]
    %v630 = vlaneseq
    %v631 = vshrl.u32 %v630, 7
    %v632 = vsub.s32 0, %v631
    %v633 = vrot.slane %v628, %v632
    %635 = vmatprep.subr.mxu0 0.0
    %636 = vmatpush1.msra.mxu0 %v596
    %637 = vmatprep.subr.mxu0 0.0
    %638 = vmatpush1.msra.mxu0 %v597
    %639 = vmatprep.subr.mxu0 0.0
    %640 = vmatpush1.msra.mxu0 %v598
    %641 = vmatprep.subr.mxu0 0.0
    %642 = vmatpush1.msra.mxu0 %v599
    %643 = vmatprep.subr.mxu0 0.0
    %644 = vmatpush1.msra.mxu0 %v600
    %645 = vmatprep.subr.mxu0 0.0
    %646 = vmatpush1.msra.mxu0 %v601
    %647 = vmatprep.subr.mxu0 0.0
    %648 = vmatpush1.msra.mxu0 %v602
    %649 = vmatprep.subr.mxu0 0.0
    %650 = vmatpush1.msra.mxu0 %v603
    %651 = vmatprep.subr.mxu0 0.0
    %652 = vmatpush1.msra.mxu0 %v604
    %653 = vmatprep.subr.mxu0 0.0
    %654 = vmatpush1.msra.mxu0 %v605
    %655 = vmatprep.subr.mxu0 0.0
    %656 = vmatpush1.msra.mxu0 %v606
    %657 = vmatprep.subr.mxu0 0.0
    %658 = vmatpush1.msra.mxu0 %v607
    %659 = vmatprep.subr.mxu0 0.0
    %660 = vmatpush1.msra.mxu0 %v608
    %661 = vmatprep.subr.mxu0 0.0
    %662 = vmatpush1.msra.mxu0 %v609
    %663 = vmatprep.subr.mxu0 0.0
    %664 = vmatpush1.msra.mxu0 %v610
    %665 = vmatprep.subr.mxu0 0.0
    %666 = vmatpush1.msra.mxu0 %v611
    %667 = vmatprep.subr.mxu0 0.0
    %668 = vmatpush1.msra.mxu0 %v612
    %669 = vmatprep.subr.mxu0 0.0
    %670 = vmatpush1.msra.mxu0 %v613
    %671 = vmatprep.subr.mxu0 0.0
    %672 = vmatpush1.msra.mxu0 %v614
    %673 = vmatprep.subr.mxu0 0.0
    %674 = vmatpush1.msra.mxu0 %v615
    %675 = vmatprep.subr.mxu0 0.0
    %676 = vmatpush1.msra.mxu0 %v616
    %677 = vmatprep.subr.mxu0 0.0
    %678 = vmatpush1.msra.mxu0 %v617
    %679 = vmatprep.subr.mxu0 0.0
    %680 = vmatpush1.msra.mxu0 %v618
    %681 = vmatprep.subr.mxu0 0.0
    %682 = vmatpush1.msra.mxu0 %v619
    %683 = vmatprep.subr.mxu0 0.0
    %684 = vmatpush1.msra.mxu0 %v620
    %685 = vmatprep.subr.mxu0 0.0
    %686 = vmatpush1.msra.mxu0 %v621
    %687 = vmatprep.subr.mxu0 0.0
    %688 = vmatpush1.msra.mxu0 %v622
    %689 = vmatprep.subr.mxu0 0.0
    %690 = vmatpush1.msra.mxu0 %v623
    %691 = vmatprep.subr.mxu0 0.0
    %692 = vmatpush1.msra.mxu0 %v624
    %693 = vmatprep.subr.mxu0 0.0
    %694 = vmatpush1.msra.mxu0 %v625
    %695 = vmatprep.subr.mxu0 0.0
    %696 = vmatpush1.msra.mxu0 %v626
    %697 = vmatprep.subr.mxu0 0.0
    %698 = vmatpush1.msra.mxu0 %v627
    %699 = vmatprep.mubr.f32.mxu0 %v595
    %700 = vmatmul.mubr.f32.gmra.mrb[0].mxu0 %v594
    %v701 = vpop.f32.mrb[0].mxu0
    %v702 = vadd.f32 %v633, %v701
    %v703 = vpop.f32.mrb[0].mxu0
    %704 = vdwg.mxu0
    %v705 = vmax.f32 %v702, 0.0
    %v706 = vld [vmem:[%s13] sm:$0xff]
    %v707 = vld [vmem:[%s13 + $0x8] sm:$0xff]
    %v708 = vld [vmem:[%s13 + $0x10] sm:$0xff]
    %v709 = vld [vmem:[%s13 + $0x18] sm:$0xff]
    %v710 = vld [vmem:[%s13 + $0x20] sm:$0xff]
    %v711 = vld [vmem:[%s13 + $0x28] sm:$0xff]
    %v712 = vld [vmem:[%s13 + $0x30] sm:$0xff]
    %v713 = vld [vmem:[%s13 + $0x38] sm:$0xff]
    %v714 = vld [vmem:[%s13 + $0x40] sm:$0xff]
    %v715 = vld [vmem:[%s13 + $0x48] sm:$0xff]
    %v716 = vld [vmem:[%s13 + $0x50] sm:$0xff]
    %v717 = vld [vmem:[%s13 + $0x58] sm:$0xff]
    %v718 = vld [vmem:[%s13 + $0x60] sm:$0xff]
    %v719 = vld [vmem:[%s13 + $0x68] sm:$0xff]
    %v720 = vld [vmem:[%s13 + $0x70] sm:$0xff]
    %v721 = vld [vmem:[%s13 + $0x78] sm:$0xff]
    %v722 = vld [vmem:[%s14] sm:$0x1]
    %v724 = vlaneseq
    %v725 = vshrl.u32 %v724, 7
    %v726 = vsub.s32 0, %v725
    %v727 = vrot.slane %v722, %v726
    %729 = vmatprep.subr.mxu0 0.0
    %730 = vmatpush1.msra.mxu0 %v706
    %731 = vmatprep.subr.mxu0 0.0
    %732 = vmatpush1.msra.mxu0 %v707
    %733 = vmatprep.subr.mxu0 0.0
    %734 = vmatpush1.msra.mxu0 %v708
    %735 = vmatprep.subr.mxu0 0.0
    %736 = vmatpush1.msra.mxu0 %v709
    %737 = vmatprep.subr.mxu0 0.0
    %738 = vmatpush1.msra.mxu0 %v710
    %739 = vmatprep.subr.mxu0 0.0
    %740 = vmatpush1.msra.mxu0 %v711
    %741 = vmatprep.subr.mxu0 0.0
    %742 = vmatpush1.msra.mxu0 %v712
    %743 = vmatprep.subr.mxu0 0.0
    %744 = vmatpush1.msra.mxu0 %v713
    %745 = vmatprep.subr.mxu0 0.0
    %746 = vmatpush1.msra.mxu0 %v714
    %747 = vmatprep.subr.mxu0 0.0
    %748 = vmatpush1.msra.mxu0 %v715
    %749 = vmatprep.subr.mxu0 0.0
    %750 = vmatpush1.msra.mxu0 %v716
    %751 = vmatprep.subr.mxu0 0.0
    %752 = vmatpush1.msra.mxu0 %v717
    %753 = vmatprep.subr.mxu0 0.0
    %754 = vmatpush1.msra.mxu0 %v718
    %755 = vmatprep.subr.mxu0 0.0
    %756 = vmatpush1.msra.mxu0 %v719
    %757 = vmatprep.subr.mxu0 0.0
    %758 = vmatpush1.msra.mxu0 %v720
    %759 = vmatprep.subr.mxu0 0.0
    %760 = vmatpush1.msra.mxu0 %v721
    %761 = vmatprep.subr.mxu0 0.0
    %762 = vmatpush1.msra.mxu0 0.0
    %763 = vmatprep.subr.mxu0 0.0
    %764 = vmatpush1.msra.mxu0 0.0
    %765 = vmatprep.subr.mxu0 0.0
    %766 = vmatpush1.msra.mxu0 0.0
    %767 = vmatprep.subr.mxu0 0.0
    %768 = vmatpush1.msra.mxu0 0.0
    %769 = vmatprep.subr.mxu0 0.0
    %770 = vmatpush1.msra.mxu0 0.0
    %771 = vmatprep.subr.mxu0 0.0
    %772 = vmatpush1.msra.mxu0 0.0
    %773 = vmatprep.subr.mxu0 0.0
    %774 = vmatpush1.msra.mxu0 0.0
    %775 = vmatprep.subr.mxu0 0.0
    %776 = vmatpush1.msra.mxu0 0.0
    %777 = vmatprep.subr.mxu0 0.0
    %778 = vmatpush1.msra.mxu0 0.0
    %779 = vmatprep.subr.mxu0 0.0
    %780 = vmatpush1.msra.mxu0 0.0
    %781 = vmatprep.subr.mxu0 0.0
    %782 = vmatpush1.msra.mxu0 0.0
    %783 = vmatprep.subr.mxu0 0.0
    %784 = vmatpush1.msra.mxu0 0.0
    %785 = vmatprep.subr.mxu0 0.0
    %786 = vmatpush1.msra.mxu0 0.0
    %787 = vmatprep.subr.mxu0 0.0
    %788 = vmatpush1.msra.mxu0 0.0
    %789 = vmatprep.subr.mxu0 0.0
    %790 = vmatpush1.msra.mxu0 0.0
    %791 = vmatprep.subr.mxu0 0.0
    %792 = vmatpush1.msra.mxu0 0.0
    %793 = vmatprep.mubr.f32.mxu0 0.0
    %794 = vmatmul.mubr.f32.gmra.mrb[0].mxu0 %v705
    %v795 = vpop.f32.mrb[0].mxu0
    %v796 = vadd.f32 %v727, %v795
    %v797 = vpop.f32.mrb[0].mxu0
    %798 = vdwg.mxu0
    %799 = vst [vmem:[#allocation2] sm:$0x3] %v796
    // Predicated region
    $region62: #{multi_model_forward.9} parent=1 // pred_check
      _
    $region63: #{multi_model_forward.9} parent=1 // pred_check_branch
      %801 = sbr.rel (0) target = $region65
    $region64: #{multi_model_forward.9} parent=1 // pred_region
      %s803 = ssub.s32 32, 32
      %804 = vsyncadd [#allocation3], %s803
      %s806 = sshll.u32 [#allocation2], 4
      %s807 = int_to_ptr.vmem [resolvable:$true] %s806
      %809 = dma.vmem_to_hbm [thread:$0]  %s807, 32, %s15, [#allocation3]
    $region65: #{multi_model_forward.9} parent=1 // pred_fallthru
      _
    // Predicated region
    $region66: #{multi_model_forward.9} parent=1 // pred_check
      _
    $region67: #{multi_model_forward.9} parent=1 // pred_check_branch
      %811 = sbr.rel (0) target = $region69
    $region68: #{multi_model_forward.9} parent=1 // pred_region
      %812 = dma.done [#allocation3], 32
    $region69: #{multi_model_forward.9} parent=1 // pred_fallthru
      _
    %813 = vsyncpa [#allocation3], 1

// kernel: multi_model_forward.8
$region0: #{multi_model_forward.8}
  #allocation0 [shape = 'u32[]', space=smem, size = 0x4, offset = 0x4, fixed_abs, tag = 'smem constant byte address 0x4 - core index']
  #allocation1 [shape = 'u32[144,128]{1,0:T(1,128)}', space=vmem, size = 0x12000, scoped, tag = 'internal scratch']
  %s0 = inlined_call_operand.vmem [shape: bf16[2,2304], index: 0, kind: input, shape index: {}]
  %s1 = inlined_call_operand.vmem [shape: bf16[2,2304], index: 1, kind: input, shape index: {}]
  %s2 = inlined_call_operand.vmem [shape: bf16[2,2304], index: 2, kind: input, shape index: {}]
  %s3 = inlined_call_operand.vmem [shape: bf16[2,2304], index: 3, kind: input, shape index: {}]
  %s4 = inlined_call_operand.vmem [shape: bf16[2304,256], index: 4, kind: input, shape index: {}]
  %s5 = inlined_call_operand.vmem [shape: f32[1,256], index: 5, kind: input, shape index: {}]
  %s6 = inlined_call_operand.vmem [shape: bf16[2,256], index: 6, kind: output, shape index: {}]
  %s7 = sld [smem:[#allocation0]]
  $region34: #{multi_model_forward.8} parent=0
    _
  %s9 = ssub.s32 1, %s7
  %s10 = scalar_select 0, %s9, %s7
  // Predicated region
  $region2: #{multi_model_forward.8} parent=0 // pred_check
    _
  $region3: #{multi_model_forward.8} parent=0 // pred_check_branch
    %12 = sbr.rel (0) target = $region5
  $region4: #{multi_model_forward.8} parent=0 // pred_region
    _
  $region5: #{multi_model_forward.8} parent=0 // pred_fallthru
    _
  // Predicated region
  $region6: #{multi_model_forward.8} parent=0 // pred_check
    _
  $region7: #{multi_model_forward.8} parent=0 // pred_check_branch
    %14 = sbr.rel (0) target = $region9
  $region8: #{multi_model_forward.8} parent=0 // pred_region
    _
  $region9: #{multi_model_forward.8} parent=0 // pred_fallthru
    _
  // Predicated region
  $region10: #{multi_model_forward.8} parent=0 // pred_check
    _
  $region11: #{multi_model_forward.8} parent=0 // pred_check_branch
    %16 = sbr.rel (0) target = $region13
  $region12: #{multi_model_forward.8} parent=0 // pred_region
    _
  $region13: #{multi_model_forward.8} parent=0 // pred_fallthru
    _
  // Predicated region
  $region14: #{multi_model_forward.8} parent=0 // pred_check
    _
  $region15: #{multi_model_forward.8} parent=0 // pred_check_branch
    %18 = sbr.rel (0) target = $region17
  $region16: #{multi_model_forward.8} parent=0 // pred_region
    _
  $region17: #{multi_model_forward.8} parent=0 // pred_fallthru
    _
  // Predicated region
  $region18: #{multi_model_forward.8} parent=0 // pred_check
    _
  $region19: #{multi_model_forward.8} parent=0 // pred_check_branch
    %20 = sbr.rel (0) target = $region21
  $region20: #{multi_model_forward.8} parent=0 // pred_region
    _
  $region21: #{multi_model_forward.8} parent=0 // pred_fallthru
    _
  // Predicated region
  $region22: #{multi_model_forward.8} parent=0 // pred_check
    _
  $region23: #{multi_model_forward.8} parent=0 // pred_check_branch
    %22 = sbr.rel (0) target = $region25
  $region24: #{multi_model_forward.8} parent=0 // pred_region
    _
  $region25: #{multi_model_forward.8} parent=0 // pred_fallthru
    _
  %v23 = vld [vmem:[%s4] sm:$0xff]
  %v24 = vld [vmem:[%s4 + $0x8] sm:$0xff]
  %v25 = vld [vmem:[%s4 + $0x10] sm:$0xff]
  %v26 = vld [vmem:[%s4 + $0x18] sm:$0xff]
  %v27 = vld [vmem:[%s4 + $0x20] sm:$0xff]
  %v28 = vld [vmem:[%s4 + $0x28] sm:$0xff]
  %v29 = vld [vmem:[%s4 + $0x30] sm:$0xff]
  %v30 = vld [vmem:[%s4 + $0x38] sm:$0xff]
  %v31 = vld [vmem:[%s4 + $0x40] sm:$0xff]
  %v32 = vld [vmem:[%s4 + $0x48] sm:$0xff]
  %v33 = vld [vmem:[%s4 + $0x50] sm:$0xff]
  %v34 = vld [vmem:[%s4 + $0x58] sm:$0xff]
  %v35 = vld [vmem:[%s4 + $0x60] sm:$0xff]
  %v36 = vld [vmem:[%s4 + $0x68] sm:$0xff]
  %v37 = vld [vmem:[%s4 + $0x70] sm:$0xff]
  %v38 = vld [vmem:[%s4 + $0x78] sm:$0xff]
  %v39 = vld [vmem:[%s4 + $0x80] sm:$0xff]
  %v40 = vld [vmem:[%s4 + $0x88] sm:$0xff]
  %v41 = vld [vmem:[%s4 + $0x90] sm:$0xff]
  %v42 = vld [vmem:[%s4 + $0x98] sm:$0xff]
  %v43 = vld [vmem:[%s4 + $0xa0] sm:$0xff]
  %v44 = vld [vmem:[%s4 + $0xa8] sm:$0xff]
  %v45 = vld [vmem:[%s4 + $0xb0] sm:$0xff]
  %v46 = vld [vmem:[%s4 + $0xb8] sm:$0xff]
  %v47 = vld [vmem:[%s4 + $0xc0] sm:$0xff]
  %v48 = vld [vmem:[%s4 + $0xc8] sm:$0xff]
  %v49 = vld [vmem:[%s4 + $0xd0] sm:$0xff]
  %v50 = vld [vmem:[%s4 + $0xd8] sm:$0xff]
  %v51 = vld [vmem:[%s4 + $0xe0] sm:$0xff]
  %v52 = vld [vmem:[%s4 + $0xe8] sm:$0xff]
  %v53 = vld [vmem:[%s4 + $0xf0] sm:$0xff]
  %v54 = vld [vmem:[%s4 + $0xf8] sm:$0xff]
  %v55 = vld [vmem:[%s4 + $0x100] sm:$0xff]
  %v56 = vld [vmem:[%s4 + $0x108] sm:$0xff]
  %v57 = vld [vmem:[%s4 + $0x110] sm:$0xff]
  %v58 = vld [vmem:[%s4 + $0x118] sm:$0xff]
  %v59 = vld [vmem:[%s4 + $0x120] sm:$0xff]
  %v60 = vld [vmem:[%s4 + $0x128] sm:$0xff]
  %v61 = vld [vmem:[%s4 + $0x130] sm:$0xff]
  %v62 = vld [vmem:[%s4 + $0x138] sm:$0xff]
  %v63 = vld [vmem:[%s4 + $0x140] sm:$0xff]
  %v64 = vld [vmem:[%s4 + $0x148] sm:$0xff]
  %v65 = vld [vmem:[%s4 + $0x150] sm:$0xff]
  %v66 = vld [vmem:[%s4 + $0x158] sm:$0xff]
  %v67 = vld [vmem:[%s4 + $0x160] sm:$0xff]
  %v68 = vld [vmem:[%s4 + $0x168] sm:$0xff]
  %v69 = vld [vmem:[%s4 + $0x170] sm:$0xff]
  %v70 = vld [vmem:[%s4 + $0x178] sm:$0xff]
  %v71 = vld [vmem:[%s4 + $0x180] sm:$0xff]
  %v72 = vld [vmem:[%s4 + $0x188] sm:$0xff]
  %v73 = vld [vmem:[%s4 + $0x190] sm:$0xff]
  %v74 = vld [vmem:[%s4 + $0x198] sm:$0xff]
  %v75 = vld [vmem:[%s4 + $0x1a0] sm:$0xff]
  %v76 = vld [vmem:[%s4 + $0x1a8] sm:$0xff]
  %v77 = vld [vmem:[%s4 + $0x1b0] sm:$0xff]
  %v78 = vld [vmem:[%s4 + $0x1b8] sm:$0xff]
  %v79 = vld [vmem:[%s4 + $0x1c0] sm:$0xff]
  %v80 = vld [vmem:[%s4 + $0x1c8] sm:$0xff]
  %v81 = vld [vmem:[%s4 + $0x1d0] sm:$0xff]
  %v82 = vld [vmem:[%s4 + $0x1d8] sm:$0xff]
  %v83 = vld [vmem:[%s4 + $0x1e0] sm:$0xff]
  %v84 = vld [vmem:[%s4 + $0x1e8] sm:$0xff]
  %v85 = vld [vmem:[%s4 + $0x1f0] sm:$0xff]
  %v86 = vld [vmem:[%s4 + $0x1f8] sm:$0xff]
  %v87 = vld [vmem:[%s4 + $0x200] sm:$0xff]
  %v88 = vld [vmem:[%s4 + $0x208] sm:$0xff]
  %v89 = vld [vmem:[%s4 + $0x210] sm:$0xff]
  %v90 = vld [vmem:[%s4 + $0x218] sm:$0xff]
  %v91 = vld [vmem:[%s4 + $0x220] sm:$0xff]
  %v92 = vld [vmem:[%s4 + $0x228] sm:$0xff]
  %v93 = vld [vmem:[%s4 + $0x230] sm:$0xff]
  %v94 = vld [vmem:[%s4 + $0x238] sm:$0xff]
  %v95 = vld [vmem:[%s4 + $0x240] sm:$0xff]
  %v96 = vld [vmem:[%s4 + $0x248] sm:$0xff]
  %v97 = vld [vmem:[%s4 + $0x250] sm:$0xff]
  %v98 = vld [vmem:[%s4 + $0x258] sm:$0xff]
  %v99 = vld [vmem:[%s4 + $0x260] sm:$0xff]
  %v100 = vld [vmem:[%s4 + $0x268] sm:$0xff]
  %v101 = vld [vmem:[%s4 + $0x270] sm:$0xff]
  %v102 = vld [vmem:[%s4 + $0x278] sm:$0xff]
  %v103 = vld [vmem:[%s4 + $0x280] sm:$0xff]
  %v104 = vld [vmem:[%s4 + $0x288] sm:$0xff]
  %v105 = vld [vmem:[%s4 + $0x290] sm:$0xff]
  %v106 = vld [vmem:[%s4 + $0x298] sm:$0xff]
  %v107 = vld [vmem:[%s4 + $0x2a0] sm:$0xff]
  %v108 = vld [vmem:[%s4 + $0x2a8] sm:$0xff]
  %v109 = vld [vmem:[%s4 + $0x2b0] sm:$0xff]
  %v110 = vld [vmem:[%s4 + $0x2b8] sm:$0xff]
  %v111 = vld [vmem:[%s4 + $0x2c0] sm:$0xff]
  %v112 = vld [vmem:[%s4 + $0x2c8] sm:$0xff]
  %v113 = vld [vmem:[%s4 + $0x2d0] sm:$0xff]
  %v114 = vld [vmem:[%s4 + $0x2d8] sm:$0xff]
  %v115 = vld [vmem:[%s4 + $0x2e0] sm:$0xff]
  %v116 = vld [vmem:[%s4 + $0x2e8] sm:$0xff]
  %v117 = vld [vmem:[%s4 + $0x2f0] sm:$0xff]
  %v118 = vld [vmem:[%s4 + $0x2f8] sm:$0xff]
  %v119 = vld [vmem:[%s4 + $0x300] sm:$0xff]
  %v120 = vld [vmem:[%s4 + $0x308] sm:$0xff]
  %v121 = vld [vmem:[%s4 + $0x310] sm:$0xff]
  %v122 = vld [vmem:[%s4 + $0x318] sm:$0xff]
  %v123 = vld [vmem:[%s4 + $0x320] sm:$0xff]
  %v124 = vld [vmem:[%s4 + $0x328] sm:$0xff]
  %v125 = vld [vmem:[%s4 + $0x330] sm:$0xff]
  %v126 = vld [vmem:[%s4 + $0x338] sm:$0xff]
  %v127 = vld [vmem:[%s4 + $0x340] sm:$0xff]
  %v128 = vld [vmem:[%s4 + $0x348] sm:$0xff]
  %v129 = vld [vmem:[%s4 + $0x350] sm:$0xff]
  %v130 = vld [vmem:[%s4 + $0x358] sm:$0xff]
  %v131 = vld [vmem:[%s4 + $0x360] sm:$0xff]
  %v132 = vld [vmem:[%s4 + $0x368] sm:$0xff]
  %v133 = vld [vmem:[%s4 + $0x370] sm:$0xff]
  %v134 = vld [vmem:[%s4 + $0x378] sm:$0xff]
  %v135 = vld [vmem:[%s4 + $0x380] sm:$0xff]
  %v136 = vld [vmem:[%s4 + $0x388] sm:$0xff]
  %v137 = vld [vmem:[%s4 + $0x390] sm:$0xff]
  %v138 = vld [vmem:[%s4 + $0x398] sm:$0xff]
  %v139 = vld [vmem:[%s4 + $0x3a0] sm:$0xff]
  %v140 = vld [vmem:[%s4 + $0x3a8] sm:$0xff]
  %v141 = vld [vmem:[%s4 + $0x3b0] sm:$0xff]
  %v142 = vld [vmem:[%s4 + $0x3b8] sm:$0xff]
  %v143 = vld [vmem:[%s4 + $0x3c0] sm:$0xff]
  %v144 = vld [vmem:[%s4 + $0x3c8] sm:$0xff]
  %v145 = vld [vmem:[%s4 + $0x3d0] sm:$0xff]
  %v146 = vld [vmem:[%s4 + $0x3d8] sm:$0xff]
  %v147 = vld [vmem:[%s4 + $0x3e0] sm:$0xff]
  %v148 = vld [vmem:[%s4 + $0x3e8] sm:$0xff]
  %v149 = vld [vmem:[%s4 + $0x3f0] sm:$0xff]
  %v150 = vld [vmem:[%s4 + $0x3f8] sm:$0xff]
  %v151 = vld [vmem:[%s4 + $0x400] sm:$0xff]
  %v152 = vld [vmem:[%s4 + $0x408] sm:$0xff]
  %v153 = vld [vmem:[%s4 + $0x410] sm:$0xff]
  %v154 = vld [vmem:[%s4 + $0x418] sm:$0xff]
  %v155 = vld [vmem:[%s4 + $0x420] sm:$0xff]
  %v156 = vld [vmem:[%s4 + $0x428] sm:$0xff]
  %v157 = vld [vmem:[%s4 + $0x430] sm:$0xff]
  %v158 = vld [vmem:[%s4 + $0x438] sm:$0xff]
  %v159 = vld [vmem:[%s4 + $0x440] sm:$0xff]
  %v160 = vld [vmem:[%s4 + $0x448] sm:$0xff]
  %v161 = vld [vmem:[%s4 + $0x450] sm:$0xff]
  %v162 = vld [vmem:[%s4 + $0x458] sm:$0xff]
  %v163 = vld [vmem:[%s4 + $0x460] sm:$0xff]
  %v164 = vld [vmem:[%s4 + $0x468] sm:$0xff]
  %v165 = vld [vmem:[%s4 + $0x470] sm:$0xff]
  %v166 = vld [vmem:[%s4 + $0x478] sm:$0xff]
  %v167 = vld [vmem:[%s4 + $0x480] sm:$0xff]
  %v168 = vld [vmem:[%s4 + $0x488] sm:$0xff]
  %v169 = vld [vmem:[%s4 + $0x490] sm:$0xff]
  %v170 = vld [vmem:[%s4 + $0x498] sm:$0xff]
  %v171 = vld [vmem:[%s4 + $0x4a0] sm:$0xff]
  %v172 = vld [vmem:[%s4 + $0x4a8] sm:$0xff]
  %v173 = vld [vmem:[%s4 + $0x4b0] sm:$0xff]
  %v174 = vld [vmem:[%s4 + $0x4b8] sm:$0xff]
  %v175 = vld [vmem:[%s4 + $0x4c0] sm:$0xff]
  %v176 = vld [vmem:[%s4 + $0x4c8] sm:$0xff]
  %v177 = vld [vmem:[%s4 + $0x4d0] sm:$0xff]
  %v178 = vld [vmem:[%s4 + $0x4d8] sm:$0xff]
  %v179 = vld [vmem:[%s4 + $0x4e0] sm:$0xff]
  %v180 = vld [vmem:[%s4 + $0x4e8] sm:$0xff]
  %v181 = vld [vmem:[%s4 + $0x4f0] sm:$0xff]
  %v182 = vld [vmem:[%s4 + $0x4f8] sm:$0xff]
  %v183 = vld [vmem:[%s4 + $0x500] sm:$0xff]
  %v184 = vld [vmem:[%s4 + $0x508] sm:$0xff]
  %v185 = vld [vmem:[%s4 + $0x510] sm:$0xff]
  %v186 = vld [vmem:[%s4 + $0x518] sm:$0xff]
  %v187 = vld [vmem:[%s4 + $0x520] sm:$0xff]
  %v188 = vld [vmem:[%s4 + $0x528] sm:$0xff]
  %v189 = vld [vmem:[%s4 + $0x530] sm:$0xff]
  %v190 = vld [vmem:[%s4 + $0x538] sm:$0xff]
  %v191 = vld [vmem:[%s4 + $0x540] sm:$0xff]
  %v192 = vld [vmem:[%s4 + $0x548] sm:$0xff]
  %v193 = vld [vmem:[%s4 + $0x550] sm:$0xff]
  %v194 = vld [vmem:[%s4 + $0x558] sm:$0xff]
  %v195 = vld [vmem:[%s4 + $0x560] sm:$0xff]
  %v196 = vld [vmem:[%s4 + $0x568] sm:$0xff]
  %v197 = vld [vmem:[%s4 + $0x570] sm:$0xff]
  %v198 = vld [vmem:[%s4 + $0x578] sm:$0xff]
  %v199 = vld [vmem:[%s4 + $0x580] sm:$0xff]
  %v200 = vld [vmem:[%s4 + $0x588] sm:$0xff]
  %v201 = vld [vmem:[%s4 + $0x590] sm:$0xff]
  %v202 = vld [vmem:[%s4 + $0x598] sm:$0xff]
  %v203 = vld [vmem:[%s4 + $0x5a0] sm:$0xff]
  %v204 = vld [vmem:[%s4 + $0x5a8] sm:$0xff]
  %v205 = vld [vmem:[%s4 + $0x5b0] sm:$0xff]
  %v206 = vld [vmem:[%s4 + $0x5b8] sm:$0xff]
  %v207 = vld [vmem:[%s4 + $0x5c0] sm:$0xff]
  %v208 = vld [vmem:[%s4 + $0x5c8] sm:$0xff]
  %v209 = vld [vmem:[%s4 + $0x5d0] sm:$0xff]
  %v210 = vld [vmem:[%s4 + $0x5d8] sm:$0xff]
  %v211 = vld [vmem:[%s4 + $0x5e0] sm:$0xff]
  %v212 = vld [vmem:[%s4 + $0x5e8] sm:$0xff]
  %v213 = vld [vmem:[%s4 + $0x5f0] sm:$0xff]
  %v214 = vld [vmem:[%s4 + $0x5f8] sm:$0xff]
  %v215 = vld [vmem:[%s4 + $0x600] sm:$0xff]
  %v216 = vld [vmem:[%s4 + $0x608] sm:$0xff]
  %v217 = vld [vmem:[%s4 + $0x610] sm:$0xff]
  %v218 = vld [vmem:[%s4 + $0x618] sm:$0xff]
  %v219 = vld [vmem:[%s4 + $0x620] sm:$0xff]
  %v220 = vld [vmem:[%s4 + $0x628] sm:$0xff]
  %v221 = vld [vmem:[%s4 + $0x630] sm:$0xff]
  %v222 = vld [vmem:[%s4 + $0x638] sm:$0xff]
  %v223 = vld [vmem:[%s4 + $0x640] sm:$0xff]
  %v224 = vld [vmem:[%s4 + $0x648] sm:$0xff]
  %v225 = vld [vmem:[%s4 + $0x650] sm:$0xff]
  %v226 = vld [vmem:[%s4 + $0x658] sm:$0xff]
  %v227 = vld [vmem:[%s4 + $0x660] sm:$0xff]
  %v228 = vld [vmem:[%s4 + $0x668] sm:$0xff]
  %v229 = vld [vmem:[%s4 + $0x670] sm:$0xff]
  %v230 = vld [vmem:[%s4 + $0x678] sm:$0xff]
  %v231 = vld [vmem:[%s4 + $0x680] sm:$0xff]
  %v232 = vld [vmem:[%s4 + $0x688] sm:$0xff]
  %v233 = vld [vmem:[%s4 + $0x690] sm:$0xff]
  %v234 = vld [vmem:[%s4 + $0x698] sm:$0xff]
  %v235 = vld [vmem:[%s4 + $0x6a0] sm:$0xff]
  %v236 = vld [vmem:[%s4 + $0x6a8] sm:$0xff]
  %v237 = vld [vmem:[%s4 + $0x6b0] sm:$0xff]
  %v238 = vld [vmem:[%s4 + $0x6b8] sm:$0xff]
  %v239 = vld [vmem:[%s4 + $0x6c0] sm:$0xff]
  %v240 = vld [vmem:[%s4 + $0x6c8] sm:$0xff]
  %v241 = vld [vmem:[%s4 + $0x6d0] sm:$0xff]
  %v242 = vld [vmem:[%s4 + $0x6d8] sm:$0xff]
  %v243 = vld [vmem:[%s4 + $0x6e0] sm:$0xff]
  %v244 = vld [vmem:[%s4 + $0x6e8] sm:$0xff]
  %v245 = vld [vmem:[%s4 + $0x6f0] sm:$0xff]
  %v246 = vld [vmem:[%s4 + $0x6f8] sm:$0xff]
  %v247 = vld [vmem:[%s4 + $0x700] sm:$0xff]
  %v248 = vld [vmem:[%s4 + $0x708] sm:$0xff]
  %v249 = vld [vmem:[%s4 + $0x710] sm:$0xff]
  %v250 = vld [vmem:[%s4 + $0x718] sm:$0xff]
  %v251 = vld [vmem:[%s4 + $0x720] sm:$0xff]
  %v252 = vld [vmem:[%s4 + $0x728] sm:$0xff]
  %v253 = vld [vmem:[%s4 + $0x730] sm:$0xff]
  %v254 = vld [vmem:[%s4 + $0x738] sm:$0xff]
  %v255 = vld [vmem:[%s4 + $0x740] sm:$0xff]
  %v256 = vld [vmem:[%s4 + $0x748] sm:$0xff]
  %v257 = vld [vmem:[%s4 + $0x750] sm:$0xff]
  %v258 = vld [vmem:[%s4 + $0x758] sm:$0xff]
  %v259 = vld [vmem:[%s4 + $0x760] sm:$0xff]
  %v260 = vld [vmem:[%s4 + $0x768] sm:$0xff]
  %v261 = vld [vmem:[%s4 + $0x770] sm:$0xff]
  %v262 = vld [vmem:[%s4 + $0x778] sm:$0xff]
  %v263 = vld [vmem:[%s4 + $0x780] sm:$0xff]
  %v264 = vld [vmem:[%s4 + $0x788] sm:$0xff]
  %v265 = vld [vmem:[%s4 + $0x790] sm:$0xff]
  %v266 = vld [vmem:[%s4 + $0x798] sm:$0xff]
  %v267 = vld [vmem:[%s4 + $0x7a0] sm:$0xff]
  %v268 = vld [vmem:[%s4 + $0x7a8] sm:$0xff]
  %v269 = vld [vmem:[%s4 + $0x7b0] sm:$0xff]
  %v270 = vld [vmem:[%s4 + $0x7b8] sm:$0xff]
  %v271 = vld [vmem:[%s4 + $0x7c0] sm:$0xff]
  %v272 = vld [vmem:[%s4 + $0x7c8] sm:$0xff]
  %v273 = vld [vmem:[%s4 + $0x7d0] sm:$0xff]
  %v274 = vld [vmem:[%s4 + $0x7d8] sm:$0xff]
  %v275 = vld [vmem:[%s4 + $0x7e0] sm:$0xff]
  %v276 = vld [vmem:[%s4 + $0x7e8] sm:$0xff]
  %v277 = vld [vmem:[%s4 + $0x7f0] sm:$0xff]
  %v278 = vld [vmem:[%s4 + $0x7f8] sm:$0xff]
  %v279 = vld [vmem:[%s4 + $0x800] sm:$0xff]
  %v280 = vld [vmem:[%s4 + $0x808] sm:$0xff]
  %v281 = vld [vmem:[%s4 + $0x810] sm:$0xff]
  %v282 = vld [vmem:[%s4 + $0x818] sm:$0xff]
  %v283 = vld [vmem:[%s4 + $0x820] sm:$0xff]
  %v284 = vld [vmem:[%s4 + $0x828] sm:$0xff]
  %v285 = vld [vmem:[%s4 + $0x830] sm:$0xff]
  %v286 = vld [vmem:[%s4 + $0x838] sm:$0xff]
  %v287 = vld [vmem:[%s4 + $0x840] sm:$0xff]
  %v288 = vld [vmem:[%s4 + $0x848] sm:$0xff]
  %v289 = vld [vmem:[%s4 + $0x850] sm:$0xff]
  %v290 = vld [vmem:[%s4 + $0x858] sm:$0xff]
  %v291 = vld [vmem:[%s4 + $0x860] sm:$0xff]
  %v292 = vld [vmem:[%s4 + $0x868] sm:$0xff]
  %v293 = vld [vmem:[%s4 + $0x870] sm:$0xff]
  %v294 = vld [vmem:[%s4 + $0x878] sm:$0xff]
  %v295 = vld [vmem:[%s4 + $0x880] sm:$0xff]
  %v296 = vld [vmem:[%s4 + $0x888] sm:$0xff]
  %v297 = vld [vmem:[%s4 + $0x890] sm:$0xff]
  %v298 = vld [vmem:[%s4 + $0x898] sm:$0xff]
  %v299 = vld [vmem:[%s4 + $0x8a0] sm:$0xff]
  %v300 = vld [vmem:[%s4 + $0x8a8] sm:$0xff]
  %v301 = vld [vmem:[%s4 + $0x8b0] sm:$0xff]
  %v302 = vld [vmem:[%s4 + $0x8b8] sm:$0xff]
  %v303 = vld [vmem:[%s4 + $0x8c0] sm:$0xff]
  %v304 = vld [vmem:[%s4 + $0x8c8] sm:$0xff]
  %v305 = vld [vmem:[%s4 + $0x8d0] sm:$0xff]
  %v306 = vld [vmem:[%s4 + $0x8d8] sm:$0xff]
  %v307 = vld [vmem:[%s4 + $0x8e0] sm:$0xff]
  %v308 = vld [vmem:[%s4 + $0x8e8] sm:$0xff]
  %v309 = vld [vmem:[%s4 + $0x8f0] sm:$0xff]
  %v310 = vld [vmem:[%s4 + $0x8f8] sm:$0xff]
  %v311 = vld [vmem:[%s5] sm:$0x3]
  %v312 = vld [vmem:[%s0] sm:$0xff]
  %v313 = vld [vmem:[%s0 + $0x8] sm:$0xff]
  %v314 = vld [vmem:[%s0 + $0x10] sm:$0x3]
  %v316 = vlaneseq
  %v317 = vshrl.u32 %v316, 7
  %v318 = vsub.s32 0, %v317
  %v319 = vrot.slane %v311, %v318
  %v320 = vlaneseq
  %v321 = vshrl.u32 %v320, 7
  %v322 = vsub.s32 1, %v321
  %v323 = vrot.slane %v311, %v322
  %v329 = vcombine.high %v312, %v312
  %v331 = vunpack.c.l.s4 1966171168
  %v332 = vunpack.c.0.s8 %v331
  %v333 = vlaneseq
  %v334 = vshrl.u32 %v333, 7
  %v335 = vsub.s32 %v332, %v334
  %v336 = vrot.slane %v312, %v335
  %v338 = vunpack.c.l.s4 1966171168
  %v339 = vunpack.c.0.s8 %v338
  %v340 = vlaneseq
  %v341 = vshrl.u32 %v340, 7
  %v342 = vsub.s32 %v339, %v341
  %v343 = vrot.slane %v329, %v342
  %v344 = vcombine.high %v336, %v336
  %v345 = vcombine.high %v343, %v343
  %v347 = vunpack.c.l.s4 1966171168
  %v348 = vunpack.c.0.s8 %v347
  %v349 = vlaneseq
  %v350 = vshrl.u32 %v349, 7
  %v351 = vsub.s32 %v348, %v350
  %v352 = vrot.slane %v336, %v351
  %v354 = vunpack.c.l.s4 1966171168
  %v355 = vunpack.c.0.s8 %v354
  %v356 = vlaneseq
  %v357 = vshrl.u32 %v356, 7
  %v358 = vsub.s32 %v355, %v357
  %v359 = vrot.slane %v343, %v358
  %v361 = vunpack.c.l.s4 1966171168
  %v362 = vunpack.c.0.s8 %v361
  %v363 = vlaneseq
  %v364 = vshrl.u32 %v363, 7
  %v365 = vsub.s32 %v362, %v364
  %v366 = vrot.slane %v344, %v365
  %v368 = vunpack.c.l.s4 1966171168
  %v369 = vunpack.c.0.s8 %v368
  %v370 = vlaneseq
  %v371 = vshrl.u32 %v370, 7
  %v372 = vsub.s32 %v369, %v371
  %v373 = vrot.slane %v345, %v372
  %v374 = vcombine.high %v352, %v352
  %v375 = vcombine.high %v359, %v359
  %v376 = vcombine.high %v366, %v366
  %v377 = vcombine.high %v373, %v373
  %v378 = vcombine.high %v313, %v313
  %v380 = vunpack.c.l.s4 1966171168
  %v381 = vunpack.c.0.s8 %v380
  %v382 = vlaneseq
  %v383 = vshrl.u32 %v382, 7
  %v384 = vsub.s32 %v381, %v383
  %v385 = vrot.slane %v313, %v384
  %v387 = vunpack.c.l.s4 1966171168
  %v388 = vunpack.c.0.s8 %v387
  %v389 = vlaneseq
  %v390 = vshrl.u32 %v389, 7
  %v391 = vsub.s32 %v388, %v390
  %v392 = vrot.slane %v378, %v391
  %v393 = vcombine.high %v385, %v385
  %v394 = vcombine.high %v392, %v392
  %v396 = vunpack.c.l.s4 1966171168
  %v397 = vunpack.c.0.s8 %v396
  %v398 = vlaneseq
  %v399 = vshrl.u32 %v398, 7
  %v400 = vsub.s32 %v397, %v399
  %v401 = vrot.slane %v385, %v400
  %v403 = vunpack.c.l.s4 1966171168
  %v404 = vunpack.c.0.s8 %v403
  %v405 = vlaneseq
  %v406 = vshrl.u32 %v405, 7
  %v407 = vsub.s32 %v404, %v406
  %v408 = vrot.slane %v392, %v407
  %v410 = vunpack.c.l.s4 1966171168
  %v411 = vunpack.c.0.s8 %v410
  %v412 = vlaneseq
  %v413 = vshrl.u32 %v412, 7
  %v414 = vsub.s32 %v411, %v413
  %v415 = vrot.slane %v393, %v414
  %v417 = vunpack.c.l.s4 1966171168
  %v418 = vunpack.c.0.s8 %v417
  %v419 = vlaneseq
  %v420 = vshrl.u32 %v419, 7
  %v421 = vsub.s32 %v418, %v420
  %v422 = vrot.slane %v394, %v421
  %v423 = vcombine.high %v401, %v401
  %v424 = vcombine.high %v408, %v408
  %v425 = vcombine.high %v415, %v415
  %v426 = vcombine.high %v422, %v422
  %v428 = vunpack.c.l.s4 1966171168
  %v429 = vunpack.c.0.s8 %v428
  %v430 = vlaneseq
  %v431 = vshrl.u32 %v430, 7
  %v432 = vsub.s32 %v429, %v431
  %v433 = vrot.slane %v314, %v432
  %v434 = vcombine.high %v433, %v433
  %v436 = vunpack.c.l.s4 1966171168
  %v437 = vunpack.c.0.s8 %v436
  %v438 = vlaneseq
  %v439 = vshrl.u32 %v438, 7
  %v440 = vsub.s32 %v437, %v439
  %v441 = vrot.slane %v433, %v440
  %v443 = vunpack.c.l.s4 1966171168
  %v444 = vunpack.c.0.s8 %v443
  %v445 = vlaneseq
  %v446 = vshrl.u32 %v445, 7
  %v447 = vsub.s32 %v444, %v446
  %v448 = vrot.slane %v434, %v447
  %v755 = vunpack.c.l.b16 %v23
  %v756 = vunpack.c.h.b16 %v23
  %v757 = vunpack.c.l.b16 %v24
  %v758 = vunpack.c.h.b16 %v24
  %v759 = vunpack.c.l.b16 %v25
  %v760 = vunpack.c.h.b16 %v25
  %v761 = vunpack.c.l.b16 %v26
  %v762 = vunpack.c.h.b16 %v26
  %v763 = vunpack.c.l.b16 %v27
  %v764 = vunpack.c.h.b16 %v27
  %v765 = vunpack.c.l.b16 %v28
  %v766 = vunpack.c.h.b16 %v28
  %v767 = vunpack.c.l.b16 %v29
  %v768 = vunpack.c.h.b16 %v29
  %v769 = vunpack.c.l.b16 %v30
  %v770 = vunpack.c.h.b16 %v30
  %v771 = vunpack.c.l.b16 %v31
  %v772 = vunpack.c.h.b16 %v31
  %v773 = vunpack.c.l.b16 %v32
  %v774 = vunpack.c.h.b16 %v32
  %v775 = vunpack.c.l.b16 %v33
  %v776 = vunpack.c.h.b16 %v33
  %v777 = vunpack.c.l.b16 %v34
  %v778 = vunpack.c.h.b16 %v34
  %v779 = vunpack.c.l.b16 %v35
  %v780 = vunpack.c.h.b16 %v35
  %v781 = vunpack.c.l.b16 %v36
  %v782 = vunpack.c.h.b16 %v36
  %v783 = vunpack.c.l.b16 %v37
  %v784 = vunpack.c.h.b16 %v37
  %v785 = vunpack.c.l.b16 %v38
  %v786 = vunpack.c.h.b16 %v38
  %v787 = vunpack.c.l.b16 %v39
  %v788 = vunpack.c.h.b16 %v39
  %v789 = vunpack.c.l.b16 %v40
  %v790 = vunpack.c.h.b16 %v40
  %v791 = vunpack.c.l.b16 %v41
  %v792 = vunpack.c.h.b16 %v41
  %v793 = vunpack.c.l.b16 %v42
  %v794 = vunpack.c.h.b16 %v42
  %v795 = vunpack.c.l.b16 %v43
  %v796 = vunpack.c.h.b16 %v43
  %v797 = vunpack.c.l.b16 %v44
  %v798 = vunpack.c.h.b16 %v44
  %v799 = vunpack.c.l.b16 %v45
  %v800 = vunpack.c.h.b16 %v45
  %v801 = vunpack.c.l.b16 %v46
  %v802 = vunpack.c.h.b16 %v46
  %v803 = vunpack.c.l.b16 %v47
  %v804 = vunpack.c.h.b16 %v47
  %v805 = vunpack.c.l.b16 %v48
  %v806 = vunpack.c.h.b16 %v48
  %v807 = vunpack.c.l.b16 %v49
  %v808 = vunpack.c.h.b16 %v49
  %v809 = vunpack.c.l.b16 %v50
  %v810 = vunpack.c.h.b16 %v50
  %v811 = vunpack.c.l.b16 %v51
  %v812 = vunpack.c.h.b16 %v51
  %v813 = vunpack.c.l.b16 %v52
  %v814 = vunpack.c.h.b16 %v52
  %v815 = vunpack.c.l.b16 %v53
  %v816 = vunpack.c.h.b16 %v53
  %v817 = vunpack.c.l.b16 %v54
  %v818 = vunpack.c.h.b16 %v54
  %v819 = vunpack.c.l.b16 %v55
  %v820 = vunpack.c.h.b16 %v55
  %v821 = vunpack.c.l.b16 %v56
  %v822 = vunpack.c.h.b16 %v56
  %v823 = vunpack.c.l.b16 %v57
  %v824 = vunpack.c.h.b16 %v57
  %v825 = vunpack.c.l.b16 %v58
  %v826 = vunpack.c.h.b16 %v58
  %v827 = vunpack.c.l.b16 %v59
  %v828 = vunpack.c.h.b16 %v59
  %v829 = vunpack.c.l.b16 %v60
  %v830 = vunpack.c.h.b16 %v60
  %v831 = vunpack.c.l.b16 %v61
  %v832 = vunpack.c.h.b16 %v61
  %v833 = vunpack.c.l.b16 %v62
  %v834 = vunpack.c.h.b16 %v62
  %v835 = vunpack.c.l.b16 %v63
  %v836 = vunpack.c.h.b16 %v63
  %v837 = vunpack.c.l.b16 %v64
  %v838 = vunpack.c.h.b16 %v64
  %v839 = vunpack.c.l.b16 %v65
  %v840 = vunpack.c.h.b16 %v65
  %v841 = vunpack.c.l.b16 %v66
  %v842 = vunpack.c.h.b16 %v66
  %v843 = vunpack.c.l.b16 %v67
  %v844 = vunpack.c.h.b16 %v67
  %v845 = vunpack.c.l.b16 %v68
  %v846 = vunpack.c.h.b16 %v68
  %v847 = vunpack.c.l.b16 %v69
  %v848 = vunpack.c.h.b16 %v69
  %v849 = vunpack.c.l.b16 %v70
  %v850 = vunpack.c.h.b16 %v70
  %v851 = vunpack.c.l.b16 %v71
  %v852 = vunpack.c.h.b16 %v71
  %v853 = vunpack.c.l.b16 %v72
  %v854 = vunpack.c.h.b16 %v72
  %v855 = vunpack.c.l.b16 %v73
  %v856 = vunpack.c.h.b16 %v73
  %v857 = vunpack.c.l.b16 %v74
  %v858 = vunpack.c.h.b16 %v74
  %v859 = vunpack.c.l.b16 %v75
  %v860 = vunpack.c.h.b16 %v75
  %v861 = vunpack.c.l.b16 %v76
  %v862 = vunpack.c.h.b16 %v76
  %v863 = vunpack.c.l.b16 %v77
  %v864 = vunpack.c.h.b16 %v77
  %v865 = vunpack.c.l.b16 %v78
  %v866 = vunpack.c.h.b16 %v78
  %v867 = vunpack.c.l.b16 %v79
  %v868 = vunpack.c.h.b16 %v79
  %v869 = vunpack.c.l.b16 %v80
  %v870 = vunpack.c.h.b16 %v80
  %v871 = vunpack.c.l.b16 %v81
  %v872 = vunpack.c.h.b16 %v81
  %v873 = vunpack.c.l.b16 %v82
  %v874 = vunpack.c.h.b16 %v82
  %v875 = vunpack.c.l.b16 %v83
  %v876 = vunpack.c.h.b16 %v83
  %v877 = vunpack.c.l.b16 %v84
  %v878 = vunpack.c.h.b16 %v84
  %v879 = vunpack.c.l.b16 %v85
  %v880 = vunpack.c.h.b16 %v85
  %v881 = vunpack.c.l.b16 %v86
  %v882 = vunpack.c.h.b16 %v86
  %v883 = vunpack.c.l.b16 %v87
  %v884 = vunpack.c.h.b16 %v87
  %v885 = vunpack.c.l.b16 %v88
  %v886 = vunpack.c.h.b16 %v88
  %v887 = vunpack.c.l.b16 %v89
  %v888 = vunpack.c.h.b16 %v89
  %v889 = vunpack.c.l.b16 %v90
  %v890 = vunpack.c.h.b16 %v90
  %v891 = vunpack.c.l.b16 %v91
  %v892 = vunpack.c.h.b16 %v91
  %v893 = vunpack.c.l.b16 %v92
  %v894 = vunpack.c.h.b16 %v92
  %v895 = vunpack.c.l.b16 %v93
  %v896 = vunpack.c.h.b16 %v93
  %v897 = vunpack.c.l.b16 %v94
  %v898 = vunpack.c.h.b16 %v94
  %v899 = vunpack.c.l.b16 %v95
  %v900 = vunpack.c.h.b16 %v95
  %v901 = vunpack.c.l.b16 %v96
  %v902 = vunpack.c.h.b16 %v96
  %v903 = vunpack.c.l.b16 %v97
  %v904 = vunpack.c.h.b16 %v97
  %v905 = vunpack.c.l.b16 %v98
  %v906 = vunpack.c.h.b16 %v98
  %v907 = vunpack.c.l.b16 %v99
  %v908 = vunpack.c.h.b16 %v99
  %v909 = vunpack.c.l.b16 %v100
  %v910 = vunpack.c.h.b16 %v100
  %v911 = vunpack.c.l.b16 %v101
  %v912 = vunpack.c.h.b16 %v101
  %v913 = vunpack.c.l.b16 %v102
  %v914 = vunpack.c.h.b16 %v102
  %v915 = vunpack.c.l.b16 %v103
  %v916 = vunpack.c.h.b16 %v103
  %v917 = vunpack.c.l.b16 %v104
  %v918 = vunpack.c.h.b16 %v104
  %v919 = vunpack.c.l.b16 %v105
  %v920 = vunpack.c.h.b16 %v105
  %v921 = vunpack.c.l.b16 %v106
  %v922 = vunpack.c.h.b16 %v106
  %v923 = vunpack.c.l.b16 %v107
  %v924 = vunpack.c.h.b16 %v107
  %v925 = vunpack.c.l.b16 %v108
  %v926 = vunpack.c.h.b16 %v108
  %v927 = vunpack.c.l.b16 %v109
  %v928 = vunpack.c.h.b16 %v109
  %v929 = vunpack.c.l.b16 %v110
  %v930 = vunpack.c.h.b16 %v110
  %v931 = vunpack.c.l.b16 %v111
  %v932 = vunpack.c.h.b16 %v111
  %v933 = vunpack.c.l.b16 %v112
  %v934 = vunpack.c.h.b16 %v112
  %v935 = vunpack.c.l.b16 %v113
  %v936 = vunpack.c.h.b16 %v113
  %v937 = vunpack.c.l.b16 %v114
  %v938 = vunpack.c.h.b16 %v114
  %v939 = vunpack.c.l.b16 %v115
  %v940 = vunpack.c.h.b16 %v115
  %v941 = vunpack.c.l.b16 %v116
  %v942 = vunpack.c.h.b16 %v116
  %v943 = vunpack.c.l.b16 %v117
  %v944 = vunpack.c.h.b16 %v117
  %v945 = vunpack.c.l.b16 %v118
  %v946 = vunpack.c.h.b16 %v118
  %v947 = vunpack.c.l.b16 %v119
  %v948 = vunpack.c.h.b16 %v119
  %v949 = vunpack.c.l.b16 %v120
  %v950 = vunpack.c.h.b16 %v120
  %v951 = vunpack.c.l.b16 %v121
  %v952 = vunpack.c.h.b16 %v121
  %v953 = vunpack.c.l.b16 %v122
  %v954 = vunpack.c.h.b16 %v122
  %v955 = vunpack.c.l.b16 %v123
  %v956 = vunpack.c.h.b16 %v123
  %v957 = vunpack.c.l.b16 %v124
  %v958 = vunpack.c.h.b16 %v124
  %v959 = vunpack.c.l.b16 %v125
  %v960 = vunpack.c.h.b16 %v125
  %v961 = vunpack.c.l.b16 %v126
  %v962 = vunpack.c.h.b16 %v126
  %v963 = vunpack.c.l.b16 %v127
  %v964 = vunpack.c.h.b16 %v127
  %v965 = vunpack.c.l.b16 %v128
  %v966 = vunpack.c.h.b16 %v128
  %v967 = vunpack.c.l.b16 %v129
  %v968 = vunpack.c.h.b16 %v129
  %v969 = vunpack.c.l.b16 %v130
  %v970 = vunpack.c.h.b16 %v130
  %v971 = vunpack.c.l.b16 %v131
  %v972 = vunpack.c.h.b16 %v131
  %v973 = vunpack.c.l.b16 %v132
  %v974 = vunpack.c.h.b16 %v132
  %v975 = vunpack.c.l.b16 %v133
  %v976 = vunpack.c.h.b16 %v133
  %v977 = vunpack.c.l.b16 %v134
  %v978 = vunpack.c.h.b16 %v134
  %v979 = vunpack.c.l.b16 %v135
  %v980 = vunpack.c.h.b16 %v135
  %v981 = vunpack.c.l.b16 %v136
  %v982 = vunpack.c.h.b16 %v136
  %v983 = vunpack.c.l.b16 %v137
  %v984 = vunpack.c.h.b16 %v137
  %v985 = vunpack.c.l.b16 %v138
  %v986 = vunpack.c.h.b16 %v138
  %v987 = vunpack.c.l.b16 %v139
  %v988 = vunpack.c.h.b16 %v139
  %v989 = vunpack.c.l.b16 %v140
  %v990 = vunpack.c.h.b16 %v140
  %v991 = vunpack.c.l.b16 %v141
  %v992 = vunpack.c.h.b16 %v141
  %v993 = vunpack.c.l.b16 %v142
  %v994 = vunpack.c.h.b16 %v142
  %v995 = vunpack.c.l.b16 %v143
  %v996 = vunpack.c.h.b16 %v143
  %v997 = vunpack.c.l.b16 %v144
  %v998 = vunpack.c.h.b16 %v144
  %v999 = vunpack.c.l.b16 %v145
  %v1000 = vunpack.c.h.b16 %v145
  %v1001 = vunpack.c.l.b16 %v146
  %v1002 = vunpack.c.h.b16 %v146
  %v1003 = vunpack.c.l.b16 %v147
  %v1004 = vunpack.c.h.b16 %v147
  %v1005 = vunpack.c.l.b16 %v148
  %v1006 = vunpack.c.h.b16 %v148
  %v1007 = vunpack.c.l.b16 %v149
  %v1008 = vunpack.c.h.b16 %v149
  %v1009 = vunpack.c.l.b16 %v150
  %v1010 = vunpack.c.h.b16 %v150
  %v1011 = vunpack.c.l.b16 %v151
  %v1012 = vunpack.c.h.b16 %v151
  %v1013 = vunpack.c.l.b16 %v152
  %v1014 = vunpack.c.h.b16 %v152
  %v1015 = vunpack.c.l.b16 %v153
  %v1016 = vunpack.c.h.b16 %v153
  %v1017 = vunpack.c.l.b16 %v154
  %v1018 = vunpack.c.h.b16 %v154
  %v1019 = vunpack.c.l.b16 %v155
  %v1020 = vunpack.c.h.b16 %v155
  %v1021 = vunpack.c.l.b16 %v156
  %v1022 = vunpack.c.h.b16 %v156
  %v1023 = vunpack.c.l.b16 %v157
  %v1024 = vunpack.c.h.b16 %v157
  %v1025 = vunpack.c.l.b16 %v158
  %v1026 = vunpack.c.h.b16 %v158
  %v1027 = vunpack.c.l.b16 %v159
  %v1028 = vunpack.c.h.b16 %v159
  %v1029 = vunpack.c.l.b16 %v160
  %v1030 = vunpack.c.h.b16 %v160
  %v1031 = vunpack.c.l.b16 %v161
  %v1032 = vunpack.c.h.b16 %v161
  %v1033 = vunpack.c.l.b16 %v162
  %v1034 = vunpack.c.h.b16 %v162
  %v1035 = vunpack.c.l.b16 %v163
  %v1036 = vunpack.c.h.b16 %v163
  %v1037 = vunpack.c.l.b16 %v164
  %v1038 = vunpack.c.h.b16 %v164
  %v1039 = vunpack.c.l.b16 %v165
  %v1040 = vunpack.c.h.b16 %v165
  %v1041 = vunpack.c.l.b16 %v166
  %v1042 = vunpack.c.h.b16 %v166
  %v1043 = vunpack.c.l.b16 %v167
  %v1044 = vunpack.c.h.b16 %v167
  %v1045 = vunpack.c.l.b16 %v168
  %v1046 = vunpack.c.h.b16 %v168
  %v1047 = vunpack.c.l.b16 %v169
  %v1048 = vunpack.c.h.b16 %v169
  %v1049 = vunpack.c.l.b16 %v170
  %v1050 = vunpack.c.h.b16 %v170
  %v1051 = vunpack.c.l.b16 %v171
  %v1052 = vunpack.c.h.b16 %v171
  %v1053 = vunpack.c.l.b16 %v172
  %v1054 = vunpack.c.h.b16 %v172
  %v1055 = vunpack.c.l.b16 %v173
  %v1056 = vunpack.c.h.b16 %v173
  %v1057 = vunpack.c.l.b16 %v174
  %v1058 = vunpack.c.h.b16 %v174
  %v1059 = vunpack.c.l.b16 %v175
  %v1060 = vunpack.c.h.b16 %v175
  %v1061 = vunpack.c.l.b16 %v176
  %v1062 = vunpack.c.h.b16 %v176
  %v1063 = vunpack.c.l.b16 %v177
  %v1064 = vunpack.c.h.b16 %v177
  %v1065 = vunpack.c.l.b16 %v178
  %v1066 = vunpack.c.h.b16 %v178
  %v1067 = vunpack.c.l.b16 %v179
  %v1068 = vunpack.c.h.b16 %v179
  %v1069 = vunpack.c.l.b16 %v180
  %v1070 = vunpack.c.h.b16 %v180
  %v1071 = vunpack.c.l.b16 %v181
  %v1072 = vunpack.c.h.b16 %v181
  %v1073 = vunpack.c.l.b16 %v182
  %v1074 = vunpack.c.h.b16 %v182
  %v1075 = vunpack.c.l.b16 %v183
  %v1076 = vunpack.c.h.b16 %v183
  %v1077 = vunpack.c.l.b16 %v184
  %v1078 = vunpack.c.h.b16 %v184
  %v1079 = vunpack.c.l.b16 %v185
  %v1080 = vunpack.c.h.b16 %v185
  %v1081 = vunpack.c.l.b16 %v186
  %v1082 = vunpack.c.h.b16 %v186
  %v1083 = vunpack.c.l.b16 %v187
  %v1084 = vunpack.c.h.b16 %v187
  %v1085 = vunpack.c.l.b16 %v188
  %v1086 = vunpack.c.h.b16 %v188
  %v1087 = vunpack.c.l.b16 %v189
  %v1088 = vunpack.c.h.b16 %v189
  %v1089 = vunpack.c.l.b16 %v190
  %v1090 = vunpack.c.h.b16 %v190
  %v1091 = vunpack.c.l.b16 %v191
  %v1092 = vunpack.c.h.b16 %v191
  %v1093 = vunpack.c.l.b16 %v192
  %v1094 = vunpack.c.h.b16 %v192
  %v1095 = vunpack.c.l.b16 %v193
  %v1096 = vunpack.c.h.b16 %v193
  %v1097 = vunpack.c.l.b16 %v194
  %v1098 = vunpack.c.h.b16 %v194
  %v1099 = vunpack.c.l.b16 %v195
  %v1100 = vunpack.c.h.b16 %v195
  %v1101 = vunpack.c.l.b16 %v196
  %v1102 = vunpack.c.h.b16 %v196
  %v1103 = vunpack.c.l.b16 %v197
  %v1104 = vunpack.c.h.b16 %v197
  %v1105 = vunpack.c.l.b16 %v198
  %v1106 = vunpack.c.h.b16 %v198
  %v1107 = vunpack.c.l.b16 %v199
  %v1108 = vunpack.c.h.b16 %v199
  %v1109 = vunpack.c.l.b16 %v200
  %v1110 = vunpack.c.h.b16 %v200
  %v1111 = vunpack.c.l.b16 %v201
  %v1112 = vunpack.c.h.b16 %v201
  %v1113 = vunpack.c.l.b16 %v202
  %v1114 = vunpack.c.h.b16 %v202
  %v1115 = vunpack.c.l.b16 %v203
  %v1116 = vunpack.c.h.b16 %v203
  %v1117 = vunpack.c.l.b16 %v204
  %v1118 = vunpack.c.h.b16 %v204
  %v1119 = vunpack.c.l.b16 %v205
  %v1120 = vunpack.c.h.b16 %v205
  %v1121 = vunpack.c.l.b16 %v206
  %v1122 = vunpack.c.h.b16 %v206
  %v1123 = vunpack.c.l.b16 %v207
  %v1124 = vunpack.c.h.b16 %v207
  %v1125 = vunpack.c.l.b16 %v208
  %v1126 = vunpack.c.h.b16 %v208
  %v1127 = vunpack.c.l.b16 %v209
  %v1128 = vunpack.c.h.b16 %v209
  %v1129 = vunpack.c.l.b16 %v210
  %v1130 = vunpack.c.h.b16 %v210
  %v1131 = vunpack.c.l.b16 %v211
  %v1132 = vunpack.c.h.b16 %v211
  %v1133 = vunpack.c.l.b16 %v212
  %v1134 = vunpack.c.h.b16 %v212
  %v1135 = vunpack.c.l.b16 %v213
  %v1136 = vunpack.c.h.b16 %v213
  %v1137 = vunpack.c.l.b16 %v214
  %v1138 = vunpack.c.h.b16 %v214
  %v1139 = vunpack.c.l.b16 %v215
  %v1140 = vunpack.c.h.b16 %v215
  %v1141 = vunpack.c.l.b16 %v216
  %v1142 = vunpack.c.h.b16 %v216
  %v1143 = vunpack.c.l.b16 %v217
  %v1144 = vunpack.c.h.b16 %v217
  %v1145 = vunpack.c.l.b16 %v218
  %v1146 = vunpack.c.h.b16 %v218
  %v1147 = vunpack.c.l.b16 %v219
  %v1148 = vunpack.c.h.b16 %v219
  %v1149 = vunpack.c.l.b16 %v220
  %v1150 = vunpack.c.h.b16 %v220
  %v1151 = vunpack.c.l.b16 %v221
  %v1152 = vunpack.c.h.b16 %v221
  %v1153 = vunpack.c.l.b16 %v222
  %v1154 = vunpack.c.h.b16 %v222
  %v1155 = vunpack.c.l.b16 %v223
  %v1156 = vunpack.c.h.b16 %v223
  %v1157 = vunpack.c.l.b16 %v224
  %v1158 = vunpack.c.h.b16 %v224
  %v1159 = vunpack.c.l.b16 %v225
  %v1160 = vunpack.c.h.b16 %v225
  %v1161 = vunpack.c.l.b16 %v226
  %v1162 = vunpack.c.h.b16 %v226
  %v1163 = vunpack.c.l.b16 %v227
  %v1164 = vunpack.c.h.b16 %v227
  %v1165 = vunpack.c.l.b16 %v228
  %v1166 = vunpack.c.h.b16 %v228
  %v1167 = vunpack.c.l.b16 %v229
  %v1168 = vunpack.c.h.b16 %v229
  %v1169 = vunpack.c.l.b16 %v230
  %v1170 = vunpack.c.h.b16 %v230
  %v1171 = vunpack.c.l.b16 %v231
  %v1172 = vunpack.c.h.b16 %v231
  %v1173 = vunpack.c.l.b16 %v232
  %v1174 = vunpack.c.h.b16 %v232
  %v1175 = vunpack.c.l.b16 %v233
  %v1176 = vunpack.c.h.b16 %v233
  %v1177 = vunpack.c.l.b16 %v234
  %v1178 = vunpack.c.h.b16 %v234
  %v1179 = vunpack.c.l.b16 %v235
  %v1180 = vunpack.c.h.b16 %v235
  %v1181 = vunpack.c.l.b16 %v236
  %v1182 = vunpack.c.h.b16 %v236
  %v1183 = vunpack.c.l.b16 %v237
  %v1184 = vunpack.c.h.b16 %v237
  %v1185 = vunpack.c.l.b16 %v238
  %v1186 = vunpack.c.h.b16 %v238
  %v1187 = vunpack.c.l.b16 %v239
  %v1188 = vunpack.c.h.b16 %v239
  %v1189 = vunpack.c.l.b16 %v240
  %v1190 = vunpack.c.h.b16 %v240
  %v1191 = vunpack.c.l.b16 %v241
  %v1192 = vunpack.c.h.b16 %v241
  %v1193 = vunpack.c.l.b16 %v242
  %v1194 = vunpack.c.h.b16 %v242
  %v1195 = vunpack.c.l.b16 %v243
  %v1196 = vunpack.c.h.b16 %v243
  %v1197 = vunpack.c.l.b16 %v244
  %v1198 = vunpack.c.h.b16 %v244
  %v1199 = vunpack.c.l.b16 %v245
  %v1200 = vunpack.c.h.b16 %v245
  %v1201 = vunpack.c.l.b16 %v246
  %v1202 = vunpack.c.h.b16 %v246
  %v1203 = vunpack.c.l.b16 %v247
  %v1204 = vunpack.c.h.b16 %v247
  %v1205 = vunpack.c.l.b16 %v248
  %v1206 = vunpack.c.h.b16 %v248
  %v1207 = vunpack.c.l.b16 %v249
  %v1208 = vunpack.c.h.b16 %v249
  %v1209 = vunpack.c.l.b16 %v250
  %v1210 = vunpack.c.h.b16 %v250
  %v1211 = vunpack.c.l.b16 %v251
  %v1212 = vunpack.c.h.b16 %v251
  %v1213 = vunpack.c.l.b16 %v252
  %v1214 = vunpack.c.h.b16 %v252
  %v1215 = vunpack.c.l.b16 %v253
  %v1216 = vunpack.c.h.b16 %v253
  %v1217 = vunpack.c.l.b16 %v254
  %v1218 = vunpack.c.h.b16 %v254
  %v1219 = vunpack.c.l.b16 %v255
  %v1220 = vunpack.c.h.b16 %v255
  %v1221 = vunpack.c.l.b16 %v256
  %v1222 = vunpack.c.h.b16 %v256
  %v1223 = vunpack.c.l.b16 %v257
  %v1224 = vunpack.c.h.b16 %v257
  %v1225 = vunpack.c.l.b16 %v258
  %v1226 = vunpack.c.h.b16 %v258
  %v1227 = vunpack.c.l.b16 %v259
  %v1228 = vunpack.c.h.b16 %v259
  %v1229 = vunpack.c.l.b16 %v260
  %v1230 = vunpack.c.h.b16 %v260
  %v1231 = vunpack.c.l.b16 %v261
  %v1232 = vunpack.c.h.b16 %v261
  %v1233 = vunpack.c.l.b16 %v262
  %v1234 = vunpack.c.h.b16 %v262
  %v1235 = vunpack.c.l.b16 %v263
  %v1236 = vunpack.c.h.b16 %v263
  %v1237 = vunpack.c.l.b16 %v264
  %v1238 = vunpack.c.h.b16 %v264
  %v1239 = vunpack.c.l.b16 %v265
  %v1240 = vunpack.c.h.b16 %v265
  %v1241 = vunpack.c.l.b16 %v266
  %v1242 = vunpack.c.h.b16 %v266
  %v1243 = vunpack.c.l.b16 %v267
  %v1244 = vunpack.c.h.b16 %v267
  %v1245 = vunpack.c.l.b16 %v268
  %v1246 = vunpack.c.h.b16 %v268
  %v1247 = vunpack.c.l.b16 %v269
  %v1248 = vunpack.c.h.b16 %v269
  %v1249 = vunpack.c.l.b16 %v270
  %v1250 = vunpack.c.h.b16 %v270
  %v1251 = vunpack.c.l.b16 %v271
  %v1252 = vunpack.c.h.b16 %v271
  %v1253 = vunpack.c.l.b16 %v272
  %v1254 = vunpack.c.h.b16 %v272
  %v1255 = vunpack.c.l.b16 %v273
  %v1256 = vunpack.c.h.b16 %v273
  %v1257 = vunpack.c.l.b16 %v274
  %v1258 = vunpack.c.h.b16 %v274
  %v1259 = vunpack.c.l.b16 %v275
  %v1260 = vunpack.c.h.b16 %v275
  %v1261 = vunpack.c.l.b16 %v276
  %v1262 = vunpack.c.h.b16 %v276
  %v1263 = vunpack.c.l.b16 %v277
  %v1264 = vunpack.c.h.b16 %v277
  %v1265 = vunpack.c.l.b16 %v278
  %v1266 = vunpack.c.h.b16 %v278
  %v1267 = vunpack.c.l.b16 %v279
  %v1268 = vunpack.c.h.b16 %v279
  %v1269 = vunpack.c.l.b16 %v280
  %v1270 = vunpack.c.h.b16 %v280
  %v1271 = vunpack.c.l.b16 %v281
  %v1272 = vunpack.c.h.b16 %v281
  %v1273 = vunpack.c.l.b16 %v282
  %v1274 = vunpack.c.h.b16 %v282
  %v1275 = vunpack.c.l.b16 %v283
  %v1276 = vunpack.c.h.b16 %v283
  %v1277 = vunpack.c.l.b16 %v284
  %v1278 = vunpack.c.h.b16 %v284
  %v1279 = vunpack.c.l.b16 %v285
  %v1280 = vunpack.c.h.b16 %v285
  %v1281 = vunpack.c.l.b16 %v286
  %v1282 = vunpack.c.h.b16 %v286
  %v1283 = vunpack.c.l.b16 %v287
  %v1284 = vunpack.c.h.b16 %v287
  %v1285 = vunpack.c.l.b16 %v288
  %v1286 = vunpack.c.h.b16 %v288
  %v1287 = vunpack.c.l.b16 %v289
  %v1288 = vunpack.c.h.b16 %v289
  %v1289 = vunpack.c.l.b16 %v290
  %v1290 = vunpack.c.h.b16 %v290
  %v1291 = vunpack.c.l.b16 %v291
  %v1292 = vunpack.c.h.b16 %v291
  %v1293 = vunpack.c.l.b16 %v292
  %v1294 = vunpack.c.h.b16 %v292
  %v1295 = vunpack.c.l.b16 %v293
  %v1296 = vunpack.c.h.b16 %v293
  %v1297 = vunpack.c.l.b16 %v294
  %v1298 = vunpack.c.h.b16 %v294
  %v1299 = vunpack.c.l.b16 %v295
  %v1300 = vunpack.c.h.b16 %v295
  %v1301 = vunpack.c.l.b16 %v296
  %v1302 = vunpack.c.h.b16 %v296
  %v1303 = vunpack.c.l.b16 %v297
  %v1304 = vunpack.c.h.b16 %v297
  %v1305 = vunpack.c.l.b16 %v298
  %v1306 = vunpack.c.h.b16 %v298
  %v1307 = vunpack.c.l.b16 %v299
  %v1308 = vunpack.c.h.b16 %v299
  %v1309 = vunpack.c.l.b16 %v300
  %v1310 = vunpack.c.h.b16 %v300
  %v1311 = vunpack.c.l.b16 %v301
  %v1312 = vunpack.c.h.b16 %v301
  %v1313 = vunpack.c.l.b16 %v302
  %v1314 = vunpack.c.h.b16 %v302
  %v1315 = vunpack.c.l.b16 %v303
  %v1316 = vunpack.c.h.b16 %v303
  %v1317 = vunpack.c.l.b16 %v304
  %v1318 = vunpack.c.h.b16 %v304
  %v1319 = vunpack.c.l.b16 %v305
  %v1320 = vunpack.c.h.b16 %v305
  %v1321 = vunpack.c.l.b16 %v306
  %v1322 = vunpack.c.h.b16 %v306
  %v1323 = vunpack.c.l.b16 %v307
  %v1324 = vunpack.c.h.b16 %v307
  %v1325 = vunpack.c.l.b16 %v308
  %v1326 = vunpack.c.h.b16 %v308
  %v1327 = vunpack.c.l.b16 %v309
  %v1328 = vunpack.c.h.b16 %v309
  %v1329 = vunpack.c.l.b16 %v310
  %v1330 = vunpack.c.h.b16 %v310
  %v1331 = vpack.c.b16 %v757, %v755
  %v1332 = vpack.c.b16 %v758, %v756
  %v1333 = vpack.c.b16 %v761, %v759
  %v1334 = vpack.c.b16 %v762, %v760
  %v1335 = vpack.c.b16 %v765, %v763
  %v1336 = vpack.c.b16 %v766, %v764
  %v1337 = vpack.c.b16 %v769, %v767
  %v1338 = vpack.c.b16 %v770, %v768
  %v1339 = vpack.c.b16 %v773, %v771
  %v1340 = vpack.c.b16 %v774, %v772
  %v1341 = vpack.c.b16 %v777, %v775
  %v1342 = vpack.c.b16 %v778, %v776
  %v1343 = vpack.c.b16 %v781, %v779
  %v1344 = vpack.c.b16 %v782, %v780
  %v1345 = vpack.c.b16 %v785, %v783
  %v1346 = vpack.c.b16 %v786, %v784
  %v1347 = vpack.c.b16 %v789, %v787
  %v1348 = vpack.c.b16 %v790, %v788
  %v1349 = vpack.c.b16 %v793, %v791
  %v1350 = vpack.c.b16 %v794, %v792
  %v1351 = vpack.c.b16 %v797, %v795
  %v1352 = vpack.c.b16 %v798, %v796
  %v1353 = vpack.c.b16 %v801, %v799
  %v1354 = vpack.c.b16 %v802, %v800
  %v1355 = vpack.c.b16 %v805, %v803
  %v1356 = vpack.c.b16 %v806, %v804
  %v1357 = vpack.c.b16 %v809, %v807
  %v1358 = vpack.c.b16 %v810, %v808
  %v1359 = vpack.c.b16 %v813, %v811
  %v1360 = vpack.c.b16 %v814, %v812
  %v1361 = vpack.c.b16 %v817, %v815
  %v1362 = vpack.c.b16 %v818, %v816
  %v1363 = vpack.c.b16 %v821, %v819
  %v1364 = vpack.c.b16 %v822, %v820
  %v1365 = vpack.c.b16 %v825, %v823
  %v1366 = vpack.c.b16 %v826, %v824
  %v1367 = vpack.c.b16 %v829, %v827
  %v1368 = vpack.c.b16 %v830, %v828
  %v1369 = vpack.c.b16 %v833, %v831
  %v1370 = vpack.c.b16 %v834, %v832
  %v1371 = vpack.c.b16 %v837, %v835
  %v1372 = vpack.c.b16 %v838, %v836
  %v1373 = vpack.c.b16 %v841, %v839
  %v1374 = vpack.c.b16 %v842, %v840
  %v1375 = vpack.c.b16 %v845, %v843
  %v1376 = vpack.c.b16 %v846, %v844
  %v1377 = vpack.c.b16 %v849, %v847
  %v1378 = vpack.c.b16 %v850, %v848
  %v1379 = vpack.c.b16 %v853, %v851
  %v1380 = vpack.c.b16 %v854, %v852
  %v1381 = vpack.c.b16 %v857, %v855
  %v1382 = vpack.c.b16 %v858, %v856
  %v1383 = vpack.c.b16 %v861, %v859
  %v1384 = vpack.c.b16 %v862, %v860
  %v1385 = vpack.c.b16 %v865, %v863
  %v1386 = vpack.c.b16 %v866, %v864
  %v1387 = vpack.c.b16 %v869, %v867
  %v1388 = vpack.c.b16 %v870, %v868
  %v1389 = vpack.c.b16 %v873, %v871
  %v1390 = vpack.c.b16 %v874, %v872
  %v1391 = vpack.c.b16 %v877, %v875
  %v1392 = vpack.c.b16 %v878, %v876
  %v1393 = vpack.c.b16 %v881, %v879
  %v1394 = vpack.c.b16 %v882, %v880
  %v1395 = vpack.c.b16 %v885, %v883
  %v1396 = vpack.c.b16 %v886, %v884
  %v1397 = vpack.c.b16 %v889, %v887
  %v1398 = vpack.c.b16 %v890, %v888
  %v1399 = vpack.c.b16 %v893, %v891
  %v1400 = vpack.c.b16 %v894, %v892
  %v1401 = vpack.c.b16 %v897, %v895
  %v1402 = vpack.c.b16 %v898, %v896
  %v1403 = vpack.c.b16 %v901, %v899
  %v1404 = vpack.c.b16 %v902, %v900
  %v1405 = vpack.c.b16 %v905, %v903
  %v1406 = vpack.c.b16 %v906, %v904
  %v1407 = vpack.c.b16 %v909, %v907
  %v1408 = vpack.c.b16 %v910, %v908
  %v1409 = vpack.c.b16 %v913, %v911
  %v1410 = vpack.c.b16 %v914, %v912
  %v1411 = vpack.c.b16 %v917, %v915
  %v1412 = vpack.c.b16 %v918, %v916
  %v1413 = vpack.c.b16 %v921, %v919
  %v1414 = vpack.c.b16 %v922, %v920
  %v1415 = vpack.c.b16 %v925, %v923
  %v1416 = vpack.c.b16 %v926, %v924
  %v1417 = vpack.c.b16 %v929, %v927
  %v1418 = vpack.c.b16 %v930, %v928
  %v1419 = vpack.c.b16 %v933, %v931
  %v1420 = vpack.c.b16 %v934, %v932
  %v1421 = vpack.c.b16 %v937, %v935
  %v1422 = vpack.c.b16 %v938, %v936
  %v1423 = vpack.c.b16 %v941, %v939
  %v1424 = vpack.c.b16 %v942, %v940
  %v1425 = vpack.c.b16 %v945, %v943
  %v1426 = vpack.c.b16 %v946, %v944
  %v1427 = vpack.c.b16 %v949, %v947
  %v1428 = vpack.c.b16 %v950, %v948
  %v1429 = vpack.c.b16 %v953, %v951
  %v1430 = vpack.c.b16 %v954, %v952
  %v1431 = vpack.c.b16 %v957, %v955
  %v1432 = vpack.c.b16 %v958, %v956
  %v1433 = vpack.c.b16 %v961, %v959
  %v1434 = vpack.c.b16 %v962, %v960
  %v1435 = vpack.c.b16 %v965, %v963
  %v1436 = vpack.c.b16 %v966, %v964
  %v1437 = vpack.c.b16 %v969, %v967
  %v1438 = vpack.c.b16 %v970, %v968
  %v1439 = vpack.c.b16 %v973, %v971
  %v1440 = vpack.c.b16 %v974, %v972
  %v1441 = vpack.c.b16 %v977, %v975
  %v1442 = vpack.c.b16 %v978, %v976
  %v1443 = vpack.c.b16 %v981, %v979
  %v1444 = vpack.c.b16 %v982, %v980
  %v1445 = vpack.c.b16 %v985, %v983
  %v1446 = vpack.c.b16 %v986, %v984
  %v1447 = vpack.c.b16 %v989, %v987
  %v1448 = vpack.c.b16 %v990, %v988
  %v1449 = vpack.c.b16 %v993, %v991
  %v1450 = vpack.c.b16 %v994, %v992
  %v1451 = vpack.c.b16 %v997, %v995
  %v1452 = vpack.c.b16 %v998, %v996
  %v1453 = vpack.c.b16 %v1001, %v999
  %v1454 = vpack.c.b16 %v1002, %v1000
  %v1455 = vpack.c.b16 %v1005, %v1003
  %v1456 = vpack.c.b16 %v1006, %v1004
  %v1457 = vpack.c.b16 %v1009, %v1007
  %v1458 = vpack.c.b16 %v1010, %v1008
  %v1459 = vpack.c.b16 %v1013, %v1011
  %v1460 = vpack.c.b16 %v1014, %v1012
  %v1461 = vpack.c.b16 %v1017, %v1015
  %v1462 = vpack.c.b16 %v1018, %v1016
  %v1463 = vpack.c.b16 %v1021, %v1019
  %v1464 = vpack.c.b16 %v1022, %v1020
  %v1465 = vpack.c.b16 %v1025, %v1023
  %v1466 = vpack.c.b16 %v1026, %v1024
  %v1467 = vpack.c.b16 %v1029, %v1027
  %v1468 = vpack.c.b16 %v1030, %v1028
  %v1469 = vpack.c.b16 %v1033, %v1031
  %v1470 = vpack.c.b16 %v1034, %v1032
  %v1471 = vpack.c.b16 %v1037, %v1035
  %v1472 = vpack.c.b16 %v1038, %v1036
  %v1473 = vpack.c.b16 %v1041, %v1039
  %v1474 = vpack.c.b16 %v1042, %v1040
  %v1475 = vpack.c.b16 %v1045, %v1043
  %v1476 = vpack.c.b16 %v1046, %v1044
  %v1477 = vpack.c.b16 %v1049, %v1047
  %v1478 = vpack.c.b16 %v1050, %v1048
  %v1479 = vpack.c.b16 %v1053, %v1051
  %v1480 = vpack.c.b16 %v1054, %v1052
  %v1481 = vpack.c.b16 %v1057, %v1055
  %v1482 = vpack.c.b16 %v1058, %v1056
  %v1483 = vpack.c.b16 %v1061, %v1059
  %v1484 = vpack.c.b16 %v1062, %v1060
  %v1485 = vpack.c.b16 %v1065, %v1063
  %v1486 = vpack.c.b16 %v1066, %v1064
  %v1487 = vpack.c.b16 %v1069, %v1067
  %v1488 = vpack.c.b16 %v1070, %v1068
  %v1489 = vpack.c.b16 %v1073, %v1071
  %v1490 = vpack.c.b16 %v1074, %v1072
  %v1491 = vpack.c.b16 %v1077, %v1075
  %v1492 = vpack.c.b16 %v1078, %v1076
  %v1493 = vpack.c.b16 %v1081, %v1079
  %v1494 = vpack.c.b16 %v1082, %v1080
  %v1495 = vpack.c.b16 %v1085, %v1083
  %v1496 = vpack.c.b16 %v1086, %v1084
  %v1497 = vpack.c.b16 %v1089, %v1087
  %v1498 = vpack.c.b16 %v1090, %v1088
  %v1499 = vpack.c.b16 %v1093, %v1091
  %v1500 = vpack.c.b16 %v1094, %v1092
  %v1501 = vpack.c.b16 %v1097, %v1095
  %v1502 = vpack.c.b16 %v1098, %v1096
  %v1503 = vpack.c.b16 %v1101, %v1099
  %v1504 = vpack.c.b16 %v1102, %v1100
  %v1505 = vpack.c.b16 %v1105, %v1103
  %v1506 = vpack.c.b16 %v1106, %v1104
  %v1507 = vpack.c.b16 %v1109, %v1107
  %v1508 = vpack.c.b16 %v1110, %v1108
  %v1509 = vpack.c.b16 %v1113, %v1111
  %v1510 = vpack.c.b16 %v1114, %v1112
  %v1511 = vpack.c.b16 %v1117, %v1115
  %v1512 = vpack.c.b16 %v1118, %v1116
  %v1513 = vpack.c.b16 %v1121, %v1119
  %v1514 = vpack.c.b16 %v1122, %v1120
  %v1515 = vpack.c.b16 %v1125, %v1123
  %v1516 = vpack.c.b16 %v1126, %v1124
  %v1517 = vpack.c.b16 %v1129, %v1127
  %v1518 = vpack.c.b16 %v1130, %v1128
  %v1519 = vpack.c.b16 %v1133, %v1131
  %v1520 = vpack.c.b16 %v1134, %v1132
  %v1521 = vpack.c.b16 %v1137, %v1135
  %v1522 = vpack.c.b16 %v1138, %v1136
  %v1523 = vpack.c.b16 %v1141, %v1139
  %v1524 = vpack.c.b16 %v1142, %v1140
  %v1525 = vpack.c.b16 %v1145, %v1143
  %v1526 = vpack.c.b16 %v1146, %v1144
  %v1527 = vpack.c.b16 %v1149, %v1147
  %v1528 = vpack.c.b16 %v1150, %v1148
  %v1529 = vpack.c.b16 %v1153, %v1151
  %v1530 = vpack.c.b16 %v1154, %v1152
  %v1531 = vpack.c.b16 %v1157, %v1155
  %v1532 = vpack.c.b16 %v1158, %v1156
  %v1533 = vpack.c.b16 %v1161, %v1159
  %v1534 = vpack.c.b16 %v1162, %v1160
  %v1535 = vpack.c.b16 %v1165, %v1163
  %v1536 = vpack.c.b16 %v1166, %v1164
  %v1537 = vpack.c.b16 %v1169, %v1167
  %v1538 = vpack.c.b16 %v1170, %v1168
  %v1539 = vpack.c.b16 %v1173, %v1171
  %v1540 = vpack.c.b16 %v1174, %v1172
  %v1541 = vpack.c.b16 %v1177, %v1175
  %v1542 = vpack.c.b16 %v1178, %v1176
  %v1543 = vpack.c.b16 %v1181, %v1179
  %v1544 = vpack.c.b16 %v1182, %v1180
  %v1545 = vpack.c.b16 %v1185, %v1183
  %v1546 = vpack.c.b16 %v1186, %v1184
  %v1547 = vpack.c.b16 %v1189, %v1187
  %v1548 = vpack.c.b16 %v1190, %v1188
  %v1549 = vpack.c.b16 %v1193, %v1191
  %v1550 = vpack.c.b16 %v1194, %v1192
  %v1551 = vpack.c.b16 %v1197, %v1195
  %v1552 = vpack.c.b16 %v1198, %v1196
  %v1553 = vpack.c.b16 %v1201, %v1199
  %v1554 = vpack.c.b16 %v1202, %v1200
  %v1555 = vpack.c.b16 %v1205, %v1203
  %v1556 = vpack.c.b16 %v1206, %v1204
  %v1557 = vpack.c.b16 %v1209, %v1207
  %v1558 = vpack.c.b16 %v1210, %v1208
  %v1559 = vpack.c.b16 %v1213, %v1211
  %v1560 = vpack.c.b16 %v1214, %v1212
  %v1561 = vpack.c.b16 %v1217, %v1215
  %v1562 = vpack.c.b16 %v1218, %v1216
  %v1563 = vpack.c.b16 %v1221, %v1219
  %v1564 = vpack.c.b16 %v1222, %v1220
  %v1565 = vpack.c.b16 %v1225, %v1223
  %v1566 = vpack.c.b16 %v1226, %v1224
  %v1567 = vpack.c.b16 %v1229, %v1227
  %v1568 = vpack.c.b16 %v1230, %v1228
  %v1569 = vpack.c.b16 %v1233, %v1231
  %v1570 = vpack.c.b16 %v1234, %v1232
  %v1571 = vpack.c.b16 %v1237, %v1235
  %v1572 = vpack.c.b16 %v1238, %v1236
  %v1573 = vpack.c.b16 %v1241, %v1239
  %v1574 = vpack.c.b16 %v1242, %v1240
  %v1575 = vpack.c.b16 %v1245, %v1243
  %v1576 = vpack.c.b16 %v1246, %v1244
  %v1577 = vpack.c.b16 %v1249, %v1247
  %v1578 = vpack.c.b16 %v1250, %v1248
  %v1579 = vpack.c.b16 %v1253, %v1251
  %v1580 = vpack.c.b16 %v1254, %v1252
  %v1581 = vpack.c.b16 %v1257, %v1255
  %v1582 = vpack.c.b16 %v1258, %v1256
  %v1583 = vpack.c.b16 %v1261, %v1259
  %v1584 = vpack.c.b16 %v1262, %v1260
  %v1585 = vpack.c.b16 %v1265, %v1263
  %v1586 = vpack.c.b16 %v1266, %v1264
  %v1587 = vpack.c.b16 %v1269, %v1267
  %v1588 = vpack.c.b16 %v1270, %v1268
  %v1589 = vpack.c.b16 %v1273, %v1271
  %v1590 = vpack.c.b16 %v1274, %v1272
  %v1591 = vpack.c.b16 %v1277, %v1275
  %v1592 = vpack.c.b16 %v1278, %v1276
  %v1593 = vpack.c.b16 %v1281, %v1279
  %v1594 = vpack.c.b16 %v1282, %v1280
  %v1595 = vpack.c.b16 %v1285, %v1283
  %v1596 = vpack.c.b16 %v1286, %v1284
  %v1597 = vpack.c.b16 %v1289, %v1287
  %v1598 = vpack.c.b16 %v1290, %v1288
  %v1599 = vpack.c.b16 %v1293, %v1291
  %v1600 = vpack.c.b16 %v1294, %v1292
  %v1601 = vpack.c.b16 %v1297, %v1295
  %v1602 = vpack.c.b16 %v1298, %v1296
  %v1603 = vpack.c.b16 %v1301, %v1299
  %v1604 = vpack.c.b16 %v1302, %v1300
  %v1605 = vpack.c.b16 %v1305, %v1303
  %v1606 = vpack.c.b16 %v1306, %v1304
  %v1607 = vpack.c.b16 %v1309, %v1307
  %v1608 = vpack.c.b16 %v1310, %v1308
  %v1609 = vpack.c.b16 %v1313, %v1311
  %v1610 = vpack.c.b16 %v1314, %v1312
  %v1611 = vpack.c.b16 %v1317, %v1315
  %v1612 = vpack.c.b16 %v1318, %v1316
  %v1613 = vpack.c.b16 %v1321, %v1319
  %v1614 = vpack.c.b16 %v1322, %v1320
  %v1615 = vpack.c.b16 %v1325, %v1323
  %v1616 = vpack.c.b16 %v1326, %v1324
  %v1617 = vpack.c.b16 %v1329, %v1327
  %v1618 = vpack.c.b16 %v1330, %v1328
  %1907 = vmatprep.subr.bf16.mxu0 %v1332
  %1908 = vmatpush1.bf16.msra.mxu0 %v1331
  %1909 = vmatprep.subr.bf16.mxu0 %v1334
  %1910 = vmatpush1.bf16.msra.mxu0 %v1333
  %1911 = vmatprep.subr.bf16.mxu0 %v1336
  %1912 = vmatpush1.bf16.msra.mxu0 %v1335
  %1913 = vmatprep.subr.bf16.mxu0 %v1338
  %1914 = vmatpush1.bf16.msra.mxu0 %v1337
  %1915 = vmatprep.subr.bf16.mxu0 %v1340
  %1916 = vmatpush1.bf16.msra.mxu0 %v1339
  %1917 = vmatprep.subr.bf16.mxu0 %v1342
  %1918 = vmatpush1.bf16.msra.mxu0 %v1341
  %1919 = vmatprep.subr.bf16.mxu0 %v1344
  %1920 = vmatpush1.bf16.msra.mxu0 %v1343
  %1921 = vmatprep.subr.bf16.mxu0 %v1346
  %1922 = vmatpush1.bf16.msra.mxu0 %v1345
  %1923 = vmatprep.subr.bf16.mxu0 %v1348
  %1924 = vmatpush1.bf16.msra.mxu0 %v1347
  %1925 = vmatprep.subr.bf16.mxu0 %v1350
  %1926 = vmatpush1.bf16.msra.mxu0 %v1349
  %1927 = vmatprep.subr.bf16.mxu0 %v1352
  %1928 = vmatpush1.bf16.msra.mxu0 %v1351
  %1929 = vmatprep.subr.bf16.mxu0 %v1354
  %1930 = vmatpush1.bf16.msra.mxu0 %v1353
  %1931 = vmatprep.subr.bf16.mxu0 %v1356
  %1932 = vmatpush1.bf16.msra.mxu0 %v1355
  %1933 = vmatprep.subr.bf16.mxu0 %v1358
  %1934 = vmatpush1.bf16.msra.mxu0 %v1357
  %1935 = vmatprep.subr.bf16.mxu0 %v1360
  %1936 = vmatpush1.bf16.msra.mxu0 %v1359
  %1937 = vmatprep.subr.bf16.mxu0 %v1362
  %1938 = vmatpush1.bf16.msra.mxu0 %v1361
  %1939 = vmatprep.mubr.bf16.mxu0 %v366
  %1940 = vmatmul.mubr.bf16.gmra.mrb[0].mxu0 %v352
  %v1941 = vpop.f32.mrb[0].mxu0
  %v1942 = vadd.f32 %v319, %v1941
  %v1943 = vpop.f32.mrb[0].mxu0
  %v1944 = vadd.f32 %v323, %v1943
  %v1945 = vpop.f32.mrb[0].mxu0
  %v1946 = vpop.f32.mrb[0].mxu0
  %1947 = vdwg.mxu0
  %1948 = vmatprep.subr.bf16.mxu0 %v1364
  %1949 = vmatpush1.bf16.msra.mxu0 %v1363
  %1950 = vmatprep.subr.bf16.mxu0 %v1366
  %1951 = vmatpush1.bf16.msra.mxu0 %v1365
  %1952 = vmatprep.subr.bf16.mxu0 %v1368
  %1953 = vmatpush1.bf16.msra.mxu0 %v1367
  %1954 = vmatprep.subr.bf16.mxu0 %v1370
  %1955 = vmatpush1.bf16.msra.mxu0 %v1369
  %1956 = vmatprep.subr.bf16.mxu0 %v1372
  %1957 = vmatpush1.bf16.msra.mxu0 %v1371
  %1958 = vmatprep.subr.bf16.mxu0 %v1374
  %1959 = vmatpush1.bf16.msra.mxu0 %v1373
  %1960 = vmatprep.subr.bf16.mxu0 %v1376
  %1961 = vmatpush1.bf16.msra.mxu0 %v1375
  %1962 = vmatprep.subr.bf16.mxu0 %v1378
  %1963 = vmatpush1.bf16.msra.mxu0 %v1377
  %1964 = vmatprep.subr.bf16.mxu0 %v1380
  %1965 = vmatpush1.bf16.msra.mxu0 %v1379
  %1966 = vmatprep.subr.bf16.mxu0 %v1382
  %1967 = vmatpush1.bf16.msra.mxu0 %v1381
  %1968 = vmatprep.subr.bf16.mxu0 %v1384
  %1969 = vmatpush1.bf16.msra.mxu0 %v1383
  %1970 = vmatprep.subr.bf16.mxu0 %v1386
  %1971 = vmatpush1.bf16.msra.mxu0 %v1385
  %1972 = vmatprep.subr.bf16.mxu0 %v1388
  %1973 = vmatpush1.bf16.msra.mxu0 %v1387
  %1974 = vmatprep.subr.bf16.mxu0 %v1390
  %1975 = vmatpush1.bf16.msra.mxu0 %v1389
  %1976 = vmatprep.subr.bf16.mxu0 %v1392
  %1977 = vmatpush1.bf16.msra.mxu0 %v1391
  %1978 = vmatprep.subr.bf16.mxu0 %v1394
  %1979 = vmatpush1.bf16.msra.mxu0 %v1393
  %1980 = vmatprep.mubr.bf16.mxu0 %v376
  %1981 = vmatmul.mubr.bf16.gmra.mrb[0].mxu0 %v374
  %v1982 = vpop.f32.mrb[0].mxu0
  %v1983 = vadd.f32 %v1942, %v1982
  %v1984 = vpop.f32.mrb[0].mxu0
  %v1985 = vadd.f32 %v1944, %v1984
  %v1986 = vpop.f32.mrb[0].mxu0
  %v1987 = vpop.f32.mrb[0].mxu0
  %1988 = vdwg.mxu0
  %1989 = vmatprep.subr.bf16.mxu0 %v1396
  %1990 = vmatpush1.bf16.msra.mxu0 %v1395
  %1991 = vmatprep.subr.bf16.mxu0 %v1398
  %1992 = vmatpush1.bf16.msra.mxu0 %v1397
  %1993 = vmatprep.subr.bf16.mxu0 %v1400
  %1994 = vmatpush1.bf16.msra.mxu0 %v1399
  %1995 = vmatprep.subr.bf16.mxu0 %v1402
  %1996 = vmatpush1.bf16.msra.mxu0 %v1401
  %1997 = vmatprep.subr.bf16.mxu0 %v1404
  %1998 = vmatpush1.bf16.msra.mxu0 %v1403
  %1999 = vmatprep.subr.bf16.mxu0 %v1406
  %2000 = vmatpush1.bf16.msra.mxu0 %v1405
  %2001 = vmatprep.subr.bf16.mxu0 %v1408
  %2002 = vmatpush1.bf16.msra.mxu0 %v1407
  %2003 = vmatprep.subr.bf16.mxu0 %v1410
  %2004 = vmatpush1.bf16.msra.mxu0 %v1409
  %2005 = vmatprep.subr.bf16.mxu0 %v1412
  %2006 = vmatpush1.bf16.msra.mxu0 %v1411
  %2007 = vmatprep.subr.bf16.mxu0 %v1414
  %2008 = vmatpush1.bf16.msra.mxu0 %v1413
  %2009 = vmatprep.subr.bf16.mxu0 %v1416
  %2010 = vmatpush1.bf16.msra.mxu0 %v1415
  %2011 = vmatprep.subr.bf16.mxu0 %v1418
  %2012 = vmatpush1.bf16.msra.mxu0 %v1417
  %2013 = vmatprep.subr.bf16.mxu0 %v1420
  %2014 = vmatpush1.bf16.msra.mxu0 %v1419
  %2015 = vmatprep.subr.bf16.mxu0 %v1422
  %2016 = vmatpush1.bf16.msra.mxu0 %v1421
  %2017 = vmatprep.subr.bf16.mxu0 %v1424
  %2018 = vmatpush1.bf16.msra.mxu0 %v1423
  %2019 = vmatprep.subr.bf16.mxu0 %v1426
  %2020 = vmatpush1.bf16.msra.mxu0 %v1425
  %2021 = vmatprep.mubr.bf16.mxu0 %v373
  %2022 = vmatmul.mubr.bf16.gmra.mrb[0].mxu0 %v359
  %v2023 = vpop.f32.mrb[0].mxu0
  %v2024 = vadd.f32 %v1983, %v2023
  %v2025 = vpop.f32.mrb[0].mxu0
  %v2026 = vadd.f32 %v1985, %v2025
  %v2027 = vpop.f32.mrb[0].mxu0
  %v2028 = vpop.f32.mrb[0].mxu0
  %2029 = vdwg.mxu0
  %2030 = vmatprep.subr.bf16.mxu0 %v1428
  %2031 = vmatpush1.bf16.msra.mxu0 %v1427
  %2032 = vmatprep.subr.bf16.mxu0 %v1430
  %2033 = vmatpush1.bf16.msra.mxu0 %v1429
  %2034 = vmatprep.subr.bf16.mxu0 %v1432
  %2035 = vmatpush1.bf16.msra.mxu0 %v1431
  %2036 = vmatprep.subr.bf16.mxu0 %v1434
  %2037 = vmatpush1.bf16.msra.mxu0 %v1433
  %2038 = vmatprep.subr.bf16.mxu0 %v1436
  %2039 = vmatpush1.bf16.msra.mxu0 %v1435
  %2040 = vmatprep.subr.bf16.mxu0 %v1438
  %2041 = vmatpush1.bf16.msra.mxu0 %v1437
  %2042 = vmatprep.subr.bf16.mxu0 %v1440
  %2043 = vmatpush1.bf16.msra.mxu0 %v1439
  %2044 = vmatprep.subr.bf16.mxu0 %v1442
  %2045 = vmatpush1.bf16.msra.mxu0 %v1441
  %2046 = vmatprep.subr.bf16.mxu0 %v1444
  %2047 = vmatpush1.bf16.msra.mxu0 %v1443
  %2048 = vmatprep.subr.bf16.mxu0 %v1446
  %2049 = vmatpush1.bf16.msra.mxu0 %v1445
  %2050 = vmatprep.subr.bf16.mxu0 %v1448
  %2051 = vmatpush1.bf16.msra.mxu0 %v1447
  %2052 = vmatprep.subr.bf16.mxu0 %v1450
  %2053 = vmatpush1.bf16.msra.mxu0 %v1449
  %2054 = vmatprep.subr.bf16.mxu0 %v1452
  %2055 = vmatpush1.bf16.msra.mxu0 %v1451
  %2056 = vmatprep.subr.bf16.mxu0 %v1454
  %2057 = vmatpush1.bf16.msra.mxu0 %v1453
  %2058 = vmatprep.subr.bf16.mxu0 %v1456
  %2059 = vmatpush1.bf16.msra.mxu0 %v1455
  %2060 = vmatprep.subr.bf16.mxu0 %v1458
  %2061 = vmatpush1.bf16.msra.mxu0 %v1457
  %2062 = vmatprep.mubr.bf16.mxu0 %v377
  %2063 = vmatmul.mubr.bf16.gmra.mrb[0].mxu0 %v375
  %v2064 = vpop.f32.mrb[0].mxu0
  %v2065 = vadd.f32 %v2024, %v2064
  %v2066 = vpop.f32.mrb[0].mxu0
  %v2067 = vadd.f32 %v2026, %v2066
  %v2068 = vpop.f32.mrb[0].mxu0
  %v2069 = vpop.f32.mrb[0].mxu0
  %2070 = vdwg.mxu0
  %2071 = vmatprep.subr.bf16.mxu0 %v1460
  %2072 = vmatpush1.bf16.msra.mxu0 %v1459
  %2073 = vmatprep.subr.bf16.mxu0 %v1462
  %2074 = vmatpush1.bf16.msra.mxu0 %v1461
  %2075 = vmatprep.subr.bf16.mxu0 %v1464
  %2076 = vmatpush1.bf16.msra.mxu0 %v1463
  %2077 = vmatprep.subr.bf16.mxu0 %v1466
  %2078 = vmatpush1.bf16.msra.mxu0 %v1465
  %2079 = vmatprep.subr.bf16.mxu0 %v1468
  %2080 = vmatpush1.bf16.msra.mxu0 %v1467
  %2081 = vmatprep.subr.bf16.mxu0 %v1470
  %2082 = vmatpush1.bf16.msra.mxu0 %v1469
  %2083 = vmatprep.subr.bf16.mxu0 %v1472
  %2084 = vmatpush1.bf16.msra.mxu0 %v1471
  %2085 = vmatprep.subr.bf16.mxu0 %v1474
  %2086 = vmatpush1.bf16.msra.mxu0 %v1473
  %2087 = vmatprep.subr.bf16.mxu0 %v1476
  %2088 = vmatpush1.bf16.msra.mxu0 %v1475
  %2089 = vmatprep.subr.bf16.mxu0 %v1478
  %2090 = vmatpush1.bf16.msra.mxu0 %v1477
  %2091 = vmatprep.subr.bf16.mxu0 %v1480
  %2092 = vmatpush1.bf16.msra.mxu0 %v1479
  %2093 = vmatprep.subr.bf16.mxu0 %v1482
  %2094 = vmatpush1.bf16.msra.mxu0 %v1481
  %2095 = vmatprep.subr.bf16.mxu0 %v1484
  %2096 = vmatpush1.bf16.msra.mxu0 %v1483
  %2097 = vmatprep.subr.bf16.mxu0 %v1486
  %2098 = vmatpush1.bf16.msra.mxu0 %v1485
  %2099 = vmatprep.subr.bf16.mxu0 %v1488
  %2100 = vmatpush1.bf16.msra.mxu0 %v1487
  %2101 = vmatprep.subr.bf16.mxu0 %v1490
  %2102 = vmatpush1.bf16.msra.mxu0 %v1489
  %2103 = vmatprep.mubr.bf16.mxu0 %v415
  %2104 = vmatmul.mubr.bf16.gmra.mrb[0].mxu0 %v401
  %v2105 = vpop.f32.mrb[0].mxu0
  %v2106 = vadd.f32 %v2065, %v2105
  %v2107 = vpop.f32.mrb[0].mxu0
  %v2108 = vadd.f32 %v2067, %v2107
  %v2109 = vpop.f32.mrb[0].mxu0
  %v2110 = vpop.f32.mrb[0].mxu0
  %2111 = vdwg.mxu0
  %2112 = vmatprep.subr.bf16.mxu0 %v1492
  %2113 = vmatpush1.bf16.msra.mxu0 %v1491
  %2114 = vmatprep.subr.bf16.mxu0 %v1494
  %2115 = vmatpush1.bf16.msra.mxu0 %v1493
  %2116 = vmatprep.subr.bf16.mxu0 %v1496
  %2117 = vmatpush1.bf16.msra.mxu0 %v1495
  %2118 = vmatprep.subr.bf16.mxu0 %v1498
  %2119 = vmatpush1.bf16.msra.mxu0 %v1497
  %2120 = vmatprep.subr.bf16.mxu0 %v1500
  %2121 = vmatpush1.bf16.msra.mxu0 %v1499
  %2122 = vmatprep.subr.bf16.mxu0 %v1502
  %2123 = vmatpush1.bf16.msra.mxu0 %v1501
  %2124 = vmatprep.subr.bf16.mxu0 %v1504
  %2125 = vmatpush1.bf16.msra.mxu0 %v1503
  %2126 = vmatprep.subr.bf16.mxu0 %v1506
  %2127 = vmatpush1.bf16.msra.mxu0 %v1505
  %2128 = vmatprep.subr.bf16.mxu0 %v1508
  %2129 = vmatpush1.bf16.msra.mxu0 %v1507
  %2130 = vmatprep.subr.bf16.mxu0 %v1510
  %2131 = vmatpush1.bf16.msra.mxu0 %v1509
  %2132 = vmatprep.subr.bf16.mxu0 %v1512
  %2133 = vmatpush1.bf16.msra.mxu0 %v1511
  %2134 = vmatprep.subr.bf16.mxu0 %v1514
  %2135 = vmatpush1.bf16.msra.mxu0 %v1513
  %2136 = vmatprep.subr.bf16.mxu0 %v1516
  %2137 = vmatpush1.bf16.msra.mxu0 %v1515
  %2138 = vmatprep.subr.bf16.mxu0 %v1518
  %2139 = vmatpush1.bf16.msra.mxu0 %v1517
  %2140 = vmatprep.subr.bf16.mxu0 %v1520
  %2141 = vmatpush1.bf16.msra.mxu0 %v1519
  %2142 = vmatprep.subr.bf16.mxu0 %v1522
  %2143 = vmatpush1.bf16.msra.mxu0 %v1521
  %2144 = vmatprep.mubr.bf16.mxu0 %v425
  %2145 = vmatmul.mubr.bf16.gmra.mrb[0].mxu0 %v423
  %v2146 = vpop.f32.mrb[0].mxu0
  %v2147 = vadd.f32 %v2106, %v2146
  %v2148 = vpop.f32.mrb[0].mxu0
  %v2149 = vadd.f32 %v2108, %v2148
  %v2150 = vpop.f32.mrb[0].mxu0
  %v2151 = vpop.f32.mrb[0].mxu0
  %2152 = vdwg.mxu0
  %2153 = vmatprep.subr.bf16.mxu0 %v1524
  %2154 = vmatpush1.bf16.msra.mxu0 %v1523
  %2155 = vmatprep.subr.bf16.mxu0 %v1526
  %2156 = vmatpush1.bf16.msra.mxu0 %v1525
  %2157 = vmatprep.subr.bf16.mxu0 %v1528
  %2158 = vmatpush1.bf16.msra.mxu0 %v1527
  %2159 = vmatprep.subr.bf16.mxu0 %v1530
  %2160 = vmatpush1.bf16.msra.mxu0 %v1529
  %2161 = vmatprep.subr.bf16.mxu0 %v1532
  %2162 = vmatpush1.bf16.msra.mxu0 %v1531
  %2163 = vmatprep.subr.bf16.mxu0 %v1534
  %2164 = vmatpush1.bf16.msra.mxu0 %v1533
  %2165 = vmatprep.subr.bf16.mxu0 %v1536
  %2166 = vmatpush1.bf16.msra.mxu0 %v1535
  %2167 = vmatprep.subr.bf16.mxu0 %v1538
  %2168 = vmatpush1.bf16.msra.mxu0 %v1537
  %2169 = vmatprep.subr.bf16.mxu0 %v1540
  %2170 = vmatpush1.bf16.msra.mxu0 %v1539
  %2171 = vmatprep.subr.bf16.mxu0 %v1542
  %2172 = vmatpush1.bf16.msra.mxu0 %v1541
  %2173 = vmatprep.subr.bf16.mxu0 %v1544
  %2174 = vmatpush1.bf16.msra.mxu0 %v1543
  %2175 = vmatprep.subr.bf16.mxu0 %v1546
  %2176 = vmatpush1.bf16.msra.mxu0 %v1545
  %2177 = vmatprep.subr.bf16.mxu0 %v1548
  %2178 = vmatpush1.bf16.msra.mxu0 %v1547
  %2179 = vmatprep.subr.bf16.mxu0 %v1550
  %2180 = vmatpush1.bf16.msra.mxu0 %v1549
  %2181 = vmatprep.subr.bf16.mxu0 %v1552
  %2182 = vmatpush1.bf16.msra.mxu0 %v1551
  %2183 = vmatprep.subr.bf16.mxu0 %v1554
  %2184 = vmatpush1.bf16.msra.mxu0 %v1553
  %2185 = vmatprep.mubr.bf16.mxu0 %v422
  %2186 = vmatmul.mubr.bf16.gmra.mrb[0].mxu0 %v408
  %v2187 = vpop.f32.mrb[0].mxu0
  %v2188 = vadd.f32 %v2147, %v2187
  %v2189 = vpop.f32.mrb[0].mxu0
  %v2190 = vadd.f32 %v2149, %v2189
  %v2191 = vpop.f32.mrb[0].mxu0
  %v2192 = vpop.f32.mrb[0].mxu0
  %2193 = vdwg.mxu0
  %2194 = vmatprep.subr.bf16.mxu0 %v1556
  %2195 = vmatpush1.bf16.msra.mxu0 %v1555
  %2196 = vmatprep.subr.bf16.mxu0 %v1558
  %2197 = vmatpush1.bf16.msra.mxu0 %v1557
  %2198 = vmatprep.subr.bf16.mxu0 %v1560
  %2199 = vmatpush1.bf16.msra.mxu0 %v1559
  %2200 = vmatprep.subr.bf16.mxu0 %v1562
  %2201 = vmatpush1.bf16.msra.mxu0 %v1561
  %2202 = vmatprep.subr.bf16.mxu0 %v1564
  %2203 = vmatpush1.bf16.msra.mxu0 %v1563
  %2204 = vmatprep.subr.bf16.mxu0 %v1566
  %2205 = vmatpush1.bf16.msra.mxu0 %v1565
  %2206 = vmatprep.subr.bf16.mxu0 %v1568
  %2207 = vmatpush1.bf16.msra.mxu0 %v1567
  %2208 = vmatprep.subr.bf16.mxu0 %v1570
  %2209 = vmatpush1.bf16.msra.mxu0 %v1569
  %2210 = vmatprep.subr.bf16.mxu0 %v1572
  %2211 = vmatpush1.bf16.msra.mxu0 %v1571
  %2212 = vmatprep.subr.bf16.mxu0 %v1574
  %2213 = vmatpush1.bf16.msra.mxu0 %v1573
  %2214 = vmatprep.subr.bf16.mxu0 %v1576
  %2215 = vmatpush1.bf16.msra.mxu0 %v1575
  %2216 = vmatprep.subr.bf16.mxu0 %v1578
  %2217 = vmatpush1.bf16.msra.mxu0 %v1577
  %2218 = vmatprep.subr.bf16.mxu0 %v1580
  %2219 = vmatpush1.bf16.msra.mxu0 %v1579
  %2220 = vmatprep.subr.bf16.mxu0 %v1582
  %2221 = vmatpush1.bf16.msra.mxu0 %v1581
  %2222 = vmatprep.subr.bf16.mxu0 %v1584
  %2223 = vmatpush1.bf16.msra.mxu0 %v1583
  %2224 = vmatprep.subr.bf16.mxu0 %v1586
  %2225 = vmatpush1.bf16.msra.mxu0 %v1585
  %2226 = vmatprep.mubr.bf16.mxu0 %v426
  %2227 = vmatmul.mubr.bf16.gmra.mrb[0].mxu0 %v424
  %v2228 = vpop.f32.mrb[0].mxu0
  %v2229 = vadd.f32 %v2188, %v2228
  %v2230 = vpop.f32.mrb[0].mxu0
  %v2231 = vadd.f32 %v2190, %v2230
  %v2232 = vpop.f32.mrb[0].mxu0
  %v2233 = vpop.f32.mrb[0].mxu0
  %2234 = vdwg.mxu0
  %2235 = vmatprep.subr.bf16.mxu0 %v1588
  %2236 = vmatpush1.bf16.msra.mxu0 %v1587
  %2237 = vmatprep.subr.bf16.mxu0 %v1590
  %2238 = vmatpush1.bf16.msra.mxu0 %v1589
  %2239 = vmatprep.subr.bf16.mxu0 %v1592
  %2240 = vmatpush1.bf16.msra.mxu0 %v1591
  %2241 = vmatprep.subr.bf16.mxu0 %v1594
  %2242 = vmatpush1.bf16.msra.mxu0 %v1593
  %2243 = vmatprep.subr.bf16.mxu0 %v1596
  %2244 = vmatpush1.bf16.msra.mxu0 %v1595
  %2245 = vmatprep.subr.bf16.mxu0 %v1598
  %2246 = vmatpush1.bf16.msra.mxu0 %v1597
  %2247 = vmatprep.subr.bf16.mxu0 %v1600
  %2248 = vmatpush1.bf16.msra.mxu0 %v1599
  %2249 = vmatprep.subr.bf16.mxu0 %v1602
  %2250 = vmatpush1.bf16.msra.mxu0 %v1601
  %2251 = vmatprep.subr.bf16.mxu0 %v1604
  %2252 = vmatpush1.bf16.msra.mxu0 %v1603
  %2253 = vmatprep.subr.bf16.mxu0 %v1606
  %2254 = vmatpush1.bf16.msra.mxu0 %v1605
  %2255 = vmatprep.subr.bf16.mxu0 %v1608
  %2256 = vmatpush1.bf16.msra.mxu0 %v1607
  %2257 = vmatprep.subr.bf16.mxu0 %v1610
  %2258 = vmatpush1.bf16.msra.mxu0 %v1609
  %2259 = vmatprep.subr.bf16.mxu0 %v1612
  %2260 = vmatpush1.bf16.msra.mxu0 %v1611
  %2261 = vmatprep.subr.bf16.mxu0 %v1614
  %2262 = vmatpush1.bf16.msra.mxu0 %v1613
  %2263 = vmatprep.subr.bf16.mxu0 %v1616
  %2264 = vmatpush1.bf16.msra.mxu0 %v1615
  %2265 = vmatprep.subr.bf16.mxu0 %v1618
  %2266 = vmatpush1.bf16.msra.mxu0 %v1617
  %2267 = vmatprep.mubr.bf16.mxu0 %v448
  %2268 = vmatmul.mubr.bf16.gmra.mrb[0].mxu0 %v441
  %v2269 = vpop.f32.mrb[0].mxu0
  %v2270 = vadd.f32 %v2229, %v2269
  %v2271 = vpop.f32.mrb[0].mxu0
  %v2272 = vadd.f32 %v2231, %v2271
  %v2273 = vpop.f32.mrb[0].mxu0
  %v2274 = vpop.f32.mrb[0].mxu0
  %2275 = vdwg.mxu0
  %v2276 = vmax.f32 %v2270, 0.0
  %v2277 = vmax.f32 %v2272, 0.0
  %v2278 = vld [vmem:[%s1] sm:$0xff]
  %v2279 = vld [vmem:[%s1 + $0x8] sm:$0xff]
  %v2280 = vld [vmem:[%s1 + $0x10] sm:$0x3]
  %v2284 = vcombine.high %v2278, %v2278
  %v2286 = vunpack.c.l.s4 1966171168
  %v2287 = vunpack.c.0.s8 %v2286
  %v2288 = vlaneseq
  %v2289 = vshrl.u32 %v2288, 7
  %v2290 = vsub.s32 %v2287, %v2289
  %v2291 = vrot.slane %v2278, %v2290
  %v2293 = vunpack.c.l.s4 1966171168
  %v2294 = vunpack.c.0.s8 %v2293
  %v2295 = vlaneseq
  %v2296 = vshrl.u32 %v2295, 7
  %v2297 = vsub.s32 %v2294, %v2296
  %v2298 = vrot.slane %v2284, %v2297
  %v2299 = vcombine.high %v2291, %v2291
  %v2300 = vcombine.high %v2298, %v2298
  %v2302 = vunpack.c.l.s4 1966171168
  %v2303 = vunpack.c.0.s8 %v2302
  %v2304 = vlaneseq
  %v2305 = vshrl.u32 %v2304, 7
  %v2306 = vsub.s32 %v2303, %v2305
  %v2307 = vrot.slane %v2291, %v2306
  %v2309 = vunpack.c.l.s4 1966171168
  %v2310 = vunpack.c.0.s8 %v2309
  %v2311 = vlaneseq
  %v2312 = vshrl.u32 %v2311, 7
  %v2313 = vsub.s32 %v2310, %v2312
  %v2314 = vrot.slane %v2298, %v2313
  %v2316 = vunpack.c.l.s4 1966171168
  %v2317 = vunpack.c.0.s8 %v2316
  %v2318 = vlaneseq
  %v2319 = vshrl.u32 %v2318, 7
  %v2320 = vsub.s32 %v2317, %v2319
  %v2321 = vrot.slane %v2299, %v2320
  %v2323 = vunpack.c.l.s4 1966171168
  %v2324 = vunpack.c.0.s8 %v2323
  %v2325 = vlaneseq
  %v2326 = vshrl.u32 %v2325, 7
  %v2327 = vsub.s32 %v2324, %v2326
  %v2328 = vrot.slane %v2300, %v2327
  %v2329 = vcombine.high %v2307, %v2307
  %v2330 = vcombine.high %v2314, %v2314
  %v2331 = vcombine.high %v2321, %v2321
  %v2332 = vcombine.high %v2328, %v2328
  %v2333 = vcombine.high %v2279, %v2279
  %v2335 = vunpack.c.l.s4 1966171168
  %v2336 = vunpack.c.0.s8 %v2335
  %v2337 = vlaneseq
  %v2338 = vshrl.u32 %v2337, 7
  %v2339 = vsub.s32 %v2336, %v2338
  %v2340 = vrot.slane %v2279, %v2339
  %v2342 = vunpack.c.l.s4 1966171168
  %v2343 = vunpack.c.0.s8 %v2342
  %v2344 = vlaneseq
  %v2345 = vshrl.u32 %v2344, 7
  %v2346 = vsub.s32 %v2343, %v2345
  %v2347 = vrot.slane %v2333, %v2346
  %v2348 = vcombine.high %v2340, %v2340
  %v2349 = vcombine.high %v2347, %v2347
  %v2351 = vunpack.c.l.s4 1966171168
  %v2352 = vunpack.c.0.s8 %v2351
  %v2353 = vlaneseq
  %v2354 = vshrl.u32 %v2353, 7
  %v2355 = vsub.s32 %v2352, %v2354
  %v2356 = vrot.slane %v2340, %v2355
  %v2358 = vunpack.c.l.s4 1966171168
  %v2359 = vunpack.c.0.s8 %v2358
  %v2360 = vlaneseq
  %v2361 = vshrl.u32 %v2360, 7
  %v2362 = vsub.s32 %v2359, %v2361
  %v2363 = vrot.slane %v2347, %v2362
  %v2365 = vunpack.c.l.s4 1966171168
  %v2366 = vunpack.c.0.s8 %v2365
  %v2367 = vlaneseq
  %v2368 = vshrl.u32 %v2367, 7
  %v2369 = vsub.s32 %v2366, %v2368
  %v2370 = vrot.slane %v2348, %v2369
  %v2372 = vunpack.c.l.s4 1966171168
  %v2373 = vunpack.c.0.s8 %v2372
  %v2374 = vlaneseq
  %v2375 = vshrl.u32 %v2374, 7
  %v2376 = vsub.s32 %v2373, %v2375
  %v2377 = vrot.slane %v2349, %v2376
  %v2378 = vcombine.high %v2356, %v2356
  %v2379 = vcombine.high %v2363, %v2363
  %v2380 = vcombine.high %v2370, %v2370
  %v2381 = vcombine.high %v2377, %v2377
  %v2383 = vunpack.c.l.s4 1966171168
  %v2384 = vunpack.c.0.s8 %v2383
  %v2385 = vlaneseq
  %v2386 = vshrl.u32 %v2385, 7
  %v2387 = vsub.s32 %v2384, %v2386
  %v2388 = vrot.slane %v2280, %v2387
  %v2389 = vcombine.high %v2388, %v2388
  %v2391 = vunpack.c.l.s4 1966171168
  %v2392 = vunpack.c.0.s8 %v2391
  %v2393 = vlaneseq
  %v2394 = vshrl.u32 %v2393, 7
  %v2395 = vsub.s32 %v2392, %v2394
  %v2396 = vrot.slane %v2388, %v2395
  %v2398 = vunpack.c.l.s4 1966171168
  %v2399 = vunpack.c.0.s8 %v2398
  %v2400 = vlaneseq
  %v2401 = vshrl.u32 %v2400, 7
  %v2402 = vsub.s32 %v2399, %v2401
  %v2403 = vrot.slane %v2389, %v2402
  %2422 = vmatprep.subr.bf16.mxu0 %v1332
  %2423 = vmatpush1.bf16.msra.mxu0 %v1331
  %2424 = vmatprep.subr.bf16.mxu0 %v1334
  %2425 = vmatpush1.bf16.msra.mxu0 %v1333
  %2426 = vmatprep.subr.bf16.mxu0 %v1336
  %2427 = vmatpush1.bf16.msra.mxu0 %v1335
  %2428 = vmatprep.subr.bf16.mxu0 %v1338
  %2429 = vmatpush1.bf16.msra.mxu0 %v1337
  %2430 = vmatprep.subr.bf16.mxu0 %v1340
  %2431 = vmatpush1.bf16.msra.mxu0 %v1339
  %2432 = vmatprep.subr.bf16.mxu0 %v1342
  %2433 = vmatpush1.bf16.msra.mxu0 %v1341
  %2434 = vmatprep.subr.bf16.mxu0 %v1344
  %2435 = vmatpush1.bf16.msra.mxu0 %v1343
  %2436 = vmatprep.subr.bf16.mxu0 %v1346
  %2437 = vmatpush1.bf16.msra.mxu0 %v1345
  %2438 = vmatprep.subr.bf16.mxu0 %v1348
  %2439 = vmatpush1.bf16.msra.mxu0 %v1347
  %2440 = vmatprep.subr.bf16.mxu0 %v1350
  %2441 = vmatpush1.bf16.msra.mxu0 %v1349
  %2442 = vmatprep.subr.bf16.mxu0 %v1352
  %2443 = vmatpush1.bf16.msra.mxu0 %v1351
  %2444 = vmatprep.subr.bf16.mxu0 %v1354
  %2445 = vmatpush1.bf16.msra.mxu0 %v1353
  %2446 = vmatprep.subr.bf16.mxu0 %v1356
  %2447 = vmatpush1.bf16.msra.mxu0 %v1355
  %2448 = vmatprep.subr.bf16.mxu0 %v1358
  %2449 = vmatpush1.bf16.msra.mxu0 %v1357
  %2450 = vmatprep.subr.bf16.mxu0 %v1360
  %2451 = vmatpush1.bf16.msra.mxu0 %v1359
  %2452 = vmatprep.subr.bf16.mxu0 %v1362
  %2453 = vmatpush1.bf16.msra.mxu0 %v1361
  %2454 = vmatprep.mubr.bf16.mxu0 %v2321
  %2455 = vmatmul.mubr.bf16.gmra.mrb[0].mxu0 %v2307
  %v2456 = vpop.f32.mrb[0].mxu0
  %v2457 = vadd.f32 %v319, %v2456
  %v2458 = vpop.f32.mrb[0].mxu0
  %v2459 = vadd.f32 %v323, %v2458
  %v2460 = vpop.f32.mrb[0].mxu0
  %v2461 = vpop.f32.mrb[0].mxu0
  %2462 = vdwg.mxu0
  %2463 = vmatprep.subr.bf16.mxu0 %v1364
  %2464 = vmatpush1.bf16.msra.mxu0 %v1363
  %2465 = vmatprep.subr.bf16.mxu0 %v1366
  %2466 = vmatpush1.bf16.msra.mxu0 %v1365
  %2467 = vmatprep.subr.bf16.mxu0 %v1368
  %2468 = vmatpush1.bf16.msra.mxu0 %v1367
  %2469 = vmatprep.subr.bf16.mxu0 %v1370
  %2470 = vmatpush1.bf16.msra.mxu0 %v1369
  %2471 = vmatprep.subr.bf16.mxu0 %v1372
  %2472 = vmatpush1.bf16.msra.mxu0 %v1371
  %2473 = vmatprep.subr.bf16.mxu0 %v1374
  %2474 = vmatpush1.bf16.msra.mxu0 %v1373
  %2475 = vmatprep.subr.bf16.mxu0 %v1376
  %2476 = vmatpush1.bf16.msra.mxu0 %v1375
  %2477 = vmatprep.subr.bf16.mxu0 %v1378
  %2478 = vmatpush1.bf16.msra.mxu0 %v1377
  %2479 = vmatprep.subr.bf16.mxu0 %v1380
  %2480 = vmatpush1.bf16.msra.mxu0 %v1379
  %2481 = vmatprep.subr.bf16.mxu0 %v1382
  %2482 = vmatpush1.bf16.msra.mxu0 %v1381
  %2483 = vmatprep.subr.bf16.mxu0 %v1384
  %2484 = vmatpush1.bf16.msra.mxu0 %v1383
  %2485 = vmatprep.subr.bf16.mxu0 %v1386
  %2486 = vmatpush1.bf16.msra.mxu0 %v1385
  %2487 = vmatprep.subr.bf16.mxu0 %v1388
  %2488 = vmatpush1.bf16.msra.mxu0 %v1387
  %2489 = vmatprep.subr.bf16.mxu0 %v1390
  %2490 = vmatpush1.bf16.msra.mxu0 %v1389
  %2491 = vmatprep.subr.bf16.mxu0 %v1392
  %2492 = vmatpush1.bf16.msra.mxu0 %v1391
  %2493 = vmatprep.subr.bf16.mxu0 %v1394
  %2494 = vmatpush1.bf16.msra.mxu0 %v1393
  %2495 = vmatprep.mubr.bf16.mxu0 %v2331
  %2496 = vmatmul.mubr.bf16.gmra.mrb[0].mxu0 %v2329
  %v2497 = vpop.f32.mrb[0].mxu0
  %v2498 = vadd.f32 %v2457, %v2497
  %v2499 = vpop.f32.mrb[0].mxu0
  %v2500 = vadd.f32 %v2459, %v2499
  %v2501 = vpop.f32.mrb[0].mxu0
  %v2502 = vpop.f32.mrb[0].mxu0
  %2503 = vdwg.mxu0
  %2504 = vmatprep.subr.bf16.mxu0 %v1396
  %2505 = vmatpush1.bf16.msra.mxu0 %v1395
  %2506 = vmatprep.subr.bf16.mxu0 %v1398
  %2507 = vmatpush1.bf16.msra.mxu0 %v1397
  %2508 = vmatprep.subr.bf16.mxu0 %v1400
  %2509 = vmatpush1.bf16.msra.mxu0 %v1399
  %2510 = vmatprep.subr.bf16.mxu0 %v1402
  %2511 = vmatpush1.bf16.msra.mxu0 %v1401
  %2512 = vmatprep.subr.bf16.mxu0 %v1404
  %2513 = vmatpush1.bf16.msra.mxu0 %v1403
  %2514 = vmatprep.subr.bf16.mxu0 %v1406
  %2515 = vmatpush1.bf16.msra.mxu0 %v1405
  %2516 = vmatprep.subr.bf16.mxu0 %v1408
  %2517 = vmatpush1.bf16.msra.mxu0 %v1407
  %2518 = vmatprep.subr.bf16.mxu0 %v1410
  %2519 = vmatpush1.bf16.msra.mxu0 %v1409
  %2520 = vmatprep.subr.bf16.mxu0 %v1412
  %2521 = vmatpush1.bf16.msra.mxu0 %v1411
  %2522 = vmatprep.subr.bf16.mxu0 %v1414
  %2523 = vmatpush1.bf16.msra.mxu0 %v1413
  %2524 = vmatprep.subr.bf16.mxu0 %v1416
  %2525 = vmatpush1.bf16.msra.mxu0 %v1415
  %2526 = vmatprep.subr.bf16.mxu0 %v1418
  %2527 = vmatpush1.bf16.msra.mxu0 %v1417
  %2528 = vmatprep.subr.bf16.mxu0 %v1420
  %2529 = vmatpush1.bf16.msra.mxu0 %v1419
  %2530 = vmatprep.subr.bf16.mxu0 %v1422
  %2531 = vmatpush1.bf16.msra.mxu0 %v1421
  %2532 = vmatprep.subr.bf16.mxu0 %v1424
  %2533 = vmatpush1.bf16.msra.mxu0 %v1423
  %2534 = vmatprep.subr.bf16.mxu0 %v1426
  %2535 = vmatpush1.bf16.msra.mxu0 %v1425
  %2536 = vmatprep.mubr.bf16.mxu0 %v2328
  %2537 = vmatmul.mubr.bf16.gmra.mrb[0].mxu0 %v2314
  %v2538 = vpop.f32.mrb[0].mxu0
  %v2539 = vadd.f32 %v2498, %v2538
  %v2540 = vpop.f32.mrb[0].mxu0
  %v2541 = vadd.f32 %v2500, %v2540
  %v2542 = vpop.f32.mrb[0].mxu0
  %v2543 = vpop.f32.mrb[0].mxu0
  %2544 = vdwg.mxu0
  %2545 = vmatprep.subr.bf16.mxu0 %v1428
  %2546 = vmatpush1.bf16.msra.mxu0 %v1427
  %2547 = vmatprep.subr.bf16.mxu0 %v1430
  %2548 = vmatpush1.bf16.msra.mxu0 %v1429
  %2549 = vmatprep.subr.bf16.mxu0 %v1432
  %2550 = vmatpush1.bf16.msra.mxu0 %v1431
  %2551 = vmatprep.subr.bf16.mxu0 %v1434
  %2552 = vmatpush1.bf16.msra.mxu0 %v1433
  %2553 = vmatprep.subr.bf16.mxu0 %v1436
  %2554 = vmatpush1.bf16.msra.mxu0 %v1435
  %2555 = vmatprep.subr.bf16.mxu0 %v1438
  %2556 = vmatpush1.bf16.msra.mxu0 %v1437
  %2557 = vmatprep.subr.bf16.mxu0 %v1440
  %2558 = vmatpush1.bf16.msra.mxu0 %v1439
  %2559 = vmatprep.subr.bf16.mxu0 %v1442
  %2560 = vmatpush1.bf16.msra.mxu0 %v1441
  %2561 = vmatprep.subr.bf16.mxu0 %v1444
  %2562 = vmatpush1.bf16.msra.mxu0 %v1443
  %2563 = vmatprep.subr.bf16.mxu0 %v1446
  %2564 = vmatpush1.bf16.msra.mxu0 %v1445
  %2565 = vmatprep.subr.bf16.mxu0 %v1448
  %2566 = vmatpush1.bf16.msra.mxu0 %v1447
  %2567 = vmatprep.subr.bf16.mxu0 %v1450
  %2568 = vmatpush1.bf16.msra.mxu0 %v1449
  %2569 = vmatprep.subr.bf16.mxu0 %v1452
  %2570 = vmatpush1.bf16.msra.mxu0 %v1451
  %2571 = vmatprep.subr.bf16.mxu0 %v1454
  %2572 = vmatpush1.bf16.msra.mxu0 %v1453
  %2573 = vmatprep.subr.bf16.mxu0 %v1456
  %2574 = vmatpush1.bf16.msra.mxu0 %v1455
  %2575 = vmatprep.subr.bf16.mxu0 %v1458
  %2576 = vmatpush1.bf16.msra.mxu0 %v1457
  %2577 = vmatprep.mubr.bf16.mxu0 %v2332
  %2578 = vmatmul.mubr.bf16.gmra.mrb[0].mxu0 %v2330
  %v2579 = vpop.f32.mrb[0].mxu0
  %v2580 = vadd.f32 %v2539, %v2579
  %v2581 = vpop.f32.mrb[0].mxu0
  %v2582 = vadd.f32 %v2541, %v2581
  %v2583 = vpop.f32.mrb[0].mxu0
  %v2584 = vpop.f32.mrb[0].mxu0
  %2585 = vdwg.mxu0
  %2586 = vmatprep.subr.bf16.mxu0 %v1460
  %2587 = vmatpush1.bf16.msra.mxu0 %v1459
  %2588 = vmatprep.subr.bf16.mxu0 %v1462
  %2589 = vmatpush1.bf16.msra.mxu0 %v1461
  %2590 = vmatprep.subr.bf16.mxu0 %v1464
  %2591 = vmatpush1.bf16.msra.mxu0 %v1463
  %2592 = vmatprep.subr.bf16.mxu0 %v1466
  %2593 = vmatpush1.bf16.msra.mxu0 %v1465
  %2594 = vmatprep.subr.bf16.mxu0 %v1468
  %2595 = vmatpush1.bf16.msra.mxu0 %v1467
  %2596 = vmatprep.subr.bf16.mxu0 %v1470
  %2597 = vmatpush1.bf16.msra.mxu0 %v1469
  %2598 = vmatprep.subr.bf16.mxu0 %v1472
  %2599 = vmatpush1.bf16.msra.mxu0 %v1471
  %2600 = vmatprep.subr.bf16.mxu0 %v1474
  %2601 = vmatpush1.bf16.msra.mxu0 %v1473
  %2602 = vmatprep.subr.bf16.mxu0 %v1476
  %2603 = vmatpush1.bf16.msra.mxu0 %v1475
  %2604 = vmatprep.subr.bf16.mxu0 %v1478
  %2605 = vmatpush1.bf16.msra.mxu0 %v1477
  %2606 = vmatprep.subr.bf16.mxu0 %v1480
  %2607 = vmatpush1.bf16.msra.mxu0 %v1479
  %2608 = vmatprep.subr.bf16.mxu0 %v1482
  %2609 = vmatpush1.bf16.msra.mxu0 %v1481
  %2610 = vmatprep.subr.bf16.mxu0 %v1484
  %2611 = vmatpush1.bf16.msra.mxu0 %v1483
  %2612 = vmatprep.subr.bf16.mxu0 %v1486
  %2613 = vmatpush1.bf16.msra.mxu0 %v1485
  %2614 = vmatprep.subr.bf16.mxu0 %v1488
  %2615 = vmatpush1.bf16.msra.mxu0 %v1487
  %2616 = vmatprep.subr.bf16.mxu0 %v1490
  %2617 = vmatpush1.bf16.msra.mxu0 %v1489
  %2618 = vmatprep.mubr.bf16.mxu0 %v2370
  %2619 = vmatmul.mubr.bf16.gmra.mrb[0].mxu0 %v2356
  %v2620 = vpop.f32.mrb[0].mxu0
  %v2621 = vadd.f32 %v2580, %v2620
  %v2622 = vpop.f32.mrb[0].mxu0
  %v2623 = vadd.f32 %v2582, %v2622
  %v2624 = vpop.f32.mrb[0].mxu0
  %v2625 = vpop.f32.mrb[0].mxu0
  %2626 = vdwg.mxu0
  %2627 = vmatprep.subr.bf16.mxu0 %v1492
  %2628 = vmatpush1.bf16.msra.mxu0 %v1491
  %2629 = vmatprep.subr.bf16.mxu0 %v1494
  %2630 = vmatpush1.bf16.msra.mxu0 %v1493
  %2631 = vmatprep.subr.bf16.mxu0 %v1496
  %2632 = vmatpush1.bf16.msra.mxu0 %v1495
  %2633 = vmatprep.subr.bf16.mxu0 %v1498
  %2634 = vmatpush1.bf16.msra.mxu0 %v1497
  %2635 = vmatprep.subr.bf16.mxu0 %v1500
  %2636 = vmatpush1.bf16.msra.mxu0 %v1499
  %2637 = vmatprep.subr.bf16.mxu0 %v1502
  %2638 = vmatpush1.bf16.msra.mxu0 %v1501
  %2639 = vmatprep.subr.bf16.mxu0 %v1504
  %2640 = vmatpush1.bf16.msra.mxu0 %v1503
  %2641 = vmatprep.subr.bf16.mxu0 %v1506
  %2642 = vmatpush1.bf16.msra.mxu0 %v1505
  %2643 = vmatprep.subr.bf16.mxu0 %v1508
  %2644 = vmatpush1.bf16.msra.mxu0 %v1507
  %2645 = vmatprep.subr.bf16.mxu0 %v1510
  %2646 = vmatpush1.bf16.msra.mxu0 %v1509
  %2647 = vmatprep.subr.bf16.mxu0 %v1512
  %2648 = vmatpush1.bf16.msra.mxu0 %v1511
  %2649 = vmatprep.subr.bf16.mxu0 %v1514
  %2650 = vmatpush1.bf16.msra.mxu0 %v1513
  %2651 = vmatprep.subr.bf16.mxu0 %v1516
  %2652 = vmatpush1.bf16.msra.mxu0 %v1515
  %2653 = vmatprep.subr.bf16.mxu0 %v1518
  %2654 = vmatpush1.bf16.msra.mxu0 %v1517
  %2655 = vmatprep.subr.bf16.mxu0 %v1520
  %2656 = vmatpush1.bf16.msra.mxu0 %v1519
  %2657 = vmatprep.subr.bf16.mxu0 %v1522
  %2658 = vmatpush1.bf16.msra.mxu0 %v1521
  %2659 = vmatprep.mubr.bf16.mxu0 %v2380
  %2660 = vmatmul.mubr.bf16.gmra.mrb[0].mxu0 %v2378
  %v2661 = vpop.f32.mrb[0].mxu0
  %v2662 = vadd.f32 %v2621, %v2661
  %v2663 = vpop.f32.mrb[0].mxu0
  %v2664 = vadd.f32 %v2623, %v2663
  %v2665 = vpop.f32.mrb[0].mxu0
  %v2666 = vpop.f32.mrb[0].mxu0
  %2667 = vdwg.mxu0
  %2668 = vmatprep.subr.bf16.mxu0 %v1524
  %2669 = vmatpush1.bf16.msra.mxu0 %v1523
  %2670 = vmatprep.subr.bf16.mxu0 %v1526
  %2671 = vmatpush1.bf16.msra.mxu0 %v1525
  %2672 = vmatprep.subr.bf16.mxu0 %v1528
  %2673 = vmatpush1.bf16.msra.mxu0 %v1527
  %2674 = vmatprep.subr.bf16.mxu0 %v1530
  %2675 = vmatpush1.bf16.msra.mxu0 %v1529
  %2676 = vmatprep.subr.bf16.mxu0 %v1532
  %2677 = vmatpush1.bf16.msra.mxu0 %v1531
  %2678 = vmatprep.subr.bf16.mxu0 %v1534
  %2679 = vmatpush1.bf16.msra.mxu0 %v1533
  %2680 = vmatprep.subr.bf16.mxu0 %v1536
  %2681 = vmatpush1.bf16.msra.mxu0 %v1535
  %2682 = vmatprep.subr.bf16.mxu0 %v1538
  %2683 = vmatpush1.bf16.msra.mxu0 %v1537
  %2684 = vmatprep.subr.bf16.mxu0 %v1540
  %2685 = vmatpush1.bf16.msra.mxu0 %v1539
  %2686 = vmatprep.subr.bf16.mxu0 %v1542
  %2687 = vmatpush1.bf16.msra.mxu0 %v1541
  %2688 = vmatprep.subr.bf16.mxu0 %v1544
  %2689 = vmatpush1.bf16.msra.mxu0 %v1543
  %2690 = vmatprep.subr.bf16.mxu0 %v1546
  %2691 = vmatpush1.bf16.msra.mxu0 %v1545
  %2692 = vmatprep.subr.bf16.mxu0 %v1548
  %2693 = vmatpush1.bf16.msra.mxu0 %v1547
  %2694 = vmatprep.subr.bf16.mxu0 %v1550
  %2695 = vmatpush1.bf16.msra.mxu0 %v1549
  %2696 = vmatprep.subr.bf16.mxu0 %v1552
  %2697 = vmatpush1.bf16.msra.mxu0 %v1551
  %2698 = vmatprep.subr.bf16.mxu0 %v1554
  %2699 = vmatpush1.bf16.msra.mxu0 %v1553
  %2700 = vmatprep.mubr.bf16.mxu0 %v2377
  %2701 = vmatmul.mubr.bf16.gmra.mrb[0].mxu0 %v2363
  %v2702 = vpop.f32.mrb[0].mxu0
  %v2703 = vadd.f32 %v2662, %v2702
  %v2704 = vpop.f32.mrb[0].mxu0
  %v2705 = vadd.f32 %v2664, %v2704
  %v2706 = vpop.f32.mrb[0].mxu0
  %v2707 = vpop.f32.mrb[0].mxu0
  %2708 = vdwg.mxu0
  %2709 = vmatprep.subr.bf16.mxu0 %v1556
  %2710 = vmatpush1.bf16.msra.mxu0 %v1555
  %2711 = vmatprep.subr.bf16.mxu0 %v1558
  %2712 = vmatpush1.bf16.msra.mxu0 %v1557
  %2713 = vmatprep.subr.bf16.mxu0 %v1560
  %2714 = vmatpush1.bf16.msra.mxu0 %v1559
  %2715 = vmatprep.subr.bf16.mxu0 %v1562
  %2716 = vmatpush1.bf16.msra.mxu0 %v1561
  %2717 = vmatprep.subr.bf16.mxu0 %v1564
  %2718 = vmatpush1.bf16.msra.mxu0 %v1563
  %2719 = vmatprep.subr.bf16.mxu0 %v1566
  %2720 = vmatpush1.bf16.msra.mxu0 %v1565
  %2721 = vmatprep.subr.bf16.mxu0 %v1568
  %2722 = vmatpush1.bf16.msra.mxu0 %v1567
  %2723 = vmatprep.subr.bf16.mxu0 %v1570
  %2724 = vmatpush1.bf16.msra.mxu0 %v1569
  %2725 = vmatprep.subr.bf16.mxu0 %v1572
  %2726 = vmatpush1.bf16.msra.mxu0 %v1571
  %2727 = vmatprep.subr.bf16.mxu0 %v1574
  %2728 = vmatpush1.bf16.msra.mxu0 %v1573
  %2729 = vmatprep.subr.bf16.mxu0 %v1576
  %2730 = vmatpush1.bf16.msra.mxu0 %v1575
  %2731 = vmatprep.subr.bf16.mxu0 %v1578
  %2732 = vmatpush1.bf16.msra.mxu0 %v1577
  %2733 = vmatprep.subr.bf16.mxu0 %v1580
  %2734 = vmatpush1.bf16.msra.mxu0 %v1579
  %2735 = vmatprep.subr.bf16.mxu0 %v1582
  %2736 = vmatpush1.bf16.msra.mxu0 %v1581
  %2737 = vmatprep.subr.bf16.mxu0 %v1584
  %2738 = vmatpush1.bf16.msra.mxu0 %v1583
  %2739 = vmatprep.subr.bf16.mxu0 %v1586
  %2740 = vmatpush1.bf16.msra.mxu0 %v1585
  %2741 = vmatprep.mubr.bf16.mxu0 %v2381
  %2742 = vmatmul.mubr.bf16.gmra.mrb[0].mxu0 %v2379
  %v2743 = vpop.f32.mrb[0].mxu0
  %v2744 = vadd.f32 %v2703, %v2743
  %v2745 = vpop.f32.mrb[0].mxu0
  %v2746 = vadd.f32 %v2705, %v2745
  %v2747 = vpop.f32.mrb[0].mxu0
  %v2748 = vpop.f32.mrb[0].mxu0
  %2749 = vdwg.mxu0
  %2750 = vmatprep.subr.bf16.mxu0 %v1588
  %2751 = vmatpush1.bf16.msra.mxu0 %v1587
  %2752 = vmatprep.subr.bf16.mxu0 %v1590
  %2753 = vmatpush1.bf16.msra.mxu0 %v1589
  %2754 = vmatprep.subr.bf16.mxu0 %v1592
  %2755 = vmatpush1.bf16.msra.mxu0 %v1591
  %2756 = vmatprep.subr.bf16.mxu0 %v1594
  %2757 = vmatpush1.bf16.msra.mxu0 %v1593
  %2758 = vmatprep.subr.bf16.mxu0 %v1596
  %2759 = vmatpush1.bf16.msra.mxu0 %v1595
  %2760 = vmatprep.subr.bf16.mxu0 %v1598
  %2761 = vmatpush1.bf16.msra.mxu0 %v1597
  %2762 = vmatprep.subr.bf16.mxu0 %v1600
  %2763 = vmatpush1.bf16.msra.mxu0 %v1599
  %2764 = vmatprep.subr.bf16.mxu0 %v1602
  %2765 = vmatpush1.bf16.msra.mxu0 %v1601
  %2766 = vmatprep.subr.bf16.mxu0 %v1604
  %2767 = vmatpush1.bf16.msra.mxu0 %v1603
  %2768 = vmatprep.subr.bf16.mxu0 %v1606
  %2769 = vmatpush1.bf16.msra.mxu0 %v1605
  %2770 = vmatprep.subr.bf16.mxu0 %v1608
  %2771 = vmatpush1.bf16.msra.mxu0 %v1607
  %2772 = vmatprep.subr.bf16.mxu0 %v1610
  %2773 = vmatpush1.bf16.msra.mxu0 %v1609
  %2774 = vmatprep.subr.bf16.mxu0 %v1612
  %2775 = vmatpush1.bf16.msra.mxu0 %v1611
  %2776 = vmatprep.subr.bf16.mxu0 %v1614
  %2777 = vmatpush1.bf16.msra.mxu0 %v1613
  %2778 = vmatprep.subr.bf16.mxu0 %v1616
  %2779 = vmatpush1.bf16.msra.mxu0 %v1615
  %2780 = vmatprep.subr.bf16.mxu0 %v1618
  %2781 = vmatpush1.bf16.msra.mxu0 %v1617
  %2782 = vmatprep.mubr.bf16.mxu0 %v2403
  %2783 = vmatmul.mubr.bf16.gmra.mrb[0].mxu0 %v2396
  %v2784 = vpop.f32.mrb[0].mxu0
  %v2785 = vadd.f32 %v2744, %v2784
  %v2786 = vpop.f32.mrb[0].mxu0
  %v2787 = vadd.f32 %v2746, %v2786
  %v2788 = vpop.f32.mrb[0].mxu0
  %v2789 = vpop.f32.mrb[0].mxu0
  %2790 = vdwg.mxu0
  %v2791 = vmax.f32 %v2785, 0.0
  %v2792 = vmax.f32 %v2787, 0.0
  %v2793 = vmax.f32 %v2276, %v2791
  %v2794 = vmax.f32 %v2277, %v2792
  %v2795 = vld [vmem:[%s2] sm:$0xff]
  %v2796 = vld [vmem:[%s2 + $0x8] sm:$0xff]
  %v2797 = vld [vmem:[%s2 + $0x10] sm:$0x3]
  %v2801 = vcombine.high %v2795, %v2795
  %v2803 = vunpack.c.l.s4 1966171168
  %v2804 = vunpack.c.0.s8 %v2803
  %v2805 = vlaneseq
  %v2806 = vshrl.u32 %v2805, 7
  %v2807 = vsub.s32 %v2804, %v2806
  %v2808 = vrot.slane %v2795, %v2807
  %v2810 = vunpack.c.l.s4 1966171168
  %v2811 = vunpack.c.0.s8 %v2810
  %v2812 = vlaneseq
  %v2813 = vshrl.u32 %v2812, 7
  %v2814 = vsub.s32 %v2811, %v2813
  %v2815 = vrot.slane %v2801, %v2814
  %v2816 = vcombine.high %v2808, %v2808
  %v2817 = vcombine.high %v2815, %v2815
  %v2819 = vunpack.c.l.s4 1966171168
  %v2820 = vunpack.c.0.s8 %v2819
  %v2821 = vlaneseq
  %v2822 = vshrl.u32 %v2821, 7
  %v2823 = vsub.s32 %v2820, %v2822
  %v2824 = vrot.slane %v2808, %v2823
  %v2826 = vunpack.c.l.s4 1966171168
  %v2827 = vunpack.c.0.s8 %v2826
  %v2828 = vlaneseq
  %v2829 = vshrl.u32 %v2828, 7
  %v2830 = vsub.s32 %v2827, %v2829
  %v2831 = vrot.slane %v2815, %v2830
  %v2833 = vunpack.c.l.s4 1966171168
  %v2834 = vunpack.c.0.s8 %v2833
  %v2835 = vlaneseq
  %v2836 = vshrl.u32 %v2835, 7
  %v2837 = vsub.s32 %v2834, %v2836
  %v2838 = vrot.slane %v2816, %v2837
  %v2840 = vunpack.c.l.s4 1966171168
  %v2841 = vunpack.c.0.s8 %v2840
  %v2842 = vlaneseq
  %v2843 = vshrl.u32 %v2842, 7
  %v2844 = vsub.s32 %v2841, %v2843
  %v2845 = vrot.slane %v2817, %v2844
  %v2846 = vcombine.high %v2824, %v2824
  %v2847 = vcombine.high %v2831, %v2831
  %v2848 = vcombine.high %v2838, %v2838
  %v2849 = vcombine.high %v2845, %v2845
  %v2850 = vcombine.high %v2796, %v2796
  %v2852 = vunpack.c.l.s4 1966171168
  %v2853 = vunpack.c.0.s8 %v2852
  %v2854 = vlaneseq
  %v2855 = vshrl.u32 %v2854, 7
  %v2856 = vsub.s32 %v2853, %v2855
  %v2857 = vrot.slane %v2796, %v2856
  %v2859 = vunpack.c.l.s4 1966171168
  %v2860 = vunpack.c.0.s8 %v2859
  %v2861 = vlaneseq
  %v2862 = vshrl.u32 %v2861, 7
  %v2863 = vsub.s32 %v2860, %v2862
  %v2864 = vrot.slane %v2850, %v2863
  %v2865 = vcombine.high %v2857, %v2857
  %v2866 = vcombine.high %v2864, %v2864
  %v2868 = vunpack.c.l.s4 1966171168
  %v2869 = vunpack.c.0.s8 %v2868
  %v2870 = vlaneseq
  %v2871 = vshrl.u32 %v2870, 7
  %v2872 = vsub.s32 %v2869, %v2871
  %v2873 = vrot.slane %v2857, %v2872
  %v2875 = vunpack.c.l.s4 1966171168
  %v2876 = vunpack.c.0.s8 %v2875
  %v2877 = vlaneseq
  %v2878 = vshrl.u32 %v2877, 7
  %v2879 = vsub.s32 %v2876, %v2878
  %v2880 = vrot.slane %v2864, %v2879
  %v2882 = vunpack.c.l.s4 1966171168
  %v2883 = vunpack.c.0.s8 %v2882
  %v2884 = vlaneseq
  %v2885 = vshrl.u32 %v2884, 7
  %v2886 = vsub.s32 %v2883, %v2885
  %v2887 = vrot.slane %v2865, %v2886
  %v2889 = vunpack.c.l.s4 1966171168
  %v2890 = vunpack.c.0.s8 %v2889
  %v2891 = vlaneseq
  %v2892 = vshrl.u32 %v2891, 7
  %v2893 = vsub.s32 %v2890, %v2892
  %v2894 = vrot.slane %v2866, %v2893
  %v2895 = vcombine.high %v2873, %v2873
  %v2896 = vcombine.high %v2880, %v2880
  %v2897 = vcombine.high %v2887, %v2887
  %v2898 = vcombine.high %v2894, %v2894
  %v2900 = vunpack.c.l.s4 1966171168
  %v2901 = vunpack.c.0.s8 %v2900
  %v2902 = vlaneseq
  %v2903 = vshrl.u32 %v2902, 7
  %v2904 = vsub.s32 %v2901, %v2903
  %v2905 = vrot.slane %v2797, %v2904
  %v2906 = vcombine.high %v2905, %v2905
  %v2908 = vunpack.c.l.s4 1966171168
  %v2909 = vunpack.c.0.s8 %v2908
  %v2910 = vlaneseq
  %v2911 = vshrl.u32 %v2910, 7
  %v2912 = vsub.s32 %v2909, %v2911
  %v2913 = vrot.slane %v2905, %v2912
  %v2915 = vunpack.c.l.s4 1966171168
  %v2916 = vunpack.c.0.s8 %v2915
  %v2917 = vlaneseq
  %v2918 = vshrl.u32 %v2917, 7
  %v2919 = vsub.s32 %v2916, %v2918
  %v2920 = vrot.slane %v2906, %v2919
  %2939 = vmatprep.subr.bf16.mxu0 %v1332
  %2940 = vmatpush1.bf16.msra.mxu0 %v1331
  %2941 = vmatprep.subr.bf16.mxu0 %v1334
  %2942 = vmatpush1.bf16.msra.mxu0 %v1333
  %2943 = vmatprep.subr.bf16.mxu0 %v1336
  %2944 = vmatpush1.bf16.msra.mxu0 %v1335
  %2945 = vmatprep.subr.bf16.mxu0 %v1338
  %2946 = vmatpush1.bf16.msra.mxu0 %v1337
  %2947 = vmatprep.subr.bf16.mxu0 %v1340
  %2948 = vmatpush1.bf16.msra.mxu0 %v1339
  %2949 = vmatprep.subr.bf16.mxu0 %v1342
  %2950 = vmatpush1.bf16.msra.mxu0 %v1341
  %2951 = vmatprep.subr.bf16.mxu0 %v1344
  %2952 = vmatpush1.bf16.msra.mxu0 %v1343
  %2953 = vmatprep.subr.bf16.mxu0 %v1346
  %2954 = vmatpush1.bf16.msra.mxu0 %v1345
  %2955 = vmatprep.subr.bf16.mxu0 %v1348
  %2956 = vmatpush1.bf16.msra.mxu0 %v1347
  %2957 = vmatprep.subr.bf16.mxu0 %v1350
  %2958 = vmatpush1.bf16.msra.mxu0 %v1349
  %2959 = vmatprep.subr.bf16.mxu0 %v1352
  %2960 = vmatpush1.bf16.msra.mxu0 %v1351
  %2961 = vmatprep.subr.bf16.mxu0 %v1354
  %2962 = vmatpush1.bf16.msra.mxu0 %v1353
  %2963 = vmatprep.subr.bf16.mxu0 %v1356
  %2964 = vmatpush1.bf16.msra.mxu0 %v1355
  %2965 = vmatprep.subr.bf16.mxu0 %v1358
  %2966 = vmatpush1.bf16.msra.mxu0 %v1357
  %2967 = vmatprep.subr.bf16.mxu0 %v1360
  %2968 = vmatpush1.bf16.msra.mxu0 %v1359
  %2969 = vmatprep.subr.bf16.mxu0 %v1362
  %2970 = vmatpush1.bf16.msra.mxu0 %v1361
  %2971 = vmatprep.mubr.bf16.mxu0 %v2838
  %2972 = vmatmul.mubr.bf16.gmra.mrb[0].mxu0 %v2824
  %v2973 = vpop.f32.mrb[0].mxu0
  %v2974 = vadd.f32 %v319, %v2973
  %v2975 = vpop.f32.mrb[0].mxu0
  %v2976 = vadd.f32 %v323, %v2975
  %v2977 = vpop.f32.mrb[0].mxu0
  %v2978 = vpop.f32.mrb[0].mxu0
  %2979 = vdwg.mxu0
  %2980 = vmatprep.subr.bf16.mxu0 %v1364
  %2981 = vmatpush1.bf16.msra.mxu0 %v1363
  %2982 = vmatprep.subr.bf16.mxu0 %v1366
  %2983 = vmatpush1.bf16.msra.mxu0 %v1365
  %2984 = vmatprep.subr.bf16.mxu0 %v1368
  %2985 = vmatpush1.bf16.msra.mxu0 %v1367
  %2986 = vmatprep.subr.bf16.mxu0 %v1370
  %2987 = vmatpush1.bf16.msra.mxu0 %v1369
  %2988 = vmatprep.subr.bf16.mxu0 %v1372
  %2989 = vmatpush1.bf16.msra.mxu0 %v1371
  %2990 = vmatprep.subr.bf16.mxu0 %v1374
  %2991 = vmatpush1.bf16.msra.mxu0 %v1373
  %2992 = vmatprep.subr.bf16.mxu0 %v1376
  %2993 = vmatpush1.bf16.msra.mxu0 %v1375
  %2994 = vmatprep.subr.bf16.mxu0 %v1378
  %2995 = vmatpush1.bf16.msra.mxu0 %v1377
  %2996 = vmatprep.subr.bf16.mxu0 %v1380
  %2997 = vmatpush1.bf16.msra.mxu0 %v1379
  %2998 = vmatprep.subr.bf16.mxu0 %v1382
  %2999 = vmatpush1.bf16.msra.mxu0 %v1381
  %3000 = vmatprep.subr.bf16.mxu0 %v1384
  %3001 = vmatpush1.bf16.msra.mxu0 %v1383
  %3002 = vmatprep.subr.bf16.mxu0 %v1386
  %3003 = vmatpush1.bf16.msra.mxu0 %v1385
  %3004 = vmatprep.subr.bf16.mxu0 %v1388
  %3005 = vmatpush1.bf16.msra.mxu0 %v1387
  %3006 = vmatprep.subr.bf16.mxu0 %v1390
  %3007 = vmatpush1.bf16.msra.mxu0 %v1389
  %3008 = vmatprep.subr.bf16.mxu0 %v1392
  %3009 = vmatpush1.bf16.msra.mxu0 %v1391
  %3010 = vmatprep.subr.bf16.mxu0 %v1394
  %3011 = vmatpush1.bf16.msra.mxu0 %v1393
  %3012 = vmatprep.mubr.bf16.mxu0 %v2848
  %3013 = vmatmul.mubr.bf16.gmra.mrb[0].mxu0 %v2846
  %v3014 = vpop.f32.mrb[0].mxu0
  %v3015 = vadd.f32 %v2974, %v3014
  %v3016 = vpop.f32.mrb[0].mxu0
  %v3017 = vadd.f32 %v2976, %v3016
  %v3018 = vpop.f32.mrb[0].mxu0
  %v3019 = vpop.f32.mrb[0].mxu0
  %3020 = vdwg.mxu0
  %3021 = vmatprep.subr.bf16.mxu0 %v1396
  %3022 = vmatpush1.bf16.msra.mxu0 %v1395
  %3023 = vmatprep.subr.bf16.mxu0 %v1398
  %3024 = vmatpush1.bf16.msra.mxu0 %v1397
  %3025 = vmatprep.subr.bf16.mxu0 %v1400
  %3026 = vmatpush1.bf16.msra.mxu0 %v1399
  %3027 = vmatprep.subr.bf16.mxu0 %v1402
  %3028 = vmatpush1.bf16.msra.mxu0 %v1401
  %3029 = vmatprep.subr.bf16.mxu0 %v1404
  %3030 = vmatpush1.bf16.msra.mxu0 %v1403
  %3031 = vmatprep.subr.bf16.mxu0 %v1406
  %3032 = vmatpush1.bf16.msra.mxu0 %v1405
  %3033 = vmatprep.subr.bf16.mxu0 %v1408
  %3034 = vmatpush1.bf16.msra.mxu0 %v1407
  %3035 = vmatprep.subr.bf16.mxu0 %v1410
  %3036 = vmatpush1.bf16.msra.mxu0 %v1409
  %3037 = vmatprep.subr.bf16.mxu0 %v1412
  %3038 = vmatpush1.bf16.msra.mxu0 %v1411
  %3039 = vmatprep.subr.bf16.mxu0 %v1414
  %3040 = vmatpush1.bf16.msra.mxu0 %v1413
  %3041 = vmatprep.subr.bf16.mxu0 %v1416
  %3042 = vmatpush1.bf16.msra.mxu0 %v1415
  %3043 = vmatprep.subr.bf16.mxu0 %v1418
  %3044 = vmatpush1.bf16.msra.mxu0 %v1417
  %3045 = vmatprep.subr.bf16.mxu0 %v1420
  %3046 = vmatpush1.bf16.msra.mxu0 %v1419
  %3047 = vmatprep.subr.bf16.mxu0 %v1422
  %3048 = vmatpush1.bf16.msra.mxu0 %v1421
  %3049 = vmatprep.subr.bf16.mxu0 %v1424
  %3050 = vmatpush1.bf16.msra.mxu0 %v1423
  %3051 = vmatprep.subr.bf16.mxu0 %v1426
  %3052 = vmatpush1.bf16.msra.mxu0 %v1425
  %3053 = vmatprep.mubr.bf16.mxu0 %v2845
  %3054 = vmatmul.mubr.bf16.gmra.mrb[0].mxu0 %v2831
  %v3055 = vpop.f32.mrb[0].mxu0
  %v3056 = vadd.f32 %v3015, %v3055
  %v3057 = vpop.f32.mrb[0].mxu0
  %v3058 = vadd.f32 %v3017, %v3057
  %v3059 = vpop.f32.mrb[0].mxu0
  %v3060 = vpop.f32.mrb[0].mxu0
  %3061 = vdwg.mxu0
  %3062 = vmatprep.subr.bf16.mxu0 %v1428
  %3063 = vmatpush1.bf16.msra.mxu0 %v1427
  %3064 = vmatprep.subr.bf16.mxu0 %v1430
  %3065 = vmatpush1.bf16.msra.mxu0 %v1429
  %3066 = vmatprep.subr.bf16.mxu0 %v1432
  %3067 = vmatpush1.bf16.msra.mxu0 %v1431
  %3068 = vmatprep.subr.bf16.mxu0 %v1434
  %3069 = vmatpush1.bf16.msra.mxu0 %v1433
  %3070 = vmatprep.subr.bf16.mxu0 %v1436
  %3071 = vmatpush1.bf16.msra.mxu0 %v1435
  %3072 = vmatprep.subr.bf16.mxu0 %v1438
  %3073 = vmatpush1.bf16.msra.mxu0 %v1437
  %3074 = vmatprep.subr.bf16.mxu0 %v1440
  %3075 = vmatpush1.bf16.msra.mxu0 %v1439
  %3076 = vmatprep.subr.bf16.mxu0 %v1442
  %3077 = vmatpush1.bf16.msra.mxu0 %v1441
  %3078 = vmatprep.subr.bf16.mxu0 %v1444
  %3079 = vmatpush1.bf16.msra.mxu0 %v1443
  %3080 = vmatprep.subr.bf16.mxu0 %v1446
  %3081 = vmatpush1.bf16.msra.mxu0 %v1445
  %3082 = vmatprep.subr.bf16.mxu0 %v1448
  %3083 = vmatpush1.bf16.msra.mxu0 %v1447
  %3084 = vmatprep.subr.bf16.mxu0 %v1450
  %3085 = vmatpush1.bf16.msra.mxu0 %v1449
  %3086 = vmatprep.subr.bf16.mxu0 %v1452
  %3087 = vmatpush1.bf16.msra.mxu0 %v1451
  %3088 = vmatprep.subr.bf16.mxu0 %v1454
  %3089 = vmatpush1.bf16.msra.mxu0 %v1453
  %3090 = vmatprep.subr.bf16.mxu0 %v1456
  %3091 = vmatpush1.bf16.msra.mxu0 %v1455
  %3092 = vmatprep.subr.bf16.mxu0 %v1458
  %3093 = vmatpush1.bf16.msra.mxu0 %v1457
  %3094 = vmatprep.mubr.bf16.mxu0 %v2849
  %3095 = vmatmul.mubr.bf16.gmra.mrb[0].mxu0 %v2847
  %v3096 = vpop.f32.mrb[0].mxu0
  %v3097 = vadd.f32 %v3056, %v3096
  %v3098 = vpop.f32.mrb[0].mxu0
  %v3099 = vadd.f32 %v3058, %v3098
  %v3100 = vpop.f32.mrb[0].mxu0
  %v3101 = vpop.f32.mrb[0].mxu0
  %3102 = vdwg.mxu0
  %3103 = vmatprep.subr.bf16.mxu0 %v1460
  %3104 = vmatpush1.bf16.msra.mxu0 %v1459
  %3105 = vmatprep.subr.bf16.mxu0 %v1462
  %3106 = vmatpush1.bf16.msra.mxu0 %v1461
  %3107 = vmatprep.subr.bf16.mxu0 %v1464
  %3108 = vmatpush1.bf16.msra.mxu0 %v1463
  %3109 = vmatprep.subr.bf16.mxu0 %v1466
  %3110 = vmatpush1.bf16.msra.mxu0 %v1465
  %3111 = vmatprep.subr.bf16.mxu0 %v1468
  %3112 = vmatpush1.bf16.msra.mxu0 %v1467
  %3113 = vmatprep.subr.bf16.mxu0 %v1470
  %3114 = vmatpush1.bf16.msra.mxu0 %v1469
  %3115 = vmatprep.subr.bf16.mxu0 %v1472
  %3116 = vmatpush1.bf16.msra.mxu0 %v1471
  %3117 = vmatprep.subr.bf16.mxu0 %v1474
  %3118 = vmatpush1.bf16.msra.mxu0 %v1473
  %3119 = vmatprep.subr.bf16.mxu0 %v1476
  %3120 = vmatpush1.bf16.msra.mxu0 %v1475
  %3121 = vmatprep.subr.bf16.mxu0 %v1478
  %3122 = vmatpush1.bf16.msra.mxu0 %v1477
  %3123 = vmatprep.subr.bf16.mxu0 %v1480
  %3124 = vmatpush1.bf16.msra.mxu0 %v1479
  %3125 = vmatprep.subr.bf16.mxu0 %v1482
  %3126 = vmatpush1.bf16.msra.mxu0 %v1481
  %3127 = vmatprep.subr.bf16.mxu0 %v1484
  %3128 = vmatpush1.bf16.msra.mxu0 %v1483
  %3129 = vmatprep.subr.bf16.mxu0 %v1486
  %3130 = vmatpush1.bf16.msra.mxu0 %v1485
  %3131 = vmatprep.subr.bf16.mxu0 %v1488
  %3132 = vmatpush1.bf16.msra.mxu0 %v1487
  %3133 = vmatprep.subr.bf16.mxu0 %v1490
  %3134 = vmatpush1.bf16.msra.mxu0 %v1489
  %3135 = vmatprep.mubr.bf16.mxu0 %v2887
  %3136 = vmatmul.mubr.bf16.gmra.mrb[0].mxu0 %v2873
  %v3137 = vpop.f32.mrb[0].mxu0
  %v3138 = vadd.f32 %v3097, %v3137
  %v3139 = vpop.f32.mrb[0].mxu0
  %v3140 = vadd.f32 %v3099, %v3139
  %v3141 = vpop.f32.mrb[0].mxu0
  %v3142 = vpop.f32.mrb[0].mxu0
  %3143 = vdwg.mxu0
  %3144 = vmatprep.subr.bf16.mxu0 %v1492
  %3145 = vmatpush1.bf16.msra.mxu0 %v1491
  %3146 = vmatprep.subr.bf16.mxu0 %v1494
  %3147 = vmatpush1.bf16.msra.mxu0 %v1493
  %3148 = vmatprep.subr.bf16.mxu0 %v1496
  %3149 = vmatpush1.bf16.msra.mxu0 %v1495
  %3150 = vmatprep.subr.bf16.mxu0 %v1498
  %3151 = vmatpush1.bf16.msra.mxu0 %v1497
  %3152 = vmatprep.subr.bf16.mxu0 %v1500
  %3153 = vmatpush1.bf16.msra.mxu0 %v1499
  %3154 = vmatprep.subr.bf16.mxu0 %v1502
  %3155 = vmatpush1.bf16.msra.mxu0 %v1501
  %3156 = vmatprep.subr.bf16.mxu0 %v1504
  %3157 = vmatpush1.bf16.msra.mxu0 %v1503
  %3158 = vmatprep.subr.bf16.mxu0 %v1506
  %3159 = vmatpush1.bf16.msra.mxu0 %v1505
  %3160 = vmatprep.subr.bf16.mxu0 %v1508
  %3161 = vmatpush1.bf16.msra.mxu0 %v1507
  %3162 = vmatprep.subr.bf16.mxu0 %v1510
  %3163 = vmatpush1.bf16.msra.mxu0 %v1509
  %3164 = vmatprep.subr.bf16.mxu0 %v1512
  %3165 = vmatpush1.bf16.msra.mxu0 %v1511
  %3166 = vmatprep.subr.bf16.mxu0 %v1514
  %3167 = vmatpush1.bf16.msra.mxu0 %v1513
  %3168 = vmatprep.subr.bf16.mxu0 %v1516
  %3169 = vmatpush1.bf16.msra.mxu0 %v1515
  %3170 = vmatprep.subr.bf16.mxu0 %v1518
  %3171 = vmatpush1.bf16.msra.mxu0 %v1517
  %3172 = vmatprep.subr.bf16.mxu0 %v1520
  %3173 = vmatpush1.bf16.msra.mxu0 %v1519
  %3174 = vmatprep.subr.bf16.mxu0 %v1522
  %3175 = vmatpush1.bf16.msra.mxu0 %v1521
  %3176 = vmatprep.mubr.bf16.mxu0 %v2897
  %3177 = vmatmul.mubr.bf16.gmra.mrb[0].mxu0 %v2895
  %v3178 = vpop.f32.mrb[0].mxu0
  %v3179 = vadd.f32 %v3138, %v3178
  %v3180 = vpop.f32.mrb[0].mxu0
  %v3181 = vadd.f32 %v3140, %v3180
  %v3182 = vpop.f32.mrb[0].mxu0
  %v3183 = vpop.f32.mrb[0].mxu0
  %3184 = vdwg.mxu0
  %3185 = vmatprep.subr.bf16.mxu0 %v1524
  %3186 = vmatpush1.bf16.msra.mxu0 %v1523
  %3187 = vmatprep.subr.bf16.mxu0 %v1526
  %3188 = vmatpush1.bf16.msra.mxu0 %v1525
  %3189 = vmatprep.subr.bf16.mxu0 %v1528
  %3190 = vmatpush1.bf16.msra.mxu0 %v1527
  %3191 = vmatprep.subr.bf16.mxu0 %v1530
  %3192 = vmatpush1.bf16.msra.mxu0 %v1529
  %3193 = vmatprep.subr.bf16.mxu0 %v1532
  %3194 = vmatpush1.bf16.msra.mxu0 %v1531
  %3195 = vmatprep.subr.bf16.mxu0 %v1534
  %3196 = vmatpush1.bf16.msra.mxu0 %v1533
  %3197 = vmatprep.subr.bf16.mxu0 %v1536
  %3198 = vmatpush1.bf16.msra.mxu0 %v1535
  %3199 = vmatprep.subr.bf16.mxu0 %v1538
  %3200 = vmatpush1.bf16.msra.mxu0 %v1537
  %3201 = vmatprep.subr.bf16.mxu0 %v1540
  %3202 = vmatpush1.bf16.msra.mxu0 %v1539
  %3203 = vmatprep.subr.bf16.mxu0 %v1542
  %3204 = vmatpush1.bf16.msra.mxu0 %v1541
  %3205 = vmatprep.subr.bf16.mxu0 %v1544
  %3206 = vmatpush1.bf16.msra.mxu0 %v1543
  %3207 = vmatprep.subr.bf16.mxu0 %v1546
  %3208 = vmatpush1.bf16.msra.mxu0 %v1545
  %3209 = vmatprep.subr.bf16.mxu0 %v1548
  %3210 = vmatpush1.bf16.msra.mxu0 %v1547
  %3211 = vmatprep.subr.bf16.mxu0 %v1550
  %3212 = vmatpush1.bf16.msra.mxu0 %v1549
  %3213 = vmatprep.subr.bf16.mxu0 %v1552
  %3214 = vmatpush1.bf16.msra.mxu0 %v1551
  %3215 = vmatprep.subr.bf16.mxu0 %v1554
  %3216 = vmatpush1.bf16.msra.mxu0 %v1553
  %3217 = vmatprep.mubr.bf16.mxu0 %v2894
  %3218 = vmatmul.mubr.bf16.gmra.mrb[0].mxu0 %v2880
  %v3219 = vpop.f32.mrb[0].mxu0
  %v3220 = vadd.f32 %v3179, %v3219
  %v3221 = vpop.f32.mrb[0].mxu0
  %v3222 = vadd.f32 %v3181, %v3221
  %v3223 = vpop.f32.mrb[0].mxu0
  %v3224 = vpop.f32.mrb[0].mxu0
  %3225 = vdwg.mxu0
  %3226 = vmatprep.subr.bf16.mxu0 %v1556
  %3227 = vmatpush1.bf16.msra.mxu0 %v1555
  %3228 = vmatprep.subr.bf16.mxu0 %v1558
  %3229 = vmatpush1.bf16.msra.mxu0 %v1557
  %3230 = vmatprep.subr.bf16.mxu0 %v1560
  %3231 = vmatpush1.bf16.msra.mxu0 %v1559
  %3232 = vmatprep.subr.bf16.mxu0 %v1562
  %3233 = vmatpush1.bf16.msra.mxu0 %v1561
  %3234 = vmatprep.subr.bf16.mxu0 %v1564
  %3235 = vmatpush1.bf16.msra.mxu0 %v1563
  %3236 = vmatprep.subr.bf16.mxu0 %v1566
  %3237 = vmatpush1.bf16.msra.mxu0 %v1565
  %3238 = vmatprep.subr.bf16.mxu0 %v1568
  %3239 = vmatpush1.bf16.msra.mxu0 %v1567
  %3240 = vmatprep.subr.bf16.mxu0 %v1570
  %3241 = vmatpush1.bf16.msra.mxu0 %v1569
  %3242 = vmatprep.subr.bf16.mxu0 %v1572
  %3243 = vmatpush1.bf16.msra.mxu0 %v1571
  %3244 = vmatprep.subr.bf16.mxu0 %v1574
  %3245 = vmatpush1.bf16.msra.mxu0 %v1573
  %3246 = vmatprep.subr.bf16.mxu0 %v1576
  %3247 = vmatpush1.bf16.msra.mxu0 %v1575
  %3248 = vmatprep.subr.bf16.mxu0 %v1578
  %3249 = vmatpush1.bf16.msra.mxu0 %v1577
  %3250 = vmatprep.subr.bf16.mxu0 %v1580
  %3251 = vmatpush1.bf16.msra.mxu0 %v1579
  %3252 = vmatprep.subr.bf16.mxu0 %v1582
  %3253 = vmatpush1.bf16.msra.mxu0 %v1581
  %3254 = vmatprep.subr.bf16.mxu0 %v1584
  %3255 = vmatpush1.bf16.msra.mxu0 %v1583
  %3256 = vmatprep.subr.bf16.mxu0 %v1586
  %3257 = vmatpush1.bf16.msra.mxu0 %v1585
  %3258 = vmatprep.mubr.bf16.mxu0 %v2898
  %3259 = vmatmul.mubr.bf16.gmra.mrb[0].mxu0 %v2896
  %v3260 = vpop.f32.mrb[0].mxu0
  %v3261 = vadd.f32 %v3220, %v3260
  %v3262 = vpop.f32.mrb[0].mxu0
  %v3263 = vadd.f32 %v3222, %v3262
  %v3264 = vpop.f32.mrb[0].mxu0
  %v3265 = vpop.f32.mrb[0].mxu0
  %3266 = vdwg.mxu0
  %3267 = vmatprep.subr.bf16.mxu0 %v1588
  %3268 = vmatpush1.bf16.msra.mxu0 %v1587
  %3269 = vmatprep.subr.bf16.mxu0 %v1590
  %3270 = vmatpush1.bf16.msra.mxu0 %v1589
  %3271 = vmatprep.subr.bf16.mxu0 %v1592
  %3272 = vmatpush1.bf16.msra.mxu0 %v1591
  %3273 = vmatprep.subr.bf16.mxu0 %v1594
  %3274 = vmatpush1.bf16.msra.mxu0 %v1593
  %3275 = vmatprep.subr.bf16.mxu0 %v1596
  %3276 = vmatpush1.bf16.msra.mxu0 %v1595
  %3277 = vmatprep.subr.bf16.mxu0 %v1598
  %3278 = vmatpush1.bf16.msra.mxu0 %v1597
  %3279 = vmatprep.subr.bf16.mxu0 %v1600
  %3280 = vmatpush1.bf16.msra.mxu0 %v1599
  %3281 = vmatprep.subr.bf16.mxu0 %v1602
  %3282 = vmatpush1.bf16.msra.mxu0 %v1601
  %3283 = vmatprep.subr.bf16.mxu0 %v1604
  %3284 = vmatpush1.bf16.msra.mxu0 %v1603
  %3285 = vmatprep.subr.bf16.mxu0 %v1606
  %3286 = vmatpush1.bf16.msra.mxu0 %v1605
  %3287 = vmatprep.subr.bf16.mxu0 %v1608
  %3288 = vmatpush1.bf16.msra.mxu0 %v1607
  %3289 = vmatprep.subr.bf16.mxu0 %v1610
  %3290 = vmatpush1.bf16.msra.mxu0 %v1609
  %3291 = vmatprep.subr.bf16.mxu0 %v1612
  %3292 = vmatpush1.bf16.msra.mxu0 %v1611
  %3293 = vmatprep.subr.bf16.mxu0 %v1614
  %3294 = vmatpush1.bf16.msra.mxu0 %v1613
  %3295 = vmatprep.subr.bf16.mxu0 %v1616
  %3296 = vmatpush1.bf16.msra.mxu0 %v1615
  %3297 = vmatprep.subr.bf16.mxu0 %v1618
  %3298 = vmatpush1.bf16.msra.mxu0 %v1617
  %3299 = vmatprep.mubr.bf16.mxu0 %v2920
  %3300 = vmatmul.mubr.bf16.gmra.mrb[0].mxu0 %v2913
  %v3301 = vpop.f32.mrb[0].mxu0
  %v3302 = vadd.f32 %v3261, %v3301
  %v3303 = vpop.f32.mrb[0].mxu0
  %v3304 = vadd.f32 %v3263, %v3303
  %v3305 = vpop.f32.mrb[0].mxu0
  %v3306 = vpop.f32.mrb[0].mxu0
  %3307 = vdwg.mxu0
  %v3308 = vmax.f32 %v3302, 0.0
  %v3309 = vmax.f32 %v3304, 0.0
  %v3310 = vld [vmem:[%s3] sm:$0xff]
  %v3311 = vld [vmem:[%s3 + $0x8] sm:$0xff]
  %v3312 = vld [vmem:[%s3 + $0x10] sm:$0x3]
  %v3316 = vcombine.high %v3310, %v3310
  %v3318 = vunpack.c.l.s4 1966171168
  %v3319 = vunpack.c.0.s8 %v3318
  %v3320 = vlaneseq
  %v3321 = vshrl.u32 %v3320, 7
  %v3322 = vsub.s32 %v3319, %v3321
  %v3323 = vrot.slane %v3310, %v3322
  %v3325 = vunpack.c.l.s4 1966171168
  %v3326 = vunpack.c.0.s8 %v3325
  %v3327 = vlaneseq
  %v3328 = vshrl.u32 %v3327, 7
  %v3329 = vsub.s32 %v3326, %v3328
  %v3330 = vrot.slane %v3316, %v3329
  %v3331 = vcombine.high %v3323, %v3323
  %v3332 = vcombine.high %v3330, %v3330
  %v3334 = vunpack.c.l.s4 1966171168
  %v3335 = vunpack.c.0.s8 %v3334
  %v3336 = vlaneseq
  %v3337 = vshrl.u32 %v3336, 7
  %v3338 = vsub.s32 %v3335, %v3337
  %v3339 = vrot.slane %v3323, %v3338
  %v3341 = vunpack.c.l.s4 1966171168
  %v3342 = vunpack.c.0.s8 %v3341
  %v3343 = vlaneseq
  %v3344 = vshrl.u32 %v3343, 7
  %v3345 = vsub.s32 %v3342, %v3344
  %v3346 = vrot.slane %v3330, %v3345
  %v3348 = vunpack.c.l.s4 1966171168
  %v3349 = vunpack.c.0.s8 %v3348
  %v3350 = vlaneseq
  %v3351 = vshrl.u32 %v3350, 7
  %v3352 = vsub.s32 %v3349, %v3351
  %v3353 = vrot.slane %v3331, %v3352
  %v3355 = vunpack.c.l.s4 1966171168
  %v3356 = vunpack.c.0.s8 %v3355
  %v3357 = vlaneseq
  %v3358 = vshrl.u32 %v3357, 7
  %v3359 = vsub.s32 %v3356, %v3358
  %v3360 = vrot.slane %v3332, %v3359
  %v3361 = vcombine.high %v3339, %v3339
  %v3362 = vcombine.high %v3346, %v3346
  %v3363 = vcombine.high %v3353, %v3353
  %v3364 = vcombine.high %v3360, %v3360
  %v3365 = vcombine.high %v3311, %v3311
  %v3367 = vunpack.c.l.s4 1966171168
  %v3368 = vunpack.c.0.s8 %v3367
  %v3369 = vlaneseq
  %v3370 = vshrl.u32 %v3369, 7
  %v3371 = vsub.s32 %v3368, %v3370
  %v3372 = vrot.slane %v3311, %v3371
  %v3374 = vunpack.c.l.s4 1966171168
  %v3375 = vunpack.c.0.s8 %v3374
  %v3376 = vlaneseq
  %v3377 = vshrl.u32 %v3376, 7
  %v3378 = vsub.s32 %v3375, %v3377
  %v3379 = vrot.slane %v3365, %v3378
  %v3380 = vcombine.high %v3372, %v3372
  %v3381 = vcombine.high %v3379, %v3379
  %v3383 = vunpack.c.l.s4 1966171168
  %v3384 = vunpack.c.0.s8 %v3383
  %v3385 = vlaneseq
  %v3386 = vshrl.u32 %v3385, 7
  %v3387 = vsub.s32 %v3384, %v3386
  %v3388 = vrot.slane %v3372, %v3387
  %v3390 = vunpack.c.l.s4 1966171168
  %v3391 = vunpack.c.0.s8 %v3390
  %v3392 = vlaneseq
  %v3393 = vshrl.u32 %v3392, 7
  %v3394 = vsub.s32 %v3391, %v3393
  %v3395 = vrot.slane %v3379, %v3394
  %v3397 = vunpack.c.l.s4 1966171168
  %v3398 = vunpack.c.0.s8 %v3397
  %v3399 = vlaneseq
  %v3400 = vshrl.u32 %v3399, 7
  %v3401 = vsub.s32 %v3398, %v3400
  %v3402 = vrot.slane %v3380, %v3401
  %v3404 = vunpack.c.l.s4 1966171168
  %v3405 = vunpack.c.0.s8 %v3404
  %v3406 = vlaneseq
  %v3407 = vshrl.u32 %v3406, 7
  %v3408 = vsub.s32 %v3405, %v3407
  %v3409 = vrot.slane %v3381, %v3408
  %v3410 = vcombine.high %v3388, %v3388
  %v3411 = vcombine.high %v3395, %v3395
  %v3412 = vcombine.high %v3402, %v3402
  %v3413 = vcombine.high %v3409, %v3409
  %v3415 = vunpack.c.l.s4 1966171168
  %v3416 = vunpack.c.0.s8 %v3415
  %v3417 = vlaneseq
  %v3418 = vshrl.u32 %v3417, 7
  %v3419 = vsub.s32 %v3416, %v3418
  %v3420 = vrot.slane %v3312, %v3419
  %v3421 = vcombine.high %v3420, %v3420
  %v3423 = vunpack.c.l.s4 1966171168
  %v3424 = vunpack.c.0.s8 %v3423
  %v3425 = vlaneseq
  %v3426 = vshrl.u32 %v3425, 7
  %v3427 = vsub.s32 %v3424, %v3426
  %v3428 = vrot.slane %v3420, %v3427
  %v3430 = vunpack.c.l.s4 1966171168
  %v3431 = vunpack.c.0.s8 %v3430
  %v3432 = vlaneseq
  %v3433 = vshrl.u32 %v3432, 7
  %v3434 = vsub.s32 %v3431, %v3433
  %v3435 = vrot.slane %v3421, %v3434
  %3454 = vmatprep.subr.bf16.mxu0 %v1332
  %3455 = vmatpush1.bf16.msra.mxu0 %v1331
  %3456 = vmatprep.subr.bf16.mxu0 %v1334
  %3457 = vmatpush1.bf16.msra.mxu0 %v1333
  %3458 = vmatprep.subr.bf16.mxu0 %v1336
  %3459 = vmatpush1.bf16.msra.mxu0 %v1335
  %3460 = vmatprep.subr.bf16.mxu0 %v1338
  %3461 = vmatpush1.bf16.msra.mxu0 %v1337
  %3462 = vmatprep.subr.bf16.mxu0 %v1340
  %3463 = vmatpush1.bf16.msra.mxu0 %v1339
  %3464 = vmatprep.subr.bf16.mxu0 %v1342
  %3465 = vmatpush1.bf16.msra.mxu0 %v1341
  %3466 = vmatprep.subr.bf16.mxu0 %v1344
  %3467 = vmatpush1.bf16.msra.mxu0 %v1343
  %3468 = vmatprep.subr.bf16.mxu0 %v1346
  %3469 = vmatpush1.bf16.msra.mxu0 %v1345
  %3470 = vmatprep.subr.bf16.mxu0 %v1348
  %3471 = vmatpush1.bf16.msra.mxu0 %v1347
  %3472 = vmatprep.subr.bf16.mxu0 %v1350
  %3473 = vmatpush1.bf16.msra.mxu0 %v1349
  %3474 = vmatprep.subr.bf16.mxu0 %v1352
  %3475 = vmatpush1.bf16.msra.mxu0 %v1351
  %3476 = vmatprep.subr.bf16.mxu0 %v1354
  %3477 = vmatpush1.bf16.msra.mxu0 %v1353
  %3478 = vmatprep.subr.bf16.mxu0 %v1356
  %3479 = vmatpush1.bf16.msra.mxu0 %v1355
  %3480 = vmatprep.subr.bf16.mxu0 %v1358
  %3481 = vmatpush1.bf16.msra.mxu0 %v1357
  %3482 = vmatprep.subr.bf16.mxu0 %v1360
  %3483 = vmatpush1.bf16.msra.mxu0 %v1359
  %3484 = vmatprep.subr.bf16.mxu0 %v1362
  %3485 = vmatpush1.bf16.msra.mxu0 %v1361
  %3486 = vmatprep.mubr.bf16.mxu0 %v3353
  %3487 = vmatmul.mubr.bf16.gmra.mrb[0].mxu0 %v3339
  %v3488 = vpop.f32.mrb[0].mxu0
  %v3489 = vadd.f32 %v319, %v3488
  %v3490 = vpop.f32.mrb[0].mxu0
  %v3491 = vadd.f32 %v323, %v3490
  %v3492 = vpop.f32.mrb[0].mxu0
  %v3493 = vpop.f32.mrb[0].mxu0
  %3494 = vdwg.mxu0
  %3495 = vmatprep.subr.bf16.mxu0 %v1364
  %3496 = vmatpush1.bf16.msra.mxu0 %v1363
  %3497 = vmatprep.subr.bf16.mxu0 %v1366
  %3498 = vmatpush1.bf16.msra.mxu0 %v1365
  %3499 = vmatprep.subr.bf16.mxu0 %v1368
  %3500 = vmatpush1.bf16.msra.mxu0 %v1367
  %3501 = vmatprep.subr.bf16.mxu0 %v1370
  %3502 = vmatpush1.bf16.msra.mxu0 %v1369
  %3503 = vmatprep.subr.bf16.mxu0 %v1372
  %3504 = vmatpush1.bf16.msra.mxu0 %v1371
  %3505 = vmatprep.subr.bf16.mxu0 %v1374
  %3506 = vmatpush1.bf16.msra.mxu0 %v1373
  %3507 = vmatprep.subr.bf16.mxu0 %v1376
  %3508 = vmatpush1.bf16.msra.mxu0 %v1375
  %3509 = vmatprep.subr.bf16.mxu0 %v1378
  %3510 = vmatpush1.bf16.msra.mxu0 %v1377
  %3511 = vmatprep.subr.bf16.mxu0 %v1380
  %3512 = vmatpush1.bf16.msra.mxu0 %v1379
  %3513 = vmatprep.subr.bf16.mxu0 %v1382
  %3514 = vmatpush1.bf16.msra.mxu0 %v1381
  %3515 = vmatprep.subr.bf16.mxu0 %v1384
  %3516 = vmatpush1.bf16.msra.mxu0 %v1383
  %3517 = vmatprep.subr.bf16.mxu0 %v1386
  %3518 = vmatpush1.bf16.msra.mxu0 %v1385
  %3519 = vmatprep.subr.bf16.mxu0 %v1388
  %3520 = vmatpush1.bf16.msra.mxu0 %v1387
  %3521 = vmatprep.subr.bf16.mxu0 %v1390
  %3522 = vmatpush1.bf16.msra.mxu0 %v1389
  %3523 = vmatprep.subr.bf16.mxu0 %v1392
  %3524 = vmatpush1.bf16.msra.mxu0 %v1391
  %3525 = vmatprep.subr.bf16.mxu0 %v1394
  %3526 = vmatpush1.bf16.msra.mxu0 %v1393
  %3527 = vmatprep.mubr.bf16.mxu0 %v3363
  %3528 = vmatmul.mubr.bf16.gmra.mrb[0].mxu0 %v3361
  %v3529 = vpop.f32.mrb[0].mxu0
  %v3530 = vadd.f32 %v3489, %v3529
  %v3531 = vpop.f32.mrb[0].mxu0
  %v3532 = vadd.f32 %v3491, %v3531
  %v3533 = vpop.f32.mrb[0].mxu0
  %v3534 = vpop.f32.mrb[0].mxu0
  %3535 = vdwg.mxu0
  %3536 = vmatprep.subr.bf16.mxu0 %v1396
  %3537 = vmatpush1.bf16.msra.mxu0 %v1395
  %3538 = vmatprep.subr.bf16.mxu0 %v1398
  %3539 = vmatpush1.bf16.msra.mxu0 %v1397
  %3540 = vmatprep.subr.bf16.mxu0 %v1400
  %3541 = vmatpush1.bf16.msra.mxu0 %v1399
  %3542 = vmatprep.subr.bf16.mxu0 %v1402
  %3543 = vmatpush1.bf16.msra.mxu0 %v1401
  %3544 = vmatprep.subr.bf16.mxu0 %v1404
  %3545 = vmatpush1.bf16.msra.mxu0 %v1403
  %3546 = vmatprep.subr.bf16.mxu0 %v1406
  %3547 = vmatpush1.bf16.msra.mxu0 %v1405
  %3548 = vmatprep.subr.bf16.mxu0 %v1408
  %3549 = vmatpush1.bf16.msra.mxu0 %v1407
  %3550 = vmatprep.subr.bf16.mxu0 %v1410
  %3551 = vmatpush1.bf16.msra.mxu0 %v1409
  %3552 = vmatprep.subr.bf16.mxu0 %v1412
  %3553 = vmatpush1.bf16.msra.mxu0 %v1411
  %3554 = vmatprep.subr.bf16.mxu0 %v1414
  %3555 = vmatpush1.bf16.msra.mxu0 %v1413
  %3556 = vmatprep.subr.bf16.mxu0 %v1416
  %3557 = vmatpush1.bf16.msra.mxu0 %v1415
  %3558 = vmatprep.subr.bf16.mxu0 %v1418
  %3559 = vmatpush1.bf16.msra.mxu0 %v1417
  %3560 = vmatprep.subr.bf16.mxu0 %v1420
  %3561 = vmatpush1.bf16.msra.mxu0 %v1419
  %3562 = vmatprep.subr.bf16.mxu0 %v1422
  %3563 = vmatpush1.bf16.msra.mxu0 %v1421
  %3564 = vmatprep.subr.bf16.mxu0 %v1424
  %3565 = vmatpush1.bf16.msra.mxu0 %v1423
  %3566 = vmatprep.subr.bf16.mxu0 %v1426
  %3567 = vmatpush1.bf16.msra.mxu0 %v1425
  %3568 = vmatprep.mubr.bf16.mxu0 %v3360
  %3569 = vmatmul.mubr.bf16.gmra.mrb[0].mxu0 %v3346
  %v3570 = vpop.f32.mrb[0].mxu0
  %v3571 = vadd.f32 %v3530, %v3570
  %v3572 = vpop.f32.mrb[0].mxu0
  %v3573 = vadd.f32 %v3532, %v3572
  %v3574 = vpop.f32.mrb[0].mxu0
  %v3575 = vpop.f32.mrb[0].mxu0
  %3576 = vdwg.mxu0
  %3577 = vmatprep.subr.bf16.mxu0 %v1428
  %3578 = vmatpush1.bf16.msra.mxu0 %v1427
  %3579 = vmatprep.subr.bf16.mxu0 %v1430
  %3580 = vmatpush1.bf16.msra.mxu0 %v1429
  %3581 = vmatprep.subr.bf16.mxu0 %v1432
  %3582 = vmatpush1.bf16.msra.mxu0 %v1431
  %3583 = vmatprep.subr.bf16.mxu0 %v1434
  %3584 = vmatpush1.bf16.msra.mxu0 %v1433
  %3585 = vmatprep.subr.bf16.mxu0 %v1436
  %3586 = vmatpush1.bf16.msra.mxu0 %v1435
  %3587 = vmatprep.subr.bf16.mxu0 %v1438
  %3588 = vmatpush1.bf16.msra.mxu0 %v1437
  %3589 = vmatprep.subr.bf16.mxu0 %v1440
  %3590 = vmatpush1.bf16.msra.mxu0 %v1439
  %3591 = vmatprep.subr.bf16.mxu0 %v1442
  %3592 = vmatpush1.bf16.msra.mxu0 %v1441
  %3593 = vmatprep.subr.bf16.mxu0 %v1444
  %3594 = vmatpush1.bf16.msra.mxu0 %v1443
  %3595 = vmatprep.subr.bf16.mxu0 %v1446
  %3596 = vmatpush1.bf16.msra.mxu0 %v1445
  %3597 = vmatprep.subr.bf16.mxu0 %v1448
  %3598 = vmatpush1.bf16.msra.mxu0 %v1447
  %3599 = vmatprep.subr.bf16.mxu0 %v1450
  %3600 = vmatpush1.bf16.msra.mxu0 %v1449
  %3601 = vmatprep.subr.bf16.mxu0 %v1452
  %3602 = vmatpush1.bf16.msra.mxu0 %v1451
  %3603 = vmatprep.subr.bf16.mxu0 %v1454
  %3604 = vmatpush1.bf16.msra.mxu0 %v1453
  %3605 = vmatprep.subr.bf16.mxu0 %v1456
  %3606 = vmatpush1.bf16.msra.mxu0 %v1455
  %3607 = vmatprep.subr.bf16.mxu0 %v1458
  %3608 = vmatpush1.bf16.msra.mxu0 %v1457
  %3609 = vmatprep.mubr.bf16.mxu0 %v3364
  %3610 = vmatmul.mubr.bf16.gmra.mrb[0].mxu0 %v3362
  %v3611 = vpop.f32.mrb[0].mxu0
  %v3612 = vadd.f32 %v3571, %v3611
  %v3613 = vpop.f32.mrb[0].mxu0
  %v3614 = vadd.f32 %v3573, %v3613
  %v3615 = vpop.f32.mrb[0].mxu0
  %v3616 = vpop.f32.mrb[0].mxu0
  %3617 = vdwg.mxu0
  %3618 = vmatprep.subr.bf16.mxu0 %v1460
  %3619 = vmatpush1.bf16.msra.mxu0 %v1459
  %3620 = vmatprep.subr.bf16.mxu0 %v1462
  %3621 = vmatpush1.bf16.msra.mxu0 %v1461
  %3622 = vmatprep.subr.bf16.mxu0 %v1464
  %3623 = vmatpush1.bf16.msra.mxu0 %v1463
  %3624 = vmatprep.subr.bf16.mxu0 %v1466
  %3625 = vmatpush1.bf16.msra.mxu0 %v1465
  %3626 = vmatprep.subr.bf16.mxu0 %v1468
  %3627 = vmatpush1.bf16.msra.mxu0 %v1467
  %3628 = vmatprep.subr.bf16.mxu0 %v1470
  %3629 = vmatpush1.bf16.msra.mxu0 %v1469
  %3630 = vmatprep.subr.bf16.mxu0 %v1472
  %3631 = vmatpush1.bf16.msra.mxu0 %v1471
  %3632 = vmatprep.subr.bf16.mxu0 %v1474
  %3633 = vmatpush1.bf16.msra.mxu0 %v1473
  %3634 = vmatprep.subr.bf16.mxu0 %v1476
  %3635 = vmatpush1.bf16.msra.mxu0 %v1475
  %3636 = vmatprep.subr.bf16.mxu0 %v1478
  %3637 = vmatpush1.bf16.msra.mxu0 %v1477
  %3638 = vmatprep.subr.bf16.mxu0 %v1480
  %3639 = vmatpush1.bf16.msra.mxu0 %v1479
  %3640 = vmatprep.subr.bf16.mxu0 %v1482
  %3641 = vmatpush1.bf16.msra.mxu0 %v1481
  %3642 = vmatprep.subr.bf16.mxu0 %v1484
  %3643 = vmatpush1.bf16.msra.mxu0 %v1483
  %3644 = vmatprep.subr.bf16.mxu0 %v1486
  %3645 = vmatpush1.bf16.msra.mxu0 %v1485
  %3646 = vmatprep.subr.bf16.mxu0 %v1488
  %3647 = vmatpush1.bf16.msra.mxu0 %v1487
  %3648 = vmatprep.subr.bf16.mxu0 %v1490
  %3649 = vmatpush1.bf16.msra.mxu0 %v1489
  %3650 = vmatprep.mubr.bf16.mxu0 %v3402
  %3651 = vmatmul.mubr.bf16.gmra.mrb[0].mxu0 %v3388
  %v3652 = vpop.f32.mrb[0].mxu0
  %v3653 = vadd.f32 %v3612, %v3652
  %v3654 = vpop.f32.mrb[0].mxu0
  %v3655 = vadd.f32 %v3614, %v3654
  %v3656 = vpop.f32.mrb[0].mxu0
  %v3657 = vpop.f32.mrb[0].mxu0
  %3658 = vdwg.mxu0
  %3659 = vmatprep.subr.bf16.mxu0 %v1492
  %3660 = vmatpush1.bf16.msra.mxu0 %v1491
  %3661 = vmatprep.subr.bf16.mxu0 %v1494
  %3662 = vmatpush1.bf16.msra.mxu0 %v1493
  %3663 = vmatprep.subr.bf16.mxu0 %v1496
  %3664 = vmatpush1.bf16.msra.mxu0 %v1495
  %3665 = vmatprep.subr.bf16.mxu0 %v1498
  %3666 = vmatpush1.bf16.msra.mxu0 %v1497
  %3667 = vmatprep.subr.bf16.mxu0 %v1500
  %3668 = vmatpush1.bf16.msra.mxu0 %v1499
  %3669 = vmatprep.subr.bf16.mxu0 %v1502
  %3670 = vmatpush1.bf16.msra.mxu0 %v1501
  %3671 = vmatprep.subr.bf16.mxu0 %v1504
  %3672 = vmatpush1.bf16.msra.mxu0 %v1503
  %3673 = vmatprep.subr.bf16.mxu0 %v1506
  %3674 = vmatpush1.bf16.msra.mxu0 %v1505
  %3675 = vmatprep.subr.bf16.mxu0 %v1508
  %3676 = vmatpush1.bf16.msra.mxu0 %v1507
  %3677 = vmatprep.subr.bf16.mxu0 %v1510
  %3678 = vmatpush1.bf16.msra.mxu0 %v1509
  %3679 = vmatprep.subr.bf16.mxu0 %v1512
  %3680 = vmatpush1.bf16.msra.mxu0 %v1511
  %3681 = vmatprep.subr.bf16.mxu0 %v1514
  %3682 = vmatpush1.bf16.msra.mxu0 %v1513
  %3683 = vmatprep.subr.bf16.mxu0 %v1516
  %3684 = vmatpush1.bf16.msra.mxu0 %v1515
  %3685 = vmatprep.subr.bf16.mxu0 %v1518
  %3686 = vmatpush1.bf16.msra.mxu0 %v1517
  %3687 = vmatprep.subr.bf16.mxu0 %v1520
  %3688 = vmatpush1.bf16.msra.mxu0 %v1519
  %3689 = vmatprep.subr.bf16.mxu0 %v1522
  %3690 = vmatpush1.bf16.msra.mxu0 %v1521
  %3691 = vmatprep.mubr.bf16.mxu0 %v3412
  %3692 = vmatmul.mubr.bf16.gmra.mrb[0].mxu0 %v3410
  %v3693 = vpop.f32.mrb[0].mxu0
  %v3694 = vadd.f32 %v3653, %v3693
  %v3695 = vpop.f32.mrb[0].mxu0
  %v3696 = vadd.f32 %v3655, %v3695
  %v3697 = vpop.f32.mrb[0].mxu0
  %v3698 = vpop.f32.mrb[0].mxu0
  %3699 = vdwg.mxu0
  %3700 = vmatprep.subr.bf16.mxu0 %v1524
  %3701 = vmatpush1.bf16.msra.mxu0 %v1523
  %3702 = vmatprep.subr.bf16.mxu0 %v1526
  %3703 = vmatpush1.bf16.msra.mxu0 %v1525
  %3704 = vmatprep.subr.bf16.mxu0 %v1528
  %3705 = vmatpush1.bf16.msra.mxu0 %v1527
  %3706 = vmatprep.subr.bf16.mxu0 %v1530
  %3707 = vmatpush1.bf16.msra.mxu0 %v1529
  %3708 = vmatprep.subr.bf16.mxu0 %v1532
  %3709 = vmatpush1.bf16.msra.mxu0 %v1531
  %3710 = vmatprep.subr.bf16.mxu0 %v1534
  %3711 = vmatpush1.bf16.msra.mxu0 %v1533
  %3712 = vmatprep.subr.bf16.mxu0 %v1536
  %3713 = vmatpush1.bf16.msra.mxu0 %v1535
  %3714 = vmatprep.subr.bf16.mxu0 %v1538
  %3715 = vmatpush1.bf16.msra.mxu0 %v1537
  %3716 = vmatprep.subr.bf16.mxu0 %v1540
  %3717 = vmatpush1.bf16.msra.mxu0 %v1539
  %3718 = vmatprep.subr.bf16.mxu0 %v1542
  %3719 = vmatpush1.bf16.msra.mxu0 %v1541
  %3720 = vmatprep.subr.bf16.mxu0 %v1544
  %3721 = vmatpush1.bf16.msra.mxu0 %v1543
  %3722 = vmatprep.subr.bf16.mxu0 %v1546
  %3723 = vmatpush1.bf16.msra.mxu0 %v1545
  %3724 = vmatprep.subr.bf16.mxu0 %v1548
  %3725 = vmatpush1.bf16.msra.mxu0 %v1547
  %3726 = vmatprep.subr.bf16.mxu0 %v1550
  %3727 = vmatpush1.bf16.msra.mxu0 %v1549
  %3728 = vmatprep.subr.bf16.mxu0 %v1552
  %3729 = vmatpush1.bf16.msra.mxu0 %v1551
  %3730 = vmatprep.subr.bf16.mxu0 %v1554
  %3731 = vmatpush1.bf16.msra.mxu0 %v1553
  %3732 = vmatprep.mubr.bf16.mxu0 %v3409
  %3733 = vmatmul.mubr.bf16.gmra.mrb[0].mxu0 %v3395
  %v3734 = vpop.f32.mrb[0].mxu0
  %v3735 = vadd.f32 %v3694, %v3734
  %v3736 = vpop.f32.mrb[0].mxu0
  %v3737 = vadd.f32 %v3696, %v3736
  %v3738 = vpop.f32.mrb[0].mxu0
  %v3739 = vpop.f32.mrb[0].mxu0
  %3740 = vdwg.mxu0
  %3741 = vmatprep.subr.bf16.mxu0 %v1556
  %3742 = vmatpush1.bf16.msra.mxu0 %v1555
  %3743 = vmatprep.subr.bf16.mxu0 %v1558
  %3744 = vmatpush1.bf16.msra.mxu0 %v1557
  %3745 = vmatprep.subr.bf16.mxu0 %v1560
  %3746 = vmatpush1.bf16.msra.mxu0 %v1559
  %3747 = vmatprep.subr.bf16.mxu0 %v1562
  %3748 = vmatpush1.bf16.msra.mxu0 %v1561
  %3749 = vmatprep.subr.bf16.mxu0 %v1564
  %3750 = vmatpush1.bf16.msra.mxu0 %v1563
  %3751 = vmatprep.subr.bf16.mxu0 %v1566
  %3752 = vmatpush1.bf16.msra.mxu0 %v1565
  %3753 = vmatprep.subr.bf16.mxu0 %v1568
  %3754 = vmatpush1.bf16.msra.mxu0 %v1567
  %3755 = vmatprep.subr.bf16.mxu0 %v1570
  %3756 = vmatpush1.bf16.msra.mxu0 %v1569
  %3757 = vmatprep.subr.bf16.mxu0 %v1572
  %3758 = vmatpush1.bf16.msra.mxu0 %v1571
  %3759 = vmatprep.subr.bf16.mxu0 %v1574
  %3760 = vmatpush1.bf16.msra.mxu0 %v1573
  %3761 = vmatprep.subr.bf16.mxu0 %v1576
  %3762 = vmatpush1.bf16.msra.mxu0 %v1575
  %3763 = vmatprep.subr.bf16.mxu0 %v1578
  %3764 = vmatpush1.bf16.msra.mxu0 %v1577
  %3765 = vmatprep.subr.bf16.mxu0 %v1580
  %3766 = vmatpush1.bf16.msra.mxu0 %v1579
  %3767 = vmatprep.subr.bf16.mxu0 %v1582
  %3768 = vmatpush1.bf16.msra.mxu0 %v1581
  %3769 = vmatprep.subr.bf16.mxu0 %v1584
  %3770 = vmatpush1.bf16.msra.mxu0 %v1583
  %3771 = vmatprep.subr.bf16.mxu0 %v1586
  %3772 = vmatpush1.bf16.msra.mxu0 %v1585
  %3773 = vmatprep.mubr.bf16.mxu0 %v3413
  %3774 = vmatmul.mubr.bf16.gmra.mrb[0].mxu0 %v3411
  %v3775 = vpop.f32.mrb[0].mxu0
  %v3776 = vadd.f32 %v3735, %v3775
  %v3777 = vpop.f32.mrb[0].mxu0
  %v3778 = vadd.f32 %v3737, %v3777
  %v3779 = vpop.f32.mrb[0].mxu0
  %v3780 = vpop.f32.mrb[0].mxu0
  %3781 = vdwg.mxu0
  %3782 = vmatprep.subr.bf16.mxu0 %v1588
  %3783 = vmatpush1.bf16.msra.mxu0 %v1587
  %3784 = vmatprep.subr.bf16.mxu0 %v1590
  %3785 = vmatpush1.bf16.msra.mxu0 %v1589
  %3786 = vmatprep.subr.bf16.mxu0 %v1592
  %3787 = vmatpush1.bf16.msra.mxu0 %v1591
  %3788 = vmatprep.subr.bf16.mxu0 %v1594
  %3789 = vmatpush1.bf16.msra.mxu0 %v1593
  %3790 = vmatprep.subr.bf16.mxu0 %v1596
  %3791 = vmatpush1.bf16.msra.mxu0 %v1595
  %3792 = vmatprep.subr.bf16.mxu0 %v1598
  %3793 = vmatpush1.bf16.msra.mxu0 %v1597
  %3794 = vmatprep.subr.bf16.mxu0 %v1600
  %3795 = vmatpush1.bf16.msra.mxu0 %v1599
  %3796 = vmatprep.subr.bf16.mxu0 %v1602
  %3797 = vmatpush1.bf16.msra.mxu0 %v1601
  %3798 = vmatprep.subr.bf16.mxu0 %v1604
  %3799 = vmatpush1.bf16.msra.mxu0 %v1603
  %3800 = vmatprep.subr.bf16.mxu0 %v1606
  %3801 = vmatpush1.bf16.msra.mxu0 %v1605
  %3802 = vmatprep.subr.bf16.mxu0 %v1608
  %3803 = vmatpush1.bf16.msra.mxu0 %v1607
  %3804 = vmatprep.subr.bf16.mxu0 %v1610
  %3805 = vmatpush1.bf16.msra.mxu0 %v1609
  %3806 = vmatprep.subr.bf16.mxu0 %v1612
  %3807 = vmatpush1.bf16.msra.mxu0 %v1611
  %3808 = vmatprep.subr.bf16.mxu0 %v1614
  %3809 = vmatpush1.bf16.msra.mxu0 %v1613
  %3810 = vmatprep.subr.bf16.mxu0 %v1616
  %3811 = vmatpush1.bf16.msra.mxu0 %v1615
  %3812 = vmatprep.subr.bf16.mxu0 %v1618
  %3813 = vmatpush1.bf16.msra.mxu0 %v1617
  %3814 = vmatprep.mubr.bf16.mxu0 %v3435
  %3815 = vmatmul.mubr.bf16.gmra.mrb[0].mxu0 %v3428
  %v3816 = vpop.f32.mrb[0].mxu0
  %v3817 = vadd.f32 %v3776, %v3816
  %v3818 = vpop.f32.mrb[0].mxu0
  %v3819 = vadd.f32 %v3778, %v3818
  %v3820 = vpop.f32.mrb[0].mxu0
  %v3821 = vpop.f32.mrb[0].mxu0
  %3822 = vdwg.mxu0
  %v3823 = vmax.f32 %v3817, 0.0
  %v3824 = vmax.f32 %v3819, 0.0
  %v3825 = vmax.f32 %v3308, %v3823
  %v3826 = vmax.f32 %v3309, %v3824
  %v3827 = vmax.f32 %v2793, %v3825
  %v3828 = vmax.f32 %v2794, %v3826
  %v3829 = vpack.c.bf16 %v3827, %v3827
  %v3830 = vpack.c.bf16 %v3828, %v3828
  %v3833 = vcombine.low %v3829, %v3830
  %v3835 = vunpack.c.l.s4 1966171168
  %v3836 = vunpack.c.0.s8 %v3835
  %v3837 = vlaneseq
  %v3838 = vshrl.u32 %v3837, 7
  %v3839 = vsub.s32 %v3836, %v3838
  %v3840 = vrot.slane %v3833, %v3839
  %v3842 = vunpack.c.l.s4 1966171168
  %v3843 = vunpack.c.0.s8 %v3842
  %v3844 = vlaneseq
  %v3845 = vshrl.u32 %v3844, 7
  %v3846 = vsub.s32 %v3843, %v3845
  %v3847 = vrot.slane %v3840, %v3846
  %3849 = vst [vmem:[%s6] sm:$0x3] %v3847
  // Predicated region
  $region26: #{multi_model_forward.8} parent=0 // pred_check
    _
  $region27: #{multi_model_forward.8} parent=0 // pred_check_branch
    %3851 = sbr.rel (0) target = $region29
  $region28: #{multi_model_forward.8} parent=0 // pred_region
    _
  $region29: #{multi_model_forward.8} parent=0 // pred_fallthru
    _
  // Predicated region
  $region30: #{multi_model_forward.8} parent=0 // pred_check
    _
  $region31: #{multi_model_forward.8} parent=0 // pred_check_branch
    %3853 = sbr.rel (0) target = $region33
  $region32: #{multi_model_forward.8} parent=0 // pred_region
    _
  $region33: #{multi_model_forward.8} parent=0 // pred_fallthru
    _

</llo_original>
